<compile_context>
chip_gen: v5e
topology: v5e:2x2
jax: 0.10.0
libtpu: 0.0.40
codegen_flags: <defaults>
</compile_context>

<pallas_src>
import functools

import jax
import jax.numpy as jnp
from jax.experimental import pallas as pl
from jax.experimental.pallas import tpu as pltpu


# ----------------------------- Pallas kernels -------------------------------

def _conv_bn_stats_kernel(xp_ref, w_ref, y_ref, stat_ref, *, H, W, Cin, Cout):
    """conv3x3(pad=1, no bias) on one image + accumulate BN batch statistics.

    xp_ref:   [1, H+2, W+2, Cin]  padded input image (VMEM)
    w_ref:    [9*Cin, Cout]       weights, row order (kh, kw, cin)
    y_ref:    [1, H*W, Cout]      conv output (pre-BN)
    stat_ref: [2, Cout]           rows: (sum, sum-of-squares), accumulated over grid
    """
    n = pl.program_id(0)

    acc = jnp.zeros((H * W, Cout), jnp.float32)
    for kh in range(3):                       # static 9-tap unroll, no HBM im2col
        for kw in range(3):
            a = xp_ref[0, kh:kh + H, kw:kw + W, :].reshape(H * W, Cin)
            wk = w_ref[(kh * 3 + kw) * Cin:(kh * 3 + kw + 1) * Cin, :]
            acc = acc + jnp.dot(a, wk, preferred_element_type=jnp.float32)

    y_ref[0] = acc

    s = jnp.sum(acc, axis=0, keepdims=True)         # [1, Cout]
    ss = jnp.sum(acc * acc, axis=0, keepdims=True)  # [1, Cout]

    @pl.when(n == 0)
    def _():
        stat_ref[...] = jnp.zeros_like(stat_ref)

    stat_ref[...] += jnp.concatenate([s, ss], axis=0)


def _bn_relu_pool_kernel(y_ref, stat_ref, g_ref, b_ref, o_ref, *, count, H, W, C):
    """BatchNorm (biased batch stats, eps=1e-5) + ReLU + 2x2 max-pool on one image.

    y_ref:    [1, H*W, C]   conv output
    stat_ref: [2, C]        (sum, sumsq) over the full batch
    g_ref:    [1, C]  b_ref: [1, C]
    o_ref:    [1, (H//2)*(W//2), C]
    """
    Ho, Wo = H // 2, W // 2
    P, Q = Ho * Wo, H * W
    inv = 1.0 / count

    mean = stat_ref[0:1, :] * inv
    var = stat_ref[1:2, :] * inv - mean * mean
    scale = g_ref[...] * jax.lax.rsqrt(var + 1e-5)
    shift = b_ref[...] - mean * scale

    z = jnp.maximum(y_ref[0] * scale + shift, 0.0)      # [Q, C]

    # 2x2 max-pool via 4 tap-selection matmuls (stride-free / reshape-free).
    p_idx = jax.lax.broadcasted_iota(jnp.int32, (P, Q), 0)
    q_idx = jax.lax.broadcasted_iota(jnp.int32, (P, Q), 1)
    s_bits = Wo.bit_length() - 1            # Wo is a power of two
    ho = p_idx >> s_bits
    wo = p_idx & (Wo - 1)
    base = 2 * ho * W + 2 * wo

    pooled = None
    for di in range(2):
        for dj in range(2):
            sel = (q_idx == base + di * W + dj).astype(jnp.float32)   # [P, Q]
            tap = jnp.dot(sel, z, preferred_element_type=jnp.float32)  # [P, C]
            pooled = tap if pooled is None else jnp.maximum(pooled, tap)

    o_ref[0] = pooled


def _dist_linear_kernel(x_ref, v_ref, g_ref, s_ref, o_ref):
    """distLinear: scale * (x/(||x||+1e-5)) @ (g * v/||v||)^T."""
    x = x_ref[...]
    x_n = x / (jnp.sqrt(jnp.sum(x * x, axis=1, keepdims=True)) + 1e-5)
    v = v_ref[...]
    w = v * (g_ref[...] / jnp.sqrt(jnp.sum(v * v, axis=1, keepdims=True)))
    cos = jax.lax.dot_general(
        x_n, w, (((1,), (1,)), ((), ())), preferred_element_type=jnp.float32
    )
    o_ref[...] = cos * s_ref[...]          # scale passed as a (1,1) input, not captured


# ------------------------------ layer wrappers -------------------------------

def conv_block(x_nhwc, blk):
    """One Conv4 block: conv3x3(pad=1) -> BN(batch stats) -> ReLU -> maxpool2x2."""
    N, H, W, Cin = x_nhwc.shape
    w_flat = blk["w"]
    Cout = w_flat.shape[1]
    Hp, Wp = H + 2, W + 2
    Ho, Wo = H // 2, W // 2
    assert H % 2 == 0 and W % 2 == 0 and (Wo & (Wo - 1)) == 0

    xp = jnp.pad(x_nhwc, ((0, 0), (1, 1), (1, 1), (0, 0)))

    y, stats = pl.pallas_call(
        functools.partial(_conv_bn_stats_kernel, H=H, W=W, Cin=Cin, Cout=Cout),
        out_shape=(
            jax.ShapeDtypeStruct((N, H * W, Cout), jnp.float32),
            jax.ShapeDtypeStruct((2, Cout), jnp.float32),
        ),
        grid=(N,),
        in_specs=[
            pl.BlockSpec((1, Hp, Wp, Cin), lambda n: (n, 0, 0, 0)),
            pl.BlockSpec((9 * Cin, Cout), lambda n: (0, 0)),
        ],
        out_specs=(
            pl.BlockSpec((1, H * W, Cout), lambda n: (n, 0, 0)),
            pl.BlockSpec((2, Cout), lambda n: (0, 0)),   # resident accumulator
        ),
        compiler_params=pltpu.CompilerParams(dimension_semantics=("arbitrary",)),
    )(xp, w_flat)

    out = pl.pallas_call(
        functools.partial(_bn_relu_pool_kernel,
                          count=float(N * H * W), H=H, W=W, C=Cout),
        out_shape=jax.ShapeDtypeStruct((N, Ho * Wo, Cout), jnp.float32),
        grid=(N,),
        in_specs=[
            pl.BlockSpec((1, H * W, Cout), lambda n: (n, 0, 0)),
            pl.BlockSpec((2, Cout), lambda n: (0, 0)),
            pl.BlockSpec((1, Cout), lambda n: (0, 0)),
            pl.BlockSpec((1, Cout), lambda n: (0, 0)),
        ],
        out_specs=pl.BlockSpec((1, Ho * Wo, Cout), lambda n: (n, 0, 0)),
        compiler_params=pltpu.CompilerParams(dimension_semantics=("parallel",)),
    )(y, stats, blk["gamma"].reshape(1, Cout), blk["beta"].reshape(1, Cout))

    return out.reshape(N, Ho, Wo, Cout)


def dist_linear(feat, v, g, scale):
    N, D = feat.shape
    num_class = v.shape[0]
    return pl.pallas_call(
        _dist_linear_kernel,
        out_shape=jax.ShapeDtypeStruct((N, num_class), jnp.float32),
        grid=(1,),
        in_specs=[
            pl.BlockSpec((N, D), lambda i: (0, 0)),
            pl.BlockSpec((num_class, D), lambda i: (0, 0)),
            pl.BlockSpec((num_class, 1), lambda i: (0, 0)),
            pl.BlockSpec((1, 1), lambda i: (0, 0)),
        ],
        out_specs=pl.BlockSpec((N, num_class), lambda i: (0, 0)),
        compiler_params=pltpu.CompilerParams(dimension_semantics=("arbitrary",)),
    )(feat, v, g, scale)


# ------------------------------ parameter init -------------------------------

def init_params(key, in_ch=3, hid=32, num_class=10, feat_dim=None):
    if feat_dim is None:
        feat_dim = hid          # 16x16 input pools down to 1x1 spatial
    keys = jax.random.split(key, 5)
    ch = [in_ch, hid, hid, hid, hid]
    convs = []
    for l in range(4):
        cin, cout = ch[l], ch[l + 1]
        fan_in = 9 * cin
        # weight stored as [kh, kw, cin, cout] -> flattened [9*cin, cout]
        w = jax.random.normal(keys[l], (3, 3, cin, cout), jnp.float32) * (2.0 / fan_in) ** 0.5
        # conv bias omitted: BN mean subtraction cancels it exactly (and it inits to 0).
        convs.append(dict(
            w=w.reshape(9 * cin, cout),
            gamma=jnp.ones((cout,), jnp.float32),
            beta=jnp.zeros((cout,), jnp.float32),
        ))
    v = jax.random.normal(keys[4], (num_class, feat_dim), jnp.float32) * (1.0 / feat_dim) ** 0.5
    g = jnp.sqrt(jnp.sum(v * v, axis=1, keepdims=True))          # WeightNorm init: g = ||v||
    scale = jnp.full((1, 1), 2.0 if num_class <= 200 else 10.0, jnp.float32)
    return dict(convs=convs, v=v, g=g, scale=scale)


# --------------------------------- forward -----------------------------------

def baseline_train_forward(params, x_nchw, y=None):
    # y accepted for parity with BaselineTrain.forward(x, y); distLinear ignores it.
    x = jnp.transpose(x_nchw, (0, 2, 3, 1)).astype(jnp.float32)   # NCHW -> NHWC
    for blk in params["convs"]:
        x = conv_block(x, blk)
    feat = x.reshape(x.shape[0], -1)   # final spatial is 1x1 here -> feat dim = hid
    scores = dist_linear(feat, params["v"], params["g"], params["scale"])
    return scores
    # TODO(synk): forward_loss (CrossEntropyLoss) and train_loop are host-side training
    # plumbing, not part of the forward kernel.


if __name__ == "__main__":
    key = jax.random.PRNGKey(0)
    k_param, k_x = jax.random.split(key)
    params = init_params(k_param, in_ch=3, hid=32, num_class=10)

    x = jax.random.normal(k_x, (2, 3, 16, 16), jnp.float32)   # NCHW like PyTorch
    y = jnp.arange(2, dtype=jnp.int32) % 10

    scores = jax.jit(baseline_train_forward)(params, x, y)
    jax.block_until_ready(scores)
    assert scores.shape == (2, 10) and scores.dtype == jnp.float32
    print("KERNEL_OK")
</pallas_src>

<mosaic_0001>
module attributes {stable_mosaic.version = 11 : i64} {
  func.func @_bn_relu_pool_kernel(%arg0: i32, %arg1: memref<1x256x32xf32, #tpu.memory_space<vmem>>, %arg2: memref<2x32xf32, #tpu.memory_space<vmem>>, %arg3: memref<1x32xf32, #tpu.memory_space<vmem>>, %arg4: memref<1x32xf32, #tpu.memory_space<vmem>>, %arg5: memref<1x64x32xf32, #tpu.memory_space<vmem>>) attributes {dimension_semantics = [#tpu.dimension_semantics<parallel>], iteration_bounds = array<i64: 2>, scalar_prefetch = 0 : i64, scratch_operands = 0 : i64, tpu.core_type = #tpu.core_type<tc>, window_params = [{transform_indices = @transform_0, window_bounds = array<i64: 1, 256, 32>}, {pipeline_mode = #tpu.pipeline_mode<synchronous>, transform_indices = @transform_1, window_bounds = array<i64: 2, 32>}, {pipeline_mode = #tpu.pipeline_mode<synchronous>, transform_indices = @transform_2, window_bounds = array<i64: 1, 32>}, {pipeline_mode = #tpu.pipeline_mode<synchronous>, transform_indices = @transform_3, window_bounds = array<i64: 1, 32>}, {transform_indices = @transform_4, window_bounds = array<i64: 1, 64, 32>}]} {
    %c0 = arith.constant 0 : index
    %c0_0 = arith.constant 0 : index
    %0 = vector.load %arg2[%c0, %c0_0] : memref<2x32xf32, #tpu.memory_space<vmem>>, vector<1x32xf32>
    %cst = arith.constant 0.001953125 : f32
    %1 = vector.broadcast %cst : f32 to vector<1x32xf32>
    %2 = arith.mulf %0, %1 : vector<1x32xf32>
    %c1 = arith.constant 1 : index
    %c0_1 = arith.constant 0 : index
    %3 = vector.load %arg2[%c1, %c0_1] : memref<2x32xf32, #tpu.memory_space<vmem>>, vector<1x32xf32>
    %cst_2 = arith.constant 0.001953125 : f32
    %4 = vector.broadcast %cst_2 : f32 to vector<1x32xf32>
    %5 = arith.mulf %3, %4 : vector<1x32xf32>
    %6 = arith.mulf %2, %2 : vector<1x32xf32>
    %7 = arith.subf %5, %6 : vector<1x32xf32>
    %c0_3 = arith.constant 0 : index
    %c0_4 = arith.constant 0 : index
    %8 = vector.load %arg3[%c0_3, %c0_4] : memref<1x32xf32, #tpu.memory_space<vmem>>, vector<1x32xf32>
    %cst_5 = arith.constant 9.99999974E-6 : f32
    %9 = vector.broadcast %cst_5 : f32 to vector<1x32xf32>
    %10 = arith.addf %7, %9 : vector<1x32xf32>
    %11 = math.rsqrt %10 : vector<1x32xf32>
    %12 = arith.mulf %8, %11 : vector<1x32xf32>
    %c0_6 = arith.constant 0 : index
    %c0_7 = arith.constant 0 : index
    %13 = vector.load %arg4[%c0_6, %c0_7] : memref<1x32xf32, #tpu.memory_space<vmem>>, vector<1x32xf32>
    %14 = arith.mulf %2, %12 : vector<1x32xf32>
    %15 = arith.subf %13, %14 : vector<1x32xf32>
    %c0_8 = arith.constant 0 : index
    %c0_9 = arith.constant 0 : index
    %c0_10 = arith.constant 0 : index
    %16 = vector.load %arg1[%c0_8, %c0_9, %c0_10] : memref<1x256x32xf32, #tpu.memory_space<vmem>>, vector<1x256x32xf32>
    %17 = vector.shape_cast %16 : vector<1x256x32xf32> to vector<256x32xf32>
    %18 = vector.broadcast %12 : vector<1x32xf32> to vector<256x32xf32>
    %19 = arith.mulf %17, %18 : vector<256x32xf32>
    %20 = vector.broadcast %15 : vector<1x32xf32> to vector<256x32xf32>
    %21 = arith.addf %19, %20 : vector<256x32xf32>
    %cst_11 = arith.constant 0.000000e+00 : f32
    %22 = vector.broadcast %cst_11 : f32 to vector<256x32xf32>
    %23 = arith.maximumf %21, %22 : vector<256x32xf32>
    %24 = tpu.iota {dimensions = array<i32: 0>} : vector<64x256xi32>
    %25 = tpu.iota {dimensions = array<i32: 1>} : vector<64x256xi32>
    %c3_i32 = arith.constant 3 : i32
    %26 = vector.broadcast %c3_i32 : i32 to vector<64x256xi32>
    %27 = arith.shrsi %24, %26 : vector<64x256xi32>
    %c7_i32 = arith.constant 7 : i32
    %28 = vector.broadcast %c7_i32 : i32 to vector<64x256xi32>
    %29 = arith.andi %24, %28 : vector<64x256xi32>
    %c2_i32 = arith.constant 2 : i32
    %30 = vector.broadcast %c2_i32 : i32 to vector<64x256xi32>
    %31 = arith.muli %30, %27 : vector<64x256xi32>
    %c16_i32 = arith.constant 16 : i32
    %32 = vector.broadcast %c16_i32 : i32 to vector<64x256xi32>
    %33 = arith.muli %31, %32 : vector<64x256xi32>
    %c2_i32_12 = arith.constant 2 : i32
    %34 = vector.broadcast %c2_i32_12 : i32 to vector<64x256xi32>
    %35 = arith.muli %34, %29 : vector<64x256xi32>
    %36 = arith.addi %33, %35 : vector<64x256xi32>
    %c0_i32 = arith.constant 0 : i32
    %37 = vector.broadcast %c0_i32 : i32 to vector<64x256xi32>
    %38 = arith.addi %36, %37 : vector<64x256xi32>
    %c0_i32_13 = arith.constant 0 : i32
    %39 = vector.broadcast %c0_i32_13 : i32 to vector<64x256xi32>
    %40 = arith.addi %38, %39 : vector<64x256xi32>
    %41 = arith.cmpi eq, %25, %40 : vector<64x256xi32>
    %42 = arith.extui %41 : vector<64x256xi1> to vector<64x256xi32>
    %43 = arith.sitofp %42 : vector<64x256xi32> to vector<64x256xf32>
    %cst_14 = arith.constant dense<0.000000e+00> : vector<64x32xf32>
    %44 = tpu.matmul %43, %23, %cst_14 {dimension_numbers = #tpu.dot_dimension_numbers<[1], [0], [0], [1], [0, 0, 1, 1], [], []>} : vector<64x256xf32>, vector<256x32xf32>, vector<64x32xf32> -> vector<64x32xf32>
    %c0_i32_15 = arith.constant 0 : i32
    %45 = vector.broadcast %c0_i32_15 : i32 to vector<64x256xi32>
    %46 = arith.addi %36, %45 : vector<64x256xi32>
    %c1_i32 = arith.constant 1 : i32
    %47 = vector.broadcast %c1_i32 : i32 to vector<64x256xi32>
    %48 = arith.addi %46, %47 : vector<64x256xi32>
    %49 = arith.cmpi eq, %25, %48 : vector<64x256xi32>
    %50 = arith.extui %49 : vector<64x256xi1> to vector<64x256xi32>
    %51 = arith.sitofp %50 : vector<64x256xi32> to vector<64x256xf32>
    %cst_16 = arith.constant dense<0.000000e+00> : vector<64x32xf32>
    %52 = tpu.matmul %51, %23, %cst_16 {dimension_numbers = #tpu.dot_dimension_numbers<[1], [0], [0], [1], [0, 0, 1, 1], [], []>} : vector<64x256xf32>, vector<256x32xf32>, vector<64x32xf32> -> vector<64x32xf32>
    %53 = arith.maximumf %44, %52 : vector<64x32xf32>
    %c16_i32_17 = arith.constant 16 : i32
    %54 = vector.broadcast %c16_i32_17 : i32 to vector<64x256xi32>
    %55 = arith.addi %36, %54 : vector<64x256xi32>
    %c0_i32_18 = arith.constant 0 : i32
    %56 = vector.broadcast %c0_i32_18 : i32 to vector<64x256xi32>
    %57 = arith.addi %55, %56 : vector<64x256xi32>
    %58 = arith.cmpi eq, %25, %57 : vector<64x256xi32>
    %59 = arith.extui %58 : vector<64x256xi1> to vector<64x256xi32>
    %60 = arith.sitofp %59 : vector<64x256xi32> to vector<64x256xf32>
    %cst_19 = arith.constant dense<0.000000e+00> : vector<64x32xf32>
    %61 = tpu.matmul %60, %23, %cst_19 {dimension_numbers = #tpu.dot_dimension_numbers<[1], [0], [0], [1], [0, 0, 1, 1], [], []>} : vector<64x256xf32>, vector<256x32xf32>, vector<64x32xf32> -> vector<64x32xf32>
    %62 = arith.maximumf %53, %61 : vector<64x32xf32>
    %c16_i32_20 = arith.constant 16 : i32
    %63 = vector.broadcast %c16_i32_20 : i32 to vector<64x256xi32>
    %64 = arith.addi %36, %63 : vector<64x256xi32>
    %c1_i32_21 = arith.constant 1 : i32
    %65 = vector.broadcast %c1_i32_21 : i32 to vector<64x256xi32>
    %66 = arith.addi %64, %65 : vector<64x256xi32>
    %67 = arith.cmpi eq, %25, %66 : vector<64x256xi32>
    %68 = arith.extui %67 : vector<64x256xi1> to vector<64x256xi32>
    %69 = arith.sitofp %68 : vector<64x256xi32> to vector<64x256xf32>
    %cst_22 = arith.constant dense<0.000000e+00> : vector<64x32xf32>
    %70 = tpu.matmul %69, %23, %cst_22 {dimension_numbers = #tpu.dot_dimension_numbers<[1], [0], [0], [1], [0, 0, 1, 1], [], []>} : vector<64x256xf32>, vector<256x32xf32>, vector<64x32xf32> -> vector<64x32xf32>
    %71 = arith.maximumf %62, %70 : vector<64x32xf32>
    %c0_23 = arith.constant 0 : index
    %c0_24 = arith.constant 0 : index
    %c0_25 = arith.constant 0 : index
    %72 = vector.load %arg5[%c0_23, %c0_24, %c0_25] : memref<1x64x32xf32, #tpu.memory_space<vmem>>, vector<1x64x32xf32>
    %73 = vector.shape_cast %72 : vector<1x64x32xf32> to vector<64x32xf32>
    %74 = vector.shape_cast %71 : vector<64x32xf32> to vector<1x64x32xf32>
    tpu.vector_store %arg5[%c0_23, %c0_24, %c0_25], %74 {strides = array<i32>} : memref<1x64x32xf32, #tpu.memory_space<vmem>>, vector<1x64x32xf32>,
    return
  }
  func.func @transform_0(%arg0: i32) -> (i32, i32, i32) {
    %c0_i32 = arith.constant 0 : i32
    %c0_i32_0 = arith.constant 0 : i32
    %c0_i32_1 = arith.constant 0 : i32
    return %arg0, %c0_i32, %c0_i32_0 : i32, i32, i32
  }
  func.func @transform_1(%arg0: i32) -> (i32, i32) {
    %c0_i32 = arith.constant 0 : i32
    %c0_i32_0 = arith.constant 0 : i32
    %c0_i32_1 = arith.constant 0 : i32
    return %c0_i32, %c0_i32_0 : i32, i32
  }
  func.func @transform_2(%arg0: i32) -> (i32, i32) {
    %c0_i32 = arith.constant 0 : i32
    %c0_i32_0 = arith.constant 0 : i32
    %c0_i32_1 = arith.constant 0 : i32
    return %c0_i32, %c0_i32_0 : i32, i32
  }
  func.func @transform_3(%arg0: i32) -> (i32, i32) {
    %c0_i32 = arith.constant 0 : i32
    %c0_i32_0 = arith.constant 0 : i32
    %c0_i32_1 = arith.constant 0 : i32
    return %c0_i32, %c0_i32_0 : i32, i32
  }
  func.func @transform_4(%arg0: i32) -> (i32, i32, i32) {
    %c0_i32 = arith.constant 0 : i32
    %c0_i32_0 = arith.constant 0 : i32
    %c0_i32_1 = arith.constant 0 : i32
    return %arg0, %c0_i32, %c0_i32_0 : i32, i32, i32
  }
}

module attributes {stable_mosaic.version = 11 : i64} {
  func.func @_conv_bn_stats_kernel(%arg0: i32, %arg1: memref<1x18x18x3xf32, #tpu.memory_space<vmem>>, %arg2: memref<27x32xf32, #tpu.memory_space<vmem>>, %arg3: memref<1x256x32xf32, #tpu.memory_space<vmem>>, %arg4: memref<2x32xf32, #tpu.memory_space<vmem>>) attributes {dimension_semantics = [#tpu.dimension_semantics<arbitrary>], iteration_bounds = array<i64: 2>, scalar_prefetch = 0 : i64, scratch_operands = 0 : i64, tpu.core_type = #tpu.core_type<tc>, window_params = [{transform_indices = @transform_0, window_bounds = array<i64: 1, 18, 18, 3>}, {pipeline_mode = #tpu.pipeline_mode<synchronous>, transform_indices = @transform_1, window_bounds = array<i64: 27, 32>}, {transform_indices = @transform_2, window_bounds = array<i64: 1, 256, 32>}, {pipeline_mode = #tpu.pipeline_mode<synchronous>, transform_indices = @transform_3, window_bounds = array<i64: 2, 32>}]} {
    %cst = arith.constant 0.000000e+00 : f32
    %0 = vector.broadcast %cst : f32 to vector<256x32xf32>
    %c0 = arith.constant 0 : index
    %c0_0 = arith.constant 0 : index
    %c0_1 = arith.constant 0 : index
    %c0_2 = arith.constant 0 : index
    %1 = vector.load %arg1[%c0, %c0_0, %c0_1, %c0_2] : memref<1x18x18x3xf32, #tpu.memory_space<vmem>>, vector<1x16x16x3xf32>
    %2 = vector.shape_cast %1 : vector<1x16x16x3xf32> to vector<16x16x3xf32>
    %3 = vector.shape_cast %2 : vector<16x16x3xf32> to vector<256x3xf32>
    %c0_3 = arith.constant 0 : index
    %c0_4 = arith.constant 0 : index
    %4 = vector.load %arg2[%c0_3, %c0_4] : memref<27x32xf32, #tpu.memory_space<vmem>>, vector<3x32xf32>
    %cst_5 = arith.constant dense<0.000000e+00> : vector<256x32xf32>
    %5 = tpu.matmul %3, %4, %cst_5 {dimension_numbers = #tpu.dot_dimension_numbers<[1], [0], [0], [1], [0, 0, 1, 1], [], []>} : vector<256x3xf32>, vector<3x32xf32>, vector<256x32xf32> -> vector<256x32xf32>
    %6 = arith.addf %0, %5 : vector<256x32xf32>
    %c0_6 = arith.constant 0 : index
    %c0_7 = arith.constant 0 : index
    %c1 = arith.constant 1 : index
    %c0_8 = arith.constant 0 : index
    %7 = vector.load %arg1[%c0_6, %c0_7, %c1, %c0_8] : memref<1x18x18x3xf32, #tpu.memory_space<vmem>>, vector<1x16x16x3xf32>
    %8 = vector.shape_cast %7 : vector<1x16x16x3xf32> to vector<16x16x3xf32>
    %9 = vector.shape_cast %8 : vector<16x16x3xf32> to vector<256x3xf32>
    %c3 = arith.constant 3 : index
    %c0_9 = arith.constant 0 : index
    %10 = vector.load %arg2[%c3, %c0_9] : memref<27x32xf32, #tpu.memory_space<vmem>>, vector<3x32xf32>
    %cst_10 = arith.constant dense<0.000000e+00> : vector<256x32xf32>
    %11 = tpu.matmul %9, %10, %cst_10 {dimension_numbers = #tpu.dot_dimension_numbers<[1], [0], [0], [1], [0, 0, 1, 1], [], []>} : vector<256x3xf32>, vector<3x32xf32>, vector<256x32xf32> -> vector<256x32xf32>
    %12 = arith.addf %6, %11 : vector<256x32xf32>
    %c0_11 = arith.constant 0 : index
    %c0_12 = arith.constant 0 : index
    %c2 = arith.constant 2 : index
    %c0_13 = arith.constant 0 : index
    %13 = vector.load %arg1[%c0_11, %c0_12, %c2, %c0_13] : memref<1x18x18x3xf32, #tpu.memory_space<vmem>>, vector<1x16x16x3xf32>
    %14 = vector.shape_cast %13 : vector<1x16x16x3xf32> to vector<16x16x3xf32>
    %15 = vector.shape_cast %14 : vector<16x16x3xf32> to vector<256x3xf32>
    %c6 = arith.constant 6 : index
    %c0_14 = arith.constant 0 : index
    %16 = vector.load %arg2[%c6, %c0_14] : memref<27x32xf32, #tpu.memory_space<vmem>>, vector<3x32xf32>
    %cst_15 = arith.constant dense<0.000000e+00> : vector<256x32xf32>
    %17 = tpu.matmul %15, %16, %cst_15 {dimension_numbers = #tpu.dot_dimension_numbers<[1], [0], [0], [1], [0, 0, 1, 1], [], []>} : vector<256x3xf32>, vector<3x32xf32>, vector<256x32xf32> -> vector<256x32xf32>
    %18 = arith.addf %12, %17 : vector<256x32xf32>
    %c0_16 = arith.constant 0 : index
    %c1_17 = arith.constant 1 : index
    %c0_18 = arith.constant 0 : index
    %c0_19 = arith.constant 0 : index
    %19 = vector.load %arg1[%c0_16, %c1_17, %c0_18, %c0_19] : memref<1x18x18x3xf32, #tpu.memory_space<vmem>>, vector<1x16x16x3xf32>
    %20 = vector.shape_cast %19 : vector<1x16x16x3xf32> to vector<16x16x3xf32>
    %21 = vector.shape_cast %20 : vector<16x16x3xf32> to vector<256x3xf32>
    %c9 = arith.constant 9 : index
    %c0_20 = arith.constant 0 : index
    %22 = vector.load %arg2[%c9, %c0_20] : memref<27x32xf32, #tpu.memory_space<vmem>>, vector<3x32xf32>
    %cst_21 = arith.constant dense<0.000000e+00> : vector<256x32xf32>
    %23 = tpu.matmul %21, %22, %cst_21 {dimension_numbers = #tpu.dot_dimension_numbers<[1], [0], [0], [1], [0, 0, 1, 1], [], []>} : vector<256x3xf32>, vector<3x32xf32>, vector<256x32xf32> -> vector<256x32xf32>
    %24 = arith.addf %18, %23 : vector<256x32xf32>
    %c0_22 = arith.constant 0 : index
    %c1_23 = arith.constant 1 : index
    %c1_24 = arith.constant 1 : index
    %c0_25 = arith.constant 0 : index
    %25 = vector.load %arg1[%c0_22, %c1_23, %c1_24, %c0_25] : memref<1x18x18x3xf32, #tpu.memory_space<vmem>>, vector<1x16x16x3xf32>
    %26 = vector.shape_cast %25 : vector<1x16x16x3xf32> to vector<16x16x3xf32>
    %27 = vector.shape_cast %26 : vector<16x16x3xf32> to vector<256x3xf32>
    %c12 = arith.constant 12 : index
    %c0_26 = arith.constant 0 : index
    %28 = vector.load %arg2[%c12, %c0_26] : memref<27x32xf32, #tpu.memory_space<vmem>>, vector<3x32xf32>
    %cst_27 = arith.constant dense<0.000000e+00> : vector<256x32xf32>
    %29 = tpu.matmul %27, %28, %cst_27 {dimension_numbers = #tpu.dot_dimension_numbers<[1], [0], [0], [1], [0, 0, 1, 1], [], []>} : vector<256x3xf32>, vector<3x32xf32>, vector<256x32xf32> -> vector<256x32xf32>
    %30 = arith.addf %24, %29 : vector<256x32xf32>
    %c0_28 = arith.constant 0 : index
    %c1_29 = arith.constant 1 : index
    %c2_30 = arith.constant 2 : index
    %c0_31 = arith.constant 0 : index
    %31 = vector.load %arg1[%c0_28, %c1_29, %c2_30, %c0_31] : memref<1x18x18x3xf32, #tpu.memory_space<vmem>>, vector<1x16x16x3xf32>
    %32 = vector.shape_cast %31 : vector<1x16x16x3xf32> to vector<16x16x3xf32>
    %33 = vector.shape_cast %32 : vector<16x16x3xf32> to vector<256x3xf32>
    %c15 = arith.constant 15 : index
    %c0_32 = arith.constant 0 : index
    %34 = vector.load %arg2[%c15, %c0_32] : memref<27x32xf32, #tpu.memory_space<vmem>>, vector<3x32xf32>
    %cst_33 = arith.constant dense<0.000000e+00> : vector<256x32xf32>
    %35 = tpu.matmul %33, %34, %cst_33 {dimension_numbers = #tpu.dot_dimension_numbers<[1], [0], [0], [1], [0, 0, 1, 1], [], []>} : vector<256x3xf32>, vector<3x32xf32>, vector<256x32xf32> -> vector<256x32xf32>
    %36 = arith.addf %30, %35 : vector<256x32xf32>
    %c0_34 = arith.constant 0 : index
    %c2_35 = arith.constant 2 : index
    %c0_36 = arith.constant 0 : index
    %c0_37 = arith.constant 0 : index
    %37 = vector.load %arg1[%c0_34, %c2_35, %c0_36, %c0_37] : memref<1x18x18x3xf32, #tpu.memory_space<vmem>>, vector<1x16x16x3xf32>
    %38 = vector.shape_cast %37 : vector<1x16x16x3xf32> to vector<16x16x3xf32>
    %39 = vector.shape_cast %38 : vector<16x16x3xf32> to vector<256x3xf32>
    %c18 = arith.constant 18 : index
    %c0_38 = arith.constant 0 : index
    %40 = vector.load %arg2[%c18, %c0_38] : memref<27x32xf32, #tpu.memory_space<vmem>>, vector<3x32xf32>
    %cst_39 = arith.constant dense<0.000000e+00> : vector<256x32xf32>
    %41 = tpu.matmul %39, %40, %cst_39 {dimension_numbers = #tpu.dot_dimension_numbers<[1], [0], [0], [1], [0, 0, 1, 1], [], []>} : vector<256x3xf32>, vector<3x32xf32>, vector<256x32xf32> -> vector<256x32xf32>
    %42 = arith.addf %36, %41 : vector<256x32xf32>
    %c0_40 = arith.constant 0 : index
    %c2_41 = arith.constant 2 : index
    %c1_42 = arith.constant 1 : index
    %c0_43 = arith.constant 0 : index
    %43 = vector.load %arg1[%c0_40, %c2_41, %c1_42, %c0_43] : memref<1x18x18x3xf32, #tpu.memory_space<vmem>>, vector<1x16x16x3xf32>
    %44 = vector.shape_cast %43 : vector<1x16x16x3xf32> to vector<16x16x3xf32>
    %45 = vector.shape_cast %44 : vector<16x16x3xf32> to vector<256x3xf32>
    %c21 = arith.constant 21 : index
    %c0_44 = arith.constant 0 : index
    %46 = vector.load %arg2[%c21, %c0_44] : memref<27x32xf32, #tpu.memory_space<vmem>>, vector<3x32xf32>
    %cst_45 = arith.constant dense<0.000000e+00> : vector<256x32xf32>
    %47 = tpu.matmul %45, %46, %cst_45 {dimension_numbers = #tpu.dot_dimension_numbers<[1], [0], [0], [1], [0, 0, 1, 1], [], []>} : vector<256x3xf32>, vector<3x32xf32>, vector<256x32xf32> -> vector<256x32xf32>
    %48 = arith.addf %42, %47 : vector<256x32xf32>
    %c0_46 = arith.constant 0 : index
    %c2_47 = arith.constant 2 : index
    %c2_48 = arith.constant 2 : index
    %c0_49 = arith.constant 0 : index
    %49 = vector.load %arg1[%c0_46, %c2_47, %c2_48, %c0_49] : memref<1x18x18x3xf32, #tpu.memory_space<vmem>>, vector<1x16x16x3xf32>
    %50 = vector.shape_cast %49 : vector<1x16x16x3xf32> to vector<16x16x3xf32>
    %51 = vector.shape_cast %50 : vector<16x16x3xf32> to vector<256x3xf32>
    %c24 = arith.constant 24 : index
    %c0_50 = arith.constant 0 : index
    %52 = vector.load %arg2[%c24, %c0_50] : memref<27x32xf32, #tpu.memory_space<vmem>>, vector<3x32xf32>
    %cst_51 = arith.constant dense<0.000000e+00> : vector<256x32xf32>
    %53 = tpu.matmul %51, %52, %cst_51 {dimension_numbers = #tpu.dot_dimension_numbers<[1], [0], [0], [1], [0, 0, 1, 1], [], []>} : vector<256x3xf32>, vector<3x32xf32>, vector<256x32xf32> -> vector<256x32xf32>
    %54 = arith.addf %48, %53 : vector<256x32xf32>
    %c0_52 = arith.constant 0 : index
    %c0_53 = arith.constant 0 : index
    %c0_54 = arith.constant 0 : index
    %55 = vector.load %arg3[%c0_52, %c0_53, %c0_54] : memref<1x256x32xf32, #tpu.memory_space<vmem>>, vector<1x256x32xf32>
    %56 = vector.shape_cast %55 : vector<1x256x32xf32> to vector<256x32xf32>
    %57 = vector.shape_cast %54 : vector<256x32xf32> to vector<1x256x32xf32>
    tpu.vector_store %arg3[%c0_52, %c0_53, %c0_54], %57 {strides = array<i32>} : memref<1x256x32xf32, #tpu.memory_space<vmem>>, vector<1x256x32xf32>,
    %cst_55 = arith.constant dense<0.000000e+00> : vector<32xf32>
    %58 = vector.multi_reduction <add>, %54, %cst_55 [0] : vector<256x32xf32> to vector<32xf32>
    %59 = vector.shape_cast %58 : vector<32xf32> to vector<1x32xf32>
    %60 = arith.mulf %54, %54 : vector<256x32xf32>
    %cst_56 = arith.constant dense<0.000000e+00> : vector<32xf32>
    %61 = vector.multi_reduction <add>, %60, %cst_56 [0] : vector<256x32xf32> to vector<32xf32>
    %62 = vector.shape_cast %61 : vector<32xf32> to vector<1x32xf32>
    %c0_i32 = arith.constant 0 : i32
    %63 = arith.cmpi eq, %arg0, %c0_i32 : i32
    %64 = arith.extui %63 : i1 to i32
    %c0_i32_57 = arith.constant 0 : i32
    %65 = arith.cmpi ne, %64, %c0_i32_57 : i32
    scf.if %65 {
      %cst_62 = arith.constant 0.000000e+00 : f32
      %70 = vector.broadcast %cst_62 : f32 to vector<2x32xf32>
      %c0_63 = arith.constant 0 : index
      %c0_64 = arith.constant 0 : index
      %71 = vector.load %arg4[%c0_63, %c0_64] : memref<2x32xf32, #tpu.memory_space<vmem>>, vector<2x32xf32>
      tpu.vector_store %arg4[%c0_63, %c0_64], %70 {strides = array<i32>} : memref<2x32xf32, #tpu.memory_space<vmem>>, vector<2x32xf32>,
    } else {
    }
    %c0_58 = arith.constant 0 : index
    %c0_59 = arith.constant 0 : index
    %66 = vector.load %arg4[%c0_58, %c0_59] : memref<2x32xf32, #tpu.memory_space<vmem>>, vector<2x32xf32>
    %67 = tpu.concatenate %59, %62 in 0 : vector<1x32xf32>, vector<1x32xf32> -> vector<2x32xf32>
    %68 = arith.addf %66, %67 : vector<2x32xf32>
    %c0_60 = arith.constant 0 : index
    %c0_61 = arith.constant 0 : index
    %69 = vector.load %arg4[%c0_60, %c0_61] : memref<2x32xf32, #tpu.memory_space<vmem>>, vector<2x32xf32>
    tpu.vector_store %arg4[%c0_60, %c0_61], %68 {strides = array<i32>} : memref<2x32xf32, #tpu.memory_space<vmem>>, vector<2x32xf32>,
    return
  }
  func.func @transform_0(%arg0: i32) -> (i32, i32, i32, i32) {
    %c0_i32 = arith.constant 0 : i32
    %c0_i32_0 = arith.constant 0 : i32
    %c0_i32_1 = arith.constant 0 : i32
    %c0_i32_2 = arith.constant 0 : i32
    return %arg0, %c0_i32, %c0_i32_0, %c0_i32_1 : i32, i32, i32, i32
  }
  func.func @transform_1(%arg0: i32) -> (i32, i32) {
    %c0_i32 = arith.constant 0 : i32
    %c0_i32_0 = arith.constant 0 : i32
    %c0_i32_1 = arith.constant 0 : i32
    return %c0_i32, %c0_i32_0 : i32, i32
  }
  func.func @transform_2(%arg0: i32) -> (i32, i32, i32) {
    %c0_i32 = arith.constant 0 : i32
    %c0_i32_0 = arith.constant 0 : i32
    %c0_i32_1 = arith.constant 0 : i32
    return %arg0, %c0_i32, %c0_i32_0 : i32, i32, i32
  }
  func.func @transform_3(%arg0: i32) -> (i32, i32) {
    %c0_i32 = arith.constant 0 : i32
    %c0_i32_0 = arith.constant 0 : i32
    %c0_i32_1 = arith.constant 0 : i32
    return %c0_i32, %c0_i32_0 : i32, i32
  }
}

module attributes {stable_mosaic.version = 11 : i64} {
  func.func @_conv_bn_stats_kernel(%arg0: i32, %arg1: memref<1x10x10x32xf32, #tpu.memory_space<vmem>>, %arg2: memref<288x32xf32, #tpu.memory_space<vmem>>, %arg3: memref<1x64x32xf32, #tpu.memory_space<vmem>>, %arg4: memref<2x32xf32, #tpu.memory_space<vmem>>) attributes {dimension_semantics = [#tpu.dimension_semantics<arbitrary>], iteration_bounds = array<i64: 2>, scalar_prefetch = 0 : i64, scratch_operands = 0 : i64, tpu.core_type = #tpu.core_type<tc>, window_params = [{transform_indices = @transform_0, window_bounds = array<i64: 1, 10, 10, 32>}, {pipeline_mode = #tpu.pipeline_mode<synchronous>, transform_indices = @transform_1, window_bounds = array<i64: 288, 32>}, {transform_indices = @transform_2, window_bounds = array<i64: 1, 64, 32>}, {pipeline_mode = #tpu.pipeline_mode<synchronous>, transform_indices = @transform_3, window_bounds = array<i64: 2, 32>}]} {
    %cst = arith.constant 0.000000e+00 : f32
    %0 = vector.broadcast %cst : f32 to vector<64x32xf32>
    %c0 = arith.constant 0 : index
    %c0_0 = arith.constant 0 : index
    %c0_1 = arith.constant 0 : index
    %c0_2 = arith.constant 0 : index
    %1 = vector.load %arg1[%c0, %c0_0, %c0_1, %c0_2] : memref<1x10x10x32xf32, #tpu.memory_space<vmem>>, vector<1x8x8x32xf32>
    %2 = vector.shape_cast %1 : vector<1x8x8x32xf32> to vector<8x8x32xf32>
    %3 = vector.shape_cast %2 : vector<8x8x32xf32> to vector<64x32xf32>
    %c0_3 = arith.constant 0 : index
    %c0_4 = arith.constant 0 : index
    %4 = vector.load %arg2[%c0_3, %c0_4] : memref<288x32xf32, #tpu.memory_space<vmem>>, vector<32x32xf32>
    %cst_5 = arith.constant dense<0.000000e+00> : vector<64x32xf32>
    %5 = tpu.matmul %3, %4, %cst_5 {dimension_numbers = #tpu.dot_dimension_numbers<[1], [0], [0], [1], [0, 0, 1, 1], [], []>} : vector<64x32xf32>, vector<32x32xf32>, vector<64x32xf32> -> vector<64x32xf32>
    %6 = arith.addf %0, %5 : vector<64x32xf32>
    %c0_6 = arith.constant 0 : index
    %c0_7 = arith.constant 0 : index
    %c1 = arith.constant 1 : index
    %c0_8 = arith.constant 0 : index
    %7 = vector.load %arg1[%c0_6, %c0_7, %c1, %c0_8] : memref<1x10x10x32xf32, #tpu.memory_space<vmem>>, vector<1x8x8x32xf32>
    %8 = vector.shape_cast %7 : vector<1x8x8x32xf32> to vector<8x8x32xf32>
    %9 = vector.shape_cast %8 : vector<8x8x32xf32> to vector<64x32xf32>
    %c32 = arith.constant 32 : index
    %c0_9 = arith.constant 0 : index
    %10 = vector.load %arg2[%c32, %c0_9] : memref<288x32xf32, #tpu.memory_space<vmem>>, vector<32x32xf32>
    %cst_10 = arith.constant dense<0.000000e+00> : vector<64x32xf32>
    %11 = tpu.matmul %9, %10, %cst_10 {dimension_numbers = #tpu.dot_dimension_numbers<[1], [0], [0], [1], [0, 0, 1, 1], [], []>} : vector<64x32xf32>, vector<32x32xf32>, vector<64x32xf32> -> vector<64x32xf32>
    %12 = arith.addf %6, %11 : vector<64x32xf32>
    %c0_11 = arith.constant 0 : index
    %c0_12 = arith.constant 0 : index
    %c2 = arith.constant 2 : index
    %c0_13 = arith.constant 0 : index
    %13 = vector.load %arg1[%c0_11, %c0_12, %c2, %c0_13] : memref<1x10x10x32xf32, #tpu.memory_space<vmem>>, vector<1x8x8x32xf32>
    %14 = vector.shape_cast %13 : vector<1x8x8x32xf32> to vector<8x8x32xf32>
    %15 = vector.shape_cast %14 : vector<8x8x32xf32> to vector<64x32xf32>
    %c64 = arith.constant 64 : index
    %c0_14 = arith.constant 0 : index
    %16 = vector.load %arg2[%c64, %c0_14] : memref<288x32xf32, #tpu.memory_space<vmem>>, vector<32x32xf32>
    %cst_15 = arith.constant dense<0.000000e+00> : vector<64x32xf32>
    %17 = tpu.matmul %15, %16, %cst_15 {dimension_numbers = #tpu.dot_dimension_numbers<[1], [0], [0], [1], [0, 0, 1, 1], [], []>} : vector<64x32xf32>, vector<32x32xf32>, vector<64x32xf32> -> vector<64x32xf32>
    %18 = arith.addf %12, %17 : vector<64x32xf32>
    %c0_16 = arith.constant 0 : index
    %c1_17 = arith.constant 1 : index
    %c0_18 = arith.constant 0 : index
    %c0_19 = arith.constant 0 : index
    %19 = vector.load %arg1[%c0_16, %c1_17, %c0_18, %c0_19] : memref<1x10x10x32xf32, #tpu.memory_space<vmem>>, vector<1x8x8x32xf32>
    %20 = vector.shape_cast %19 : vector<1x8x8x32xf32> to vector<8x8x32xf32>
    %21 = vector.shape_cast %20 : vector<8x8x32xf32> to vector<64x32xf32>
    %c96 = arith.constant 96 : index
    %c0_20 = arith.constant 0 : index
    %22 = vector.load %arg2[%c96, %c0_20] : memref<288x32xf32, #tpu.memory_space<vmem>>, vector<32x32xf32>
    %cst_21 = arith.constant dense<0.000000e+00> : vector<64x32xf32>
    %23 = tpu.matmul %21, %22, %cst_21 {dimension_numbers = #tpu.dot_dimension_numbers<[1], [0], [0], [1], [0, 0, 1, 1], [], []>} : vector<64x32xf32>, vector<32x32xf32>, vector<64x32xf32> -> vector<64x32xf32>
    %24 = arith.addf %18, %23 : vector<64x32xf32>
    %c0_22 = arith.constant 0 : index
    %c1_23 = arith.constant 1 : index
    %c1_24 = arith.constant 1 : index
    %c0_25 = arith.constant 0 : index
    %25 = vector.load %arg1[%c0_22, %c1_23, %c1_24, %c0_25] : memref<1x10x10x32xf32, #tpu.memory_space<vmem>>, vector<1x8x8x32xf32>
    %26 = vector.shape_cast %25 : vector<1x8x8x32xf32> to vector<8x8x32xf32>
    %27 = vector.shape_cast %26 : vector<8x8x32xf32> to vector<64x32xf32>
    %c128 = arith.constant 128 : index
    %c0_26 = arith.constant 0 : index
    %28 = vector.load %arg2[%c128, %c0_26] : memref<288x32xf32, #tpu.memory_space<vmem>>, vector<32x32xf32>
    %cst_27 = arith.constant dense<0.000000e+00> : vector<64x32xf32>
    %29 = tpu.matmul %27, %28, %cst_27 {dimension_numbers = #tpu.dot_dimension_numbers<[1], [0], [0], [1], [0, 0, 1, 1], [], []>} : vector<64x32xf32>, vector<32x32xf32>, vector<64x32xf32> -> vector<64x32xf32>
    %30 = arith.addf %24, %29 : vector<64x32xf32>
    %c0_28 = arith.constant 0 : index
    %c1_29 = arith.constant 1 : index
    %c2_30 = arith.constant 2 : index
    %c0_31 = arith.constant 0 : index
    %31 = vector.load %arg1[%c0_28, %c1_29, %c2_30, %c0_31] : memref<1x10x10x32xf32, #tpu.memory_space<vmem>>, vector<1x8x8x32xf32>
    %32 = vector.shape_cast %31 : vector<1x8x8x32xf32> to vector<8x8x32xf32>
    %33 = vector.shape_cast %32 : vector<8x8x32xf32> to vector<64x32xf32>
    %c160 = arith.constant 160 : index
    %c0_32 = arith.constant 0 : index
    %34 = vector.load %arg2[%c160, %c0_32] : memref<288x32xf32, #tpu.memory_space<vmem>>, vector<32x32xf32>
    %cst_33 = arith.constant dense<0.000000e+00> : vector<64x32xf32>
    %35 = tpu.matmul %33, %34, %cst_33 {dimension_numbers = #tpu.dot_dimension_numbers<[1], [0], [0], [1], [0, 0, 1, 1], [], []>} : vector<64x32xf32>, vector<32x32xf32>, vector<64x32xf32> -> vector<64x32xf32>
    %36 = arith.addf %30, %35 : vector<64x32xf32>
    %c0_34 = arith.constant 0 : index
    %c2_35 = arith.constant 2 : index
    %c0_36 = arith.constant 0 : index
    %c0_37 = arith.constant 0 : index
    %37 = vector.load %arg1[%c0_34, %c2_35, %c0_36, %c0_37] : memref<1x10x10x32xf32, #tpu.memory_space<vmem>>, vector<1x8x8x32xf32>
    %38 = vector.shape_cast %37 : vector<1x8x8x32xf32> to vector<8x8x32xf32>
    %39 = vector.shape_cast %38 : vector<8x8x32xf32> to vector<64x32xf32>
    %c192 = arith.constant 192 : index
    %c0_38 = arith.constant 0 : index
    %40 = vector.load %arg2[%c192, %c0_38] : memref<288x32xf32, #tpu.memory_space<vmem>>, vector<32x32xf32>
    %cst_39 = arith.constant dense<0.000000e+00> : vector<64x32xf32>
    %41 = tpu.matmul %39, %40, %cst_39 {dimension_numbers = #tpu.dot_dimension_numbers<[1], [0], [0], [1], [0, 0, 1, 1], [], []>} : vector<64x32xf32>, vector<32x32xf32>, vector<64x32xf32> -> vector<64x32xf32>
    %42 = arith.addf %36, %41 : vector<64x32xf32>
    %c0_40 = arith.constant 0 : index
    %c2_41 = arith.constant 2 : index
    %c1_42 = arith.constant 1 : index
    %c0_43 = arith.constant 0 : index
    %43 = vector.load %arg1[%c0_40, %c2_41, %c1_42, %c0_43] : memref<1x10x10x32xf32, #tpu.memory_space<vmem>>, vector<1x8x8x32xf32>
    %44 = vector.shape_cast %43 : vector<1x8x8x32xf32> to vector<8x8x32xf32>
    %45 = vector.shape_cast %44 : vector<8x8x32xf32> to vector<64x32xf32>
    %c224 = arith.constant 224 : index
    %c0_44 = arith.constant 0 : index
    %46 = vector.load %arg2[%c224, %c0_44] : memref<288x32xf32, #tpu.memory_space<vmem>>, vector<32x32xf32>
    %cst_45 = arith.constant dense<0.000000e+00> : vector<64x32xf32>
    %47 = tpu.matmul %45, %46, %cst_45 {dimension_numbers = #tpu.dot_dimension_numbers<[1], [0], [0], [1], [0, 0, 1, 1], [], []>} : vector<64x32xf32>, vector<32x32xf32>, vector<64x32xf32> -> vector<64x32xf32>
    %48 = arith.addf %42, %47 : vector<64x32xf32>
    %c0_46 = arith.constant 0 : index
    %c2_47 = arith.constant 2 : index
    %c2_48 = arith.constant 2 : index
    %c0_49 = arith.constant 0 : index
    %49 = vector.load %arg1[%c0_46, %c2_47, %c2_48, %c0_49] : memref<1x10x10x32xf32, #tpu.memory_space<vmem>>, vector<1x8x8x32xf32>
    %50 = vector.shape_cast %49 : vector<1x8x8x32xf32> to vector<8x8x32xf32>
    %51 = vector.shape_cast %50 : vector<8x8x32xf32> to vector<64x32xf32>
    %c256 = arith.constant 256 : index
    %c0_50 = arith.constant 0 : index
    %52 = vector.load %arg2[%c256, %c0_50] : memref<288x32xf32, #tpu.memory_space<vmem>>, vector<32x32xf32>
    %cst_51 = arith.constant dense<0.000000e+00> : vector<64x32xf32>
    %53 = tpu.matmul %51, %52, %cst_51 {dimension_numbers = #tpu.dot_dimension_numbers<[1], [0], [0], [1], [0, 0, 1, 1], [], []>} : vector<64x32xf32>, vector<32x32xf32>, vector<64x32xf32> -> vector<64x32xf32>
    %54 = arith.addf %48, %53 : vector<64x32xf32>
    %c0_52 = arith.constant 0 : index
    %c0_53 = arith.constant 0 : index
    %c0_54 = arith.constant 0 : index
    %55 = vector.load %arg3[%c0_52, %c0_53, %c0_54] : memref<1x64x32xf32, #tpu.memory_space<vmem>>, vector<1x64x32xf32>
    %56 = vector.shape_cast %55 : vector<1x64x32xf32> to vector<64x32xf32>
    %57 = vector.shape_cast %54 : vector<64x32xf32> to vector<1x64x32xf32>
    tpu.vector_store %arg3[%c0_52, %c0_53, %c0_54], %57 {strides = array<i32>} : memref<1x64x32xf32, #tpu.memory_space<vmem>>, vector<1x64x32xf32>,
    %cst_55 = arith.constant dense<0.000000e+00> : vector<32xf32>
    %58 = vector.multi_reduction <add>, %54, %cst_55 [0] : vector<64x32xf32> to vector<32xf32>
    %59 = vector.shape_cast %58 : vector<32xf32> to vector<1x32xf32>
    %60 = arith.mulf %54, %54 : vector<64x32xf32>
    %cst_56 = arith.constant dense<0.000000e+00> : vector<32xf32>
    %61 = vector.multi_reduction <add>, %60, %cst_56 [0] : vector<64x32xf32> to vector<32xf32>
    %62 = vector.shape_cast %61 : vector<32xf32> to vector<1x32xf32>
    %c0_i32 = arith.constant 0 : i32
    %63 = arith.cmpi eq, %arg0, %c0_i32 : i32
    %64 = arith.extui %63 : i1 to i32
    %c0_i32_57 = arith.constant 0 : i32
    %65 = arith.cmpi ne, %64, %c0_i32_57 : i32
    scf.if %65 {
      %cst_62 = arith.constant 0.000000e+00 : f32
      %70 = vector.broadcast %cst_62 : f32 to vector<2x32xf32>
      %c0_63 = arith.constant 0 : index
      %c0_64 = arith.constant 0 : index
      %71 = vector.load %arg4[%c0_63, %c0_64] : memref<2x32xf32, #tpu.memory_space<vmem>>, vector<2x32xf32>
      tpu.vector_store %arg4[%c0_63, %c0_64], %70 {strides = array<i32>} : memref<2x32xf32, #tpu.memory_space<vmem>>, vector<2x32xf32>,
    } else {
    }
    %c0_58 = arith.constant 0 : index
    %c0_59 = arith.constant 0 : index
    %66 = vector.load %arg4[%c0_58, %c0_59] : memref<2x32xf32, #tpu.memory_space<vmem>>, vector<2x32xf32>
    %67 = tpu.concatenate %59, %62 in 0 : vector<1x32xf32>, vector<1x32xf32> -> vector<2x32xf32>
    %68 = arith.addf %66, %67 : vector<2x32xf32>
    %c0_60 = arith.constant 0 : index
    %c0_61 = arith.constant 0 : index
    %69 = vector.load %arg4[%c0_60, %c0_61] : memref<2x32xf32, #tpu.memory_space<vmem>>, vector<2x32xf32>
    tpu.vector_store %arg4[%c0_60, %c0_61], %68 {strides = array<i32>} : memref<2x32xf32, #tpu.memory_space<vmem>>, vector<2x32xf32>,
    return
  }
  func.func @transform_0(%arg0: i32) -> (i32, i32, i32, i32) {
    %c0_i32 = arith.constant 0 : i32
    %c0_i32_0 = arith.constant 0 : i32
    %c0_i32_1 = arith.constant 0 : i32
    %c0_i32_2 = arith.constant 0 : i32
    return %arg0, %c0_i32, %c0_i32_0, %c0_i32_1 : i32, i32, i32, i32
  }
  func.func @transform_1(%arg0: i32) -> (i32, i32) {
    %c0_i32 = arith.constant 0 : i32
    %c0_i32_0 = arith.constant 0 : i32
    %c0_i32_1 = arith.constant 0 : i32
    return %c0_i32, %c0_i32_0 : i32, i32
  }
  func.func @transform_2(%arg0: i32) -> (i32, i32, i32) {
    %c0_i32 = arith.constant 0 : i32
    %c0_i32_0 = arith.constant 0 : i32
    %c0_i32_1 = arith.constant 0 : i32
    return %arg0, %c0_i32, %c0_i32_0 : i32, i32, i32
  }
  func.func @transform_3(%arg0: i32) -> (i32, i32) {
    %c0_i32 = arith.constant 0 : i32
    %c0_i32_0 = arith.constant 0 : i32
    %c0_i32_1 = arith.constant 0 : i32
    return %c0_i32, %c0_i32_0 : i32, i32
  }
}

module attributes {stable_mosaic.version = 11 : i64} {
  func.func @_bn_relu_pool_kernel(%arg0: i32, %arg1: memref<1x64x32xf32, #tpu.memory_space<vmem>>, %arg2: memref<2x32xf32, #tpu.memory_space<vmem>>, %arg3: memref<1x32xf32, #tpu.memory_space<vmem>>, %arg4: memref<1x32xf32, #tpu.memory_space<vmem>>, %arg5: memref<1x16x32xf32, #tpu.memory_space<vmem>>) attributes {dimension_semantics = [#tpu.dimension_semantics<parallel>], iteration_bounds = array<i64: 2>, scalar_prefetch = 0 : i64, scratch_operands = 0 : i64, tpu.core_type = #tpu.core_type<tc>, window_params = [{transform_indices = @transform_0, window_bounds = array<i64: 1, 64, 32>}, {pipeline_mode = #tpu.pipeline_mode<synchronous>, transform_indices = @transform_1, window_bounds = array<i64: 2, 32>}, {pipeline_mode = #tpu.pipeline_mode<synchronous>, transform_indices = @transform_2, window_bounds = array<i64: 1, 32>}, {pipeline_mode = #tpu.pipeline_mode<synchronous>, transform_indices = @transform_3, window_bounds = array<i64: 1, 32>}, {transform_indices = @transform_4, window_bounds = array<i64: 1, 16, 32>}]} {
    %c0 = arith.constant 0 : index
    %c0_0 = arith.constant 0 : index
    %0 = vector.load %arg2[%c0, %c0_0] : memref<2x32xf32, #tpu.memory_space<vmem>>, vector<1x32xf32>
    %cst = arith.constant 7.812500e-03 : f32
    %1 = vector.broadcast %cst : f32 to vector<1x32xf32>
    %2 = arith.mulf %0, %1 : vector<1x32xf32>
    %c1 = arith.constant 1 : index
    %c0_1 = arith.constant 0 : index
    %3 = vector.load %arg2[%c1, %c0_1] : memref<2x32xf32, #tpu.memory_space<vmem>>, vector<1x32xf32>
    %cst_2 = arith.constant 7.812500e-03 : f32
    %4 = vector.broadcast %cst_2 : f32 to vector<1x32xf32>
    %5 = arith.mulf %3, %4 : vector<1x32xf32>
    %6 = arith.mulf %2, %2 : vector<1x32xf32>
    %7 = arith.subf %5, %6 : vector<1x32xf32>
    %c0_3 = arith.constant 0 : index
    %c0_4 = arith.constant 0 : index
    %8 = vector.load %arg3[%c0_3, %c0_4] : memref<1x32xf32, #tpu.memory_space<vmem>>, vector<1x32xf32>
    %cst_5 = arith.constant 9.99999974E-6 : f32
    %9 = vector.broadcast %cst_5 : f32 to vector<1x32xf32>
    %10 = arith.addf %7, %9 : vector<1x32xf32>
    %11 = math.rsqrt %10 : vector<1x32xf32>
    %12 = arith.mulf %8, %11 : vector<1x32xf32>
    %c0_6 = arith.constant 0 : index
    %c0_7 = arith.constant 0 : index
    %13 = vector.load %arg4[%c0_6, %c0_7] : memref<1x32xf32, #tpu.memory_space<vmem>>, vector<1x32xf32>
    %14 = arith.mulf %2, %12 : vector<1x32xf32>
    %15 = arith.subf %13, %14 : vector<1x32xf32>
    %c0_8 = arith.constant 0 : index
    %c0_9 = arith.constant 0 : index
    %c0_10 = arith.constant 0 : index
    %16 = vector.load %arg1[%c0_8, %c0_9, %c0_10] : memref<1x64x32xf32, #tpu.memory_space<vmem>>, vector<1x64x32xf32>
    %17 = vector.shape_cast %16 : vector<1x64x32xf32> to vector<64x32xf32>
    %18 = vector.broadcast %12 : vector<1x32xf32> to vector<64x32xf32>
    %19 = arith.mulf %17, %18 : vector<64x32xf32>
    %20 = vector.broadcast %15 : vector<1x32xf32> to vector<64x32xf32>
    %21 = arith.addf %19, %20 : vector<64x32xf32>
    %cst_11 = arith.constant 0.000000e+00 : f32
    %22 = vector.broadcast %cst_11 : f32 to vector<64x32xf32>
    %23 = arith.maximumf %21, %22 : vector<64x32xf32>
    %24 = tpu.iota {dimensions = array<i32: 0>} : vector<16x64xi32>
    %25 = tpu.iota {dimensions = array<i32: 1>} : vector<16x64xi32>
    %c2_i32 = arith.constant 2 : i32
    %26 = vector.broadcast %c2_i32 : i32 to vector<16x64xi32>
    %27 = arith.shrsi %24, %26 : vector<16x64xi32>
    %c3_i32 = arith.constant 3 : i32
    %28 = vector.broadcast %c3_i32 : i32 to vector<16x64xi32>
    %29 = arith.andi %24, %28 : vector<16x64xi32>
    %c2_i32_12 = arith.constant 2 : i32
    %30 = vector.broadcast %c2_i32_12 : i32 to vector<16x64xi32>
    %31 = arith.muli %30, %27 : vector<16x64xi32>
    %c8_i32 = arith.constant 8 : i32
    %32 = vector.broadcast %c8_i32 : i32 to vector<16x64xi32>
    %33 = arith.muli %31, %32 : vector<16x64xi32>
    %c2_i32_13 = arith.constant 2 : i32
    %34 = vector.broadcast %c2_i32_13 : i32 to vector<16x64xi32>
    %35 = arith.muli %34, %29 : vector<16x64xi32>
    %36 = arith.addi %33, %35 : vector<16x64xi32>
    %c0_i32 = arith.constant 0 : i32
    %37 = vector.broadcast %c0_i32 : i32 to vector<16x64xi32>
    %38 = arith.addi %36, %37 : vector<16x64xi32>
    %c0_i32_14 = arith.constant 0 : i32
    %39 = vector.broadcast %c0_i32_14 : i32 to vector<16x64xi32>
    %40 = arith.addi %38, %39 : vector<16x64xi32>
    %41 = arith.cmpi eq, %25, %40 : vector<16x64xi32>
    %42 = arith.extui %41 : vector<16x64xi1> to vector<16x64xi32>
    %43 = arith.sitofp %42 : vector<16x64xi32> to vector<16x64xf32>
    %cst_15 = arith.constant dense<0.000000e+00> : vector<16x32xf32>
    %44 = tpu.matmul %43, %23, %cst_15 {dimension_numbers = #tpu.dot_dimension_numbers<[1], [0], [0], [1], [0, 0, 1, 1], [], []>} : vector<16x64xf32>, vector<64x32xf32>, vector<16x32xf32> -> vector<16x32xf32>
    %c0_i32_16 = arith.constant 0 : i32
    %45 = vector.broadcast %c0_i32_16 : i32 to vector<16x64xi32>
    %46 = arith.addi %36, %45 : vector<16x64xi32>
    %c1_i32 = arith.constant 1 : i32
    %47 = vector.broadcast %c1_i32 : i32 to vector<16x64xi32>
    %48 = arith.addi %46, %47 : vector<16x64xi32>
    %49 = arith.cmpi eq, %25, %48 : vector<16x64xi32>
    %50 = arith.extui %49 : vector<16x64xi1> to vector<16x64xi32>
    %51 = arith.sitofp %50 : vector<16x64xi32> to vector<16x64xf32>
    %cst_17 = arith.constant dense<0.000000e+00> : vector<16x32xf32>
    %52 = tpu.matmul %51, %23, %cst_17 {dimension_numbers = #tpu.dot_dimension_numbers<[1], [0], [0], [1], [0, 0, 1, 1], [], []>} : vector<16x64xf32>, vector<64x32xf32>, vector<16x32xf32> -> vector<16x32xf32>
    %53 = arith.maximumf %44, %52 : vector<16x32xf32>
    %c8_i32_18 = arith.constant 8 : i32
    %54 = vector.broadcast %c8_i32_18 : i32 to vector<16x64xi32>
    %55 = arith.addi %36, %54 : vector<16x64xi32>
    %c0_i32_19 = arith.constant 0 : i32
    %56 = vector.broadcast %c0_i32_19 : i32 to vector<16x64xi32>
    %57 = arith.addi %55, %56 : vector<16x64xi32>
    %58 = arith.cmpi eq, %25, %57 : vector<16x64xi32>
    %59 = arith.extui %58 : vector<16x64xi1> to vector<16x64xi32>
    %60 = arith.sitofp %59 : vector<16x64xi32> to vector<16x64xf32>
    %cst_20 = arith.constant dense<0.000000e+00> : vector<16x32xf32>
    %61 = tpu.matmul %60, %23, %cst_20 {dimension_numbers = #tpu.dot_dimension_numbers<[1], [0], [0], [1], [0, 0, 1, 1], [], []>} : vector<16x64xf32>, vector<64x32xf32>, vector<16x32xf32> -> vector<16x32xf32>
    %62 = arith.maximumf %53, %61 : vector<16x32xf32>
    %c8_i32_21 = arith.constant 8 : i32
    %63 = vector.broadcast %c8_i32_21 : i32 to vector<16x64xi32>
    %64 = arith.addi %36, %63 : vector<16x64xi32>
    %c1_i32_22 = arith.constant 1 : i32
    %65 = vector.broadcast %c1_i32_22 : i32 to vector<16x64xi32>
    %66 = arith.addi %64, %65 : vector<16x64xi32>
    %67 = arith.cmpi eq, %25, %66 : vector<16x64xi32>
    %68 = arith.extui %67 : vector<16x64xi1> to vector<16x64xi32>
    %69 = arith.sitofp %68 : vector<16x64xi32> to vector<16x64xf32>
    %cst_23 = arith.constant dense<0.000000e+00> : vector<16x32xf32>
    %70 = tpu.matmul %69, %23, %cst_23 {dimension_numbers = #tpu.dot_dimension_numbers<[1], [0], [0], [1], [0, 0, 1, 1], [], []>} : vector<16x64xf32>, vector<64x32xf32>, vector<16x32xf32> -> vector<16x32xf32>
    %71 = arith.maximumf %62, %70 : vector<16x32xf32>
    %c0_24 = arith.constant 0 : index
    %c0_25 = arith.constant 0 : index
    %c0_26 = arith.constant 0 : index
    %72 = vector.load %arg5[%c0_24, %c0_25, %c0_26] : memref<1x16x32xf32, #tpu.memory_space<vmem>>, vector<1x16x32xf32>
    %73 = vector.shape_cast %72 : vector<1x16x32xf32> to vector<16x32xf32>
    %74 = vector.shape_cast %71 : vector<16x32xf32> to vector<1x16x32xf32>
    tpu.vector_store %arg5[%c0_24, %c0_25, %c0_26], %74 {strides = array<i32>} : memref<1x16x32xf32, #tpu.memory_space<vmem>>, vector<1x16x32xf32>,
    return
  }
  func.func @transform_0(%arg0: i32) -> (i32, i32, i32) {
    %c0_i32 = arith.constant 0 : i32
    %c0_i32_0 = arith.constant 0 : i32
    %c0_i32_1 = arith.constant 0 : i32
    return %arg0, %c0_i32, %c0_i32_0 : i32, i32, i32
  }
  func.func @transform_1(%arg0: i32) -> (i32, i32) {
    %c0_i32 = arith.constant 0 : i32
    %c0_i32_0 = arith.constant 0 : i32
    %c0_i32_1 = arith.constant 0 : i32
    return %c0_i32, %c0_i32_0 : i32, i32
  }
  func.func @transform_2(%arg0: i32) -> (i32, i32) {
    %c0_i32 = arith.constant 0 : i32
    %c0_i32_0 = arith.constant 0 : i32
    %c0_i32_1 = arith.constant 0 : i32
    return %c0_i32, %c0_i32_0 : i32, i32
  }
  func.func @transform_3(%arg0: i32) -> (i32, i32) {
    %c0_i32 = arith.constant 0 : i32
    %c0_i32_0 = arith.constant 0 : i32
    %c0_i32_1 = arith.constant 0 : i32
    return %c0_i32, %c0_i32_0 : i32, i32
  }
  func.func @transform_4(%arg0: i32) -> (i32, i32, i32) {
    %c0_i32 = arith.constant 0 : i32
    %c0_i32_0 = arith.constant 0 : i32
    %c0_i32_1 = arith.constant 0 : i32
    return %arg0, %c0_i32, %c0_i32_0 : i32, i32, i32
  }
}

module attributes {stable_mosaic.version = 11 : i64} {
  func.func @_conv_bn_stats_kernel(%arg0: i32, %arg1: memref<1x6x6x32xf32, #tpu.memory_space<vmem>>, %arg2: memref<288x32xf32, #tpu.memory_space<vmem>>, %arg3: memref<1x16x32xf32, #tpu.memory_space<vmem>>, %arg4: memref<2x32xf32, #tpu.memory_space<vmem>>) attributes {dimension_semantics = [#tpu.dimension_semantics<arbitrary>], iteration_bounds = array<i64: 2>, scalar_prefetch = 0 : i64, scratch_operands = 0 : i64, tpu.core_type = #tpu.core_type<tc>, window_params = [{transform_indices = @transform_0, window_bounds = array<i64: 1, 6, 6, 32>}, {pipeline_mode = #tpu.pipeline_mode<synchronous>, transform_indices = @transform_1, window_bounds = array<i64: 288, 32>}, {transform_indices = @transform_2, window_bounds = array<i64: 1, 16, 32>}, {pipeline_mode = #tpu.pipeline_mode<synchronous>, transform_indices = @transform_3, window_bounds = array<i64: 2, 32>}]} {
    %cst = arith.constant 0.000000e+00 : f32
    %0 = vector.broadcast %cst : f32 to vector<16x32xf32>
    %c0 = arith.constant 0 : index
    %c0_0 = arith.constant 0 : index
    %c0_1 = arith.constant 0 : index
    %c0_2 = arith.constant 0 : index
    %1 = vector.load %arg1[%c0, %c0_0, %c0_1, %c0_2] : memref<1x6x6x32xf32, #tpu.memory_space<vmem>>, vector<1x4x4x32xf32>
    %2 = vector.shape_cast %1 : vector<1x4x4x32xf32> to vector<4x4x32xf32>
    %3 = vector.shape_cast %2 : vector<4x4x32xf32> to vector<16x32xf32>
    %c0_3 = arith.constant 0 : index
    %c0_4 = arith.constant 0 : index
    %4 = vector.load %arg2[%c0_3, %c0_4] : memref<288x32xf32, #tpu.memory_space<vmem>>, vector<32x32xf32>
    %cst_5 = arith.constant dense<0.000000e+00> : vector<16x32xf32>
    %5 = tpu.matmul %3, %4, %cst_5 {dimension_numbers = #tpu.dot_dimension_numbers<[1], [0], [0], [1], [0, 0, 1, 1], [], []>} : vector<16x32xf32>, vector<32x32xf32>, vector<16x32xf32> -> vector<16x32xf32>
    %6 = arith.addf %0, %5 : vector<16x32xf32>
    %c0_6 = arith.constant 0 : index
    %c0_7 = arith.constant 0 : index
    %c1 = arith.constant 1 : index
    %c0_8 = arith.constant 0 : index
    %7 = vector.load %arg1[%c0_6, %c0_7, %c1, %c0_8] : memref<1x6x6x32xf32, #tpu.memory_space<vmem>>, vector<1x4x4x32xf32>
    %8 = vector.shape_cast %7 : vector<1x4x4x32xf32> to vector<4x4x32xf32>
    %9 = vector.shape_cast %8 : vector<4x4x32xf32> to vector<16x32xf32>
    %c32 = arith.constant 32 : index
    %c0_9 = arith.constant 0 : index
    %10 = vector.load %arg2[%c32, %c0_9] : memref<288x32xf32, #tpu.memory_space<vmem>>, vector<32x32xf32>
    %cst_10 = arith.constant dense<0.000000e+00> : vector<16x32xf32>
    %11 = tpu.matmul %9, %10, %cst_10 {dimension_numbers = #tpu.dot_dimension_numbers<[1], [0], [0], [1], [0, 0, 1, 1], [], []>} : vector<16x32xf32>, vector<32x32xf32>, vector<16x32xf32> -> vector<16x32xf32>
    %12 = arith.addf %6, %11 : vector<16x32xf32>
    %c0_11 = arith.constant 0 : index
    %c0_12 = arith.constant 0 : index
    %c2 = arith.constant 2 : index
    %c0_13 = arith.constant 0 : index
    %13 = vector.load %arg1[%c0_11, %c0_12, %c2, %c0_13] : memref<1x6x6x32xf32, #tpu.memory_space<vmem>>, vector<1x4x4x32xf32>
    %14 = vector.shape_cast %13 : vector<1x4x4x32xf32> to vector<4x4x32xf32>
    %15 = vector.shape_cast %14 : vector<4x4x32xf32> to vector<16x32xf32>
    %c64 = arith.constant 64 : index
    %c0_14 = arith.constant 0 : index
    %16 = vector.load %arg2[%c64, %c0_14] : memref<288x32xf32, #tpu.memory_space<vmem>>, vector<32x32xf32>
    %cst_15 = arith.constant dense<0.000000e+00> : vector<16x32xf32>
    %17 = tpu.matmul %15, %16, %cst_15 {dimension_numbers = #tpu.dot_dimension_numbers<[1], [0], [0], [1], [0, 0, 1, 1], [], []>} : vector<16x32xf32>, vector<32x32xf32>, vector<16x32xf32> -> vector<16x32xf32>
    %18 = arith.addf %12, %17 : vector<16x32xf32>
    %c0_16 = arith.constant 0 : index
    %c1_17 = arith.constant 1 : index
    %c0_18 = arith.constant 0 : index
    %c0_19 = arith.constant 0 : index
    %19 = vector.load %arg1[%c0_16, %c1_17, %c0_18, %c0_19] : memref<1x6x6x32xf32, #tpu.memory_space<vmem>>, vector<1x4x4x32xf32>
    %20 = vector.shape_cast %19 : vector<1x4x4x32xf32> to vector<4x4x32xf32>
    %21 = vector.shape_cast %20 : vector<4x4x32xf32> to vector<16x32xf32>
    %c96 = arith.constant 96 : index
    %c0_20 = arith.constant 0 : index
    %22 = vector.load %arg2[%c96, %c0_20] : memref<288x32xf32, #tpu.memory_space<vmem>>, vector<32x32xf32>
    %cst_21 = arith.constant dense<0.000000e+00> : vector<16x32xf32>
    %23 = tpu.matmul %21, %22, %cst_21 {dimension_numbers = #tpu.dot_dimension_numbers<[1], [0], [0], [1], [0, 0, 1, 1], [], []>} : vector<16x32xf32>, vector<32x32xf32>, vector<16x32xf32> -> vector<16x32xf32>
    %24 = arith.addf %18, %23 : vector<16x32xf32>
    %c0_22 = arith.constant 0 : index
    %c1_23 = arith.constant 1 : index
    %c1_24 = arith.constant 1 : index
    %c0_25 = arith.constant 0 : index
    %25 = vector.load %arg1[%c0_22, %c1_23, %c1_24, %c0_25] : memref<1x6x6x32xf32, #tpu.memory_space<vmem>>, vector<1x4x4x32xf32>
    %26 = vector.shape_cast %25 : vector<1x4x4x32xf32> to vector<4x4x32xf32>
    %27 = vector.shape_cast %26 : vector<4x4x32xf32> to vector<16x32xf32>
    %c128 = arith.constant 128 : index
    %c0_26 = arith.constant 0 : index
    %28 = vector.load %arg2[%c128, %c0_26] : memref<288x32xf32, #tpu.memory_space<vmem>>, vector<32x32xf32>
    %cst_27 = arith.constant dense<0.000000e+00> : vector<16x32xf32>
    %29 = tpu.matmul %27, %28, %cst_27 {dimension_numbers = #tpu.dot_dimension_numbers<[1], [0], [0], [1], [0, 0, 1, 1], [], []>} : vector<16x32xf32>, vector<32x32xf32>, vector<16x32xf32> -> vector<16x32xf32>
    %30 = arith.addf %24, %29 : vector<16x32xf32>
    %c0_28 = arith.constant 0 : index
    %c1_29 = arith.constant 1 : index
    %c2_30 = arith.constant 2 : index
    %c0_31 = arith.constant 0 : index
    %31 = vector.load %arg1[%c0_28, %c1_29, %c2_30, %c0_31] : memref<1x6x6x32xf32, #tpu.memory_space<vmem>>, vector<1x4x4x32xf32>
    %32 = vector.shape_cast %31 : vector<1x4x4x32xf32> to vector<4x4x32xf32>
    %33 = vector.shape_cast %32 : vector<4x4x32xf32> to vector<16x32xf32>
    %c160 = arith.constant 160 : index
    %c0_32 = arith.constant 0 : index
    %34 = vector.load %arg2[%c160, %c0_32] : memref<288x32xf32, #tpu.memory_space<vmem>>, vector<32x32xf32>
    %cst_33 = arith.constant dense<0.000000e+00> : vector<16x32xf32>
    %35 = tpu.matmul %33, %34, %cst_33 {dimension_numbers = #tpu.dot_dimension_numbers<[1], [0], [0], [1], [0, 0, 1, 1], [], []>} : vector<16x32xf32>, vector<32x32xf32>, vector<16x32xf32> -> vector<16x32xf32>
    %36 = arith.addf %30, %35 : vector<16x32xf32>
    %c0_34 = arith.constant 0 : index
    %c2_35 = arith.constant 2 : index
    %c0_36 = arith.constant 0 : index
    %c0_37 = arith.constant 0 : index
    %37 = vector.load %arg1[%c0_34, %c2_35, %c0_36, %c0_37] : memref<1x6x6x32xf32, #tpu.memory_space<vmem>>, vector<1x4x4x32xf32>
    %38 = vector.shape_cast %37 : vector<1x4x4x32xf32> to vector<4x4x32xf32>
    %39 = vector.shape_cast %38 : vector<4x4x32xf32> to vector<16x32xf32>
    %c192 = arith.constant 192 : index
    %c0_38 = arith.constant 0 : index
    %40 = vector.load %arg2[%c192, %c0_38] : memref<288x32xf32, #tpu.memory_space<vmem>>, vector<32x32xf32>
    %cst_39 = arith.constant dense<0.000000e+00> : vector<16x32xf32>
    %41 = tpu.matmul %39, %40, %cst_39 {dimension_numbers = #tpu.dot_dimension_numbers<[1], [0], [0], [1], [0, 0, 1, 1], [], []>} : vector<16x32xf32>, vector<32x32xf32>, vector<16x32xf32> -> vector<16x32xf32>
    %42 = arith.addf %36, %41 : vector<16x32xf32>
    %c0_40 = arith.constant 0 : index
    %c2_41 = arith.constant 2 : index
    %c1_42 = arith.constant 1 : index
    %c0_43 = arith.constant 0 : index
    %43 = vector.load %arg1[%c0_40, %c2_41, %c1_42, %c0_43] : memref<1x6x6x32xf32, #tpu.memory_space<vmem>>, vector<1x4x4x32xf32>
    %44 = vector.shape_cast %43 : vector<1x4x4x32xf32> to vector<4x4x32xf32>
    %45 = vector.shape_cast %44 : vector<4x4x32xf32> to vector<16x32xf32>
    %c224 = arith.constant 224 : index
    %c0_44 = arith.constant 0 : index
    %46 = vector.load %arg2[%c224, %c0_44] : memref<288x32xf32, #tpu.memory_space<vmem>>, vector<32x32xf32>
    %cst_45 = arith.constant dense<0.000000e+00> : vector<16x32xf32>
    %47 = tpu.matmul %45, %46, %cst_45 {dimension_numbers = #tpu.dot_dimension_numbers<[1], [0], [0], [1], [0, 0, 1, 1], [], []>} : vector<16x32xf32>, vector<32x32xf32>, vector<16x32xf32> -> vector<16x32xf32>
    %48 = arith.addf %42, %47 : vector<16x32xf32>
    %c0_46 = arith.constant 0 : index
    %c2_47 = arith.constant 2 : index
    %c2_48 = arith.constant 2 : index
    %c0_49 = arith.constant 0 : index
    %49 = vector.load %arg1[%c0_46, %c2_47, %c2_48, %c0_49] : memref<1x6x6x32xf32, #tpu.memory_space<vmem>>, vector<1x4x4x32xf32>
    %50 = vector.shape_cast %49 : vector<1x4x4x32xf32> to vector<4x4x32xf32>
    %51 = vector.shape_cast %50 : vector<4x4x32xf32> to vector<16x32xf32>
    %c256 = arith.constant 256 : index
    %c0_50 = arith.constant 0 : index
    %52 = vector.load %arg2[%c256, %c0_50] : memref<288x32xf32, #tpu.memory_space<vmem>>, vector<32x32xf32>
    %cst_51 = arith.constant dense<0.000000e+00> : vector<16x32xf32>
    %53 = tpu.matmul %51, %52, %cst_51 {dimension_numbers = #tpu.dot_dimension_numbers<[1], [0], [0], [1], [0, 0, 1, 1], [], []>} : vector<16x32xf32>, vector<32x32xf32>, vector<16x32xf32> -> vector<16x32xf32>
    %54 = arith.addf %48, %53 : vector<16x32xf32>
    %c0_52 = arith.constant 0 : index
    %c0_53 = arith.constant 0 : index
    %c0_54 = arith.constant 0 : index
    %55 = vector.load %arg3[%c0_52, %c0_53, %c0_54] : memref<1x16x32xf32, #tpu.memory_space<vmem>>, vector<1x16x32xf32>
    %56 = vector.shape_cast %55 : vector<1x16x32xf32> to vector<16x32xf32>
    %57 = vector.shape_cast %54 : vector<16x32xf32> to vector<1x16x32xf32>
    tpu.vector_store %arg3[%c0_52, %c0_53, %c0_54], %57 {strides = array<i32>} : memref<1x16x32xf32, #tpu.memory_space<vmem>>, vector<1x16x32xf32>,
    %cst_55 = arith.constant dense<0.000000e+00> : vector<32xf32>
    %58 = vector.multi_reduction <add>, %54, %cst_55 [0] : vector<16x32xf32> to vector<32xf32>
    %59 = vector.shape_cast %58 : vector<32xf32> to vector<1x32xf32>
    %60 = arith.mulf %54, %54 : vector<16x32xf32>
    %cst_56 = arith.constant dense<0.000000e+00> : vector<32xf32>
    %61 = vector.multi_reduction <add>, %60, %cst_56 [0] : vector<16x32xf32> to vector<32xf32>
    %62 = vector.shape_cast %61 : vector<32xf32> to vector<1x32xf32>
    %c0_i32 = arith.constant 0 : i32
    %63 = arith.cmpi eq, %arg0, %c0_i32 : i32
    %64 = arith.extui %63 : i1 to i32
    %c0_i32_57 = arith.constant 0 : i32
    %65 = arith.cmpi ne, %64, %c0_i32_57 : i32
    scf.if %65 {
      %cst_62 = arith.constant 0.000000e+00 : f32
      %70 = vector.broadcast %cst_62 : f32 to vector<2x32xf32>
      %c0_63 = arith.constant 0 : index
      %c0_64 = arith.constant 0 : index
      %71 = vector.load %arg4[%c0_63, %c0_64] : memref<2x32xf32, #tpu.memory_space<vmem>>, vector<2x32xf32>
      tpu.vector_store %arg4[%c0_63, %c0_64], %70 {strides = array<i32>} : memref<2x32xf32, #tpu.memory_space<vmem>>, vector<2x32xf32>,
    } else {
    }
    %c0_58 = arith.constant 0 : index
    %c0_59 = arith.constant 0 : index
    %66 = vector.load %arg4[%c0_58, %c0_59] : memref<2x32xf32, #tpu.memory_space<vmem>>, vector<2x32xf32>
    %67 = tpu.concatenate %59, %62 in 0 : vector<1x32xf32>, vector<1x32xf32> -> vector<2x32xf32>
    %68 = arith.addf %66, %67 : vector<2x32xf32>
    %c0_60 = arith.constant 0 : index
    %c0_61 = arith.constant 0 : index
    %69 = vector.load %arg4[%c0_60, %c0_61] : memref<2x32xf32, #tpu.memory_space<vmem>>, vector<2x32xf32>
    tpu.vector_store %arg4[%c0_60, %c0_61], %68 {strides = array<i32>} : memref<2x32xf32, #tpu.memory_space<vmem>>, vector<2x32xf32>,
    return
  }
  func.func @transform_0(%arg0: i32) -> (i32, i32, i32, i32) {
    %c0_i32 = arith.constant 0 : i32
    %c0_i32_0 = arith.constant 0 : i32
    %c0_i32_1 = arith.constant 0 : i32
    %c0_i32_2 = arith.constant 0 : i32
    return %arg0, %c0_i32, %c0_i32_0, %c0_i32_1 : i32, i32, i32, i32
  }
  func.func @transform_1(%arg0: i32) -> (i32, i32) {
    %c0_i32 = arith.constant 0 : i32
    %c0_i32_0 = arith.constant 0 : i32
    %c0_i32_1 = arith.constant 0 : i32
    return %c0_i32, %c0_i32_0 : i32, i32
  }
  func.func @transform_2(%arg0: i32) -> (i32, i32, i32) {
    %c0_i32 = arith.constant 0 : i32
    %c0_i32_0 = arith.constant 0 : i32
    %c0_i32_1 = arith.constant 0 : i32
    return %arg0, %c0_i32, %c0_i32_0 : i32, i32, i32
  }
  func.func @transform_3(%arg0: i32) -> (i32, i32) {
    %c0_i32 = arith.constant 0 : i32
    %c0_i32_0 = arith.constant 0 : i32
    %c0_i32_1 = arith.constant 0 : i32
    return %c0_i32, %c0_i32_0 : i32, i32
  }
}

module attributes {stable_mosaic.version = 11 : i64} {
  func.func @_bn_relu_pool_kernel(%arg0: i32, %arg1: memref<1x16x32xf32, #tpu.memory_space<vmem>>, %arg2: memref<2x32xf32, #tpu.memory_space<vmem>>, %arg3: memref<1x32xf32, #tpu.memory_space<vmem>>, %arg4: memref<1x32xf32, #tpu.memory_space<vmem>>, %arg5: memref<1x4x32xf32, #tpu.memory_space<vmem>>) attributes {dimension_semantics = [#tpu.dimension_semantics<parallel>], iteration_bounds = array<i64: 2>, scalar_prefetch = 0 : i64, scratch_operands = 0 : i64, tpu.core_type = #tpu.core_type<tc>, window_params = [{transform_indices = @transform_0, window_bounds = array<i64: 1, 16, 32>}, {pipeline_mode = #tpu.pipeline_mode<synchronous>, transform_indices = @transform_1, window_bounds = array<i64: 2, 32>}, {pipeline_mode = #tpu.pipeline_mode<synchronous>, transform_indices = @transform_2, window_bounds = array<i64: 1, 32>}, {pipeline_mode = #tpu.pipeline_mode<synchronous>, transform_indices = @transform_3, window_bounds = array<i64: 1, 32>}, {transform_indices = @transform_4, window_bounds = array<i64: 1, 4, 32>}]} {
    %c0 = arith.constant 0 : index
    %c0_0 = arith.constant 0 : index
    %0 = vector.load %arg2[%c0, %c0_0] : memref<2x32xf32, #tpu.memory_space<vmem>>, vector<1x32xf32>
    %cst = arith.constant 3.125000e-02 : f32
    %1 = vector.broadcast %cst : f32 to vector<1x32xf32>
    %2 = arith.mulf %0, %1 : vector<1x32xf32>
    %c1 = arith.constant 1 : index
    %c0_1 = arith.constant 0 : index
    %3 = vector.load %arg2[%c1, %c0_1] : memref<2x32xf32, #tpu.memory_space<vmem>>, vector<1x32xf32>
    %cst_2 = arith.constant 3.125000e-02 : f32
    %4 = vector.broadcast %cst_2 : f32 to vector<1x32xf32>
    %5 = arith.mulf %3, %4 : vector<1x32xf32>
    %6 = arith.mulf %2, %2 : vector<1x32xf32>
    %7 = arith.subf %5, %6 : vector<1x32xf32>
    %c0_3 = arith.constant 0 : index
    %c0_4 = arith.constant 0 : index
    %8 = vector.load %arg3[%c0_3, %c0_4] : memref<1x32xf32, #tpu.memory_space<vmem>>, vector<1x32xf32>
    %cst_5 = arith.constant 9.99999974E-6 : f32
    %9 = vector.broadcast %cst_5 : f32 to vector<1x32xf32>
    %10 = arith.addf %7, %9 : vector<1x32xf32>
    %11 = math.rsqrt %10 : vector<1x32xf32>
    %12 = arith.mulf %8, %11 : vector<1x32xf32>
    %c0_6 = arith.constant 0 : index
    %c0_7 = arith.constant 0 : index
    %13 = vector.load %arg4[%c0_6, %c0_7] : memref<1x32xf32, #tpu.memory_space<vmem>>, vector<1x32xf32>
    %14 = arith.mulf %2, %12 : vector<1x32xf32>
    %15 = arith.subf %13, %14 : vector<1x32xf32>
    %c0_8 = arith.constant 0 : index
    %c0_9 = arith.constant 0 : index
    %c0_10 = arith.constant 0 : index
    %16 = vector.load %arg1[%c0_8, %c0_9, %c0_10] : memref<1x16x32xf32, #tpu.memory_space<vmem>>, vector<1x16x32xf32>
    %17 = vector.shape_cast %16 : vector<1x16x32xf32> to vector<16x32xf32>
    %18 = vector.broadcast %12 : vector<1x32xf32> to vector<16x32xf32>
    %19 = arith.mulf %17, %18 : vector<16x32xf32>
    %20 = vector.broadcast %15 : vector<1x32xf32> to vector<16x32xf32>
    %21 = arith.addf %19, %20 : vector<16x32xf32>
    %cst_11 = arith.constant 0.000000e+00 : f32
    %22 = vector.broadcast %cst_11 : f32 to vector<16x32xf32>
    %23 = arith.maximumf %21, %22 : vector<16x32xf32>
    %24 = tpu.iota {dimensions = array<i32: 0>} : vector<4x16xi32>
    %25 = tpu.iota {dimensions = array<i32: 1>} : vector<4x16xi32>
    %c1_i32 = arith.constant 1 : i32
    %26 = vector.broadcast %c1_i32 : i32 to vector<4x16xi32>
    %27 = arith.shrsi %24, %26 : vector<4x16xi32>
    %c1_i32_12 = arith.constant 1 : i32
    %28 = vector.broadcast %c1_i32_12 : i32 to vector<4x16xi32>
    %29 = arith.andi %24, %28 : vector<4x16xi32>
    %c2_i32 = arith.constant 2 : i32
    %30 = vector.broadcast %c2_i32 : i32 to vector<4x16xi32>
    %31 = arith.muli %30, %27 : vector<4x16xi32>
    %c4_i32 = arith.constant 4 : i32
    %32 = vector.broadcast %c4_i32 : i32 to vector<4x16xi32>
    %33 = arith.muli %31, %32 : vector<4x16xi32>
    %c2_i32_13 = arith.constant 2 : i32
    %34 = vector.broadcast %c2_i32_13 : i32 to vector<4x16xi32>
    %35 = arith.muli %34, %29 : vector<4x16xi32>
    %36 = arith.addi %33, %35 : vector<4x16xi32>
    %c0_i32 = arith.constant 0 : i32
    %37 = vector.broadcast %c0_i32 : i32 to vector<4x16xi32>
    %38 = arith.addi %36, %37 : vector<4x16xi32>
    %c0_i32_14 = arith.constant 0 : i32
    %39 = vector.broadcast %c0_i32_14 : i32 to vector<4x16xi32>
    %40 = arith.addi %38, %39 : vector<4x16xi32>
    %41 = arith.cmpi eq, %25, %40 : vector<4x16xi32>
    %42 = arith.extui %41 : vector<4x16xi1> to vector<4x16xi32>
    %43 = arith.sitofp %42 : vector<4x16xi32> to vector<4x16xf32>
    %cst_15 = arith.constant dense<0.000000e+00> : vector<4x32xf32>
    %44 = tpu.matmul %43, %23, %cst_15 {dimension_numbers = #tpu.dot_dimension_numbers<[1], [0], [0], [1], [0, 0, 1, 1], [], []>} : vector<4x16xf32>, vector<16x32xf32>, vector<4x32xf32> -> vector<4x32xf32>
    %c0_i32_16 = arith.constant 0 : i32
    %45 = vector.broadcast %c0_i32_16 : i32 to vector<4x16xi32>
    %46 = arith.addi %36, %45 : vector<4x16xi32>
    %c1_i32_17 = arith.constant 1 : i32
    %47 = vector.broadcast %c1_i32_17 : i32 to vector<4x16xi32>
    %48 = arith.addi %46, %47 : vector<4x16xi32>
    %49 = arith.cmpi eq, %25, %48 : vector<4x16xi32>
    %50 = arith.extui %49 : vector<4x16xi1> to vector<4x16xi32>
    %51 = arith.sitofp %50 : vector<4x16xi32> to vector<4x16xf32>
    %cst_18 = arith.constant dense<0.000000e+00> : vector<4x32xf32>
    %52 = tpu.matmul %51, %23, %cst_18 {dimension_numbers = #tpu.dot_dimension_numbers<[1], [0], [0], [1], [0, 0, 1, 1], [], []>} : vector<4x16xf32>, vector<16x32xf32>, vector<4x32xf32> -> vector<4x32xf32>
    %53 = arith.maximumf %44, %52 : vector<4x32xf32>
    %c4_i32_19 = arith.constant 4 : i32
    %54 = vector.broadcast %c4_i32_19 : i32 to vector<4x16xi32>
    %55 = arith.addi %36, %54 : vector<4x16xi32>
    %c0_i32_20 = arith.constant 0 : i32
    %56 = vector.broadcast %c0_i32_20 : i32 to vector<4x16xi32>
    %57 = arith.addi %55, %56 : vector<4x16xi32>
    %58 = arith.cmpi eq, %25, %57 : vector<4x16xi32>
    %59 = arith.extui %58 : vector<4x16xi1> to vector<4x16xi32>
    %60 = arith.sitofp %59 : vector<4x16xi32> to vector<4x16xf32>
    %cst_21 = arith.constant dense<0.000000e+00> : vector<4x32xf32>
    %61 = tpu.matmul %60, %23, %cst_21 {dimension_numbers = #tpu.dot_dimension_numbers<[1], [0], [0], [1], [0, 0, 1, 1], [], []>} : vector<4x16xf32>, vector<16x32xf32>, vector<4x32xf32> -> vector<4x32xf32>
    %62 = arith.maximumf %53, %61 : vector<4x32xf32>
    %c4_i32_22 = arith.constant 4 : i32
    %63 = vector.broadcast %c4_i32_22 : i32 to vector<4x16xi32>
    %64 = arith.addi %36, %63 : vector<4x16xi32>
    %c1_i32_23 = arith.constant 1 : i32
    %65 = vector.broadcast %c1_i32_23 : i32 to vector<4x16xi32>
    %66 = arith.addi %64, %65 : vector<4x16xi32>
    %67 = arith.cmpi eq, %25, %66 : vector<4x16xi32>
    %68 = arith.extui %67 : vector<4x16xi1> to vector<4x16xi32>
    %69 = arith.sitofp %68 : vector<4x16xi32> to vector<4x16xf32>
    %cst_24 = arith.constant dense<0.000000e+00> : vector<4x32xf32>
    %70 = tpu.matmul %69, %23, %cst_24 {dimension_numbers = #tpu.dot_dimension_numbers<[1], [0], [0], [1], [0, 0, 1, 1], [], []>} : vector<4x16xf32>, vector<16x32xf32>, vector<4x32xf32> -> vector<4x32xf32>
    %71 = arith.maximumf %62, %70 : vector<4x32xf32>
    %c0_25 = arith.constant 0 : index
    %c0_26 = arith.constant 0 : index
    %c0_27 = arith.constant 0 : index
    %72 = vector.load %arg5[%c0_25, %c0_26, %c0_27] : memref<1x4x32xf32, #tpu.memory_space<vmem>>, vector<1x4x32xf32>
    %73 = vector.shape_cast %72 : vector<1x4x32xf32> to vector<4x32xf32>
    %74 = vector.shape_cast %71 : vector<4x32xf32> to vector<1x4x32xf32>
    tpu.vector_store %arg5[%c0_25, %c0_26, %c0_27], %74 {strides = array<i32>} : memref<1x4x32xf32, #tpu.memory_space<vmem>>, vector<1x4x32xf32>,
    return
  }
  func.func @transform_0(%arg0: i32) -> (i32, i32, i32) {
    %c0_i32 = arith.constant 0 : i32
    %c0_i32_0 = arith.constant 0 : i32
    %c0_i32_1 = arith.constant 0 : i32
    return %arg0, %c0_i32, %c0_i32_0 : i32, i32, i32
  }
  func.func @transform_1(%arg0: i32) -> (i32, i32) {
    %c0_i32 = arith.constant 0 : i32
    %c0_i32_0 = arith.constant 0 : i32
    %c0_i32_1 = arith.constant 0 : i32
    return %c0_i32, %c0_i32_0 : i32, i32
  }
  func.func @transform_2(%arg0: i32) -> (i32, i32) {
    %c0_i32 = arith.constant 0 : i32
    %c0_i32_0 = arith.constant 0 : i32
    %c0_i32_1 = arith.constant 0 : i32
    return %c0_i32, %c0_i32_0 : i32, i32
  }
  func.func @transform_3(%arg0: i32) -> (i32, i32) {
    %c0_i32 = arith.constant 0 : i32
    %c0_i32_0 = arith.constant 0 : i32
    %c0_i32_1 = arith.constant 0 : i32
    return %c0_i32, %c0_i32_0 : i32, i32
  }
  func.func @transform_4(%arg0: i32) -> (i32, i32, i32) {
    %c0_i32 = arith.constant 0 : i32
    %c0_i32_0 = arith.constant 0 : i32
    %c0_i32_1 = arith.constant 0 : i32
    return %arg0, %c0_i32, %c0_i32_0 : i32, i32, i32
  }
}

module attributes {stable_mosaic.version = 11 : i64} {
  func.func @_conv_bn_stats_kernel(%arg0: i32, %arg1: memref<1x4x4x32xf32, #tpu.memory_space<vmem>>, %arg2: memref<288x32xf32, #tpu.memory_space<vmem>>, %arg3: memref<1x4x32xf32, #tpu.memory_space<vmem>>, %arg4: memref<2x32xf32, #tpu.memory_space<vmem>>) attributes {dimension_semantics = [#tpu.dimension_semantics<arbitrary>], iteration_bounds = array<i64: 2>, scalar_prefetch = 0 : i64, scratch_operands = 0 : i64, tpu.core_type = #tpu.core_type<tc>, window_params = [{transform_indices = @transform_0, window_bounds = array<i64: 1, 4, 4, 32>}, {pipeline_mode = #tpu.pipeline_mode<synchronous>, transform_indices = @transform_1, window_bounds = array<i64: 288, 32>}, {transform_indices = @transform_2, window_bounds = array<i64: 1, 4, 32>}, {pipeline_mode = #tpu.pipeline_mode<synchronous>, transform_indices = @transform_3, window_bounds = array<i64: 2, 32>}]} {
    %cst = arith.constant 0.000000e+00 : f32
    %0 = vector.broadcast %cst : f32 to vector<4x32xf32>
    %c0 = arith.constant 0 : index
    %c0_0 = arith.constant 0 : index
    %c0_1 = arith.constant 0 : index
    %c0_2 = arith.constant 0 : index
    %1 = vector.load %arg1[%c0, %c0_0, %c0_1, %c0_2] : memref<1x4x4x32xf32, #tpu.memory_space<vmem>>, vector<1x2x2x32xf32>
    %2 = vector.shape_cast %1 : vector<1x2x2x32xf32> to vector<2x2x32xf32>
    %3 = vector.shape_cast %2 : vector<2x2x32xf32> to vector<4x32xf32>
    %c0_3 = arith.constant 0 : index
    %c0_4 = arith.constant 0 : index
    %4 = vector.load %arg2[%c0_3, %c0_4] : memref<288x32xf32, #tpu.memory_space<vmem>>, vector<32x32xf32>
    %cst_5 = arith.constant dense<0.000000e+00> : vector<4x32xf32>
    %5 = tpu.matmul %3, %4, %cst_5 {dimension_numbers = #tpu.dot_dimension_numbers<[1], [0], [0], [1], [0, 0, 1, 1], [], []>} : vector<4x32xf32>, vector<32x32xf32>, vector<4x32xf32> -> vector<4x32xf32>
    %6 = arith.addf %0, %5 : vector<4x32xf32>
    %c0_6 = arith.constant 0 : index
    %c0_7 = arith.constant 0 : index
    %c1 = arith.constant 1 : index
    %c0_8 = arith.constant 0 : index
    %7 = vector.load %arg1[%c0_6, %c0_7, %c1, %c0_8] : memref<1x4x4x32xf32, #tpu.memory_space<vmem>>, vector<1x2x2x32xf32>
    %8 = vector.shape_cast %7 : vector<1x2x2x32xf32> to vector<2x2x32xf32>
    %9 = vector.shape_cast %8 : vector<2x2x32xf32> to vector<4x32xf32>
    %c32 = arith.constant 32 : index
    %c0_9 = arith.constant 0 : index
    %10 = vector.load %arg2[%c32, %c0_9] : memref<288x32xf32, #tpu.memory_space<vmem>>, vector<32x32xf32>
    %cst_10 = arith.constant dense<0.000000e+00> : vector<4x32xf32>
    %11 = tpu.matmul %9, %10, %cst_10 {dimension_numbers = #tpu.dot_dimension_numbers<[1], [0], [0], [1], [0, 0, 1, 1], [], []>} : vector<4x32xf32>, vector<32x32xf32>, vector<4x32xf32> -> vector<4x32xf32>
    %12 = arith.addf %6, %11 : vector<4x32xf32>
    %c0_11 = arith.constant 0 : index
    %c0_12 = arith.constant 0 : index
    %c2 = arith.constant 2 : index
    %c0_13 = arith.constant 0 : index
    %13 = vector.load %arg1[%c0_11, %c0_12, %c2, %c0_13] : memref<1x4x4x32xf32, #tpu.memory_space<vmem>>, vector<1x2x2x32xf32>
    %14 = vector.shape_cast %13 : vector<1x2x2x32xf32> to vector<2x2x32xf32>
    %15 = vector.shape_cast %14 : vector<2x2x32xf32> to vector<4x32xf32>
    %c64 = arith.constant 64 : index
    %c0_14 = arith.constant 0 : index
    %16 = vector.load %arg2[%c64, %c0_14] : memref<288x32xf32, #tpu.memory_space<vmem>>, vector<32x32xf32>
    %cst_15 = arith.constant dense<0.000000e+00> : vector<4x32xf32>
    %17 = tpu.matmul %15, %16, %cst_15 {dimension_numbers = #tpu.dot_dimension_numbers<[1], [0], [0], [1], [0, 0, 1, 1], [], []>} : vector<4x32xf32>, vector<32x32xf32>, vector<4x32xf32> -> vector<4x32xf32>
    %18 = arith.addf %12, %17 : vector<4x32xf32>
    %c0_16 = arith.constant 0 : index
    %c1_17 = arith.constant 1 : index
    %c0_18 = arith.constant 0 : index
    %c0_19 = arith.constant 0 : index
    %19 = vector.load %arg1[%c0_16, %c1_17, %c0_18, %c0_19] : memref<1x4x4x32xf32, #tpu.memory_space<vmem>>, vector<1x2x2x32xf32>
    %20 = vector.shape_cast %19 : vector<1x2x2x32xf32> to vector<2x2x32xf32>
    %21 = vector.shape_cast %20 : vector<2x2x32xf32> to vector<4x32xf32>
    %c96 = arith.constant 96 : index
    %c0_20 = arith.constant 0 : index
    %22 = vector.load %arg2[%c96, %c0_20] : memref<288x32xf32, #tpu.memory_space<vmem>>, vector<32x32xf32>
    %cst_21 = arith.constant dense<0.000000e+00> : vector<4x32xf32>
    %23 = tpu.matmul %21, %22, %cst_21 {dimension_numbers = #tpu.dot_dimension_numbers<[1], [0], [0], [1], [0, 0, 1, 1], [], []>} : vector<4x32xf32>, vector<32x32xf32>, vector<4x32xf32> -> vector<4x32xf32>
    %24 = arith.addf %18, %23 : vector<4x32xf32>
    %c0_22 = arith.constant 0 : index
    %c1_23 = arith.constant 1 : index
    %c1_24 = arith.constant 1 : index
    %c0_25 = arith.constant 0 : index
    %25 = vector.load %arg1[%c0_22, %c1_23, %c1_24, %c0_25] : memref<1x4x4x32xf32, #tpu.memory_space<vmem>>, vector<1x2x2x32xf32>
    %26 = vector.shape_cast %25 : vector<1x2x2x32xf32> to vector<2x2x32xf32>
    %27 = vector.shape_cast %26 : vector<2x2x32xf32> to vector<4x32xf32>
    %c128 = arith.constant 128 : index
    %c0_26 = arith.constant 0 : index
    %28 = vector.load %arg2[%c128, %c0_26] : memref<288x32xf32, #tpu.memory_space<vmem>>, vector<32x32xf32>
    %cst_27 = arith.constant dense<0.000000e+00> : vector<4x32xf32>
    %29 = tpu.matmul %27, %28, %cst_27 {dimension_numbers = #tpu.dot_dimension_numbers<[1], [0], [0], [1], [0, 0, 1, 1], [], []>} : vector<4x32xf32>, vector<32x32xf32>, vector<4x32xf32> -> vector<4x32xf32>
    %30 = arith.addf %24, %29 : vector<4x32xf32>
    %c0_28 = arith.constant 0 : index
    %c1_29 = arith.constant 1 : index
    %c2_30 = arith.constant 2 : index
    %c0_31 = arith.constant 0 : index
    %31 = vector.load %arg1[%c0_28, %c1_29, %c2_30, %c0_31] : memref<1x4x4x32xf32, #tpu.memory_space<vmem>>, vector<1x2x2x32xf32>
    %32 = vector.shape_cast %31 : vector<1x2x2x32xf32> to vector<2x2x32xf32>
    %33 = vector.shape_cast %32 : vector<2x2x32xf32> to vector<4x32xf32>
    %c160 = arith.constant 160 : index
    %c0_32 = arith.constant 0 : index
    %34 = vector.load %arg2[%c160, %c0_32] : memref<288x32xf32, #tpu.memory_space<vmem>>, vector<32x32xf32>
    %cst_33 = arith.constant dense<0.000000e+00> : vector<4x32xf32>
    %35 = tpu.matmul %33, %34, %cst_33 {dimension_numbers = #tpu.dot_dimension_numbers<[1], [0], [0], [1], [0, 0, 1, 1], [], []>} : vector<4x32xf32>, vector<32x32xf32>, vector<4x32xf32> -> vector<4x32xf32>
    %36 = arith.addf %30, %35 : vector<4x32xf32>
    %c0_34 = arith.constant 0 : index
    %c2_35 = arith.constant 2 : index
    %c0_36 = arith.constant 0 : index
    %c0_37 = arith.constant 0 : index
    %37 = vector.load %arg1[%c0_34, %c2_35, %c0_36, %c0_37] : memref<1x4x4x32xf32, #tpu.memory_space<vmem>>, vector<1x2x2x32xf32>
    %38 = vector.shape_cast %37 : vector<1x2x2x32xf32> to vector<2x2x32xf32>
    %39 = vector.shape_cast %38 : vector<2x2x32xf32> to vector<4x32xf32>
    %c192 = arith.constant 192 : index
    %c0_38 = arith.constant 0 : index
    %40 = vector.load %arg2[%c192, %c0_38] : memref<288x32xf32, #tpu.memory_space<vmem>>, vector<32x32xf32>
    %cst_39 = arith.constant dense<0.000000e+00> : vector<4x32xf32>
    %41 = tpu.matmul %39, %40, %cst_39 {dimension_numbers = #tpu.dot_dimension_numbers<[1], [0], [0], [1], [0, 0, 1, 1], [], []>} : vector<4x32xf32>, vector<32x32xf32>, vector<4x32xf32> -> vector<4x32xf32>
    %42 = arith.addf %36, %41 : vector<4x32xf32>
    %c0_40 = arith.constant 0 : index
    %c2_41 = arith.constant 2 : index
    %c1_42 = arith.constant 1 : index
    %c0_43 = arith.constant 0 : index
    %43 = vector.load %arg1[%c0_40, %c2_41, %c1_42, %c0_43] : memref<1x4x4x32xf32, #tpu.memory_space<vmem>>, vector<1x2x2x32xf32>
    %44 = vector.shape_cast %43 : vector<1x2x2x32xf32> to vector<2x2x32xf32>
    %45 = vector.shape_cast %44 : vector<2x2x32xf32> to vector<4x32xf32>
    %c224 = arith.constant 224 : index
    %c0_44 = arith.constant 0 : index
    %46 = vector.load %arg2[%c224, %c0_44] : memref<288x32xf32, #tpu.memory_space<vmem>>, vector<32x32xf32>
    %cst_45 = arith.constant dense<0.000000e+00> : vector<4x32xf32>
    %47 = tpu.matmul %45, %46, %cst_45 {dimension_numbers = #tpu.dot_dimension_numbers<[1], [0], [0], [1], [0, 0, 1, 1], [], []>} : vector<4x32xf32>, vector<32x32xf32>, vector<4x32xf32> -> vector<4x32xf32>
    %48 = arith.addf %42, %47 : vector<4x32xf32>
    %c0_46 = arith.constant 0 : index
    %c2_47 = arith.constant 2 : index
    %c2_48 = arith.constant 2 : index
    %c0_49 = arith.constant 0 : index
    %49 = vector.load %arg1[%c0_46, %c2_47, %c2_48, %c0_49] : memref<1x4x4x32xf32, #tpu.memory_space<vmem>>, vector<1x2x2x32xf32>
    %50 = vector.shape_cast %49 : vector<1x2x2x32xf32> to vector<2x2x32xf32>
    %51 = vector.shape_cast %50 : vector<2x2x32xf32> to vector<4x32xf32>
    %c256 = arith.constant 256 : index
    %c0_50 = arith.constant 0 : index
    %52 = vector.load %arg2[%c256, %c0_50] : memref<288x32xf32, #tpu.memory_space<vmem>>, vector<32x32xf32>
    %cst_51 = arith.constant dense<0.000000e+00> : vector<4x32xf32>
    %53 = tpu.matmul %51, %52, %cst_51 {dimension_numbers = #tpu.dot_dimension_numbers<[1], [0], [0], [1], [0, 0, 1, 1], [], []>} : vector<4x32xf32>, vector<32x32xf32>, vector<4x32xf32> -> vector<4x32xf32>
    %54 = arith.addf %48, %53 : vector<4x32xf32>
    %c0_52 = arith.constant 0 : index
    %c0_53 = arith.constant 0 : index
    %c0_54 = arith.constant 0 : index
    %55 = vector.load %arg3[%c0_52, %c0_53, %c0_54] : memref<1x4x32xf32, #tpu.memory_space<vmem>>, vector<1x4x32xf32>
    %56 = vector.shape_cast %55 : vector<1x4x32xf32> to vector<4x32xf32>
    %57 = vector.shape_cast %54 : vector<4x32xf32> to vector<1x4x32xf32>
    tpu.vector_store %arg3[%c0_52, %c0_53, %c0_54], %57 {strides = array<i32>} : memref<1x4x32xf32, #tpu.memory_space<vmem>>, vector<1x4x32xf32>,
    %cst_55 = arith.constant dense<0.000000e+00> : vector<32xf32>
    %58 = vector.multi_reduction <add>, %54, %cst_55 [0] : vector<4x32xf32> to vector<32xf32>
    %59 = vector.shape_cast %58 : vector<32xf32> to vector<1x32xf32>
    %60 = arith.mulf %54, %54 : vector<4x32xf32>
    %cst_56 = arith.constant dense<0.000000e+00> : vector<32xf32>
    %61 = vector.multi_reduction <add>, %60, %cst_56 [0] : vector<4x32xf32> to vector<32xf32>
    %62 = vector.shape_cast %61 : vector<32xf32> to vector<1x32xf32>
    %c0_i32 = arith.constant 0 : i32
    %63 = arith.cmpi eq, %arg0, %c0_i32 : i32
    %64 = arith.extui %63 : i1 to i32
    %c0_i32_57 = arith.constant 0 : i32
    %65 = arith.cmpi ne, %64, %c0_i32_57 : i32
    scf.if %65 {
      %cst_62 = arith.constant 0.000000e+00 : f32
      %70 = vector.broadcast %cst_62 : f32 to vector<2x32xf32>
      %c0_63 = arith.constant 0 : index
      %c0_64 = arith.constant 0 : index
      %71 = vector.load %arg4[%c0_63, %c0_64] : memref<2x32xf32, #tpu.memory_space<vmem>>, vector<2x32xf32>
      tpu.vector_store %arg4[%c0_63, %c0_64], %70 {strides = array<i32>} : memref<2x32xf32, #tpu.memory_space<vmem>>, vector<2x32xf32>,
    } else {
    }
    %c0_58 = arith.constant 0 : index
    %c0_59 = arith.constant 0 : index
    %66 = vector.load %arg4[%c0_58, %c0_59] : memref<2x32xf32, #tpu.memory_space<vmem>>, vector<2x32xf32>
    %67 = tpu.concatenate %59, %62 in 0 : vector<1x32xf32>, vector<1x32xf32> -> vector<2x32xf32>
    %68 = arith.addf %66, %67 : vector<2x32xf32>
    %c0_60 = arith.constant 0 : index
    %c0_61 = arith.constant 0 : index
    %69 = vector.load %arg4[%c0_60, %c0_61] : memref<2x32xf32, #tpu.memory_space<vmem>>, vector<2x32xf32>
    tpu.vector_store %arg4[%c0_60, %c0_61], %68 {strides = array<i32>} : memref<2x32xf32, #tpu.memory_space<vmem>>, vector<2x32xf32>,
    return
  }
  func.func @transform_0(%arg0: i32) -> (i32, i32, i32, i32) {
    %c0_i32 = arith.constant 0 : i32
    %c0_i32_0 = arith.constant 0 : i32
    %c0_i32_1 = arith.constant 0 : i32
    %c0_i32_2 = arith.constant 0 : i32
    return %arg0, %c0_i32, %c0_i32_0, %c0_i32_1 : i32, i32, i32, i32
  }
  func.func @transform_1(%arg0: i32) -> (i32, i32) {
    %c0_i32 = arith.constant 0 : i32
    %c0_i32_0 = arith.constant 0 : i32
    %c0_i32_1 = arith.constant 0 : i32
    return %c0_i32, %c0_i32_0 : i32, i32
  }
  func.func @transform_2(%arg0: i32) -> (i32, i32, i32) {
    %c0_i32 = arith.constant 0 : i32
    %c0_i32_0 = arith.constant 0 : i32
    %c0_i32_1 = arith.constant 0 : i32
    return %arg0, %c0_i32, %c0_i32_0 : i32, i32, i32
  }
  func.func @transform_3(%arg0: i32) -> (i32, i32) {
    %c0_i32 = arith.constant 0 : i32
    %c0_i32_0 = arith.constant 0 : i32
    %c0_i32_1 = arith.constant 0 : i32
    return %c0_i32, %c0_i32_0 : i32, i32
  }
}

module attributes {stable_mosaic.version = 11 : i64} {
  func.func @_bn_relu_pool_kernel(%arg0: i32, %arg1: memref<1x4x32xf32, #tpu.memory_space<vmem>>, %arg2: memref<2x32xf32, #tpu.memory_space<vmem>>, %arg3: memref<1x32xf32, #tpu.memory_space<vmem>>, %arg4: memref<1x32xf32, #tpu.memory_space<vmem>>, %arg5: memref<1x1x32xf32, #tpu.memory_space<vmem>>) attributes {dimension_semantics = [#tpu.dimension_semantics<parallel>], iteration_bounds = array<i64: 2>, scalar_prefetch = 0 : i64, scratch_operands = 0 : i64, tpu.core_type = #tpu.core_type<tc>, window_params = [{transform_indices = @transform_0, window_bounds = array<i64: 1, 4, 32>}, {pipeline_mode = #tpu.pipeline_mode<synchronous>, transform_indices = @transform_1, window_bounds = array<i64: 2, 32>}, {pipeline_mode = #tpu.pipeline_mode<synchronous>, transform_indices = @transform_2, window_bounds = array<i64: 1, 32>}, {pipeline_mode = #tpu.pipeline_mode<synchronous>, transform_indices = @transform_3, window_bounds = array<i64: 1, 32>}, {transform_indices = @transform_4, window_bounds = array<i64: 1, 1, 32>}]} {
    %c0 = arith.constant 0 : index
    %c0_0 = arith.constant 0 : index
    %0 = vector.load %arg2[%c0, %c0_0] : memref<2x32xf32, #tpu.memory_space<vmem>>, vector<1x32xf32>
    %cst = arith.constant 1.250000e-01 : f32
    %1 = vector.broadcast %cst : f32 to vector<1x32xf32>
    %2 = arith.mulf %0, %1 : vector<1x32xf32>
    %c1 = arith.constant 1 : index
    %c0_1 = arith.constant 0 : index
    %3 = vector.load %arg2[%c1, %c0_1] : memref<2x32xf32, #tpu.memory_space<vmem>>, vector<1x32xf32>
    %cst_2 = arith.constant 1.250000e-01 : f32
    %4 = vector.broadcast %cst_2 : f32 to vector<1x32xf32>
    %5 = arith.mulf %3, %4 : vector<1x32xf32>
    %6 = arith.mulf %2, %2 : vector<1x32xf32>
    %7 = arith.subf %5, %6 : vector<1x32xf32>
    %c0_3 = arith.constant 0 : index
    %c0_4 = arith.constant 0 : index
    %8 = vector.load %arg3[%c0_3, %c0_4] : memref<1x32xf32, #tpu.memory_space<vmem>>, vector<1x32xf32>
    %cst_5 = arith.constant 9.99999974E-6 : f32
    %9 = vector.broadcast %cst_5 : f32 to vector<1x32xf32>
    %10 = arith.addf %7, %9 : vector<1x32xf32>
    %11 = math.rsqrt %10 : vector<1x32xf32>
    %12 = arith.mulf %8, %11 : vector<1x32xf32>
    %c0_6 = arith.constant 0 : index
    %c0_7 = arith.constant 0 : index
    %13 = vector.load %arg4[%c0_6, %c0_7] : memref<1x32xf32, #tpu.memory_space<vmem>>, vector<1x32xf32>
    %14 = arith.mulf %2, %12 : vector<1x32xf32>
    %15 = arith.subf %13, %14 : vector<1x32xf32>
    %c0_8 = arith.constant 0 : index
    %c0_9 = arith.constant 0 : index
    %c0_10 = arith.constant 0 : index
    %16 = vector.load %arg1[%c0_8, %c0_9, %c0_10] : memref<1x4x32xf32, #tpu.memory_space<vmem>>, vector<1x4x32xf32>
    %17 = vector.shape_cast %16 : vector<1x4x32xf32> to vector<4x32xf32>
    %18 = vector.broadcast %12 : vector<1x32xf32> to vector<4x32xf32>
    %19 = arith.mulf %17, %18 : vector<4x32xf32>
    %20 = vector.broadcast %15 : vector<1x32xf32> to vector<4x32xf32>
    %21 = arith.addf %19, %20 : vector<4x32xf32>
    %cst_11 = arith.constant 0.000000e+00 : f32
    %22 = vector.broadcast %cst_11 : f32 to vector<4x32xf32>
    %23 = arith.maximumf %21, %22 : vector<4x32xf32>
    %24 = tpu.iota {dimensions = array<i32: 0>} : vector<1x4xi32>
    %25 = tpu.iota {dimensions = array<i32: 1>} : vector<1x4xi32>
    %c0_i32 = arith.constant 0 : i32
    %26 = vector.broadcast %c0_i32 : i32 to vector<1x4xi32>
    %27 = arith.shrsi %24, %26 : vector<1x4xi32>
    %c0_i32_12 = arith.constant 0 : i32
    %28 = vector.broadcast %c0_i32_12 : i32 to vector<1x4xi32>
    %29 = arith.andi %24, %28 : vector<1x4xi32>
    %c2_i32 = arith.constant 2 : i32
    %30 = vector.broadcast %c2_i32 : i32 to vector<1x4xi32>
    %31 = arith.muli %30, %27 : vector<1x4xi32>
    %c2_i32_13 = arith.constant 2 : i32
    %32 = vector.broadcast %c2_i32_13 : i32 to vector<1x4xi32>
    %33 = arith.muli %31, %32 : vector<1x4xi32>
    %c2_i32_14 = arith.constant 2 : i32
    %34 = vector.broadcast %c2_i32_14 : i32 to vector<1x4xi32>
    %35 = arith.muli %34, %29 : vector<1x4xi32>
    %36 = arith.addi %33, %35 : vector<1x4xi32>
    %c0_i32_15 = arith.constant 0 : i32
    %37 = vector.broadcast %c0_i32_15 : i32 to vector<1x4xi32>
    %38 = arith.addi %36, %37 : vector<1x4xi32>
    %c0_i32_16 = arith.constant 0 : i32
    %39 = vector.broadcast %c0_i32_16 : i32 to vector<1x4xi32>
    %40 = arith.addi %38, %39 : vector<1x4xi32>
    %41 = arith.cmpi eq, %25, %40 : vector<1x4xi32>
    %42 = arith.extui %41 : vector<1x4xi1> to vector<1x4xi32>
    %43 = arith.sitofp %42 : vector<1x4xi32> to vector<1x4xf32>
    %cst_17 = arith.constant dense<0.000000e+00> : vector<1x32xf32>
    %44 = tpu.matmul %43, %23, %cst_17 {dimension_numbers = #tpu.dot_dimension_numbers<[1], [0], [0], [1], [0, 0, 1, 1], [], []>} : vector<1x4xf32>, vector<4x32xf32>, vector<1x32xf32> -> vector<1x32xf32>
    %c0_i32_18 = arith.constant 0 : i32
    %45 = vector.broadcast %c0_i32_18 : i32 to vector<1x4xi32>
    %46 = arith.addi %36, %45 : vector<1x4xi32>
    %c1_i32 = arith.constant 1 : i32
    %47 = vector.broadcast %c1_i32 : i32 to vector<1x4xi32>
    %48 = arith.addi %46, %47 : vector<1x4xi32>
    %49 = arith.cmpi eq, %25, %48 : vector<1x4xi32>
    %50 = arith.extui %49 : vector<1x4xi1> to vector<1x4xi32>
    %51 = arith.sitofp %50 : vector<1x4xi32> to vector<1x4xf32>
    %cst_19 = arith.constant dense<0.000000e+00> : vector<1x32xf32>
    %52 = tpu.matmul %51, %23, %cst_19 {dimension_numbers = #tpu.dot_dimension_numbers<[1], [0], [0], [1], [0, 0, 1, 1], [], []>} : vector<1x4xf32>, vector<4x32xf32>, vector<1x32xf32> -> vector<1x32xf32>
    %53 = arith.maximumf %44, %52 : vector<1x32xf32>
    %c2_i32_20 = arith.constant 2 : i32
    %54 = vector.broadcast %c2_i32_20 : i32 to vector<1x4xi32>
    %55 = arith.addi %36, %54 : vector<1x4xi32>
    %c0_i32_21 = arith.constant 0 : i32
    %56 = vector.broadcast %c0_i32_21 : i32 to vector<1x4xi32>
    %57 = arith.addi %55, %56 : vector<1x4xi32>
    %58 = arith.cmpi eq, %25, %57 : vector<1x4xi32>
    %59 = arith.extui %58 : vector<1x4xi1> to vector<1x4xi32>
    %60 = arith.sitofp %59 : vector<1x4xi32> to vector<1x4xf32>
    %cst_22 = arith.constant dense<0.000000e+00> : vector<1x32xf32>
    %61 = tpu.matmul %60, %23, %cst_22 {dimension_numbers = #tpu.dot_dimension_numbers<[1], [0], [0], [1], [0, 0, 1, 1], [], []>} : vector<1x4xf32>, vector<4x32xf32>, vector<1x32xf32> -> vector<1x32xf32>
    %62 = arith.maximumf %53, %61 : vector<1x32xf32>
    %c2_i32_23 = arith.constant 2 : i32
    %63 = vector.broadcast %c2_i32_23 : i32 to vector<1x4xi32>
    %64 = arith.addi %36, %63 : vector<1x4xi32>
    %c1_i32_24 = arith.constant 1 : i32
    %65 = vector.broadcast %c1_i32_24 : i32 to vector<1x4xi32>
    %66 = arith.addi %64, %65 : vector<1x4xi32>
    %67 = arith.cmpi eq, %25, %66 : vector<1x4xi32>
    %68 = arith.extui %67 : vector<1x4xi1> to vector<1x4xi32>
    %69 = arith.sitofp %68 : vector<1x4xi32> to vector<1x4xf32>
    %cst_25 = arith.constant dense<0.000000e+00> : vector<1x32xf32>
    %70 = tpu.matmul %69, %23, %cst_25 {dimension_numbers = #tpu.dot_dimension_numbers<[1], [0], [0], [1], [0, 0, 1, 1], [], []>} : vector<1x4xf32>, vector<4x32xf32>, vector<1x32xf32> -> vector<1x32xf32>
    %71 = arith.maximumf %62, %70 : vector<1x32xf32>
    %c0_26 = arith.constant 0 : index
    %c0_27 = arith.constant 0 : index
    %c0_28 = arith.constant 0 : index
    %72 = vector.load %arg5[%c0_26, %c0_27, %c0_28] : memref<1x1x32xf32, #tpu.memory_space<vmem>>, vector<1x1x32xf32>
    %73 = vector.shape_cast %72 : vector<1x1x32xf32> to vector<1x32xf32>
    %74 = vector.shape_cast %71 : vector<1x32xf32> to vector<1x1x32xf32>
    tpu.vector_store %arg5[%c0_26, %c0_27, %c0_28], %74 {strides = array<i32>} : memref<1x1x32xf32, #tpu.memory_space<vmem>>, vector<1x1x32xf32>,
    return
  }
  func.func @transform_0(%arg0: i32) -> (i32, i32, i32) {
    %c0_i32 = arith.constant 0 : i32
    %c0_i32_0 = arith.constant 0 : i32
    %c0_i32_1 = arith.constant 0 : i32
    return %arg0, %c0_i32, %c0_i32_0 : i32, i32, i32
  }
  func.func @transform_1(%arg0: i32) -> (i32, i32) {
    %c0_i32 = arith.constant 0 : i32
    %c0_i32_0 = arith.constant 0 : i32
    %c0_i32_1 = arith.constant 0 : i32
    return %c0_i32, %c0_i32_0 : i32, i32
  }
  func.func @transform_2(%arg0: i32) -> (i32, i32) {
    %c0_i32 = arith.constant 0 : i32
    %c0_i32_0 = arith.constant 0 : i32
    %c0_i32_1 = arith.constant 0 : i32
    return %c0_i32, %c0_i32_0 : i32, i32
  }
  func.func @transform_3(%arg0: i32) -> (i32, i32) {
    %c0_i32 = arith.constant 0 : i32
    %c0_i32_0 = arith.constant 0 : i32
    %c0_i32_1 = arith.constant 0 : i32
    return %c0_i32, %c0_i32_0 : i32, i32
  }
  func.func @transform_4(%arg0: i32) -> (i32, i32, i32) {
    %c0_i32 = arith.constant 0 : i32
    %c0_i32_0 = arith.constant 0 : i32
    %c0_i32_1 = arith.constant 0 : i32
    return %arg0, %c0_i32, %c0_i32_0 : i32, i32, i32
  }
}

module attributes {stable_mosaic.version = 11 : i64} {
  func.func @_dist_linear_kernel(%arg0: i32, %arg1: memref<2x32xf32, #tpu.memory_space<vmem>>, %arg2: memref<10x32xf32, #tpu.memory_space<vmem>>, %arg3: memref<10x1xf32, #tpu.memory_space<vmem>>, %arg4: memref<1x1xf32, #tpu.memory_space<vmem>>, %arg5: memref<2x10xf32, #tpu.memory_space<vmem>>) attributes {dimension_semantics = [#tpu.dimension_semantics<arbitrary>], iteration_bounds = array<i64: 1>, scalar_prefetch = 0 : i64, scratch_operands = 0 : i64, tpu.core_type = #tpu.core_type<tc>, window_params = [{pipeline_mode = #tpu.pipeline_mode<synchronous>, transform_indices = @transform_0, window_bounds = array<i64: 2, 32>}, {pipeline_mode = #tpu.pipeline_mode<synchronous>, transform_indices = @transform_1, window_bounds = array<i64: 10, 32>}, {pipeline_mode = #tpu.pipeline_mode<synchronous>, transform_indices = @transform_2, window_bounds = array<i64: 10, 1>}, {pipeline_mode = #tpu.pipeline_mode<synchronous>, transform_indices = @transform_3, window_bounds = array<i64: 1, 1>}, {pipeline_mode = #tpu.pipeline_mode<synchronous>, transform_indices = @transform_4, window_bounds = array<i64: 2, 10>}]} {
    %c0 = arith.constant 0 : index
    %c0_0 = arith.constant 0 : index
    %0 = vector.load %arg1[%c0, %c0_0] : memref<2x32xf32, #tpu.memory_space<vmem>>, vector<2x32xf32>
    %1 = arith.mulf %0, %0 : vector<2x32xf32>
    %cst = arith.constant dense<0.000000e+00> : vector<2xf32>
    %2 = vector.multi_reduction <add>, %1, %cst [1] : vector<2x32xf32> to vector<2xf32>
    %3 = vector.shape_cast %2 : vector<2xf32> to vector<2x1xf32>
    %4 = math.sqrt %3 : vector<2x1xf32>
    %cst_1 = arith.constant 9.99999974E-6 : f32
    %5 = vector.broadcast %cst_1 : f32 to vector<2x1xf32>
    %6 = arith.addf %4, %5 : vector<2x1xf32>
    %7 = vector.broadcast %6 : vector<2x1xf32> to vector<2x32xf32>
    %8 = arith.divf %0, %7 : vector<2x32xf32>
    %c0_2 = arith.constant 0 : index
    %c0_3 = arith.constant 0 : index
    %9 = vector.load %arg2[%c0_2, %c0_3] : memref<10x32xf32, #tpu.memory_space<vmem>>, vector<10x32xf32>
    %c0_4 = arith.constant 0 : index
    %c0_5 = arith.constant 0 : index
    %10 = vector.load %arg3[%c0_4, %c0_5] : memref<10x1xf32, #tpu.memory_space<vmem>>, vector<10x1xf32>
    %11 = arith.mulf %9, %9 : vector<10x32xf32>
    %cst_6 = arith.constant dense<0.000000e+00> : vector<10xf32>
    %12 = vector.multi_reduction <add>, %11, %cst_6 [1] : vector<10x32xf32> to vector<10xf32>
    %13 = vector.shape_cast %12 : vector<10xf32> to vector<10x1xf32>
    %14 = math.sqrt %13 : vector<10x1xf32>
    %15 = arith.divf %10, %14 : vector<10x1xf32>
    %16 = vector.broadcast %15 : vector<10x1xf32> to vector<10x32xf32>
    %17 = arith.mulf %9, %16 : vector<10x32xf32>
    %cst_7 = arith.constant dense<0.000000e+00> : vector<2x10xf32>
    %18 = tpu.matmul %8, %17, %cst_7 {dimension_numbers = #tpu.dot_dimension_numbers<[1], [1], [0], [0], [0, 0, 1, 0], [], []>} : vector<2x32xf32>, vector<10x32xf32>, vector<2x10xf32> -> vector<2x10xf32>
    %c0_8 = arith.constant 0 : index
    %c0_9 = arith.constant 0 : index
    %19 = vector.load %arg4[%c0_8, %c0_9] : memref<1x1xf32, #tpu.memory_space<vmem>>, vector<1x1xf32>
    %20 = vector.broadcast %19 : vector<1x1xf32> to vector<2x10xf32>
    %21 = arith.mulf %18, %20 : vector<2x10xf32>
    %c0_10 = arith.constant 0 : index
    %c0_11 = arith.constant 0 : index
    %22 = vector.load %arg5[%c0_10, %c0_11] : memref<2x10xf32, #tpu.memory_space<vmem>>, vector<2x10xf32>
    tpu.vector_store %arg5[%c0_10, %c0_11], %21 {strides = array<i32>} : memref<2x10xf32, #tpu.memory_space<vmem>>, vector<2x10xf32>,
    return
  }
  func.func @transform_0(%arg0: i32) -> (i32, i32) {
    %c0_i32 = arith.constant 0 : i32
    %c0_i32_0 = arith.constant 0 : i32
    %c0_i32_1 = arith.constant 0 : i32
    return %c0_i32, %c0_i32_0 : i32, i32
  }
  func.func @transform_1(%arg0: i32) -> (i32, i32) {
    %c0_i32 = arith.constant 0 : i32
    %c0_i32_0 = arith.constant 0 : i32
    %c0_i32_1 = arith.constant 0 : i32
    return %c0_i32, %c0_i32_0 : i32, i32
  }
  func.func @transform_2(%arg0: i32) -> (i32, i32) {
    %c0_i32 = arith.constant 0 : i32
    %c0_i32_0 = arith.constant 0 : i32
    %c0_i32_1 = arith.constant 0 : i32
    return %c0_i32, %c0_i32_0 : i32, i32
  }
  func.func @transform_3(%arg0: i32) -> (i32, i32) {
    %c0_i32 = arith.constant 0 : i32
    %c0_i32_0 = arith.constant 0 : i32
    %c0_i32_1 = arith.constant 0 : i32
    return %c0_i32, %c0_i32_0 : i32, i32
  }
  func.func @transform_4(%arg0: i32) -> (i32, i32) {
    %c0_i32 = arith.constant 0 : i32
    %c0_i32_0 = arith.constant 0 : i32
    %c0_i32_1 = arith.constant 0 : i32
    return %c0_i32, %c0_i32_0 : i32, i32
  }
}

</mosaic_0001>

<llo_original>
// kernel: baseline_train_forward.10
$region0: #{baseline_train_forward.10}
  #allocation0 [shape = 'u32[]', space=smem, size = 0x4, offset = 0x4, fixed_abs, tag = 'smem constant byte address 0x4 - core index']
  #allocation1 [shape = 'u32[72,128]{1,0:T(1,128)}', space=vmem, size = 0x9000, scoped, tag = 'internal scratch']
  %s0 = inlined_call_operand.vmem [shape: f32[2,256,32], index: 0, kind: input, shape index: {}]
  %s1 = inlined_call_operand.vmem [shape: f32[2,32], index: 1, kind: input, shape index: {}]
  %s2 = inlined_call_operand.vmem [shape: f32[1,32], index: 2, kind: input, shape index: {}]
  %s3 = inlined_call_operand.vmem [shape: f32[1,32], index: 3, kind: input, shape index: {}]
  %s4 = inlined_call_operand.vmem [shape: f32[2,64,32], index: 4, kind: output, shape index: {}]
  %s5 = sld [smem:[#allocation0]]
  $region49: #{baseline_train_forward.10} parent=0
    _
  %s7 = ssub.s32 1, %s5
  %s8 = scalar_select 0, %s7, %s5
  loop: start=0, step=1, limit=4
  $region2: #{baseline_train_forward.10} parent=0 // loop_pre_header
    _
  $region3: #{baseline_train_forward.10} parent=0 // loop_header
    %s10 = sphi 0, %s14
    %p11 = scmp.ge.s32.totalorder %s10, 4
    %s20 = sphi 0, %s22
    %s23 = sphi 0, %s20
    %s24 = sphi 0, %s23
    %s40 = sphi 0, %s24
    %s44 = sphi 0, %s44
    %s46 = sphi 0, %s44
    %s47 = sphi 0, %s46
    %s61 = sphi 0, %s47
    %s65 = sphi 0, %s65
    %s67 = sphi 0, %s65
    %s68 = sphi 0, %s67
    %s82 = sphi 0, %s68
    %s86 = sphi 0, %s86
    %s88 = sphi 0, %s86
    %s89 = sphi 0, %s88
    %s103 = sphi 0, %s89
    %s109 = sphi 0, %s111
    %s112 = sphi 0, %s109
    %s113 = sphi 0, %s112
    %s129 = sphi 0, %s113
  $region4: #{baseline_train_forward.10} parent=0 // loop_header_branch
    %13 = sbr.rel (%p11) target = $region8
  $region5: #{baseline_train_forward.10} parent=0 // loop_body
    %s15 = ssub.s32 %s10, 1
    %s16 = ssub.s32 %s10, 2
    %s17 = sadd.s32 %s10, 1
    %s18 = ssub.s32 %s10, %s17
    %p19 = scmp.eq.s32.totalorder %s18, 0
    %s21 = sadd.s32 %s20, 1
    %s22 = scalar_select %p19, %s20, %s21
    %p25 = pneg %p19
    %p26 = scmp.eq.s32.totalorder %s10, 1
    %p27 = por %p25, %p26
    %p28 = scmp.ne.s32.totalorder %s20, %s23
    %p29 = scmp.eq.s32.totalorder %s10, 0
    %p30 = por %p28, %p29
    %p31 = scmp.ne.s32.totalorder %s20, %s23
    %p32 = scmp.eq.s32.totalorder %s15, 1
    %p33 = por %p31, %p32
    %p34 = scmp.ne.s32.totalorder %s23, %s24
    %p35 = scmp.eq.s32.totalorder %s15, 0
    %p36 = por %p34, %p35
    %p37 = scmp.ne.s32.totalorder %s23, %s24
    %p38 = scmp.eq.s32.totalorder %s16, 1
    %p39 = por %p37, %p38
    %p41 = scmp.ne.s32.totalorder %s24, %s40
    %p42 = scmp.eq.s32.totalorder %s16, 0
    %p43 = por %p41, %p42
    %s45 = sadd.s32 %s44, 1
    %p48 = scmp.eq.s32.totalorder %s10, 1
    %p49 = scmp.ne.s32.totalorder %s44, %s46
    %p50 = scmp.eq.s32.totalorder %s10, 0
    %p51 = por %p49, %p50
    %p52 = scmp.ne.s32.totalorder %s44, %s46
    %p53 = scmp.eq.s32.totalorder %s15, 1
    %p54 = por %p52, %p53
    %p55 = scmp.ne.s32.totalorder %s46, %s47
    %p56 = scmp.eq.s32.totalorder %s15, 0
    %p57 = por %p55, %p56
    %p58 = scmp.ne.s32.totalorder %s46, %s47
    %p59 = scmp.eq.s32.totalorder %s16, 1
    %p60 = por %p58, %p59
    %p62 = scmp.ne.s32.totalorder %s47, %s61
    %p63 = scmp.eq.s32.totalorder %s16, 0
    %p64 = por %p62, %p63
    %s66 = sadd.s32 %s65, 1
    %p69 = scmp.eq.s32.totalorder %s10, 1
    %p70 = scmp.ne.s32.totalorder %s65, %s67
    %p71 = scmp.eq.s32.totalorder %s10, 0
    %p72 = por %p70, %p71
    %p73 = scmp.ne.s32.totalorder %s65, %s67
    %p74 = scmp.eq.s32.totalorder %s15, 1
    %p75 = por %p73, %p74
    %p76 = scmp.ne.s32.totalorder %s67, %s68
    %p77 = scmp.eq.s32.totalorder %s15, 0
    %p78 = por %p76, %p77
    %p79 = scmp.ne.s32.totalorder %s67, %s68
    %p80 = scmp.eq.s32.totalorder %s16, 1
    %p81 = por %p79, %p80
    %p83 = scmp.ne.s32.totalorder %s68, %s82
    %p84 = scmp.eq.s32.totalorder %s16, 0
    %p85 = por %p83, %p84
    %s87 = sadd.s32 %s86, 1
    %p90 = scmp.eq.s32.totalorder %s10, 1
    %p91 = scmp.ne.s32.totalorder %s86, %s88
    %p92 = scmp.eq.s32.totalorder %s10, 0
    %p93 = por %p91, %p92
    %p94 = scmp.ne.s32.totalorder %s86, %s88
    %p95 = scmp.eq.s32.totalorder %s15, 1
    %p96 = por %p94, %p95
    %p97 = scmp.ne.s32.totalorder %s88, %s89
    %p98 = scmp.eq.s32.totalorder %s15, 0
    %p99 = por %p97, %p98
    %p100 = scmp.ne.s32.totalorder %s88, %s89
    %p101 = scmp.eq.s32.totalorder %s16, 1
    %p102 = por %p100, %p101
    %p104 = scmp.ne.s32.totalorder %s89, %s103
    %p105 = scmp.eq.s32.totalorder %s16, 0
    %p106 = por %p104, %p105
    %s107 = ssub.s32 %s10, %s17
    %p108 = scmp.eq.s32.totalorder %s107, 0
    %s110 = sadd.s32 %s109, 1
    %s111 = scalar_select %p108, %s109, %s110
    %p114 = pneg %p108
    %p115 = scmp.eq.s32.totalorder %s10, 1
    %p116 = por %p114, %p115
    %p117 = scmp.ne.s32.totalorder %s109, %s112
    %p118 = scmp.eq.s32.totalorder %s10, 0
    %p119 = por %p117, %p118
    %p120 = scmp.ne.s32.totalorder %s109, %s112
    %p121 = scmp.eq.s32.totalorder %s15, 1
    %p122 = por %p120, %p121
    %p123 = scmp.ne.s32.totalorder %s112, %s113
    %p124 = scmp.eq.s32.totalorder %s15, 0
    %p125 = por %p123, %p124
    %p126 = scmp.ne.s32.totalorder %s112, %s113
    %p127 = scmp.eq.s32.totalorder %s16, 1
    %p128 = por %p126, %p127
    %p130 = scmp.ne.s32.totalorder %s113, %s129
    %p131 = scmp.eq.s32.totalorder %s16, 0
    %p132 = por %p130, %p131
    %p133 = scmp.le.s32.totalorder 1, %s10
    %p134 = scmp.lt.s32.totalorder %s10, 3
    %p135 = pnand %p133, %p134
    %p136 = pneg %p135
    // Predicated region
    $region9: #{baseline_train_forward.10} parent=5 // pred_check
      _
    $region10: #{baseline_train_forward.10} parent=5 // pred_check_branch
      %138 = sbr.rel (%p135) target = $region12
    $region11: #{baseline_train_forward.10} parent=5 // pred_region
      %s139 = ssub.s32 %s10, 1
      // Predicated region
      $region13: #{baseline_train_forward.10} parent=11 // pred_check
        %p140 = pneg %p57
      $region14: #{baseline_train_forward.10} parent=11 // pred_check_branch
        %142 = sbr.rel (%p140) target = $region16
      $region15: #{baseline_train_forward.10} parent=11 // pred_region
        _
      $region16: #{baseline_train_forward.10} parent=11 // pred_fallthru
        _
      // Predicated region
      $region17: #{baseline_train_forward.10} parent=11 // pred_check
        %p143 = pneg %p78
      $region18: #{baseline_train_forward.10} parent=11 // pred_check_branch
        %145 = sbr.rel (%p143) target = $region20
      $region19: #{baseline_train_forward.10} parent=11 // pred_region
        _
      $region20: #{baseline_train_forward.10} parent=11 // pred_fallthru
        _
      // Predicated region
      $region21: #{baseline_train_forward.10} parent=11 // pred_check
        %p146 = pneg %p99
      $region22: #{baseline_train_forward.10} parent=11 // pred_check_branch
        %148 = sbr.rel (%p146) target = $region24
      $region23: #{baseline_train_forward.10} parent=11 // pred_region
        _
      $region24: #{baseline_train_forward.10} parent=11 // pred_fallthru
        _
    $region12: #{baseline_train_forward.10} parent=5 // pred_fallthru
      _
    %p149 = scmp.lt.s32.totalorder %s10, 2
    // Predicated region
    $region25: #{baseline_train_forward.10} parent=5 // pred_check
      %p150 = pneg %p149
    $region26: #{baseline_train_forward.10} parent=5 // pred_check_branch
      %152 = sbr.rel (%p150) target = $region28
    $region27: #{baseline_train_forward.10} parent=5 // pred_region
      // Predicated region
      $region29: #{baseline_train_forward.10} parent=27 // pred_check
        %p153 = pneg %p30
      $region30: #{baseline_train_forward.10} parent=27 // pred_check_branch
        %155 = sbr.rel (%p153) target = $region32
      $region31: #{baseline_train_forward.10} parent=27 // pred_region
        %p156 = scmp.lt.s32.totalorder %s10, 1
        %s157 = scalar_select %p156, %s10, 1
        %s158 = smul.addr %s157, 32
        %s159 = smul.addr %s158, 8
        %s160 = scalar_lea.vmem %s0, %s159
      $region32: #{baseline_train_forward.10} parent=27 // pred_fallthru
        _
    $region28: #{baseline_train_forward.10} parent=5 // pred_fallthru
      _
    %p161 = scmp.le.s32.totalorder 1, %s10
    %p162 = scmp.lt.s32.totalorder %s10, 3
    %p163 = pnand %p161, %p162
    %p164 = pneg %p163
    // Predicated region
    $region33: #{baseline_train_forward.10} parent=5 // pred_check
      _
    $region34: #{baseline_train_forward.10} parent=5 // pred_check_branch
      %166 = sbr.rel (%p163) target = $region36
    $region35: #{baseline_train_forward.10} parent=5 // pred_region
      %s167 = ssub.s32 %s10, 1
      %p168 = scmp.lt.s32.totalorder %s15, 1
      %s169 = scalar_select %p168, %s15, 1
      %s170 = smul.addr %s169, 32
      %s171 = smul.addr %s170, 8
      %s172 = scalar_lea.vmem %s0, %s171
      %p173 = pneg %p36
      %p174 = pneg %p33
      %p175 = pneg %p57
      %p176 = pneg %p54
      %p177 = pneg %p78
      %p178 = pneg %p75
      %p179 = pneg %p99
      %p180 = pneg %p96
      %p181 = pneg %p125
      %p182 = pneg %p122
      %p183 = scmp.lt.s32.totalorder %s15, 1
      %s184 = scalar_select %p183, %s15, 1
      %s185 = smul.addr %s184, 8
      %s186 = smul.addr %s185, 8
      %s187 = scalar_lea.vmem %s4, %s186
      %p188 = scmp.lt.s32.totalorder %s15, 1
      %s189 = scalar_select %p188, %s15, 1
      %s190 = smul.addr %s189, 32
      %s191 = smul.addr %s190, 8
      %s192 = scalar_lea.vmem %s0, %s191
      %p193 = scmp.lt.s32.totalorder %s15, 1
      %s194 = scalar_select %p193, %s15, 1
      %s195 = smul.addr %s194, 8
      %s196 = smul.addr %s195, 8
      %s197 = scalar_lea.vmem %s4, %s196
      %v198 = vld [vmem:[%s1] sm:$0x1]
      %v199 = vmul.f32 %v198, 0.001953125
      %v200 = vld [vmem:[%s1 + $0x1] sm:$0x1]
      %v201 = vmul.f32 %v200, 0.001953125
      %v202 = vmul.f32 %v199, %v199
      %v203 = vsub.f32 %v201, %v202
      %v204 = vld [vmem:[%s2] sm:$0x1]
      %v205 = vadd.f32 %v203, 1e-05
      %v206 = vrsqrt.pop %v205
      %v207 = vmul.f32 %v206, %v205
      %v208 = vmul.f32 %v207, %v206
      %v209 = vmul.f32 0.5, %v208
      %v210 = vsub.f32 1.5, %v209
      %v211 = vmul.f32 %v206, %v210
      %vm212 = vweird.f32 %v205
      %vm213 = vweird.f32 %v206
      %vm214 = vmor %vm212, %vm213
      %v215 = vsel %vm214, %v206, %v211
      %v216 = vmul.f32 %v204, %v215
      %v217 = vld [vmem:[%s3] sm:$0x1]
      %v218 = vmul.f32 %v199, %v216
      %v219 = vsub.f32 %v217, %v218
      %v220 = vld [vmem:[%s192] sm:$0xff]
      %v221 = vld [vmem:[%s192 + $0x8] sm:$0xff]
      %v222 = vld [vmem:[%s192 + $0x10] sm:$0xff]
      %v223 = vld [vmem:[%s192 + $0x18] sm:$0xff]
      %v224 = vld [vmem:[%s192 + $0x20] sm:$0xff]
      %v225 = vld [vmem:[%s192 + $0x28] sm:$0xff]
      %v226 = vld [vmem:[%s192 + $0x30] sm:$0xff]
      %v227 = vld [vmem:[%s192 + $0x38] sm:$0xff]
      %v228 = vld [vmem:[%s192 + $0x40] sm:$0xff]
      %v229 = vld [vmem:[%s192 + $0x48] sm:$0xff]
      %v230 = vld [vmem:[%s192 + $0x50] sm:$0xff]
      %v231 = vld [vmem:[%s192 + $0x58] sm:$0xff]
      %v232 = vld [vmem:[%s192 + $0x60] sm:$0xff]
      %v233 = vld [vmem:[%s192 + $0x68] sm:$0xff]
      %v234 = vld [vmem:[%s192 + $0x70] sm:$0xff]
      %v235 = vld [vmem:[%s192 + $0x78] sm:$0xff]
      %v236 = vld [vmem:[%s192 + $0x80] sm:$0xff]
      %v237 = vld [vmem:[%s192 + $0x88] sm:$0xff]
      %v238 = vld [vmem:[%s192 + $0x90] sm:$0xff]
      %v239 = vld [vmem:[%s192 + $0x98] sm:$0xff]
      %v240 = vld [vmem:[%s192 + $0xa0] sm:$0xff]
      %v241 = vld [vmem:[%s192 + $0xa8] sm:$0xff]
      %v242 = vld [vmem:[%s192 + $0xb0] sm:$0xff]
      %v243 = vld [vmem:[%s192 + $0xb8] sm:$0xff]
      %v244 = vld [vmem:[%s192 + $0xc0] sm:$0xff]
      %v245 = vld [vmem:[%s192 + $0xc8] sm:$0xff]
      %v246 = vld [vmem:[%s192 + $0xd0] sm:$0xff]
      %v247 = vld [vmem:[%s192 + $0xd8] sm:$0xff]
      %v248 = vld [vmem:[%s192 + $0xe0] sm:$0xff]
      %v249 = vld [vmem:[%s192 + $0xe8] sm:$0xff]
      %v250 = vld [vmem:[%s192 + $0xf0] sm:$0xff]
      %v251 = vld [vmem:[%s192 + $0xf8] sm:$0xff]
      %v253 = vperm.slane %v216, 0
      %v255 = vmul.f32 %v220, %v253
      %v256 = vmul.f32 %v221, %v253
      %v257 = vmul.f32 %v222, %v253
      %v258 = vmul.f32 %v223, %v253
      %v259 = vmul.f32 %v224, %v253
      %v260 = vmul.f32 %v225, %v253
      %v261 = vmul.f32 %v226, %v253
      %v262 = vmul.f32 %v227, %v253
      %v263 = vmul.f32 %v228, %v253
      %v264 = vmul.f32 %v229, %v253
      %v265 = vmul.f32 %v230, %v253
      %v266 = vmul.f32 %v231, %v253
      %v267 = vmul.f32 %v232, %v253
      %v268 = vmul.f32 %v233, %v253
      %v269 = vmul.f32 %v234, %v253
      %v270 = vmul.f32 %v235, %v253
      %v271 = vmul.f32 %v236, %v253
      %v272 = vmul.f32 %v237, %v253
      %v273 = vmul.f32 %v238, %v253
      %v274 = vmul.f32 %v239, %v253
      %v275 = vmul.f32 %v240, %v253
      %v276 = vmul.f32 %v241, %v253
      %v277 = vmul.f32 %v242, %v253
      %v278 = vmul.f32 %v243, %v253
      %v279 = vmul.f32 %v244, %v253
      %v280 = vmul.f32 %v245, %v253
      %v281 = vmul.f32 %v246, %v253
      %v282 = vmul.f32 %v247, %v253
      %v283 = vmul.f32 %v248, %v253
      %v284 = vmul.f32 %v249, %v253
      %v285 = vmul.f32 %v250, %v253
      %v286 = vmul.f32 %v251, %v253
      %v288 = vperm.slane %v219, 0
      %v290 = vadd.f32 %v255, %v288
      %v291 = vadd.f32 %v256, %v288
      %v292 = vadd.f32 %v257, %v288
      %v293 = vadd.f32 %v258, %v288
      %v294 = vadd.f32 %v259, %v288
      %v295 = vadd.f32 %v260, %v288
      %v296 = vadd.f32 %v261, %v288
      %v297 = vadd.f32 %v262, %v288
      %v298 = vadd.f32 %v263, %v288
      %v299 = vadd.f32 %v264, %v288
      %v300 = vadd.f32 %v265, %v288
      %v301 = vadd.f32 %v266, %v288
      %v302 = vadd.f32 %v267, %v288
      %v303 = vadd.f32 %v268, %v288
      %v304 = vadd.f32 %v269, %v288
      %v305 = vadd.f32 %v270, %v288
      %v306 = vadd.f32 %v271, %v288
      %v307 = vadd.f32 %v272, %v288
      %v308 = vadd.f32 %v273, %v288
      %v309 = vadd.f32 %v274, %v288
      %v310 = vadd.f32 %v275, %v288
      %v311 = vadd.f32 %v276, %v288
      %v312 = vadd.f32 %v277, %v288
      %v313 = vadd.f32 %v278, %v288
      %v314 = vadd.f32 %v279, %v288
      %v315 = vadd.f32 %v280, %v288
      %v316 = vadd.f32 %v281, %v288
      %v317 = vadd.f32 %v282, %v288
      %v318 = vadd.f32 %v283, %v288
      %v319 = vadd.f32 %v284, %v288
      %v320 = vadd.f32 %v285, %v288
      %v321 = vadd.f32 %v286, %v288
      %v322 = vmax.f32 %v290, 0.0
      %v323 = vmax.f32 %v291, 0.0
      %v324 = vmax.f32 %v292, 0.0
      %v325 = vmax.f32 %v293, 0.0
      %v326 = vmax.f32 %v294, 0.0
      %v327 = vmax.f32 %v295, 0.0
      %v328 = vmax.f32 %v296, 0.0
      %v329 = vmax.f32 %v297, 0.0
      %v330 = vmax.f32 %v298, 0.0
      %v331 = vmax.f32 %v299, 0.0
      %v332 = vmax.f32 %v300, 0.0
      %v333 = vmax.f32 %v301, 0.0
      %v334 = vmax.f32 %v302, 0.0
      %v335 = vmax.f32 %v303, 0.0
      %v336 = vmax.f32 %v304, 0.0
      %v337 = vmax.f32 %v305, 0.0
      %v338 = vmax.f32 %v306, 0.0
      %v339 = vmax.f32 %v307, 0.0
      %v340 = vmax.f32 %v308, 0.0
      %v341 = vmax.f32 %v309, 0.0
      %v342 = vmax.f32 %v310, 0.0
      %v343 = vmax.f32 %v311, 0.0
      %v344 = vmax.f32 %v312, 0.0
      %v345 = vmax.f32 %v313, 0.0
      %v346 = vmax.f32 %v314, 0.0
      %v347 = vmax.f32 %v315, 0.0
      %v348 = vmax.f32 %v316, 0.0
      %v349 = vmax.f32 %v317, 0.0
      %v350 = vmax.f32 %v318, 0.0
      %v351 = vmax.f32 %v319, 0.0
      %v352 = vmax.f32 %v320, 0.0
      %v353 = vmax.f32 %v321, 0.0
      %v354 = vlaneseq
      %v355 = vshrl.u32 %v354, 7
      %v356 = vadd.s32 %v355, 8
      %v357 = vadd.s32 %v355, 16
      %v358 = vadd.s32 %v355, 24
      %v359 = vadd.s32 %v355, 32
      %v360 = vadd.s32 %v355, 40
      %v361 = vadd.s32 %v355, 48
      %v362 = vadd.s32 %v355, 56
      %v363 = vlaneseq
      %v364 = vand.u32 %v363, 127
      %v365 = vadd.s32 %v364, 128
      %v366 = vshra.s32 %v355, 3
      %v367 = vshra.s32 %v356, 3
      %v368 = vshra.s32 %v357, 3
      %v369 = vshra.s32 %v358, 3
      %v370 = vshra.s32 %v359, 3
      %v371 = vshra.s32 %v360, 3
      %v372 = vshra.s32 %v361, 3
      %v373 = vshra.s32 %v362, 3
      %v374 = vand.u32 %v355, 7
      %v375 = vand.u32 %v356, 7
      %v376 = vand.u32 %v357, 7
      %v377 = vand.u32 %v358, 7
      %v378 = vand.u32 %v359, 7
      %v379 = vand.u32 %v360, 7
      %v380 = vand.u32 %v361, 7
      %v381 = vand.u32 %v362, 7
      %v382 = vmul.u32 %v366, 2
      %v383 = vmul.u32 %v367, 2
      %v384 = vmul.u32 %v368, 2
      %v385 = vmul.u32 %v369, 2
      %v386 = vmul.u32 %v370, 2
      %v387 = vmul.u32 %v371, 2
      %v388 = vmul.u32 %v372, 2
      %v389 = vmul.u32 %v373, 2
      %v390 = vmul.u32 %v382, 16
      %v391 = vmul.u32 %v383, 16
      %v392 = vmul.u32 %v384, 16
      %v393 = vmul.u32 %v385, 16
      %v394 = vmul.u32 %v386, 16
      %v395 = vmul.u32 %v387, 16
      %v396 = vmul.u32 %v388, 16
      %v397 = vmul.u32 %v389, 16
      %v398 = vmul.u32 %v374, 2
      %v399 = vmul.u32 %v375, 2
      %v400 = vmul.u32 %v376, 2
      %v401 = vmul.u32 %v377, 2
      %v402 = vmul.u32 %v378, 2
      %v403 = vmul.u32 %v379, 2
      %v404 = vmul.u32 %v380, 2
      %v405 = vmul.u32 %v381, 2
      %v406 = vadd.s32 %v390, %v398
      %v407 = vadd.s32 %v391, %v399
      %v408 = vadd.s32 %v392, %v400
      %v409 = vadd.s32 %v393, %v401
      %v410 = vadd.s32 %v394, %v402
      %v411 = vadd.s32 %v395, %v403
      %v412 = vadd.s32 %v396, %v404
      %v413 = vadd.s32 %v397, %v405
      %vm414 = vcmp.eq.s32.totalorder %v364, %v406
      %vm415 = vcmp.eq.s32.totalorder %v365, %v406
      %vm416 = vcmp.eq.s32.totalorder %v364, %v407
      %vm417 = vcmp.eq.s32.totalorder %v365, %v407
      %vm418 = vcmp.eq.s32.totalorder %v364, %v408
      %vm419 = vcmp.eq.s32.totalorder %v365, %v408
      %vm420 = vcmp.eq.s32.totalorder %v364, %v409
      %vm421 = vcmp.eq.s32.totalorder %v365, %v409
      %vm422 = vcmp.eq.s32.totalorder %v364, %v410
      %vm423 = vcmp.eq.s32.totalorder %v365, %v410
      %vm424 = vcmp.eq.s32.totalorder %v364, %v411
      %vm425 = vcmp.eq.s32.totalorder %v365, %v411
      %vm426 = vcmp.eq.s32.totalorder %v364, %v412
      %vm427 = vcmp.eq.s32.totalorder %v365, %v412
      %vm428 = vcmp.eq.s32.totalorder %v364, %v413
      %vm429 = vcmp.eq.s32.totalorder %v365, %v413
      %v430 = vsel %vm414, 1, 0
      %v431 = vsel %vm415, 1, 0
      %v432 = vsel %vm416, 1, 0
      %v433 = vsel %vm417, 1, 0
      %v434 = vsel %vm418, 1, 0
      %v435 = vsel %vm419, 1, 0
      %v436 = vsel %vm420, 1, 0
      %v437 = vsel %vm421, 1, 0
      %v438 = vsel %vm422, 1, 0
      %v439 = vsel %vm423, 1, 0
      %v440 = vsel %vm424, 1, 0
      %v441 = vsel %vm425, 1, 0
      %v442 = vsel %vm426, 1, 0
      %v443 = vsel %vm427, 1, 0
      %v444 = vsel %vm428, 1, 0
      %v445 = vsel %vm429, 1, 0
      %v446 = vcvt.s32.f32 %v430
      %v447 = vcvt.s32.f32 %v431
      %v448 = vcvt.s32.f32 %v432
      %v449 = vcvt.s32.f32 %v433
      %v450 = vcvt.s32.f32 %v434
      %v451 = vcvt.s32.f32 %v435
      %v452 = vcvt.s32.f32 %v436
      %v453 = vcvt.s32.f32 %v437
      %v454 = vcvt.s32.f32 %v438
      %v455 = vcvt.s32.f32 %v439
      %v456 = vcvt.s32.f32 %v440
      %v457 = vcvt.s32.f32 %v441
      %v458 = vcvt.s32.f32 %v442
      %v459 = vcvt.s32.f32 %v443
      %v460 = vcvt.s32.f32 %v444
      %v461 = vcvt.s32.f32 %v445
      %462 = vmatpush.msra.mxu0 %v337
      %463 = vmatpush.msra.mxu0 %v336
      %464 = vmatpush.msra.mxu0 %v335
      %465 = vmatpush.msra.mxu0 %v334
      %466 = vmatpush.msra.mxu0 %v333
      %467 = vmatpush.msra.mxu0 %v332
      %468 = vmatpush.msra.mxu0 %v331
      %469 = vmatpush.msra.mxu0 %v330
      %470 = vmatpush.msra.mxu0 %v329
      %471 = vmatpush.msra.mxu0 %v328
      %472 = vmatpush.msra.mxu0 %v327
      %473 = vmatpush.msra.mxu0 %v326
      %474 = vmatpush.msra.mxu0 %v325
      %475 = vmatpush.msra.mxu0 %v324
      %476 = vmatpush.msra.mxu0 %v323
      %477 = vmatpush.msra.mxu0 %v322
      %478 = vmatmul.f32.gmra.mxu0 %v446
      %v479 = vpop.f32.mrf.mxu0
      %v480 = vadd.f32 0.0, %v479
      %481 = vmatmul.f32.gmra.mxu0 %v448
      %v482 = vpop.f32.mrf.mxu0
      %v483 = vadd.f32 0.0, %v482
      %484 = vmatmul.f32.gmra.mxu0 %v450
      %v485 = vpop.f32.mrf.mxu0
      %v486 = vadd.f32 0.0, %v485
      %487 = vmatmul.f32.gmra.mxu0 %v452
      %v488 = vpop.f32.mrf.mxu0
      %v489 = vadd.f32 0.0, %v488
      %490 = vmatmul.f32.gmra.mxu0 %v454
      %v491 = vpop.f32.mrf.mxu0
      %v492 = vadd.f32 0.0, %v491
      %493 = vmatmul.f32.gmra.mxu0 %v456
      %v494 = vpop.f32.mrf.mxu0
      %v495 = vadd.f32 0.0, %v494
      %496 = vmatmul.f32.gmra.mxu0 %v458
      %v497 = vpop.f32.mrf.mxu0
      %v498 = vadd.f32 0.0, %v497
      %499 = vmatmul.f32.gmra.mxu0 %v460
      %v500 = vpop.f32.mrf.mxu0
      %v501 = vadd.f32 0.0, %v500
      %502 = vdwg.mxu0
      %503 = vmatpush.msra.mxu0 %v353
      %504 = vmatpush.msra.mxu0 %v352
      %505 = vmatpush.msra.mxu0 %v351
      %506 = vmatpush.msra.mxu0 %v350
      %507 = vmatpush.msra.mxu0 %v349
      %508 = vmatpush.msra.mxu0 %v348
      %509 = vmatpush.msra.mxu0 %v347
      %510 = vmatpush.msra.mxu0 %v346
      %511 = vmatpush.msra.mxu0 %v345
      %512 = vmatpush.msra.mxu0 %v344
      %513 = vmatpush.msra.mxu0 %v343
      %514 = vmatpush.msra.mxu0 %v342
      %515 = vmatpush.msra.mxu0 %v341
      %516 = vmatpush.msra.mxu0 %v340
      %517 = vmatpush.msra.mxu0 %v339
      %518 = vmatpush.msra.mxu0 %v338
      %519 = vmatmul.f32.gmra.mxu0 %v447
      %v520 = vpop.f32.mrf.mxu0
      %v521 = vadd.f32 %v480, %v520
      %522 = vmatmul.f32.gmra.mxu0 %v449
      %v523 = vpop.f32.mrf.mxu0
      %v524 = vadd.f32 %v483, %v523
      %525 = vmatmul.f32.gmra.mxu0 %v451
      %v526 = vpop.f32.mrf.mxu0
      %v527 = vadd.f32 %v486, %v526
      %528 = vmatmul.f32.gmra.mxu0 %v453
      %v529 = vpop.f32.mrf.mxu0
      %v530 = vadd.f32 %v489, %v529
      %531 = vmatmul.f32.gmra.mxu0 %v455
      %v532 = vpop.f32.mrf.mxu0
      %v533 = vadd.f32 %v492, %v532
      %534 = vmatmul.f32.gmra.mxu0 %v457
      %v535 = vpop.f32.mrf.mxu0
      %v536 = vadd.f32 %v495, %v535
      %537 = vmatmul.f32.gmra.mxu0 %v459
      %v538 = vpop.f32.mrf.mxu0
      %v539 = vadd.f32 %v498, %v538
      %540 = vmatmul.f32.gmra.mxu0 %v461
      %v541 = vpop.f32.mrf.mxu0
      %v542 = vadd.f32 %v501, %v541
      %543 = vdwg.mxu0
      %v544 = vadd.s32 %v406, 1
      %v545 = vadd.s32 %v407, 1
      %v546 = vadd.s32 %v408, 1
      %v547 = vadd.s32 %v409, 1
      %v548 = vadd.s32 %v410, 1
      %v549 = vadd.s32 %v411, 1
      %v550 = vadd.s32 %v412, 1
      %v551 = vadd.s32 %v413, 1
      %vm552 = vcmp.eq.s32.totalorder %v364, %v544
      %vm553 = vcmp.eq.s32.totalorder %v365, %v544
      %vm554 = vcmp.eq.s32.totalorder %v364, %v545
      %vm555 = vcmp.eq.s32.totalorder %v365, %v545
      %vm556 = vcmp.eq.s32.totalorder %v364, %v546
      %vm557 = vcmp.eq.s32.totalorder %v365, %v546
      %vm558 = vcmp.eq.s32.totalorder %v364, %v547
      %vm559 = vcmp.eq.s32.totalorder %v365, %v547
      %vm560 = vcmp.eq.s32.totalorder %v364, %v548
      %vm561 = vcmp.eq.s32.totalorder %v365, %v548
      %vm562 = vcmp.eq.s32.totalorder %v364, %v549
      %vm563 = vcmp.eq.s32.totalorder %v365, %v549
      %vm564 = vcmp.eq.s32.totalorder %v364, %v550
      %vm565 = vcmp.eq.s32.totalorder %v365, %v550
      %vm566 = vcmp.eq.s32.totalorder %v364, %v551
      %vm567 = vcmp.eq.s32.totalorder %v365, %v551
      %v568 = vsel %vm552, 1, 0
      %v569 = vsel %vm553, 1, 0
      %v570 = vsel %vm554, 1, 0
      %v571 = vsel %vm555, 1, 0
      %v572 = vsel %vm556, 1, 0
      %v573 = vsel %vm557, 1, 0
      %v574 = vsel %vm558, 1, 0
      %v575 = vsel %vm559, 1, 0
      %v576 = vsel %vm560, 1, 0
      %v577 = vsel %vm561, 1, 0
      %v578 = vsel %vm562, 1, 0
      %v579 = vsel %vm563, 1, 0
      %v580 = vsel %vm564, 1, 0
      %v581 = vsel %vm565, 1, 0
      %v582 = vsel %vm566, 1, 0
      %v583 = vsel %vm567, 1, 0
      %v584 = vcvt.s32.f32 %v568
      %v585 = vcvt.s32.f32 %v569
      %v586 = vcvt.s32.f32 %v570
      %v587 = vcvt.s32.f32 %v571
      %v588 = vcvt.s32.f32 %v572
      %v589 = vcvt.s32.f32 %v573
      %v590 = vcvt.s32.f32 %v574
      %v591 = vcvt.s32.f32 %v575
      %v592 = vcvt.s32.f32 %v576
      %v593 = vcvt.s32.f32 %v577
      %v594 = vcvt.s32.f32 %v578
      %v595 = vcvt.s32.f32 %v579
      %v596 = vcvt.s32.f32 %v580
      %v597 = vcvt.s32.f32 %v581
      %v598 = vcvt.s32.f32 %v582
      %v599 = vcvt.s32.f32 %v583
      %600 = vmatpush.msra.mxu0 %v337
      %601 = vmatpush.msra.mxu0 %v336
      %602 = vmatpush.msra.mxu0 %v335
      %603 = vmatpush.msra.mxu0 %v334
      %604 = vmatpush.msra.mxu0 %v333
      %605 = vmatpush.msra.mxu0 %v332
      %606 = vmatpush.msra.mxu0 %v331
      %607 = vmatpush.msra.mxu0 %v330
      %608 = vmatpush.msra.mxu0 %v329
      %609 = vmatpush.msra.mxu0 %v328
      %610 = vmatpush.msra.mxu0 %v327
      %611 = vmatpush.msra.mxu0 %v326
      %612 = vmatpush.msra.mxu0 %v325
      %613 = vmatpush.msra.mxu0 %v324
      %614 = vmatpush.msra.mxu0 %v323
      %615 = vmatpush.msra.mxu0 %v322
      %616 = vmatmul.f32.gmra.mxu0 %v584
      %v617 = vpop.f32.mrf.mxu0
      %v618 = vadd.f32 0.0, %v617
      %619 = vmatmul.f32.gmra.mxu0 %v586
      %v620 = vpop.f32.mrf.mxu0
      %v621 = vadd.f32 0.0, %v620
      %622 = vmatmul.f32.gmra.mxu0 %v588
      %v623 = vpop.f32.mrf.mxu0
      %v624 = vadd.f32 0.0, %v623
      %625 = vmatmul.f32.gmra.mxu0 %v590
      %v626 = vpop.f32.mrf.mxu0
      %v627 = vadd.f32 0.0, %v626
      %628 = vmatmul.f32.gmra.mxu0 %v592
      %v629 = vpop.f32.mrf.mxu0
      %v630 = vadd.f32 0.0, %v629
      %631 = vmatmul.f32.gmra.mxu0 %v594
      %v632 = vpop.f32.mrf.mxu0
      %v633 = vadd.f32 0.0, %v632
      %634 = vmatmul.f32.gmra.mxu0 %v596
      %v635 = vpop.f32.mrf.mxu0
      %v636 = vadd.f32 0.0, %v635
      %637 = vmatmul.f32.gmra.mxu0 %v598
      %v638 = vpop.f32.mrf.mxu0
      %v639 = vadd.f32 0.0, %v638
      %640 = vdwg.mxu0
      %641 = vmatpush.msra.mxu0 %v353
      %642 = vmatpush.msra.mxu0 %v352
      %643 = vmatpush.msra.mxu0 %v351
      %644 = vmatpush.msra.mxu0 %v350
      %645 = vmatpush.msra.mxu0 %v349
      %646 = vmatpush.msra.mxu0 %v348
      %647 = vmatpush.msra.mxu0 %v347
      %648 = vmatpush.msra.mxu0 %v346
      %649 = vmatpush.msra.mxu0 %v345
      %650 = vmatpush.msra.mxu0 %v344
      %651 = vmatpush.msra.mxu0 %v343
      %652 = vmatpush.msra.mxu0 %v342
      %653 = vmatpush.msra.mxu0 %v341
      %654 = vmatpush.msra.mxu0 %v340
      %655 = vmatpush.msra.mxu0 %v339
      %656 = vmatpush.msra.mxu0 %v338
      %657 = vmatmul.f32.gmra.mxu0 %v585
      %v658 = vpop.f32.mrf.mxu0
      %v659 = vadd.f32 %v618, %v658
      %660 = vmatmul.f32.gmra.mxu0 %v587
      %v661 = vpop.f32.mrf.mxu0
      %v662 = vadd.f32 %v621, %v661
      %663 = vmatmul.f32.gmra.mxu0 %v589
      %v664 = vpop.f32.mrf.mxu0
      %v665 = vadd.f32 %v624, %v664
      %666 = vmatmul.f32.gmra.mxu0 %v591
      %v667 = vpop.f32.mrf.mxu0
      %v668 = vadd.f32 %v627, %v667
      %669 = vmatmul.f32.gmra.mxu0 %v593
      %v670 = vpop.f32.mrf.mxu0
      %v671 = vadd.f32 %v630, %v670
      %672 = vmatmul.f32.gmra.mxu0 %v595
      %v673 = vpop.f32.mrf.mxu0
      %v674 = vadd.f32 %v633, %v673
      %675 = vmatmul.f32.gmra.mxu0 %v597
      %v676 = vpop.f32.mrf.mxu0
      %v677 = vadd.f32 %v636, %v676
      %678 = vmatmul.f32.gmra.mxu0 %v599
      %v679 = vpop.f32.mrf.mxu0
      %v680 = vadd.f32 %v639, %v679
      %681 = vdwg.mxu0
      %v682 = vmax.f32 %v521, %v659
      %v683 = vmax.f32 %v524, %v662
      %v684 = vmax.f32 %v527, %v665
      %v685 = vmax.f32 %v530, %v668
      %v686 = vmax.f32 %v533, %v671
      %v687 = vmax.f32 %v536, %v674
      %v688 = vmax.f32 %v539, %v677
      %v689 = vmax.f32 %v542, %v680
      %v690 = vadd.s32 %v406, 16
      %v691 = vadd.s32 %v407, 16
      %v692 = vadd.s32 %v408, 16
      %v693 = vadd.s32 %v409, 16
      %v694 = vadd.s32 %v410, 16
      %v695 = vadd.s32 %v411, 16
      %v696 = vadd.s32 %v412, 16
      %v697 = vadd.s32 %v413, 16
      %vm698 = vcmp.eq.s32.totalorder %v364, %v690
      %vm699 = vcmp.eq.s32.totalorder %v365, %v690
      %vm700 = vcmp.eq.s32.totalorder %v364, %v691
      %vm701 = vcmp.eq.s32.totalorder %v365, %v691
      %vm702 = vcmp.eq.s32.totalorder %v364, %v692
      %vm703 = vcmp.eq.s32.totalorder %v365, %v692
      %vm704 = vcmp.eq.s32.totalorder %v364, %v693
      %vm705 = vcmp.eq.s32.totalorder %v365, %v693
      %vm706 = vcmp.eq.s32.totalorder %v364, %v694
      %vm707 = vcmp.eq.s32.totalorder %v365, %v694
      %vm708 = vcmp.eq.s32.totalorder %v364, %v695
      %vm709 = vcmp.eq.s32.totalorder %v365, %v695
      %vm710 = vcmp.eq.s32.totalorder %v364, %v696
      %vm711 = vcmp.eq.s32.totalorder %v365, %v696
      %vm712 = vcmp.eq.s32.totalorder %v364, %v697
      %vm713 = vcmp.eq.s32.totalorder %v365, %v697
      %v714 = vsel %vm698, 1, 0
      %v715 = vsel %vm699, 1, 0
      %v716 = vsel %vm700, 1, 0
      %v717 = vsel %vm701, 1, 0
      %v718 = vsel %vm702, 1, 0
      %v719 = vsel %vm703, 1, 0
      %v720 = vsel %vm704, 1, 0
      %v721 = vsel %vm705, 1, 0
      %v722 = vsel %vm706, 1, 0
      %v723 = vsel %vm707, 1, 0
      %v724 = vsel %vm708, 1, 0
      %v725 = vsel %vm709, 1, 0
      %v726 = vsel %vm710, 1, 0
      %v727 = vsel %vm711, 1, 0
      %v728 = vsel %vm712, 1, 0
      %v729 = vsel %vm713, 1, 0
      %v730 = vcvt.s32.f32 %v714
      %v731 = vcvt.s32.f32 %v715
      %v732 = vcvt.s32.f32 %v716
      %v733 = vcvt.s32.f32 %v717
      %v734 = vcvt.s32.f32 %v718
      %v735 = vcvt.s32.f32 %v719
      %v736 = vcvt.s32.f32 %v720
      %v737 = vcvt.s32.f32 %v721
      %v738 = vcvt.s32.f32 %v722
      %v739 = vcvt.s32.f32 %v723
      %v740 = vcvt.s32.f32 %v724
      %v741 = vcvt.s32.f32 %v725
      %v742 = vcvt.s32.f32 %v726
      %v743 = vcvt.s32.f32 %v727
      %v744 = vcvt.s32.f32 %v728
      %v745 = vcvt.s32.f32 %v729
      %746 = vmatpush.msra.mxu0 %v337
      %747 = vmatpush.msra.mxu0 %v336
      %748 = vmatpush.msra.mxu0 %v335
      %749 = vmatpush.msra.mxu0 %v334
      %750 = vmatpush.msra.mxu0 %v333
      %751 = vmatpush.msra.mxu0 %v332
      %752 = vmatpush.msra.mxu0 %v331
      %753 = vmatpush.msra.mxu0 %v330
      %754 = vmatpush.msra.mxu0 %v329
      %755 = vmatpush.msra.mxu0 %v328
      %756 = vmatpush.msra.mxu0 %v327
      %757 = vmatpush.msra.mxu0 %v326
      %758 = vmatpush.msra.mxu0 %v325
      %759 = vmatpush.msra.mxu0 %v324
      %760 = vmatpush.msra.mxu0 %v323
      %761 = vmatpush.msra.mxu0 %v322
      %762 = vmatmul.f32.gmra.mxu0 %v730
      %v763 = vpop.f32.mrf.mxu0
      %v764 = vadd.f32 0.0, %v763
      %765 = vmatmul.f32.gmra.mxu0 %v732
      %v766 = vpop.f32.mrf.mxu0
      %v767 = vadd.f32 0.0, %v766
      %768 = vmatmul.f32.gmra.mxu0 %v734
      %v769 = vpop.f32.mrf.mxu0
      %v770 = vadd.f32 0.0, %v769
      %771 = vmatmul.f32.gmra.mxu0 %v736
      %v772 = vpop.f32.mrf.mxu0
      %v773 = vadd.f32 0.0, %v772
      %774 = vmatmul.f32.gmra.mxu0 %v738
      %v775 = vpop.f32.mrf.mxu0
      %v776 = vadd.f32 0.0, %v775
      %777 = vmatmul.f32.gmra.mxu0 %v740
      %v778 = vpop.f32.mrf.mxu0
      %v779 = vadd.f32 0.0, %v778
      %780 = vmatmul.f32.gmra.mxu0 %v742
      %v781 = vpop.f32.mrf.mxu0
      %v782 = vadd.f32 0.0, %v781
      %783 = vmatmul.f32.gmra.mxu0 %v744
      %v784 = vpop.f32.mrf.mxu0
      %v785 = vadd.f32 0.0, %v784
      %786 = vdwg.mxu0
      %787 = vmatpush.msra.mxu0 %v353
      %788 = vmatpush.msra.mxu0 %v352
      %789 = vmatpush.msra.mxu0 %v351
      %790 = vmatpush.msra.mxu0 %v350
      %791 = vmatpush.msra.mxu0 %v349
      %792 = vmatpush.msra.mxu0 %v348
      %793 = vmatpush.msra.mxu0 %v347
      %794 = vmatpush.msra.mxu0 %v346
      %795 = vmatpush.msra.mxu0 %v345
      %796 = vmatpush.msra.mxu0 %v344
      %797 = vmatpush.msra.mxu0 %v343
      %798 = vmatpush.msra.mxu0 %v342
      %799 = vmatpush.msra.mxu0 %v341
      %800 = vmatpush.msra.mxu0 %v340
      %801 = vmatpush.msra.mxu0 %v339
      %802 = vmatpush.msra.mxu0 %v338
      %803 = vmatmul.f32.gmra.mxu0 %v731
      %v804 = vpop.f32.mrf.mxu0
      %v805 = vadd.f32 %v764, %v804
      %806 = vmatmul.f32.gmra.mxu0 %v733
      %v807 = vpop.f32.mrf.mxu0
      %v808 = vadd.f32 %v767, %v807
      %809 = vmatmul.f32.gmra.mxu0 %v735
      %v810 = vpop.f32.mrf.mxu0
      %v811 = vadd.f32 %v770, %v810
      %812 = vmatmul.f32.gmra.mxu0 %v737
      %v813 = vpop.f32.mrf.mxu0
      %v814 = vadd.f32 %v773, %v813
      %815 = vmatmul.f32.gmra.mxu0 %v739
      %v816 = vpop.f32.mrf.mxu0
      %v817 = vadd.f32 %v776, %v816
      %818 = vmatmul.f32.gmra.mxu0 %v741
      %v819 = vpop.f32.mrf.mxu0
      %v820 = vadd.f32 %v779, %v819
      %821 = vmatmul.f32.gmra.mxu0 %v743
      %v822 = vpop.f32.mrf.mxu0
      %v823 = vadd.f32 %v782, %v822
      %824 = vmatmul.f32.gmra.mxu0 %v745
      %v825 = vpop.f32.mrf.mxu0
      %v826 = vadd.f32 %v785, %v825
      %827 = vdwg.mxu0
      %v828 = vmax.f32 %v682, %v805
      %v829 = vmax.f32 %v683, %v808
      %v830 = vmax.f32 %v684, %v811
      %v831 = vmax.f32 %v685, %v814
      %v832 = vmax.f32 %v686, %v817
      %v833 = vmax.f32 %v687, %v820
      %v834 = vmax.f32 %v688, %v823
      %v835 = vmax.f32 %v689, %v826
      %v836 = vadd.s32 %v690, 1
      %v837 = vadd.s32 %v691, 1
      %v838 = vadd.s32 %v692, 1
      %v839 = vadd.s32 %v693, 1
      %v840 = vadd.s32 %v694, 1
      %v841 = vadd.s32 %v695, 1
      %v842 = vadd.s32 %v696, 1
      %v843 = vadd.s32 %v697, 1
      %vm844 = vcmp.eq.s32.totalorder %v364, %v836
      %vm845 = vcmp.eq.s32.totalorder %v365, %v836
      %vm846 = vcmp.eq.s32.totalorder %v364, %v837
      %vm847 = vcmp.eq.s32.totalorder %v365, %v837
      %vm848 = vcmp.eq.s32.totalorder %v364, %v838
      %vm849 = vcmp.eq.s32.totalorder %v365, %v838
      %vm850 = vcmp.eq.s32.totalorder %v364, %v839
      %vm851 = vcmp.eq.s32.totalorder %v365, %v839
      %vm852 = vcmp.eq.s32.totalorder %v364, %v840
      %vm853 = vcmp.eq.s32.totalorder %v365, %v840
      %vm854 = vcmp.eq.s32.totalorder %v364, %v841
      %vm855 = vcmp.eq.s32.totalorder %v365, %v841
      %vm856 = vcmp.eq.s32.totalorder %v364, %v842
      %vm857 = vcmp.eq.s32.totalorder %v365, %v842
      %vm858 = vcmp.eq.s32.totalorder %v364, %v843
      %vm859 = vcmp.eq.s32.totalorder %v365, %v843
      %v860 = vsel %vm844, 1, 0
      %v861 = vsel %vm845, 1, 0
      %v862 = vsel %vm846, 1, 0
      %v863 = vsel %vm847, 1, 0
      %v864 = vsel %vm848, 1, 0
      %v865 = vsel %vm849, 1, 0
      %v866 = vsel %vm850, 1, 0
      %v867 = vsel %vm851, 1, 0
      %v868 = vsel %vm852, 1, 0
      %v869 = vsel %vm853, 1, 0
      %v870 = vsel %vm854, 1, 0
      %v871 = vsel %vm855, 1, 0
      %v872 = vsel %vm856, 1, 0
      %v873 = vsel %vm857, 1, 0
      %v874 = vsel %vm858, 1, 0
      %v875 = vsel %vm859, 1, 0
      %v876 = vcvt.s32.f32 %v860
      %v877 = vcvt.s32.f32 %v861
      %v878 = vcvt.s32.f32 %v862
      %v879 = vcvt.s32.f32 %v863
      %v880 = vcvt.s32.f32 %v864
      %v881 = vcvt.s32.f32 %v865
      %v882 = vcvt.s32.f32 %v866
      %v883 = vcvt.s32.f32 %v867
      %v884 = vcvt.s32.f32 %v868
      %v885 = vcvt.s32.f32 %v869
      %v886 = vcvt.s32.f32 %v870
      %v887 = vcvt.s32.f32 %v871
      %v888 = vcvt.s32.f32 %v872
      %v889 = vcvt.s32.f32 %v873
      %v890 = vcvt.s32.f32 %v874
      %v891 = vcvt.s32.f32 %v875
      %892 = vmatpush.msra.mxu0 %v337
      %893 = vmatpush.msra.mxu0 %v336
      %894 = vmatpush.msra.mxu0 %v335
      %895 = vmatpush.msra.mxu0 %v334
      %896 = vmatpush.msra.mxu0 %v333
      %897 = vmatpush.msra.mxu0 %v332
      %898 = vmatpush.msra.mxu0 %v331
      %899 = vmatpush.msra.mxu0 %v330
      %900 = vmatpush.msra.mxu0 %v329
      %901 = vmatpush.msra.mxu0 %v328
      %902 = vmatpush.msra.mxu0 %v327
      %903 = vmatpush.msra.mxu0 %v326
      %904 = vmatpush.msra.mxu0 %v325
      %905 = vmatpush.msra.mxu0 %v324
      %906 = vmatpush.msra.mxu0 %v323
      %907 = vmatpush.msra.mxu0 %v322
      %908 = vmatmul.f32.gmra.mxu0 %v876
      %v909 = vpop.f32.mrf.mxu0
      %v910 = vadd.f32 0.0, %v909
      %911 = vmatmul.f32.gmra.mxu0 %v878
      %v912 = vpop.f32.mrf.mxu0
      %v913 = vadd.f32 0.0, %v912
      %914 = vmatmul.f32.gmra.mxu0 %v880
      %v915 = vpop.f32.mrf.mxu0
      %v916 = vadd.f32 0.0, %v915
      %917 = vmatmul.f32.gmra.mxu0 %v882
      %v918 = vpop.f32.mrf.mxu0
      %v919 = vadd.f32 0.0, %v918
      %920 = vmatmul.f32.gmra.mxu0 %v884
      %v921 = vpop.f32.mrf.mxu0
      %v922 = vadd.f32 0.0, %v921
      %923 = vmatmul.f32.gmra.mxu0 %v886
      %v924 = vpop.f32.mrf.mxu0
      %v925 = vadd.f32 0.0, %v924
      %926 = vmatmul.f32.gmra.mxu0 %v888
      %v927 = vpop.f32.mrf.mxu0
      %v928 = vadd.f32 0.0, %v927
      %929 = vmatmul.f32.gmra.mxu0 %v890
      %v930 = vpop.f32.mrf.mxu0
      %v931 = vadd.f32 0.0, %v930
      %932 = vdwg.mxu0
      %933 = vmatpush.msra.mxu0 %v353
      %934 = vmatpush.msra.mxu0 %v352
      %935 = vmatpush.msra.mxu0 %v351
      %936 = vmatpush.msra.mxu0 %v350
      %937 = vmatpush.msra.mxu0 %v349
      %938 = vmatpush.msra.mxu0 %v348
      %939 = vmatpush.msra.mxu0 %v347
      %940 = vmatpush.msra.mxu0 %v346
      %941 = vmatpush.msra.mxu0 %v345
      %942 = vmatpush.msra.mxu0 %v344
      %943 = vmatpush.msra.mxu0 %v343
      %944 = vmatpush.msra.mxu0 %v342
      %945 = vmatpush.msra.mxu0 %v341
      %946 = vmatpush.msra.mxu0 %v340
      %947 = vmatpush.msra.mxu0 %v339
      %948 = vmatpush.msra.mxu0 %v338
      %949 = vmatmul.f32.gmra.mxu0 %v877
      %v950 = vpop.f32.mrf.mxu0
      %v951 = vadd.f32 %v910, %v950
      %952 = vmatmul.f32.gmra.mxu0 %v879
      %v953 = vpop.f32.mrf.mxu0
      %v954 = vadd.f32 %v913, %v953
      %955 = vmatmul.f32.gmra.mxu0 %v881
      %v956 = vpop.f32.mrf.mxu0
      %v957 = vadd.f32 %v916, %v956
      %958 = vmatmul.f32.gmra.mxu0 %v883
      %v959 = vpop.f32.mrf.mxu0
      %v960 = vadd.f32 %v919, %v959
      %961 = vmatmul.f32.gmra.mxu0 %v885
      %v962 = vpop.f32.mrf.mxu0
      %v963 = vadd.f32 %v922, %v962
      %964 = vmatmul.f32.gmra.mxu0 %v887
      %v965 = vpop.f32.mrf.mxu0
      %v966 = vadd.f32 %v925, %v965
      %967 = vmatmul.f32.gmra.mxu0 %v889
      %v968 = vpop.f32.mrf.mxu0
      %v969 = vadd.f32 %v928, %v968
      %970 = vmatmul.f32.gmra.mxu0 %v891
      %v971 = vpop.f32.mrf.mxu0
      %v972 = vadd.f32 %v931, %v971
      %973 = vdwg.mxu0
      %v974 = vmax.f32 %v828, %v951
      %v975 = vmax.f32 %v829, %v954
      %v976 = vmax.f32 %v830, %v957
      %v977 = vmax.f32 %v831, %v960
      %v978 = vmax.f32 %v832, %v963
      %v979 = vmax.f32 %v833, %v966
      %v980 = vmax.f32 %v834, %v969
      %v981 = vmax.f32 %v835, %v972
      %vm982 = vcmask 261120
      %983 = vst.msk [vmem:[%s197] sm:$0xff] %vm982, %v974
      %984 = vst.msk [vmem:[%s197 + $0x8] sm:$0xff] %vm982, %v975
      %985 = vst.msk [vmem:[%s197 + $0x10] sm:$0xff] %vm982, %v976
      %986 = vst.msk [vmem:[%s197 + $0x18] sm:$0xff] %vm982, %v977
      %987 = vst.msk [vmem:[%s197 + $0x20] sm:$0xff] %vm982, %v978
      %988 = vst.msk [vmem:[%s197 + $0x28] sm:$0xff] %vm982, %v979
      %989 = vst.msk [vmem:[%s197 + $0x30] sm:$0xff] %vm982, %v980
      %990 = vst.msk [vmem:[%s197 + $0x38] sm:$0xff] %vm982, %v981
      %p991 = scmp.lt.s32.totalorder %s15, 1
      %s992 = scalar_select %p991, %s15, 1
      %s993 = smul.addr %s992, 8
      %s994 = smul.addr %s993, 8
      %s995 = scalar_lea.vmem %s4, %s994
      // Predicated region
      $region37: #{baseline_train_forward.10} parent=35 // pred_check
        %p996 = pneg %p122
      $region38: #{baseline_train_forward.10} parent=35 // pred_check_branch
        %998 = sbr.rel (%p996) target = $region40
      $region39: #{baseline_train_forward.10} parent=35 // pred_region
        _
      $region40: #{baseline_train_forward.10} parent=35 // pred_fallthru
        _
    $region36: #{baseline_train_forward.10} parent=5 // pred_fallthru
      _
    %p999 = scmp.le.s32.totalorder 2, %s10
    // Predicated region
    $region41: #{baseline_train_forward.10} parent=5 // pred_check
      %p1000 = pneg %p999
    $region42: #{baseline_train_forward.10} parent=5 // pred_check_branch
      %1002 = sbr.rel (%p1000) target = $region44
    $region43: #{baseline_train_forward.10} parent=5 // pred_region
      %s1003 = ssub.s32 %s10, 2
      // Predicated region
      $region45: #{baseline_train_forward.10} parent=43 // pred_check
        %p1004 = pneg %p128
      $region46: #{baseline_train_forward.10} parent=43 // pred_check_branch
        %1006 = sbr.rel (%p1004) target = $region48
      $region47: #{baseline_train_forward.10} parent=43 // pred_region
        %p1007 = scmp.lt.s32.totalorder %s16, 1
        %s1008 = scalar_select %p1007, %s16, 1
        %s1009 = smul.addr %s1008, 8
        %s1010 = smul.addr %s1009, 8
        %s1011 = scalar_lea.vmem %s4, %s1010
      $region48: #{baseline_train_forward.10} parent=43 // pred_fallthru
        _
    $region44: #{baseline_train_forward.10} parent=5 // pred_fallthru
      _
  $region6: #{baseline_train_forward.10} parent=0 // loop_footer
    %s14 = sadd.s32 1, %s10
  $region7: #{baseline_train_forward.10} parent=0 // loop_footer_branch
    %9 = sbr.rel target = $region3
  $region8: #{baseline_train_forward.10} parent=0 // loop_exit
    _

// kernel: baseline_train_forward.12
$region0: #{baseline_train_forward.12}
  #allocation0 [shape = 'u32[]', space=smem, size = 0x4, offset = 0x4, fixed_abs, tag = 'smem constant byte address 0x4 - core index']
  #allocation1 [shape = 'u32[72,128]{1,0:T(1,128)}', space=vmem, size = 0x9000, scoped, tag = 'internal scratch']
  %s0 = inlined_call_operand.vmem [shape: f32[2,64,32], index: 0, kind: input, shape index: {}]
  %s1 = inlined_call_operand.vmem [shape: f32[2,32], index: 1, kind: input, shape index: {}]
  %s2 = inlined_call_operand.vmem [shape: f32[1,32], index: 2, kind: input, shape index: {}]
  %s3 = inlined_call_operand.vmem [shape: f32[1,32], index: 3, kind: input, shape index: {}]
  %s4 = inlined_call_operand.vmem [shape: f32[2,16,32], index: 4, kind: output, shape index: {}]
  %s5 = sld [smem:[#allocation0]]
  $region49: #{baseline_train_forward.12} parent=0
    _
  %s7 = ssub.s32 1, %s5
  %s8 = scalar_select 0, %s7, %s5
  loop: start=0, step=1, limit=4
  $region2: #{baseline_train_forward.12} parent=0 // loop_pre_header
    _
  $region3: #{baseline_train_forward.12} parent=0 // loop_header
    %s10 = sphi 0, %s14
    %p11 = scmp.ge.s32.totalorder %s10, 4
    %s20 = sphi 0, %s22
    %s23 = sphi 0, %s20
    %s24 = sphi 0, %s23
    %s40 = sphi 0, %s24
    %s44 = sphi 0, %s44
    %s46 = sphi 0, %s44
    %s47 = sphi 0, %s46
    %s61 = sphi 0, %s47
    %s65 = sphi 0, %s65
    %s67 = sphi 0, %s65
    %s68 = sphi 0, %s67
    %s82 = sphi 0, %s68
    %s86 = sphi 0, %s86
    %s88 = sphi 0, %s86
    %s89 = sphi 0, %s88
    %s103 = sphi 0, %s89
    %s109 = sphi 0, %s111
    %s112 = sphi 0, %s109
    %s113 = sphi 0, %s112
    %s129 = sphi 0, %s113
  $region4: #{baseline_train_forward.12} parent=0 // loop_header_branch
    %13 = sbr.rel (%p11) target = $region8
  $region5: #{baseline_train_forward.12} parent=0 // loop_body
    %s15 = ssub.s32 %s10, 1
    %s16 = ssub.s32 %s10, 2
    %s17 = sadd.s32 %s10, 1
    %s18 = ssub.s32 %s10, %s17
    %p19 = scmp.eq.s32.totalorder %s18, 0
    %s21 = sadd.s32 %s20, 1
    %s22 = scalar_select %p19, %s20, %s21
    %p25 = pneg %p19
    %p26 = scmp.eq.s32.totalorder %s10, 1
    %p27 = por %p25, %p26
    %p28 = scmp.ne.s32.totalorder %s20, %s23
    %p29 = scmp.eq.s32.totalorder %s10, 0
    %p30 = por %p28, %p29
    %p31 = scmp.ne.s32.totalorder %s20, %s23
    %p32 = scmp.eq.s32.totalorder %s15, 1
    %p33 = por %p31, %p32
    %p34 = scmp.ne.s32.totalorder %s23, %s24
    %p35 = scmp.eq.s32.totalorder %s15, 0
    %p36 = por %p34, %p35
    %p37 = scmp.ne.s32.totalorder %s23, %s24
    %p38 = scmp.eq.s32.totalorder %s16, 1
    %p39 = por %p37, %p38
    %p41 = scmp.ne.s32.totalorder %s24, %s40
    %p42 = scmp.eq.s32.totalorder %s16, 0
    %p43 = por %p41, %p42
    %s45 = sadd.s32 %s44, 1
    %p48 = scmp.eq.s32.totalorder %s10, 1
    %p49 = scmp.ne.s32.totalorder %s44, %s46
    %p50 = scmp.eq.s32.totalorder %s10, 0
    %p51 = por %p49, %p50
    %p52 = scmp.ne.s32.totalorder %s44, %s46
    %p53 = scmp.eq.s32.totalorder %s15, 1
    %p54 = por %p52, %p53
    %p55 = scmp.ne.s32.totalorder %s46, %s47
    %p56 = scmp.eq.s32.totalorder %s15, 0
    %p57 = por %p55, %p56
    %p58 = scmp.ne.s32.totalorder %s46, %s47
    %p59 = scmp.eq.s32.totalorder %s16, 1
    %p60 = por %p58, %p59
    %p62 = scmp.ne.s32.totalorder %s47, %s61
    %p63 = scmp.eq.s32.totalorder %s16, 0
    %p64 = por %p62, %p63
    %s66 = sadd.s32 %s65, 1
    %p69 = scmp.eq.s32.totalorder %s10, 1
    %p70 = scmp.ne.s32.totalorder %s65, %s67
    %p71 = scmp.eq.s32.totalorder %s10, 0
    %p72 = por %p70, %p71
    %p73 = scmp.ne.s32.totalorder %s65, %s67
    %p74 = scmp.eq.s32.totalorder %s15, 1
    %p75 = por %p73, %p74
    %p76 = scmp.ne.s32.totalorder %s67, %s68
    %p77 = scmp.eq.s32.totalorder %s15, 0
    %p78 = por %p76, %p77
    %p79 = scmp.ne.s32.totalorder %s67, %s68
    %p80 = scmp.eq.s32.totalorder %s16, 1
    %p81 = por %p79, %p80
    %p83 = scmp.ne.s32.totalorder %s68, %s82
    %p84 = scmp.eq.s32.totalorder %s16, 0
    %p85 = por %p83, %p84
    %s87 = sadd.s32 %s86, 1
    %p90 = scmp.eq.s32.totalorder %s10, 1
    %p91 = scmp.ne.s32.totalorder %s86, %s88
    %p92 = scmp.eq.s32.totalorder %s10, 0
    %p93 = por %p91, %p92
    %p94 = scmp.ne.s32.totalorder %s86, %s88
    %p95 = scmp.eq.s32.totalorder %s15, 1
    %p96 = por %p94, %p95
    %p97 = scmp.ne.s32.totalorder %s88, %s89
    %p98 = scmp.eq.s32.totalorder %s15, 0
    %p99 = por %p97, %p98
    %p100 = scmp.ne.s32.totalorder %s88, %s89
    %p101 = scmp.eq.s32.totalorder %s16, 1
    %p102 = por %p100, %p101
    %p104 = scmp.ne.s32.totalorder %s89, %s103
    %p105 = scmp.eq.s32.totalorder %s16, 0
    %p106 = por %p104, %p105
    %s107 = ssub.s32 %s10, %s17
    %p108 = scmp.eq.s32.totalorder %s107, 0
    %s110 = sadd.s32 %s109, 1
    %s111 = scalar_select %p108, %s109, %s110
    %p114 = pneg %p108
    %p115 = scmp.eq.s32.totalorder %s10, 1
    %p116 = por %p114, %p115
    %p117 = scmp.ne.s32.totalorder %s109, %s112
    %p118 = scmp.eq.s32.totalorder %s10, 0
    %p119 = por %p117, %p118
    %p120 = scmp.ne.s32.totalorder %s109, %s112
    %p121 = scmp.eq.s32.totalorder %s15, 1
    %p122 = por %p120, %p121
    %p123 = scmp.ne.s32.totalorder %s112, %s113
    %p124 = scmp.eq.s32.totalorder %s15, 0
    %p125 = por %p123, %p124
    %p126 = scmp.ne.s32.totalorder %s112, %s113
    %p127 = scmp.eq.s32.totalorder %s16, 1
    %p128 = por %p126, %p127
    %p130 = scmp.ne.s32.totalorder %s113, %s129
    %p131 = scmp.eq.s32.totalorder %s16, 0
    %p132 = por %p130, %p131
    %p133 = scmp.le.s32.totalorder 1, %s10
    %p134 = scmp.lt.s32.totalorder %s10, 3
    %p135 = pnand %p133, %p134
    %p136 = pneg %p135
    // Predicated region
    $region9: #{baseline_train_forward.12} parent=5 // pred_check
      _
    $region10: #{baseline_train_forward.12} parent=5 // pred_check_branch
      %138 = sbr.rel (%p135) target = $region12
    $region11: #{baseline_train_forward.12} parent=5 // pred_region
      %s139 = ssub.s32 %s10, 1
      // Predicated region
      $region13: #{baseline_train_forward.12} parent=11 // pred_check
        %p140 = pneg %p57
      $region14: #{baseline_train_forward.12} parent=11 // pred_check_branch
        %142 = sbr.rel (%p140) target = $region16
      $region15: #{baseline_train_forward.12} parent=11 // pred_region
        _
      $region16: #{baseline_train_forward.12} parent=11 // pred_fallthru
        _
      // Predicated region
      $region17: #{baseline_train_forward.12} parent=11 // pred_check
        %p143 = pneg %p78
      $region18: #{baseline_train_forward.12} parent=11 // pred_check_branch
        %145 = sbr.rel (%p143) target = $region20
      $region19: #{baseline_train_forward.12} parent=11 // pred_region
        _
      $region20: #{baseline_train_forward.12} parent=11 // pred_fallthru
        _
      // Predicated region
      $region21: #{baseline_train_forward.12} parent=11 // pred_check
        %p146 = pneg %p99
      $region22: #{baseline_train_forward.12} parent=11 // pred_check_branch
        %148 = sbr.rel (%p146) target = $region24
      $region23: #{baseline_train_forward.12} parent=11 // pred_region
        _
      $region24: #{baseline_train_forward.12} parent=11 // pred_fallthru
        _
    $region12: #{baseline_train_forward.12} parent=5 // pred_fallthru
      _
    %p149 = scmp.lt.s32.totalorder %s10, 2
    // Predicated region
    $region25: #{baseline_train_forward.12} parent=5 // pred_check
      %p150 = pneg %p149
    $region26: #{baseline_train_forward.12} parent=5 // pred_check_branch
      %152 = sbr.rel (%p150) target = $region28
    $region27: #{baseline_train_forward.12} parent=5 // pred_region
      // Predicated region
      $region29: #{baseline_train_forward.12} parent=27 // pred_check
        %p153 = pneg %p30
      $region30: #{baseline_train_forward.12} parent=27 // pred_check_branch
        %155 = sbr.rel (%p153) target = $region32
      $region31: #{baseline_train_forward.12} parent=27 // pred_region
        %p156 = scmp.lt.s32.totalorder %s10, 1
        %s157 = scalar_select %p156, %s10, 1
        %s158 = smul.addr %s157, 8
        %s159 = smul.addr %s158, 8
        %s160 = scalar_lea.vmem %s0, %s159
      $region32: #{baseline_train_forward.12} parent=27 // pred_fallthru
        _
    $region28: #{baseline_train_forward.12} parent=5 // pred_fallthru
      _
    %p161 = scmp.le.s32.totalorder 1, %s10
    %p162 = scmp.lt.s32.totalorder %s10, 3
    %p163 = pnand %p161, %p162
    %p164 = pneg %p163
    // Predicated region
    $region33: #{baseline_train_forward.12} parent=5 // pred_check
      _
    $region34: #{baseline_train_forward.12} parent=5 // pred_check_branch
      %166 = sbr.rel (%p163) target = $region36
    $region35: #{baseline_train_forward.12} parent=5 // pred_region
      %s167 = ssub.s32 %s10, 1
      %p168 = scmp.lt.s32.totalorder %s15, 1
      %s169 = scalar_select %p168, %s15, 1
      %s170 = smul.addr %s169, 8
      %s171 = smul.addr %s170, 8
      %s172 = scalar_lea.vmem %s0, %s171
      %p173 = pneg %p36
      %p174 = pneg %p33
      %p175 = pneg %p57
      %p176 = pneg %p54
      %p177 = pneg %p78
      %p178 = pneg %p75
      %p179 = pneg %p99
      %p180 = pneg %p96
      %p181 = pneg %p125
      %p182 = pneg %p122
      %p183 = scmp.lt.s32.totalorder %s15, 1
      %s184 = scalar_select %p183, %s15, 1
      %s185 = smul.addr %s184, 2
      %s186 = smul.addr %s185, 8
      %s187 = scalar_lea.vmem %s4, %s186
      %p188 = scmp.lt.s32.totalorder %s15, 1
      %s189 = scalar_select %p188, %s15, 1
      %s190 = smul.addr %s189, 8
      %s191 = smul.addr %s190, 8
      %s192 = scalar_lea.vmem %s0, %s191
      %p193 = scmp.lt.s32.totalorder %s15, 1
      %s194 = scalar_select %p193, %s15, 1
      %s195 = smul.addr %s194, 2
      %s196 = smul.addr %s195, 8
      %s197 = scalar_lea.vmem %s4, %s196
      %v198 = vld [vmem:[%s1] sm:$0x1]
      %v199 = vmul.f32 %v198, 0.0078125
      %v200 = vld [vmem:[%s1 + $0x1] sm:$0x1]
      %v201 = vmul.f32 %v200, 0.0078125
      %v202 = vmul.f32 %v199, %v199
      %v203 = vsub.f32 %v201, %v202
      %v204 = vld [vmem:[%s2] sm:$0x1]
      %v205 = vadd.f32 %v203, 1e-05
      %v206 = vrsqrt.pop %v205
      %v207 = vmul.f32 %v206, %v205
      %v208 = vmul.f32 %v207, %v206
      %v209 = vmul.f32 0.5, %v208
      %v210 = vsub.f32 1.5, %v209
      %v211 = vmul.f32 %v206, %v210
      %vm212 = vweird.f32 %v205
      %vm213 = vweird.f32 %v206
      %vm214 = vmor %vm212, %vm213
      %v215 = vsel %vm214, %v206, %v211
      %v216 = vmul.f32 %v204, %v215
      %v217 = vld [vmem:[%s3] sm:$0x1]
      %v218 = vmul.f32 %v199, %v216
      %v219 = vsub.f32 %v217, %v218
      %v220 = vld [vmem:[%s192] sm:$0xff]
      %v221 = vld [vmem:[%s192 + $0x8] sm:$0xff]
      %v222 = vld [vmem:[%s192 + $0x10] sm:$0xff]
      %v223 = vld [vmem:[%s192 + $0x18] sm:$0xff]
      %v224 = vld [vmem:[%s192 + $0x20] sm:$0xff]
      %v225 = vld [vmem:[%s192 + $0x28] sm:$0xff]
      %v226 = vld [vmem:[%s192 + $0x30] sm:$0xff]
      %v227 = vld [vmem:[%s192 + $0x38] sm:$0xff]
      %v229 = vperm.slane %v216, 0
      %v231 = vmul.f32 %v220, %v229
      %v232 = vmul.f32 %v221, %v229
      %v233 = vmul.f32 %v222, %v229
      %v234 = vmul.f32 %v223, %v229
      %v235 = vmul.f32 %v224, %v229
      %v236 = vmul.f32 %v225, %v229
      %v237 = vmul.f32 %v226, %v229
      %v238 = vmul.f32 %v227, %v229
      %v240 = vperm.slane %v219, 0
      %v242 = vadd.f32 %v231, %v240
      %v243 = vadd.f32 %v232, %v240
      %v244 = vadd.f32 %v233, %v240
      %v245 = vadd.f32 %v234, %v240
      %v246 = vadd.f32 %v235, %v240
      %v247 = vadd.f32 %v236, %v240
      %v248 = vadd.f32 %v237, %v240
      %v249 = vadd.f32 %v238, %v240
      %v250 = vmax.f32 %v242, 0.0
      %v251 = vmax.f32 %v243, 0.0
      %v252 = vmax.f32 %v244, 0.0
      %v253 = vmax.f32 %v245, 0.0
      %v254 = vmax.f32 %v246, 0.0
      %v255 = vmax.f32 %v247, 0.0
      %v256 = vmax.f32 %v248, 0.0
      %v257 = vmax.f32 %v249, 0.0
      %v258 = vlaneseq
      %v259 = vshrl.u32 %v258, 7
      %v260 = vadd.s32 %v259, 8
      %v261 = vlaneseq
      %v262 = vand.u32 %v261, 127
      %v263 = vshra.s32 %v259, 2
      %v264 = vshra.s32 %v260, 2
      %v265 = vand.u32 %v259, 3
      %v266 = vand.u32 %v260, 3
      %v267 = vmul.u32 %v263, 2
      %v268 = vmul.u32 %v264, 2
      %v269 = vmul.u32 %v267, 8
      %v270 = vmul.u32 %v268, 8
      %v271 = vmul.u32 %v265, 2
      %v272 = vmul.u32 %v266, 2
      %v273 = vadd.s32 %v269, %v271
      %v274 = vadd.s32 %v270, %v272
      %vm275 = vcmp.eq.s32.totalorder %v262, %v273
      %vm276 = vcmp.eq.s32.totalorder %v262, %v274
      %v277 = vsel %vm275, 1, 0
      %v278 = vsel %vm276, 1, 0
      %v279 = vcvt.s32.f32 %v277
      %v280 = vcvt.s32.f32 %v278
      %vm281 = vcmask 523264
      %v283 = vsel %vm281, %v279, 0
      %v286 = vsel %vm281, %v280, 0
      %288 = vmatpush.msra.mxu0 0.0
      %289 = vmatpush.msra.mxu0 0.0
      %290 = vmatpush.msra.mxu0 0.0
      %291 = vmatpush.msra.mxu0 0.0
      %292 = vmatpush.msra.mxu0 0.0
      %293 = vmatpush.msra.mxu0 0.0
      %294 = vmatpush.msra.mxu0 0.0
      %295 = vmatpush.msra.mxu0 0.0
      %296 = vmatpush.msra.mxu0 %v257
      %297 = vmatpush.msra.mxu0 %v256
      %298 = vmatpush.msra.mxu0 %v255
      %299 = vmatpush.msra.mxu0 %v254
      %300 = vmatpush.msra.mxu0 %v253
      %301 = vmatpush.msra.mxu0 %v252
      %302 = vmatpush.msra.mxu0 %v251
      %303 = vmatpush.msra.mxu0 %v250
      %304 = vmatmul.f32.gmra.mxu0 %v283
      %v305 = vpop.f32.mrf.mxu0
      %v306 = vadd.f32 0.0, %v305
      %307 = vmatmul.f32.gmra.mxu0 %v286
      %v308 = vpop.f32.mrf.mxu0
      %v309 = vadd.f32 0.0, %v308
      %310 = vdwg.mxu0
      %v311 = vadd.s32 %v273, 1
      %v312 = vadd.s32 %v274, 1
      %vm313 = vcmp.eq.s32.totalorder %v262, %v311
      %vm314 = vcmp.eq.s32.totalorder %v262, %v312
      %v315 = vsel %vm313, 1, 0
      %v316 = vsel %vm314, 1, 0
      %v317 = vcvt.s32.f32 %v315
      %v318 = vcvt.s32.f32 %v316
      %v320 = vsel %vm281, %v317, 0
      %v323 = vsel %vm281, %v318, 0
      %325 = vmatpush.msra.mxu0 0.0
      %326 = vmatpush.msra.mxu0 0.0
      %327 = vmatpush.msra.mxu0 0.0
      %328 = vmatpush.msra.mxu0 0.0
      %329 = vmatpush.msra.mxu0 0.0
      %330 = vmatpush.msra.mxu0 0.0
      %331 = vmatpush.msra.mxu0 0.0
      %332 = vmatpush.msra.mxu0 0.0
      %333 = vmatpush.msra.mxu0 %v257
      %334 = vmatpush.msra.mxu0 %v256
      %335 = vmatpush.msra.mxu0 %v255
      %336 = vmatpush.msra.mxu0 %v254
      %337 = vmatpush.msra.mxu0 %v253
      %338 = vmatpush.msra.mxu0 %v252
      %339 = vmatpush.msra.mxu0 %v251
      %340 = vmatpush.msra.mxu0 %v250
      %341 = vmatmul.f32.gmra.mxu0 %v320
      %v342 = vpop.f32.mrf.mxu0
      %v343 = vadd.f32 0.0, %v342
      %344 = vmatmul.f32.gmra.mxu0 %v323
      %v345 = vpop.f32.mrf.mxu0
      %v346 = vadd.f32 0.0, %v345
      %347 = vdwg.mxu0
      %v348 = vmax.f32 %v306, %v343
      %v349 = vmax.f32 %v309, %v346
      %v350 = vadd.s32 %v273, 8
      %v351 = vadd.s32 %v274, 8
      %vm352 = vcmp.eq.s32.totalorder %v262, %v350
      %vm353 = vcmp.eq.s32.totalorder %v262, %v351
      %v354 = vsel %vm352, 1, 0
      %v355 = vsel %vm353, 1, 0
      %v356 = vcvt.s32.f32 %v354
      %v357 = vcvt.s32.f32 %v355
      %v359 = vsel %vm281, %v356, 0
      %v362 = vsel %vm281, %v357, 0
      %364 = vmatpush.msra.mxu0 0.0
      %365 = vmatpush.msra.mxu0 0.0
      %366 = vmatpush.msra.mxu0 0.0
      %367 = vmatpush.msra.mxu0 0.0
      %368 = vmatpush.msra.mxu0 0.0
      %369 = vmatpush.msra.mxu0 0.0
      %370 = vmatpush.msra.mxu0 0.0
      %371 = vmatpush.msra.mxu0 0.0
      %372 = vmatpush.msra.mxu0 %v257
      %373 = vmatpush.msra.mxu0 %v256
      %374 = vmatpush.msra.mxu0 %v255
      %375 = vmatpush.msra.mxu0 %v254
      %376 = vmatpush.msra.mxu0 %v253
      %377 = vmatpush.msra.mxu0 %v252
      %378 = vmatpush.msra.mxu0 %v251
      %379 = vmatpush.msra.mxu0 %v250
      %380 = vmatmul.f32.gmra.mxu0 %v359
      %v381 = vpop.f32.mrf.mxu0
      %v382 = vadd.f32 0.0, %v381
      %383 = vmatmul.f32.gmra.mxu0 %v362
      %v384 = vpop.f32.mrf.mxu0
      %v385 = vadd.f32 0.0, %v384
      %386 = vdwg.mxu0
      %v387 = vmax.f32 %v348, %v382
      %v388 = vmax.f32 %v349, %v385
      %v389 = vadd.s32 %v350, 1
      %v390 = vadd.s32 %v351, 1
      %vm391 = vcmp.eq.s32.totalorder %v262, %v389
      %vm392 = vcmp.eq.s32.totalorder %v262, %v390
      %v393 = vsel %vm391, 1, 0
      %v394 = vsel %vm392, 1, 0
      %v395 = vcvt.s32.f32 %v393
      %v396 = vcvt.s32.f32 %v394
      %v398 = vsel %vm281, %v395, 0
      %v401 = vsel %vm281, %v396, 0
      %403 = vmatpush.msra.mxu0 0.0
      %404 = vmatpush.msra.mxu0 0.0
      %405 = vmatpush.msra.mxu0 0.0
      %406 = vmatpush.msra.mxu0 0.0
      %407 = vmatpush.msra.mxu0 0.0
      %408 = vmatpush.msra.mxu0 0.0
      %409 = vmatpush.msra.mxu0 0.0
      %410 = vmatpush.msra.mxu0 0.0
      %411 = vmatpush.msra.mxu0 %v257
      %412 = vmatpush.msra.mxu0 %v256
      %413 = vmatpush.msra.mxu0 %v255
      %414 = vmatpush.msra.mxu0 %v254
      %415 = vmatpush.msra.mxu0 %v253
      %416 = vmatpush.msra.mxu0 %v252
      %417 = vmatpush.msra.mxu0 %v251
      %418 = vmatpush.msra.mxu0 %v250
      %419 = vmatmul.f32.gmra.mxu0 %v398
      %v420 = vpop.f32.mrf.mxu0
      %v421 = vadd.f32 0.0, %v420
      %422 = vmatmul.f32.gmra.mxu0 %v401
      %v423 = vpop.f32.mrf.mxu0
      %v424 = vadd.f32 0.0, %v423
      %425 = vdwg.mxu0
      %v426 = vmax.f32 %v387, %v421
      %v427 = vmax.f32 %v388, %v424
      %vm428 = vcmask 261120
      %429 = vst.msk [vmem:[%s197] sm:$0xff] %vm428, %v426
      %430 = vst.msk [vmem:[%s197 + $0x8] sm:$0xff] %vm428, %v427
      %p431 = scmp.lt.s32.totalorder %s15, 1
      %s432 = scalar_select %p431, %s15, 1
      %s433 = smul.addr %s432, 2
      %s434 = smul.addr %s433, 8
      %s435 = scalar_lea.vmem %s4, %s434
      // Predicated region
      $region37: #{baseline_train_forward.12} parent=35 // pred_check
        %p436 = pneg %p122
      $region38: #{baseline_train_forward.12} parent=35 // pred_check_branch
        %438 = sbr.rel (%p436) target = $region40
      $region39: #{baseline_train_forward.12} parent=35 // pred_region
        _
      $region40: #{baseline_train_forward.12} parent=35 // pred_fallthru
        _
    $region36: #{baseline_train_forward.12} parent=5 // pred_fallthru
      _
    %p439 = scmp.le.s32.totalorder 2, %s10
    // Predicated region
    $region41: #{baseline_train_forward.12} parent=5 // pred_check
      %p440 = pneg %p439
    $region42: #{baseline_train_forward.12} parent=5 // pred_check_branch
      %442 = sbr.rel (%p440) target = $region44
    $region43: #{baseline_train_forward.12} parent=5 // pred_region
      %s443 = ssub.s32 %s10, 2
      // Predicated region
      $region45: #{baseline_train_forward.12} parent=43 // pred_check
        %p444 = pneg %p128
      $region46: #{baseline_train_forward.12} parent=43 // pred_check_branch
        %446 = sbr.rel (%p444) target = $region48
      $region47: #{baseline_train_forward.12} parent=43 // pred_region
        %p447 = scmp.lt.s32.totalorder %s16, 1
        %s448 = scalar_select %p447, %s16, 1
        %s449 = smul.addr %s448, 2
        %s450 = smul.addr %s449, 8
        %s451 = scalar_lea.vmem %s4, %s450
      $region48: #{baseline_train_forward.12} parent=43 // pred_fallthru
        _
    $region44: #{baseline_train_forward.12} parent=5 // pred_fallthru
      _
  $region6: #{baseline_train_forward.12} parent=0 // loop_footer
    %s14 = sadd.s32 1, %s10
  $region7: #{baseline_train_forward.12} parent=0 // loop_footer_branch
    %9 = sbr.rel target = $region3
  $region8: #{baseline_train_forward.12} parent=0 // loop_exit
    _

// kernel: baseline_train_forward.11
$region0: #{baseline_train_forward.11}
  #allocation0 [shape = 'u32[]', space=smem, size = 0x4, offset = 0x4, fixed_abs, tag = 'smem constant byte address 0x4 - core index']
  #allocation1 [shape = 'u32[72,128]{1,0:T(1,128)}', space=vmem, size = 0x9000, scoped, tag = 'internal scratch']
  %s0 = inlined_call_operand.vmem [shape: f32[2,10,10,32], index: 0, kind: input, shape index: {}]
  %s1 = inlined_call_operand.vmem [shape: f32[288,32], index: 1, kind: input, shape index: {}]
  %s2 = inlined_call_operand.vmem [shape: f32[2,64,32], index: 2, kind: output, shape index: {0}]
  %s3 = inlined_call_operand.vmem [shape: f32[2,32], index: 3, kind: output, shape index: {1}]
  %4 = xla_tuple %s2, %s3
  %s5 = sld [smem:[#allocation0]]
  $region53: #{baseline_train_forward.11} parent=0
    _
  %s7 = ssub.s32 1, %s5
  %s8 = scalar_select 0, %s7, %s5
  loop: start=0, step=1, limit=4
  $region2: #{baseline_train_forward.11} parent=0 // loop_pre_header
    _
  $region3: #{baseline_train_forward.11} parent=0 // loop_header
    %s10 = sphi 0, %s14
    %p11 = scmp.ge.s32.totalorder %s10, 4
    %s20 = sphi 0, %s22
    %s23 = sphi 0, %s20
    %s24 = sphi 0, %s23
    %s40 = sphi 0, %s24
    %s44 = sphi 0, %s44
    %s46 = sphi 0, %s44
    %s47 = sphi 0, %s46
    %s61 = sphi 0, %s47
    %s67 = sphi 0, %s69
    %s70 = sphi 0, %s67
    %s71 = sphi 0, %s70
    %s87 = sphi 0, %s71
    %s91 = sphi 0, %s91
    %s93 = sphi 0, %s91
    %s94 = sphi 0, %s93
    %s108 = sphi 0, %s94
  $region4: #{baseline_train_forward.11} parent=0 // loop_header_branch
    %13 = sbr.rel (%p11) target = $region8
  $region5: #{baseline_train_forward.11} parent=0 // loop_body
    %s15 = ssub.s32 %s10, 1
    %s16 = ssub.s32 %s10, 2
    %s17 = sadd.s32 %s10, 1
    %s18 = ssub.s32 %s10, %s17
    %p19 = scmp.eq.s32.totalorder %s18, 0
    %s21 = sadd.s32 %s20, 1
    %s22 = scalar_select %p19, %s20, %s21
    %p25 = pneg %p19
    %p26 = scmp.eq.s32.totalorder %s10, 1
    %p27 = por %p25, %p26
    %p28 = scmp.ne.s32.totalorder %s20, %s23
    %p29 = scmp.eq.s32.totalorder %s10, 0
    %p30 = por %p28, %p29
    %p31 = scmp.ne.s32.totalorder %s20, %s23
    %p32 = scmp.eq.s32.totalorder %s15, 1
    %p33 = por %p31, %p32
    %p34 = scmp.ne.s32.totalorder %s23, %s24
    %p35 = scmp.eq.s32.totalorder %s15, 0
    %p36 = por %p34, %p35
    %p37 = scmp.ne.s32.totalorder %s23, %s24
    %p38 = scmp.eq.s32.totalorder %s16, 1
    %p39 = por %p37, %p38
    %p41 = scmp.ne.s32.totalorder %s24, %s40
    %p42 = scmp.eq.s32.totalorder %s16, 0
    %p43 = por %p41, %p42
    %s45 = sadd.s32 %s44, 1
    %p48 = scmp.eq.s32.totalorder %s10, 1
    %p49 = scmp.ne.s32.totalorder %s44, %s46
    %p50 = scmp.eq.s32.totalorder %s10, 0
    %p51 = por %p49, %p50
    %p52 = scmp.ne.s32.totalorder %s44, %s46
    %p53 = scmp.eq.s32.totalorder %s15, 1
    %p54 = por %p52, %p53
    %p55 = scmp.ne.s32.totalorder %s46, %s47
    %p56 = scmp.eq.s32.totalorder %s15, 0
    %p57 = por %p55, %p56
    %p58 = scmp.ne.s32.totalorder %s46, %s47
    %p59 = scmp.eq.s32.totalorder %s16, 1
    %p60 = por %p58, %p59
    %p62 = scmp.ne.s32.totalorder %s47, %s61
    %p63 = scmp.eq.s32.totalorder %s16, 0
    %p64 = por %p62, %p63
    %s65 = ssub.s32 %s10, %s17
    %p66 = scmp.eq.s32.totalorder %s65, 0
    %s68 = sadd.s32 %s67, 1
    %s69 = scalar_select %p66, %s67, %s68
    %p72 = pneg %p66
    %p73 = scmp.eq.s32.totalorder %s10, 1
    %p74 = por %p72, %p73
    %p75 = scmp.ne.s32.totalorder %s67, %s70
    %p76 = scmp.eq.s32.totalorder %s10, 0
    %p77 = por %p75, %p76
    %p78 = scmp.ne.s32.totalorder %s67, %s70
    %p79 = scmp.eq.s32.totalorder %s15, 1
    %p80 = por %p78, %p79
    %p81 = scmp.ne.s32.totalorder %s70, %s71
    %p82 = scmp.eq.s32.totalorder %s15, 0
    %p83 = por %p81, %p82
    %p84 = scmp.ne.s32.totalorder %s70, %s71
    %p85 = scmp.eq.s32.totalorder %s16, 1
    %p86 = por %p84, %p85
    %p88 = scmp.ne.s32.totalorder %s71, %s87
    %p89 = scmp.eq.s32.totalorder %s16, 0
    %p90 = por %p88, %p89
    %s92 = sadd.s32 %s91, 1
    %p95 = scmp.eq.s32.totalorder %s10, 1
    %p96 = scmp.ne.s32.totalorder %s91, %s93
    %p97 = scmp.eq.s32.totalorder %s10, 0
    %p98 = por %p96, %p97
    %p99 = scmp.ne.s32.totalorder %s91, %s93
    %p100 = scmp.eq.s32.totalorder %s15, 1
    %p101 = por %p99, %p100
    %p102 = scmp.ne.s32.totalorder %s93, %s94
    %p103 = scmp.eq.s32.totalorder %s15, 0
    %p104 = por %p102, %p103
    %p105 = scmp.ne.s32.totalorder %s93, %s94
    %p106 = scmp.eq.s32.totalorder %s16, 1
    %p107 = por %p105, %p106
    %p109 = scmp.ne.s32.totalorder %s94, %s108
    %p110 = scmp.eq.s32.totalorder %s16, 0
    %p111 = por %p109, %p110
    %p112 = scmp.le.s32.totalorder 1, %s10
    %p113 = scmp.lt.s32.totalorder %s10, 3
    %p114 = pnand %p112, %p113
    %p115 = pneg %p114
    // Predicated region
    $region9: #{baseline_train_forward.11} parent=5 // pred_check
      _
    $region10: #{baseline_train_forward.11} parent=5 // pred_check_branch
      %117 = sbr.rel (%p114) target = $region12
    $region11: #{baseline_train_forward.11} parent=5 // pred_region
      %s118 = ssub.s32 %s10, 1
      // Predicated region
      $region13: #{baseline_train_forward.11} parent=11 // pred_check
        %p119 = pneg %p57
      $region14: #{baseline_train_forward.11} parent=11 // pred_check_branch
        %121 = sbr.rel (%p119) target = $region16
      $region15: #{baseline_train_forward.11} parent=11 // pred_region
        _
      $region16: #{baseline_train_forward.11} parent=11 // pred_fallthru
        _
    $region12: #{baseline_train_forward.11} parent=5 // pred_fallthru
      _
    %p122 = scmp.lt.s32.totalorder %s10, 2
    // Predicated region
    $region17: #{baseline_train_forward.11} parent=5 // pred_check
      %p123 = pneg %p122
    $region18: #{baseline_train_forward.11} parent=5 // pred_check_branch
      %125 = sbr.rel (%p123) target = $region20
    $region19: #{baseline_train_forward.11} parent=5 // pred_region
      // Predicated region
      $region21: #{baseline_train_forward.11} parent=19 // pred_check
        %p126 = pneg %p30
      $region22: #{baseline_train_forward.11} parent=19 // pred_check_branch
        %128 = sbr.rel (%p126) target = $region24
      $region23: #{baseline_train_forward.11} parent=19 // pred_region
        %p129 = scmp.lt.s32.totalorder %s10, 1
        %s130 = scalar_select %p129, %s10, 1
        %s131 = smul.addr %s130, 20
        %s132 = smul.addr %s131, 8
        %s133 = scalar_lea.vmem %s0, %s132
      $region24: #{baseline_train_forward.11} parent=19 // pred_fallthru
        _
    $region20: #{baseline_train_forward.11} parent=5 // pred_fallthru
      _
    %p134 = scmp.le.s32.totalorder 1, %s10
    %p135 = scmp.lt.s32.totalorder %s10, 3
    %p136 = pnand %p134, %p135
    %p137 = pneg %p136
    // Predicated region
    $region25: #{baseline_train_forward.11} parent=5 // pred_check
      _
    $region26: #{baseline_train_forward.11} parent=5 // pred_check_branch
      %139 = sbr.rel (%p136) target = $region28
    $region27: #{baseline_train_forward.11} parent=5 // pred_region
      %s140 = ssub.s32 %s10, 1
      %p141 = scmp.lt.s32.totalorder %s15, 1
      %s142 = scalar_select %p141, %s15, 1
      %s143 = smul.addr %s142, 20
      %s144 = smul.addr %s143, 8
      %s145 = scalar_lea.vmem %s0, %s144
      %p146 = pneg %p36
      %p147 = pneg %p33
      %p148 = pneg %p57
      %p149 = pneg %p54
      %p150 = pneg %p83
      %p151 = pneg %p80
      %p152 = scmp.lt.s32.totalorder %s15, 1
      %s153 = scalar_select %p152, %s15, 1
      %s154 = smul.addr %s153, 8
      %s155 = smul.addr %s154, 8
      %s156 = scalar_lea.vmem %s2, %s155
      %p157 = pneg %p104
      %p158 = pneg %p101
      %p159 = scmp.lt.s32.totalorder %s15, 1
      %s160 = scalar_select %p159, %s15, 1
      %s161 = smul.addr %s160, 20
      %s162 = smul.addr %s161, 8
      %s163 = scalar_lea.vmem %s0, %s162
      %p164 = scmp.lt.s32.totalorder %s15, 1
      %s165 = scalar_select %p164, %s15, 1
      %s166 = smul.addr %s165, 8
      %s167 = smul.addr %s166, 8
      %s168 = scalar_lea.vmem %s2, %s167
      %v169 = vld [vmem:[%s163] sm:$0xff]
      %v170 = vld [vmem:[%s163 + $0x10] sm:$0xff]
      %v171 = vld [vmem:[%s163 + $0x20] sm:$0xff]
      %v172 = vld [vmem:[%s163 + $0x30] sm:$0xff]
      %v173 = vld [vmem:[%s163 + $0x40] sm:$0xff]
      %v174 = vld [vmem:[%s163 + $0x50] sm:$0xff]
      %v175 = vld [vmem:[%s163 + $0x60] sm:$0xff]
      %v176 = vld [vmem:[%s163 + $0x70] sm:$0xff]
      %v177 = vld [vmem:[%s1] sm:$0xff]
      %v178 = vld [vmem:[%s1 + $0x8] sm:$0xff]
      %v179 = vld [vmem:[%s1 + $0x10] sm:$0xff]
      %v180 = vld [vmem:[%s1 + $0x18] sm:$0xff]
      %v181 = vld [vmem:[%s163 + $0x1] sm:$0xff]
      %v182 = vld [vmem:[%s163 + $0x11] sm:$0xff]
      %v183 = vld [vmem:[%s163 + $0x21] sm:$0xff]
      %v184 = vld [vmem:[%s163 + $0x31] sm:$0xff]
      %v185 = vld [vmem:[%s163 + $0x41] sm:$0xff]
      %v186 = vld [vmem:[%s163 + $0x51] sm:$0xff]
      %v187 = vld [vmem:[%s163 + $0x61] sm:$0xff]
      %v188 = vld [vmem:[%s163 + $0x71] sm:$0xff]
      %v189 = vld [vmem:[%s1 + $0x20] sm:$0xff]
      %v190 = vld [vmem:[%s1 + $0x28] sm:$0xff]
      %v191 = vld [vmem:[%s1 + $0x30] sm:$0xff]
      %v192 = vld [vmem:[%s1 + $0x38] sm:$0xff]
      %vm193 = vcmask 261120
      %v195 = vsel %vm193, %v181, 0
      %v198 = vsel %vm193, %v182, 0
      %v201 = vsel %vm193, %v183, 0
      %v204 = vsel %vm193, %v184, 0
      %v207 = vsel %vm193, %v185, 0
      %v210 = vsel %vm193, %v186, 0
      %v213 = vsel %vm193, %v187, 0
      %v216 = vsel %vm193, %v188, 0
      %218 = vmatpush.msra.mxu0 0.0
      %219 = vmatpush.msra.mxu0 0.0
      %220 = vmatpush.msra.mxu0 0.0
      %221 = vmatpush.msra.mxu0 0.0
      %222 = vmatpush.msra.mxu0 0.0
      %223 = vmatpush.msra.mxu0 0.0
      %224 = vmatpush.msra.mxu0 0.0
      %225 = vmatpush.msra.mxu0 0.0
      %226 = vmatpush.msra.mxu0 0.0
      %227 = vmatpush.msra.mxu0 0.0
      %228 = vmatpush.msra.mxu0 0.0
      %229 = vmatpush.msra.mxu0 0.0
      %230 = vmatpush.msra.mxu0 %v192
      %231 = vmatpush.msra.mxu0 %v191
      %232 = vmatpush.msra.mxu0 %v190
      %233 = vmatpush.msra.mxu0 %v189
      %234 = vmatmul.f32.gmra.mxu0 %v195
      %v235 = vpop.f32.mrf.mxu0
      %v236 = vadd.f32 0.0, %v235
      %237 = vmatmul.f32.gmra.mxu0 %v198
      %v238 = vpop.f32.mrf.mxu0
      %v239 = vadd.f32 0.0, %v238
      %240 = vmatmul.f32.gmra.mxu0 %v201
      %v241 = vpop.f32.mrf.mxu0
      %v242 = vadd.f32 0.0, %v241
      %243 = vmatmul.f32.gmra.mxu0 %v204
      %v244 = vpop.f32.mrf.mxu0
      %v245 = vadd.f32 0.0, %v244
      %246 = vmatmul.f32.gmra.mxu0 %v207
      %v247 = vpop.f32.mrf.mxu0
      %v248 = vadd.f32 0.0, %v247
      %249 = vmatmul.f32.gmra.mxu0 %v210
      %v250 = vpop.f32.mrf.mxu0
      %v251 = vadd.f32 0.0, %v250
      %252 = vmatmul.f32.gmra.mxu0 %v213
      %v253 = vpop.f32.mrf.mxu0
      %v254 = vadd.f32 0.0, %v253
      %255 = vmatmul.f32.gmra.mxu0 %v216
      %v256 = vpop.f32.mrf.mxu0
      %v257 = vadd.f32 0.0, %v256
      %258 = vdwg.mxu0
      %v260 = vsel %vm193, %v169, 0
      %v263 = vsel %vm193, %v170, 0
      %v266 = vsel %vm193, %v171, 0
      %v269 = vsel %vm193, %v172, 0
      %v272 = vsel %vm193, %v173, 0
      %v275 = vsel %vm193, %v174, 0
      %v278 = vsel %vm193, %v175, 0
      %v281 = vsel %vm193, %v176, 0
      %283 = vmatpush.msra.mxu0 0.0
      %284 = vmatpush.msra.mxu0 0.0
      %285 = vmatpush.msra.mxu0 0.0
      %286 = vmatpush.msra.mxu0 0.0
      %287 = vmatpush.msra.mxu0 0.0
      %288 = vmatpush.msra.mxu0 0.0
      %289 = vmatpush.msra.mxu0 0.0
      %290 = vmatpush.msra.mxu0 0.0
      %291 = vmatpush.msra.mxu0 0.0
      %292 = vmatpush.msra.mxu0 0.0
      %293 = vmatpush.msra.mxu0 0.0
      %294 = vmatpush.msra.mxu0 0.0
      %295 = vmatpush.msra.mxu0 %v180
      %296 = vmatpush.msra.mxu0 %v179
      %297 = vmatpush.msra.mxu0 %v178
      %298 = vmatpush.msra.mxu0 %v177
      %299 = vmatmul.f32.gmra.mxu0 %v260
      %v300 = vpop.f32.mrf.mxu0
      %v301 = vadd.f32 %v236, %v300
      %302 = vmatmul.f32.gmra.mxu0 %v263
      %v303 = vpop.f32.mrf.mxu0
      %v304 = vadd.f32 %v239, %v303
      %305 = vmatmul.f32.gmra.mxu0 %v266
      %v306 = vpop.f32.mrf.mxu0
      %v307 = vadd.f32 %v242, %v306
      %308 = vmatmul.f32.gmra.mxu0 %v269
      %v309 = vpop.f32.mrf.mxu0
      %v310 = vadd.f32 %v245, %v309
      %311 = vmatmul.f32.gmra.mxu0 %v272
      %v312 = vpop.f32.mrf.mxu0
      %v313 = vadd.f32 %v248, %v312
      %314 = vmatmul.f32.gmra.mxu0 %v275
      %v315 = vpop.f32.mrf.mxu0
      %v316 = vadd.f32 %v251, %v315
      %317 = vmatmul.f32.gmra.mxu0 %v278
      %v318 = vpop.f32.mrf.mxu0
      %v319 = vadd.f32 %v254, %v318
      %320 = vmatmul.f32.gmra.mxu0 %v281
      %v321 = vpop.f32.mrf.mxu0
      %v322 = vadd.f32 %v257, %v321
      %323 = vdwg.mxu0
      %v324 = vld [vmem:[%s163 + $0x2] sm:$0xff]
      %v325 = vld [vmem:[%s163 + $0x12] sm:$0xff]
      %v326 = vld [vmem:[%s163 + $0x22] sm:$0xff]
      %v327 = vld [vmem:[%s163 + $0x32] sm:$0xff]
      %v328 = vld [vmem:[%s163 + $0x42] sm:$0xff]
      %v329 = vld [vmem:[%s163 + $0x52] sm:$0xff]
      %v330 = vld [vmem:[%s163 + $0x62] sm:$0xff]
      %v331 = vld [vmem:[%s163 + $0x72] sm:$0xff]
      %v332 = vld [vmem:[%s1 + $0x40] sm:$0xff]
      %v333 = vld [vmem:[%s1 + $0x48] sm:$0xff]
      %v334 = vld [vmem:[%s1 + $0x50] sm:$0xff]
      %v335 = vld [vmem:[%s1 + $0x58] sm:$0xff]
      %v337 = vsel %vm193, %v324, 0
      %v340 = vsel %vm193, %v325, 0
      %v343 = vsel %vm193, %v326, 0
      %v346 = vsel %vm193, %v327, 0
      %v349 = vsel %vm193, %v328, 0
      %v352 = vsel %vm193, %v329, 0
      %v355 = vsel %vm193, %v330, 0
      %v358 = vsel %vm193, %v331, 0
      %360 = vmatpush.msra.mxu0 0.0
      %361 = vmatpush.msra.mxu0 0.0
      %362 = vmatpush.msra.mxu0 0.0
      %363 = vmatpush.msra.mxu0 0.0
      %364 = vmatpush.msra.mxu0 0.0
      %365 = vmatpush.msra.mxu0 0.0
      %366 = vmatpush.msra.mxu0 0.0
      %367 = vmatpush.msra.mxu0 0.0
      %368 = vmatpush.msra.mxu0 0.0
      %369 = vmatpush.msra.mxu0 0.0
      %370 = vmatpush.msra.mxu0 0.0
      %371 = vmatpush.msra.mxu0 0.0
      %372 = vmatpush.msra.mxu0 %v335
      %373 = vmatpush.msra.mxu0 %v334
      %374 = vmatpush.msra.mxu0 %v333
      %375 = vmatpush.msra.mxu0 %v332
      %376 = vmatmul.f32.gmra.mxu0 %v337
      %v377 = vpop.f32.mrf.mxu0
      %v378 = vadd.f32 0.0, %v377
      %379 = vmatmul.f32.gmra.mxu0 %v340
      %v380 = vpop.f32.mrf.mxu0
      %v381 = vadd.f32 0.0, %v380
      %382 = vmatmul.f32.gmra.mxu0 %v343
      %v383 = vpop.f32.mrf.mxu0
      %v384 = vadd.f32 0.0, %v383
      %385 = vmatmul.f32.gmra.mxu0 %v346
      %v386 = vpop.f32.mrf.mxu0
      %v387 = vadd.f32 0.0, %v386
      %388 = vmatmul.f32.gmra.mxu0 %v349
      %v389 = vpop.f32.mrf.mxu0
      %v390 = vadd.f32 0.0, %v389
      %391 = vmatmul.f32.gmra.mxu0 %v352
      %v392 = vpop.f32.mrf.mxu0
      %v393 = vadd.f32 0.0, %v392
      %394 = vmatmul.f32.gmra.mxu0 %v355
      %v395 = vpop.f32.mrf.mxu0
      %v396 = vadd.f32 0.0, %v395
      %397 = vmatmul.f32.gmra.mxu0 %v358
      %v398 = vpop.f32.mrf.mxu0
      %v399 = vadd.f32 0.0, %v398
      %400 = vdwg.mxu0
      %v401 = vadd.f32 %v301, %v378
      %v402 = vadd.f32 %v304, %v381
      %v403 = vadd.f32 %v307, %v384
      %v404 = vadd.f32 %v310, %v387
      %v405 = vadd.f32 %v313, %v390
      %v406 = vadd.f32 %v316, %v393
      %v407 = vadd.f32 %v319, %v396
      %v408 = vadd.f32 %v322, %v399
      %s409 = scalar_lea.vmem %s163, 16
      %v410 = vld [vmem:[%s409] sm:$0xff]
      %v411 = vld [vmem:[%s409 + $0x10] sm:$0xff]
      %v412 = vld [vmem:[%s409 + $0x20] sm:$0xff]
      %v413 = vld [vmem:[%s409 + $0x30] sm:$0xff]
      %v414 = vld [vmem:[%s409 + $0x40] sm:$0xff]
      %v415 = vld [vmem:[%s409 + $0x50] sm:$0xff]
      %v416 = vld [vmem:[%s409 + $0x60] sm:$0xff]
      %v417 = vld [vmem:[%s409 + $0x70] sm:$0xff]
      %v418 = vld [vmem:[%s1 + $0x60] sm:$0xff]
      %v419 = vld [vmem:[%s1 + $0x68] sm:$0xff]
      %v420 = vld [vmem:[%s1 + $0x70] sm:$0xff]
      %v421 = vld [vmem:[%s1 + $0x78] sm:$0xff]
      %v423 = vsel %vm193, %v410, 0
      %v426 = vsel %vm193, %v411, 0
      %v429 = vsel %vm193, %v412, 0
      %v432 = vsel %vm193, %v413, 0
      %v435 = vsel %vm193, %v414, 0
      %v438 = vsel %vm193, %v415, 0
      %v441 = vsel %vm193, %v416, 0
      %v444 = vsel %vm193, %v417, 0
      %446 = vmatpush.msra.mxu0 0.0
      %447 = vmatpush.msra.mxu0 0.0
      %448 = vmatpush.msra.mxu0 0.0
      %449 = vmatpush.msra.mxu0 0.0
      %450 = vmatpush.msra.mxu0 0.0
      %451 = vmatpush.msra.mxu0 0.0
      %452 = vmatpush.msra.mxu0 0.0
      %453 = vmatpush.msra.mxu0 0.0
      %454 = vmatpush.msra.mxu0 0.0
      %455 = vmatpush.msra.mxu0 0.0
      %456 = vmatpush.msra.mxu0 0.0
      %457 = vmatpush.msra.mxu0 0.0
      %458 = vmatpush.msra.mxu0 %v421
      %459 = vmatpush.msra.mxu0 %v420
      %460 = vmatpush.msra.mxu0 %v419
      %461 = vmatpush.msra.mxu0 %v418
      %462 = vmatmul.f32.gmra.mxu0 %v423
      %v463 = vpop.f32.mrf.mxu0
      %v464 = vadd.f32 0.0, %v463
      %465 = vmatmul.f32.gmra.mxu0 %v426
      %v466 = vpop.f32.mrf.mxu0
      %v467 = vadd.f32 0.0, %v466
      %468 = vmatmul.f32.gmra.mxu0 %v429
      %v469 = vpop.f32.mrf.mxu0
      %v470 = vadd.f32 0.0, %v469
      %471 = vmatmul.f32.gmra.mxu0 %v432
      %v472 = vpop.f32.mrf.mxu0
      %v473 = vadd.f32 0.0, %v472
      %474 = vmatmul.f32.gmra.mxu0 %v435
      %v475 = vpop.f32.mrf.mxu0
      %v476 = vadd.f32 0.0, %v475
      %477 = vmatmul.f32.gmra.mxu0 %v438
      %v478 = vpop.f32.mrf.mxu0
      %v479 = vadd.f32 0.0, %v478
      %480 = vmatmul.f32.gmra.mxu0 %v441
      %v481 = vpop.f32.mrf.mxu0
      %v482 = vadd.f32 0.0, %v481
      %483 = vmatmul.f32.gmra.mxu0 %v444
      %v484 = vpop.f32.mrf.mxu0
      %v485 = vadd.f32 0.0, %v484
      %486 = vdwg.mxu0
      %v487 = vadd.f32 %v401, %v464
      %v488 = vadd.f32 %v402, %v467
      %v489 = vadd.f32 %v403, %v470
      %v490 = vadd.f32 %v404, %v473
      %v491 = vadd.f32 %v405, %v476
      %v492 = vadd.f32 %v406, %v479
      %v493 = vadd.f32 %v407, %v482
      %v494 = vadd.f32 %v408, %v485
      %v495 = vld [vmem:[%s409 + $0x1] sm:$0xff]
      %v496 = vld [vmem:[%s409 + $0x11] sm:$0xff]
      %v497 = vld [vmem:[%s409 + $0x21] sm:$0xff]
      %v498 = vld [vmem:[%s409 + $0x31] sm:$0xff]
      %v499 = vld [vmem:[%s409 + $0x41] sm:$0xff]
      %v500 = vld [vmem:[%s409 + $0x51] sm:$0xff]
      %v501 = vld [vmem:[%s409 + $0x61] sm:$0xff]
      %v502 = vld [vmem:[%s409 + $0x71] sm:$0xff]
      %v503 = vld [vmem:[%s1 + $0x80] sm:$0xff]
      %v504 = vld [vmem:[%s1 + $0x88] sm:$0xff]
      %v505 = vld [vmem:[%s1 + $0x90] sm:$0xff]
      %v506 = vld [vmem:[%s1 + $0x98] sm:$0xff]
      %v508 = vsel %vm193, %v495, 0
      %v511 = vsel %vm193, %v496, 0
      %v514 = vsel %vm193, %v497, 0
      %v517 = vsel %vm193, %v498, 0
      %v520 = vsel %vm193, %v499, 0
      %v523 = vsel %vm193, %v500, 0
      %v526 = vsel %vm193, %v501, 0
      %v529 = vsel %vm193, %v502, 0
      %531 = vmatpush.msra.mxu0 0.0
      %532 = vmatpush.msra.mxu0 0.0
      %533 = vmatpush.msra.mxu0 0.0
      %534 = vmatpush.msra.mxu0 0.0
      %535 = vmatpush.msra.mxu0 0.0
      %536 = vmatpush.msra.mxu0 0.0
      %537 = vmatpush.msra.mxu0 0.0
      %538 = vmatpush.msra.mxu0 0.0
      %539 = vmatpush.msra.mxu0 0.0
      %540 = vmatpush.msra.mxu0 0.0
      %541 = vmatpush.msra.mxu0 0.0
      %542 = vmatpush.msra.mxu0 0.0
      %543 = vmatpush.msra.mxu0 %v506
      %544 = vmatpush.msra.mxu0 %v505
      %545 = vmatpush.msra.mxu0 %v504
      %546 = vmatpush.msra.mxu0 %v503
      %547 = vmatmul.f32.gmra.mxu0 %v508
      %v548 = vpop.f32.mrf.mxu0
      %v549 = vadd.f32 0.0, %v548
      %550 = vmatmul.f32.gmra.mxu0 %v511
      %v551 = vpop.f32.mrf.mxu0
      %v552 = vadd.f32 0.0, %v551
      %553 = vmatmul.f32.gmra.mxu0 %v514
      %v554 = vpop.f32.mrf.mxu0
      %v555 = vadd.f32 0.0, %v554
      %556 = vmatmul.f32.gmra.mxu0 %v517
      %v557 = vpop.f32.mrf.mxu0
      %v558 = vadd.f32 0.0, %v557
      %559 = vmatmul.f32.gmra.mxu0 %v520
      %v560 = vpop.f32.mrf.mxu0
      %v561 = vadd.f32 0.0, %v560
      %562 = vmatmul.f32.gmra.mxu0 %v523
      %v563 = vpop.f32.mrf.mxu0
      %v564 = vadd.f32 0.0, %v563
      %565 = vmatmul.f32.gmra.mxu0 %v526
      %v566 = vpop.f32.mrf.mxu0
      %v567 = vadd.f32 0.0, %v566
      %568 = vmatmul.f32.gmra.mxu0 %v529
      %v569 = vpop.f32.mrf.mxu0
      %v570 = vadd.f32 0.0, %v569
      %571 = vdwg.mxu0
      %v572 = vadd.f32 %v487, %v549
      %v573 = vadd.f32 %v488, %v552
      %v574 = vadd.f32 %v489, %v555
      %v575 = vadd.f32 %v490, %v558
      %v576 = vadd.f32 %v491, %v561
      %v577 = vadd.f32 %v492, %v564
      %v578 = vadd.f32 %v493, %v567
      %v579 = vadd.f32 %v494, %v570
      %v580 = vld [vmem:[%s409 + $0x2] sm:$0xff]
      %v581 = vld [vmem:[%s409 + $0x12] sm:$0xff]
      %v582 = vld [vmem:[%s409 + $0x22] sm:$0xff]
      %v583 = vld [vmem:[%s409 + $0x32] sm:$0xff]
      %v584 = vld [vmem:[%s409 + $0x42] sm:$0xff]
      %v585 = vld [vmem:[%s409 + $0x52] sm:$0xff]
      %v586 = vld [vmem:[%s409 + $0x62] sm:$0xff]
      %v587 = vld [vmem:[%s409 + $0x72] sm:$0xff]
      %v588 = vld [vmem:[%s1 + $0xa0] sm:$0xff]
      %v589 = vld [vmem:[%s1 + $0xa8] sm:$0xff]
      %v590 = vld [vmem:[%s1 + $0xb0] sm:$0xff]
      %v591 = vld [vmem:[%s1 + $0xb8] sm:$0xff]
      %v593 = vsel %vm193, %v580, 0
      %v596 = vsel %vm193, %v581, 0
      %v599 = vsel %vm193, %v582, 0
      %v602 = vsel %vm193, %v583, 0
      %v605 = vsel %vm193, %v584, 0
      %v608 = vsel %vm193, %v585, 0
      %v611 = vsel %vm193, %v586, 0
      %v614 = vsel %vm193, %v587, 0
      %616 = vmatpush.msra.mxu0 0.0
      %617 = vmatpush.msra.mxu0 0.0
      %618 = vmatpush.msra.mxu0 0.0
      %619 = vmatpush.msra.mxu0 0.0
      %620 = vmatpush.msra.mxu0 0.0
      %621 = vmatpush.msra.mxu0 0.0
      %622 = vmatpush.msra.mxu0 0.0
      %623 = vmatpush.msra.mxu0 0.0
      %624 = vmatpush.msra.mxu0 0.0
      %625 = vmatpush.msra.mxu0 0.0
      %626 = vmatpush.msra.mxu0 0.0
      %627 = vmatpush.msra.mxu0 0.0
      %628 = vmatpush.msra.mxu0 %v591
      %629 = vmatpush.msra.mxu0 %v590
      %630 = vmatpush.msra.mxu0 %v589
      %631 = vmatpush.msra.mxu0 %v588
      %632 = vmatmul.f32.gmra.mxu0 %v593
      %v633 = vpop.f32.mrf.mxu0
      %v634 = vadd.f32 0.0, %v633
      %635 = vmatmul.f32.gmra.mxu0 %v596
      %v636 = vpop.f32.mrf.mxu0
      %v637 = vadd.f32 0.0, %v636
      %638 = vmatmul.f32.gmra.mxu0 %v599
      %v639 = vpop.f32.mrf.mxu0
      %v640 = vadd.f32 0.0, %v639
      %641 = vmatmul.f32.gmra.mxu0 %v602
      %v642 = vpop.f32.mrf.mxu0
      %v643 = vadd.f32 0.0, %v642
      %644 = vmatmul.f32.gmra.mxu0 %v605
      %v645 = vpop.f32.mrf.mxu0
      %v646 = vadd.f32 0.0, %v645
      %647 = vmatmul.f32.gmra.mxu0 %v608
      %v648 = vpop.f32.mrf.mxu0
      %v649 = vadd.f32 0.0, %v648
      %650 = vmatmul.f32.gmra.mxu0 %v611
      %v651 = vpop.f32.mrf.mxu0
      %v652 = vadd.f32 0.0, %v651
      %653 = vmatmul.f32.gmra.mxu0 %v614
      %v654 = vpop.f32.mrf.mxu0
      %v655 = vadd.f32 0.0, %v654
      %656 = vdwg.mxu0
      %v657 = vadd.f32 %v572, %v634
      %v658 = vadd.f32 %v573, %v637
      %v659 = vadd.f32 %v574, %v640
      %v660 = vadd.f32 %v575, %v643
      %v661 = vadd.f32 %v576, %v646
      %v662 = vadd.f32 %v577, %v649
      %v663 = vadd.f32 %v578, %v652
      %v664 = vadd.f32 %v579, %v655
      %s665 = scalar_lea.vmem %s163, 32
      %v666 = vld [vmem:[%s665] sm:$0xff]
      %v667 = vld [vmem:[%s665 + $0x10] sm:$0xff]
      %v668 = vld [vmem:[%s665 + $0x20] sm:$0xff]
      %v669 = vld [vmem:[%s665 + $0x30] sm:$0xff]
      %v670 = vld [vmem:[%s665 + $0x40] sm:$0xff]
      %v671 = vld [vmem:[%s665 + $0x50] sm:$0xff]
      %v672 = vld [vmem:[%s665 + $0x60] sm:$0xff]
      %v673 = vld [vmem:[%s665 + $0x70] sm:$0xff]
      %v674 = vld [vmem:[%s1 + $0xc0] sm:$0xff]
      %v675 = vld [vmem:[%s1 + $0xc8] sm:$0xff]
      %v676 = vld [vmem:[%s1 + $0xd0] sm:$0xff]
      %v677 = vld [vmem:[%s1 + $0xd8] sm:$0xff]
      %v679 = vsel %vm193, %v666, 0
      %v682 = vsel %vm193, %v667, 0
      %v685 = vsel %vm193, %v668, 0
      %v688 = vsel %vm193, %v669, 0
      %v691 = vsel %vm193, %v670, 0
      %v694 = vsel %vm193, %v671, 0
      %v697 = vsel %vm193, %v672, 0
      %v700 = vsel %vm193, %v673, 0
      %702 = vmatpush.msra.mxu0 0.0
      %703 = vmatpush.msra.mxu0 0.0
      %704 = vmatpush.msra.mxu0 0.0
      %705 = vmatpush.msra.mxu0 0.0
      %706 = vmatpush.msra.mxu0 0.0
      %707 = vmatpush.msra.mxu0 0.0
      %708 = vmatpush.msra.mxu0 0.0
      %709 = vmatpush.msra.mxu0 0.0
      %710 = vmatpush.msra.mxu0 0.0
      %711 = vmatpush.msra.mxu0 0.0
      %712 = vmatpush.msra.mxu0 0.0
      %713 = vmatpush.msra.mxu0 0.0
      %714 = vmatpush.msra.mxu0 %v677
      %715 = vmatpush.msra.mxu0 %v676
      %716 = vmatpush.msra.mxu0 %v675
      %717 = vmatpush.msra.mxu0 %v674
      %718 = vmatmul.f32.gmra.mxu0 %v679
      %v719 = vpop.f32.mrf.mxu0
      %v720 = vadd.f32 0.0, %v719
      %721 = vmatmul.f32.gmra.mxu0 %v682
      %v722 = vpop.f32.mrf.mxu0
      %v723 = vadd.f32 0.0, %v722
      %724 = vmatmul.f32.gmra.mxu0 %v685
      %v725 = vpop.f32.mrf.mxu0
      %v726 = vadd.f32 0.0, %v725
      %727 = vmatmul.f32.gmra.mxu0 %v688
      %v728 = vpop.f32.mrf.mxu0
      %v729 = vadd.f32 0.0, %v728
      %730 = vmatmul.f32.gmra.mxu0 %v691
      %v731 = vpop.f32.mrf.mxu0
      %v732 = vadd.f32 0.0, %v731
      %733 = vmatmul.f32.gmra.mxu0 %v694
      %v734 = vpop.f32.mrf.mxu0
      %v735 = vadd.f32 0.0, %v734
      %736 = vmatmul.f32.gmra.mxu0 %v697
      %v737 = vpop.f32.mrf.mxu0
      %v738 = vadd.f32 0.0, %v737
      %739 = vmatmul.f32.gmra.mxu0 %v700
      %v740 = vpop.f32.mrf.mxu0
      %v741 = vadd.f32 0.0, %v740
      %742 = vdwg.mxu0
      %v743 = vadd.f32 %v657, %v720
      %v744 = vadd.f32 %v658, %v723
      %v745 = vadd.f32 %v659, %v726
      %v746 = vadd.f32 %v660, %v729
      %v747 = vadd.f32 %v661, %v732
      %v748 = vadd.f32 %v662, %v735
      %v749 = vadd.f32 %v663, %v738
      %v750 = vadd.f32 %v664, %v741
      %v751 = vld [vmem:[%s665 + $0x1] sm:$0xff]
      %v752 = vld [vmem:[%s665 + $0x11] sm:$0xff]
      %v753 = vld [vmem:[%s665 + $0x21] sm:$0xff]
      %v754 = vld [vmem:[%s665 + $0x31] sm:$0xff]
      %v755 = vld [vmem:[%s665 + $0x41] sm:$0xff]
      %v756 = vld [vmem:[%s665 + $0x51] sm:$0xff]
      %v757 = vld [vmem:[%s665 + $0x61] sm:$0xff]
      %v758 = vld [vmem:[%s665 + $0x71] sm:$0xff]
      %v759 = vld [vmem:[%s1 + $0xe0] sm:$0xff]
      %v760 = vld [vmem:[%s1 + $0xe8] sm:$0xff]
      %v761 = vld [vmem:[%s1 + $0xf0] sm:$0xff]
      %v762 = vld [vmem:[%s1 + $0xf8] sm:$0xff]
      %v764 = vsel %vm193, %v751, 0
      %v767 = vsel %vm193, %v752, 0
      %v770 = vsel %vm193, %v753, 0
      %v773 = vsel %vm193, %v754, 0
      %v776 = vsel %vm193, %v755, 0
      %v779 = vsel %vm193, %v756, 0
      %v782 = vsel %vm193, %v757, 0
      %v785 = vsel %vm193, %v758, 0
      %787 = vmatpush.msra.mxu0 0.0
      %788 = vmatpush.msra.mxu0 0.0
      %789 = vmatpush.msra.mxu0 0.0
      %790 = vmatpush.msra.mxu0 0.0
      %791 = vmatpush.msra.mxu0 0.0
      %792 = vmatpush.msra.mxu0 0.0
      %793 = vmatpush.msra.mxu0 0.0
      %794 = vmatpush.msra.mxu0 0.0
      %795 = vmatpush.msra.mxu0 0.0
      %796 = vmatpush.msra.mxu0 0.0
      %797 = vmatpush.msra.mxu0 0.0
      %798 = vmatpush.msra.mxu0 0.0
      %799 = vmatpush.msra.mxu0 %v762
      %800 = vmatpush.msra.mxu0 %v761
      %801 = vmatpush.msra.mxu0 %v760
      %802 = vmatpush.msra.mxu0 %v759
      %803 = vmatmul.f32.gmra.mxu0 %v764
      %v804 = vpop.f32.mrf.mxu0
      %v805 = vadd.f32 0.0, %v804
      %806 = vmatmul.f32.gmra.mxu0 %v767
      %v807 = vpop.f32.mrf.mxu0
      %v808 = vadd.f32 0.0, %v807
      %809 = vmatmul.f32.gmra.mxu0 %v770
      %v810 = vpop.f32.mrf.mxu0
      %v811 = vadd.f32 0.0, %v810
      %812 = vmatmul.f32.gmra.mxu0 %v773
      %v813 = vpop.f32.mrf.mxu0
      %v814 = vadd.f32 0.0, %v813
      %815 = vmatmul.f32.gmra.mxu0 %v776
      %v816 = vpop.f32.mrf.mxu0
      %v817 = vadd.f32 0.0, %v816
      %818 = vmatmul.f32.gmra.mxu0 %v779
      %v819 = vpop.f32.mrf.mxu0
      %v820 = vadd.f32 0.0, %v819
      %821 = vmatmul.f32.gmra.mxu0 %v782
      %v822 = vpop.f32.mrf.mxu0
      %v823 = vadd.f32 0.0, %v822
      %824 = vmatmul.f32.gmra.mxu0 %v785
      %v825 = vpop.f32.mrf.mxu0
      %v826 = vadd.f32 0.0, %v825
      %827 = vdwg.mxu0
      %v828 = vadd.f32 %v743, %v805
      %v829 = vadd.f32 %v744, %v808
      %v830 = vadd.f32 %v745, %v811
      %v831 = vadd.f32 %v746, %v814
      %v832 = vadd.f32 %v747, %v817
      %v833 = vadd.f32 %v748, %v820
      %v834 = vadd.f32 %v749, %v823
      %v835 = vadd.f32 %v750, %v826
      %v836 = vld [vmem:[%s665 + $0x2] sm:$0xff]
      %v837 = vld [vmem:[%s665 + $0x12] sm:$0xff]
      %v838 = vld [vmem:[%s665 + $0x22] sm:$0xff]
      %v839 = vld [vmem:[%s665 + $0x32] sm:$0xff]
      %v840 = vld [vmem:[%s665 + $0x42] sm:$0xff]
      %v841 = vld [vmem:[%s665 + $0x52] sm:$0xff]
      %v842 = vld [vmem:[%s665 + $0x62] sm:$0xff]
      %v843 = vld [vmem:[%s665 + $0x72] sm:$0xff]
      %v844 = vld [vmem:[%s1 + $0x100] sm:$0xff]
      %v845 = vld [vmem:[%s1 + $0x108] sm:$0xff]
      %v846 = vld [vmem:[%s1 + $0x110] sm:$0xff]
      %v847 = vld [vmem:[%s1 + $0x118] sm:$0xff]
      %v849 = vsel %vm193, %v836, 0
      %v852 = vsel %vm193, %v837, 0
      %v855 = vsel %vm193, %v838, 0
      %v858 = vsel %vm193, %v839, 0
      %v861 = vsel %vm193, %v840, 0
      %v864 = vsel %vm193, %v841, 0
      %v867 = vsel %vm193, %v842, 0
      %v870 = vsel %vm193, %v843, 0
      %872 = vmatpush.msra.mxu0 0.0
      %873 = vmatpush.msra.mxu0 0.0
      %874 = vmatpush.msra.mxu0 0.0
      %875 = vmatpush.msra.mxu0 0.0
      %876 = vmatpush.msra.mxu0 0.0
      %877 = vmatpush.msra.mxu0 0.0
      %878 = vmatpush.msra.mxu0 0.0
      %879 = vmatpush.msra.mxu0 0.0
      %880 = vmatpush.msra.mxu0 0.0
      %881 = vmatpush.msra.mxu0 0.0
      %882 = vmatpush.msra.mxu0 0.0
      %883 = vmatpush.msra.mxu0 0.0
      %884 = vmatpush.msra.mxu0 %v847
      %885 = vmatpush.msra.mxu0 %v846
      %886 = vmatpush.msra.mxu0 %v845
      %887 = vmatpush.msra.mxu0 %v844
      %888 = vmatmul.f32.gmra.mxu0 %v849
      %v889 = vpop.f32.mrf.mxu0
      %v890 = vadd.f32 0.0, %v889
      %891 = vmatmul.f32.gmra.mxu0 %v852
      %v892 = vpop.f32.mrf.mxu0
      %v893 = vadd.f32 0.0, %v892
      %894 = vmatmul.f32.gmra.mxu0 %v855
      %v895 = vpop.f32.mrf.mxu0
      %v896 = vadd.f32 0.0, %v895
      %897 = vmatmul.f32.gmra.mxu0 %v858
      %v898 = vpop.f32.mrf.mxu0
      %v899 = vadd.f32 0.0, %v898
      %900 = vmatmul.f32.gmra.mxu0 %v861
      %v901 = vpop.f32.mrf.mxu0
      %v902 = vadd.f32 0.0, %v901
      %903 = vmatmul.f32.gmra.mxu0 %v864
      %v904 = vpop.f32.mrf.mxu0
      %v905 = vadd.f32 0.0, %v904
      %906 = vmatmul.f32.gmra.mxu0 %v867
      %v907 = vpop.f32.mrf.mxu0
      %v908 = vadd.f32 0.0, %v907
      %909 = vmatmul.f32.gmra.mxu0 %v870
      %v910 = vpop.f32.mrf.mxu0
      %v911 = vadd.f32 0.0, %v910
      %912 = vdwg.mxu0
      %v913 = vadd.f32 %v828, %v890
      %v914 = vadd.f32 %v829, %v893
      %v915 = vadd.f32 %v830, %v896
      %v916 = vadd.f32 %v831, %v899
      %v917 = vadd.f32 %v832, %v902
      %v918 = vadd.f32 %v833, %v905
      %v919 = vadd.f32 %v834, %v908
      %v920 = vadd.f32 %v835, %v911
      %921 = vst.msk [vmem:[%s168] sm:$0xff] %vm193, %v913
      %922 = vst.msk [vmem:[%s168 + $0x8] sm:$0xff] %vm193, %v914
      %923 = vst.msk [vmem:[%s168 + $0x10] sm:$0xff] %vm193, %v915
      %924 = vst.msk [vmem:[%s168 + $0x18] sm:$0xff] %vm193, %v916
      %925 = vst.msk [vmem:[%s168 + $0x20] sm:$0xff] %vm193, %v917
      %926 = vst.msk [vmem:[%s168 + $0x28] sm:$0xff] %vm193, %v918
      %927 = vst.msk [vmem:[%s168 + $0x30] sm:$0xff] %vm193, %v919
      %928 = vst.msk [vmem:[%s168 + $0x38] sm:$0xff] %vm193, %v920
      %v929 = vsel %vm193, %v913, 0.0
      %v930 = vsel %vm193, %v914, 0.0
      %v931 = vadd.f32 %v929, %v930
      %v932 = vsel %vm193, %v915, 0.0
      %v933 = vadd.f32 %v931, %v932
      %v934 = vsel %vm193, %v916, 0.0
      %v935 = vadd.f32 %v933, %v934
      %v936 = vsel %vm193, %v917, 0.0
      %v937 = vadd.f32 %v935, %v936
      %v938 = vsel %vm193, %v918, 0.0
      %v939 = vadd.f32 %v937, %v938
      %v940 = vsel %vm193, %v919, 0.0
      %v941 = vadd.f32 %v939, %v940
      %v942 = vsel %vm193, %v920, 0.0
      %v943 = vadd.f32 %v941, %v942
      %v944 = vrot.slane %v943, 4
      %v945 = vadd.f32 %v943, %v944
      %v946 = vrot.slane %v945, 2
      %v947 = vadd.f32 %v945, %v946
      %v948 = vrot.slane %v947, 1
      %v949 = vadd.f32 %v947, %v948
      %v950 = vmul.f32 %v913, %v913
      %v951 = vmul.f32 %v914, %v914
      %v952 = vmul.f32 %v915, %v915
      %v953 = vmul.f32 %v916, %v916
      %v954 = vmul.f32 %v917, %v917
      %v955 = vmul.f32 %v918, %v918
      %v956 = vmul.f32 %v919, %v919
      %v957 = vmul.f32 %v920, %v920
      %v958 = vsel %vm193, %v950, 0.0
      %v959 = vsel %vm193, %v951, 0.0
      %v960 = vadd.f32 %v958, %v959
      %v961 = vsel %vm193, %v952, 0.0
      %v962 = vadd.f32 %v960, %v961
      %v963 = vsel %vm193, %v953, 0.0
      %v964 = vadd.f32 %v962, %v963
      %v965 = vsel %vm193, %v954, 0.0
      %v966 = vadd.f32 %v964, %v965
      %v967 = vsel %vm193, %v955, 0.0
      %v968 = vadd.f32 %v966, %v967
      %v969 = vsel %vm193, %v956, 0.0
      %v970 = vadd.f32 %v968, %v969
      %v971 = vsel %vm193, %v957, 0.0
      %v972 = vadd.f32 %v970, %v971
      %v973 = vrot.slane %v972, 4
      %v974 = vadd.f32 %v972, %v973
      %v975 = vrot.slane %v974, 2
      %v976 = vadd.f32 %v974, %v975
      %v977 = vrot.slane %v976, 1
      %v978 = vadd.f32 %v976, %v977
      %p979 = scmp.eq.s32.totalorder %s15, 0
      // Predicated region
      $region29: #{baseline_train_forward.11} parent=27 // pred_check
        %p980 = pneg %p979
      $region30: #{baseline_train_forward.11} parent=27 // pred_check_branch
        %982 = sbr.rel (%p980) target = $region32
      $region31: #{baseline_train_forward.11} parent=27 // pred_region
        %vm983 = vcmask 254976
        %984 = vst.msk [vmem:[%s3] sm:$0x3] %vm983, 0.0
      $region32: #{baseline_train_forward.11} parent=27 // pred_fallthru
        _
      %v985 = vld [vmem:[%s3] sm:$0x3]
      %vm986 = vcmask 1040384
      %v987 = vsel %vm986, %v949, %v978
      %v988 = vadd.f32 %v985, %v987
      %vm989 = vcmask 254976
      %990 = vst.msk [vmem:[%s3] sm:$0x3] %vm989, %v988
      %p991 = scmp.lt.s32.totalorder %s15, 1
      %s992 = scalar_select %p991, %s15, 1
      %s993 = smul.addr %s992, 8
      %s994 = smul.addr %s993, 8
      %s995 = scalar_lea.vmem %s2, %s994
      // Predicated region
      $region33: #{baseline_train_forward.11} parent=27 // pred_check
        %p996 = pneg %p80
      $region34: #{baseline_train_forward.11} parent=27 // pred_check_branch
        %998 = sbr.rel (%p996) target = $region36
      $region35: #{baseline_train_forward.11} parent=27 // pred_region
        _
      $region36: #{baseline_train_forward.11} parent=27 // pred_fallthru
        _
      // Predicated region
      $region37: #{baseline_train_forward.11} parent=27 // pred_check
        %p999 = pneg %p101
      $region38: #{baseline_train_forward.11} parent=27 // pred_check_branch
        %1001 = sbr.rel (%p999) target = $region40
      $region39: #{baseline_train_forward.11} parent=27 // pred_region
        _
      $region40: #{baseline_train_forward.11} parent=27 // pred_fallthru
        _
      // Predicated region
      $region41: #{baseline_train_forward.11} parent=27 // pred_check
        %p1002 = pneg %p101
      $region42: #{baseline_train_forward.11} parent=27 // pred_check_branch
        %1004 = sbr.rel (%p1002) target = $region44
      $region43: #{baseline_train_forward.11} parent=27 // pred_region
        _
      $region44: #{baseline_train_forward.11} parent=27 // pred_fallthru
        _
    $region28: #{baseline_train_forward.11} parent=5 // pred_fallthru
      _
    %p1005 = scmp.le.s32.totalorder 2, %s10
    // Predicated region
    $region45: #{baseline_train_forward.11} parent=5 // pred_check
      %p1006 = pneg %p1005
    $region46: #{baseline_train_forward.11} parent=5 // pred_check_branch
      %1008 = sbr.rel (%p1006) target = $region48
    $region47: #{baseline_train_forward.11} parent=5 // pred_region
      %s1009 = ssub.s32 %s10, 2
      // Predicated region
      $region49: #{baseline_train_forward.11} parent=47 // pred_check
        %p1010 = pneg %p86
      $region50: #{baseline_train_forward.11} parent=47 // pred_check_branch
        %1012 = sbr.rel (%p1010) target = $region52
      $region51: #{baseline_train_forward.11} parent=47 // pred_region
        %p1013 = scmp.lt.s32.totalorder %s16, 1
        %s1014 = scalar_select %p1013, %s16, 1
        %s1015 = smul.addr %s1014, 8
        %s1016 = smul.addr %s1015, 8
        %s1017 = scalar_lea.vmem %s2, %s1016
      $region52: #{baseline_train_forward.11} parent=47 // pred_fallthru
        _
    $region48: #{baseline_train_forward.11} parent=5 // pred_fallthru
      _
  $region6: #{baseline_train_forward.11} parent=0 // loop_footer
    %s14 = sadd.s32 1, %s10
  $region7: #{baseline_train_forward.11} parent=0 // loop_footer_branch
    %9 = sbr.rel target = $region3
  $region8: #{baseline_train_forward.11} parent=0 // loop_exit
    _

// kernel: baseline_train_forward.9
$region0: #{baseline_train_forward.9}
  #allocation0 [shape = 'u32[]', space=smem, size = 0x4, offset = 0x4, fixed_abs, tag = 'smem constant byte address 0x4 - core index']
  #allocation1 [shape = 'u32[72,128]{1,0:T(1,128)}', space=vmem, size = 0x9000, scoped, tag = 'internal scratch']
  %s0 = inlined_call_operand.vmem [shape: f32[2,18,18,3], index: 0, kind: input, shape index: {}]
  %s1 = inlined_call_operand.vmem [shape: f32[27,32], index: 1, kind: input, shape index: {}]
  %s2 = inlined_call_operand.vmem [shape: f32[2,256,32], index: 2, kind: output, shape index: {0}]
  %s3 = inlined_call_operand.vmem [shape: f32[2,32], index: 3, kind: output, shape index: {1}]
  %4 = xla_tuple %s2, %s3
  %s5 = sld [smem:[#allocation0]]
  $region53: #{baseline_train_forward.9} parent=0
    _
  %s7 = ssub.s32 1, %s5
  %s8 = scalar_select 0, %s7, %s5
  loop: start=0, step=1, limit=4
  $region2: #{baseline_train_forward.9} parent=0 // loop_pre_header
    _
  $region3: #{baseline_train_forward.9} parent=0 // loop_header
    %s10 = sphi 0, %s14
    %p11 = scmp.ge.s32.totalorder %s10, 4
    %s20 = sphi 0, %s22
    %s23 = sphi 0, %s20
    %s24 = sphi 0, %s23
    %s40 = sphi 0, %s24
    %s44 = sphi 0, %s44
    %s46 = sphi 0, %s44
    %s47 = sphi 0, %s46
    %s61 = sphi 0, %s47
    %s67 = sphi 0, %s69
    %s70 = sphi 0, %s67
    %s71 = sphi 0, %s70
    %s87 = sphi 0, %s71
    %s91 = sphi 0, %s91
    %s93 = sphi 0, %s91
    %s94 = sphi 0, %s93
    %s108 = sphi 0, %s94
  $region4: #{baseline_train_forward.9} parent=0 // loop_header_branch
    %13 = sbr.rel (%p11) target = $region8
  $region5: #{baseline_train_forward.9} parent=0 // loop_body
    %s15 = ssub.s32 %s10, 1
    %s16 = ssub.s32 %s10, 2
    %s17 = sadd.s32 %s10, 1
    %s18 = ssub.s32 %s10, %s17
    %p19 = scmp.eq.s32.totalorder %s18, 0
    %s21 = sadd.s32 %s20, 1
    %s22 = scalar_select %p19, %s20, %s21
    %p25 = pneg %p19
    %p26 = scmp.eq.s32.totalorder %s10, 1
    %p27 = por %p25, %p26
    %p28 = scmp.ne.s32.totalorder %s20, %s23
    %p29 = scmp.eq.s32.totalorder %s10, 0
    %p30 = por %p28, %p29
    %p31 = scmp.ne.s32.totalorder %s20, %s23
    %p32 = scmp.eq.s32.totalorder %s15, 1
    %p33 = por %p31, %p32
    %p34 = scmp.ne.s32.totalorder %s23, %s24
    %p35 = scmp.eq.s32.totalorder %s15, 0
    %p36 = por %p34, %p35
    %p37 = scmp.ne.s32.totalorder %s23, %s24
    %p38 = scmp.eq.s32.totalorder %s16, 1
    %p39 = por %p37, %p38
    %p41 = scmp.ne.s32.totalorder %s24, %s40
    %p42 = scmp.eq.s32.totalorder %s16, 0
    %p43 = por %p41, %p42
    %s45 = sadd.s32 %s44, 1
    %p48 = scmp.eq.s32.totalorder %s10, 1
    %p49 = scmp.ne.s32.totalorder %s44, %s46
    %p50 = scmp.eq.s32.totalorder %s10, 0
    %p51 = por %p49, %p50
    %p52 = scmp.ne.s32.totalorder %s44, %s46
    %p53 = scmp.eq.s32.totalorder %s15, 1
    %p54 = por %p52, %p53
    %p55 = scmp.ne.s32.totalorder %s46, %s47
    %p56 = scmp.eq.s32.totalorder %s15, 0
    %p57 = por %p55, %p56
    %p58 = scmp.ne.s32.totalorder %s46, %s47
    %p59 = scmp.eq.s32.totalorder %s16, 1
    %p60 = por %p58, %p59
    %p62 = scmp.ne.s32.totalorder %s47, %s61
    %p63 = scmp.eq.s32.totalorder %s16, 0
    %p64 = por %p62, %p63
    %s65 = ssub.s32 %s10, %s17
    %p66 = scmp.eq.s32.totalorder %s65, 0
    %s68 = sadd.s32 %s67, 1
    %s69 = scalar_select %p66, %s67, %s68
    %p72 = pneg %p66
    %p73 = scmp.eq.s32.totalorder %s10, 1
    %p74 = por %p72, %p73
    %p75 = scmp.ne.s32.totalorder %s67, %s70
    %p76 = scmp.eq.s32.totalorder %s10, 0
    %p77 = por %p75, %p76
    %p78 = scmp.ne.s32.totalorder %s67, %s70
    %p79 = scmp.eq.s32.totalorder %s15, 1
    %p80 = por %p78, %p79
    %p81 = scmp.ne.s32.totalorder %s70, %s71
    %p82 = scmp.eq.s32.totalorder %s15, 0
    %p83 = por %p81, %p82
    %p84 = scmp.ne.s32.totalorder %s70, %s71
    %p85 = scmp.eq.s32.totalorder %s16, 1
    %p86 = por %p84, %p85
    %p88 = scmp.ne.s32.totalorder %s71, %s87
    %p89 = scmp.eq.s32.totalorder %s16, 0
    %p90 = por %p88, %p89
    %s92 = sadd.s32 %s91, 1
    %p95 = scmp.eq.s32.totalorder %s10, 1
    %p96 = scmp.ne.s32.totalorder %s91, %s93
    %p97 = scmp.eq.s32.totalorder %s10, 0
    %p98 = por %p96, %p97
    %p99 = scmp.ne.s32.totalorder %s91, %s93
    %p100 = scmp.eq.s32.totalorder %s15, 1
    %p101 = por %p99, %p100
    %p102 = scmp.ne.s32.totalorder %s93, %s94
    %p103 = scmp.eq.s32.totalorder %s15, 0
    %p104 = por %p102, %p103
    %p105 = scmp.ne.s32.totalorder %s93, %s94
    %p106 = scmp.eq.s32.totalorder %s16, 1
    %p107 = por %p105, %p106
    %p109 = scmp.ne.s32.totalorder %s94, %s108
    %p110 = scmp.eq.s32.totalorder %s16, 0
    %p111 = por %p109, %p110
    %p112 = scmp.le.s32.totalorder 1, %s10
    %p113 = scmp.lt.s32.totalorder %s10, 3
    %p114 = pnand %p112, %p113
    %p115 = pneg %p114
    // Predicated region
    $region9: #{baseline_train_forward.9} parent=5 // pred_check
      _
    $region10: #{baseline_train_forward.9} parent=5 // pred_check_branch
      %117 = sbr.rel (%p114) target = $region12
    $region11: #{baseline_train_forward.9} parent=5 // pred_region
      %s118 = ssub.s32 %s10, 1
      // Predicated region
      $region13: #{baseline_train_forward.9} parent=11 // pred_check
        %p119 = pneg %p57
      $region14: #{baseline_train_forward.9} parent=11 // pred_check_branch
        %121 = sbr.rel (%p119) target = $region16
      $region15: #{baseline_train_forward.9} parent=11 // pred_region
        _
      $region16: #{baseline_train_forward.9} parent=11 // pred_fallthru
        _
    $region12: #{baseline_train_forward.9} parent=5 // pred_fallthru
      _
    %p122 = scmp.lt.s32.totalorder %s10, 2
    // Predicated region
    $region17: #{baseline_train_forward.9} parent=5 // pred_check
      %p123 = pneg %p122
    $region18: #{baseline_train_forward.9} parent=5 // pred_check_branch
      %125 = sbr.rel (%p123) target = $region20
    $region19: #{baseline_train_forward.9} parent=5 // pred_region
      // Predicated region
      $region21: #{baseline_train_forward.9} parent=19 // pred_check
        %p126 = pneg %p30
      $region22: #{baseline_train_forward.9} parent=19 // pred_check_branch
        %128 = sbr.rel (%p126) target = $region24
      $region23: #{baseline_train_forward.9} parent=19 // pred_region
        %p129 = scmp.lt.s32.totalorder %s10, 1
        %s130 = scalar_select %p129, %s10, 1
        %s131 = smul.addr %s130, 54
        %s132 = smul.addr %s131, 8
        %s133 = scalar_lea.vmem %s0, %s132
      $region24: #{baseline_train_forward.9} parent=19 // pred_fallthru
        _
    $region20: #{baseline_train_forward.9} parent=5 // pred_fallthru
      _
    %p134 = scmp.le.s32.totalorder 1, %s10
    %p135 = scmp.lt.s32.totalorder %s10, 3
    %p136 = pnand %p134, %p135
    %p137 = pneg %p136
    // Predicated region
    $region25: #{baseline_train_forward.9} parent=5 // pred_check
      _
    $region26: #{baseline_train_forward.9} parent=5 // pred_check_branch
      %139 = sbr.rel (%p136) target = $region28
    $region27: #{baseline_train_forward.9} parent=5 // pred_region
      %s140 = ssub.s32 %s10, 1
      %p141 = scmp.lt.s32.totalorder %s15, 1
      %s142 = scalar_select %p141, %s15, 1
      %s143 = smul.addr %s142, 54
      %s144 = smul.addr %s143, 8
      %s145 = scalar_lea.vmem %s0, %s144
      %p146 = pneg %p36
      %p147 = pneg %p33
      %p148 = pneg %p57
      %p149 = pneg %p54
      %p150 = pneg %p83
      %p151 = pneg %p80
      %p152 = scmp.lt.s32.totalorder %s15, 1
      %s153 = scalar_select %p152, %s15, 1
      %s154 = smul.addr %s153, 32
      %s155 = smul.addr %s154, 8
      %s156 = scalar_lea.vmem %s2, %s155
      %p157 = pneg %p104
      %p158 = pneg %p101
      %p159 = scmp.lt.s32.totalorder %s15, 1
      %s160 = scalar_select %p159, %s15, 1
      %s161 = smul.addr %s160, 54
      %s162 = smul.addr %s161, 8
      %s163 = scalar_lea.vmem %s0, %s162
      %p164 = scmp.lt.s32.totalorder %s15, 1
      %s165 = scalar_select %p164, %s15, 1
      %s166 = smul.addr %s165, 32
      %s167 = smul.addr %s166, 8
      %s168 = scalar_lea.vmem %s2, %s167
      %v169 = vld [vmem:[%s163] sm:$0xff]
      %v170 = vld [vmem:[%s163 + $0x8] sm:$0xff]
      %v171 = vld [vmem:[%s163 + $0x18] sm:$0xff]
      %v172 = vld [vmem:[%s163 + $0x20] sm:$0xff]
      %v173 = vld [vmem:[%s163 + $0x30] sm:$0xff]
      %v174 = vld [vmem:[%s163 + $0x38] sm:$0xff]
      %v175 = vld [vmem:[%s163 + $0x48] sm:$0xff]
      %v176 = vld [vmem:[%s163 + $0x50] sm:$0xff]
      %v177 = vld [vmem:[%s163 + $0x60] sm:$0xff]
      %v178 = vld [vmem:[%s163 + $0x68] sm:$0xff]
      %v179 = vld [vmem:[%s163 + $0x78] sm:$0xff]
      %v180 = vld [vmem:[%s163 + $0x80] sm:$0xff]
      %v181 = vld [vmem:[%s163 + $0x90] sm:$0xff]
      %v182 = vld [vmem:[%s163 + $0x98] sm:$0xff]
      %v183 = vld [vmem:[%s163 + $0xa8] sm:$0xff]
      %v184 = vld [vmem:[%s163 + $0xb0] sm:$0xff]
      %v185 = vld [vmem:[%s163 + $0xc0] sm:$0xff]
      %v186 = vld [vmem:[%s163 + $0xc8] sm:$0xff]
      %v187 = vld [vmem:[%s163 + $0xd8] sm:$0xff]
      %v188 = vld [vmem:[%s163 + $0xe0] sm:$0xff]
      %v189 = vld [vmem:[%s163 + $0xf0] sm:$0xff]
      %v190 = vld [vmem:[%s163 + $0xf8] sm:$0xff]
      %v191 = vld [vmem:[%s163 + $0x108] sm:$0xff]
      %v192 = vld [vmem:[%s163 + $0x110] sm:$0xff]
      %v193 = vld [vmem:[%s163 + $0x120] sm:$0xff]
      %v194 = vld [vmem:[%s163 + $0x128] sm:$0xff]
      %v195 = vld [vmem:[%s163 + $0x138] sm:$0xff]
      %v196 = vld [vmem:[%s163 + $0x140] sm:$0xff]
      %v197 = vld [vmem:[%s163 + $0x150] sm:$0xff]
      %v198 = vld [vmem:[%s163 + $0x158] sm:$0xff]
      %v199 = vld [vmem:[%s163 + $0x168] sm:$0xff]
      %v200 = vld [vmem:[%s163 + $0x170] sm:$0xff]
      %v201 = vld [vmem:[%s1] sm:$0x7]
      %v202 = vld [vmem:[%s163 + $0x1] sm:$0xff]
      %v203 = vld [vmem:[%s163 + $0x9] sm:$0xff]
      %v204 = vld [vmem:[%s163 + $0x19] sm:$0xff]
      %v205 = vld [vmem:[%s163 + $0x21] sm:$0xff]
      %v206 = vld [vmem:[%s163 + $0x31] sm:$0xff]
      %v207 = vld [vmem:[%s163 + $0x39] sm:$0xff]
      %v208 = vld [vmem:[%s163 + $0x49] sm:$0xff]
      %v209 = vld [vmem:[%s163 + $0x51] sm:$0xff]
      %v210 = vld [vmem:[%s163 + $0x61] sm:$0xff]
      %v211 = vld [vmem:[%s163 + $0x69] sm:$0xff]
      %v212 = vld [vmem:[%s163 + $0x79] sm:$0xff]
      %v213 = vld [vmem:[%s163 + $0x81] sm:$0xff]
      %v214 = vld [vmem:[%s163 + $0x91] sm:$0xff]
      %v215 = vld [vmem:[%s163 + $0x99] sm:$0xff]
      %v216 = vld [vmem:[%s163 + $0xa9] sm:$0xff]
      %v217 = vld [vmem:[%s163 + $0xb1] sm:$0xff]
      %v218 = vld [vmem:[%s163 + $0xc1] sm:$0xff]
      %v219 = vld [vmem:[%s163 + $0xc9] sm:$0xff]
      %v220 = vld [vmem:[%s163 + $0xd9] sm:$0xff]
      %v221 = vld [vmem:[%s163 + $0xe1] sm:$0xff]
      %v222 = vld [vmem:[%s163 + $0xf1] sm:$0xff]
      %v223 = vld [vmem:[%s163 + $0xf9] sm:$0xff]
      %v224 = vld [vmem:[%s163 + $0x109] sm:$0xff]
      %v225 = vld [vmem:[%s163 + $0x111] sm:$0xff]
      %v226 = vld [vmem:[%s163 + $0x121] sm:$0xff]
      %v227 = vld [vmem:[%s163 + $0x129] sm:$0xff]
      %v228 = vld [vmem:[%s163 + $0x139] sm:$0xff]
      %v229 = vld [vmem:[%s163 + $0x141] sm:$0xff]
      %v230 = vld [vmem:[%s163 + $0x151] sm:$0xff]
      %v231 = vld [vmem:[%s163 + $0x159] sm:$0xff]
      %v232 = vld [vmem:[%s163 + $0x169] sm:$0xff]
      %v233 = vld [vmem:[%s163 + $0x171] sm:$0xff]
      %v234 = vld [vmem:[%s1 + $0x3] sm:$0x7]
      %vm235 = vcmask 23552
      %v237 = vsel %vm235, %v202, 0
      %v240 = vsel %vm235, %v203, 0
      %v243 = vsel %vm235, %v204, 0
      %v246 = vsel %vm235, %v205, 0
      %v249 = vsel %vm235, %v206, 0
      %v252 = vsel %vm235, %v207, 0
      %v255 = vsel %vm235, %v208, 0
      %v258 = vsel %vm235, %v209, 0
      %v261 = vsel %vm235, %v210, 0
      %v264 = vsel %vm235, %v211, 0
      %v267 = vsel %vm235, %v212, 0
      %v270 = vsel %vm235, %v213, 0
      %v273 = vsel %vm235, %v214, 0
      %v276 = vsel %vm235, %v215, 0
      %v279 = vsel %vm235, %v216, 0
      %v282 = vsel %vm235, %v217, 0
      %v285 = vsel %vm235, %v218, 0
      %v288 = vsel %vm235, %v219, 0
      %v291 = vsel %vm235, %v220, 0
      %v294 = vsel %vm235, %v221, 0
      %v297 = vsel %vm235, %v222, 0
      %v300 = vsel %vm235, %v223, 0
      %v303 = vsel %vm235, %v224, 0
      %v306 = vsel %vm235, %v225, 0
      %v309 = vsel %vm235, %v226, 0
      %v312 = vsel %vm235, %v227, 0
      %v315 = vsel %vm235, %v228, 0
      %v318 = vsel %vm235, %v229, 0
      %v321 = vsel %vm235, %v230, 0
      %v324 = vsel %vm235, %v231, 0
      %v327 = vsel %vm235, %v232, 0
      %v330 = vsel %vm235, %v233, 0
      %vm332 = vcmask 1042432
      %v334 = vsel %vm332, %v234, 0
      %336 = vmatpush.msra.mxu0 0.0
      %337 = vmatpush.msra.mxu0 0.0
      %338 = vmatpush.msra.mxu0 0.0
      %339 = vmatpush.msra.mxu0 0.0
      %340 = vmatpush.msra.mxu0 0.0
      %341 = vmatpush.msra.mxu0 0.0
      %342 = vmatpush.msra.mxu0 0.0
      %343 = vmatpush.msra.mxu0 0.0
      %344 = vmatpush.msra.mxu0 0.0
      %345 = vmatpush.msra.mxu0 0.0
      %346 = vmatpush.msra.mxu0 0.0
      %347 = vmatpush.msra.mxu0 0.0
      %348 = vmatpush.msra.mxu0 0.0
      %349 = vmatpush.msra.mxu0 0.0
      %350 = vmatpush.msra.mxu0 0.0
      %351 = vmatpush.msra.mxu0 %v334
      %352 = vmatmul.f32.gmra.mxu0 %v237
      %v353 = vpop.f32.mrf.mxu0
      %v354 = vadd.f32 0.0, %v353
      %355 = vmatmul.f32.gmra.mxu0 %v240
      %v356 = vpop.f32.mrf.mxu0
      %v357 = vadd.f32 0.0, %v356
      %358 = vmatmul.f32.gmra.mxu0 %v243
      %v359 = vpop.f32.mrf.mxu0
      %v360 = vadd.f32 0.0, %v359
      %361 = vmatmul.f32.gmra.mxu0 %v246
      %v362 = vpop.f32.mrf.mxu0
      %v363 = vadd.f32 0.0, %v362
      %364 = vmatmul.f32.gmra.mxu0 %v249
      %v365 = vpop.f32.mrf.mxu0
      %v366 = vadd.f32 0.0, %v365
      %367 = vmatmul.f32.gmra.mxu0 %v252
      %v368 = vpop.f32.mrf.mxu0
      %v369 = vadd.f32 0.0, %v368
      %370 = vmatmul.f32.gmra.mxu0 %v255
      %v371 = vpop.f32.mrf.mxu0
      %v372 = vadd.f32 0.0, %v371
      %373 = vmatmul.f32.gmra.mxu0 %v258
      %v374 = vpop.f32.mrf.mxu0
      %v375 = vadd.f32 0.0, %v374
      %376 = vmatmul.f32.gmra.mxu0 %v261
      %v377 = vpop.f32.mrf.mxu0
      %v378 = vadd.f32 0.0, %v377
      %379 = vmatmul.f32.gmra.mxu0 %v264
      %v380 = vpop.f32.mrf.mxu0
      %v381 = vadd.f32 0.0, %v380
      %382 = vmatmul.f32.gmra.mxu0 %v267
      %v383 = vpop.f32.mrf.mxu0
      %v384 = vadd.f32 0.0, %v383
      %385 = vmatmul.f32.gmra.mxu0 %v270
      %v386 = vpop.f32.mrf.mxu0
      %v387 = vadd.f32 0.0, %v386
      %388 = vmatmul.f32.gmra.mxu0 %v273
      %v389 = vpop.f32.mrf.mxu0
      %v390 = vadd.f32 0.0, %v389
      %391 = vmatmul.f32.gmra.mxu0 %v276
      %v392 = vpop.f32.mrf.mxu0
      %v393 = vadd.f32 0.0, %v392
      %394 = vmatmul.f32.gmra.mxu0 %v279
      %v395 = vpop.f32.mrf.mxu0
      %v396 = vadd.f32 0.0, %v395
      %397 = vmatmul.f32.gmra.mxu0 %v282
      %v398 = vpop.f32.mrf.mxu0
      %v399 = vadd.f32 0.0, %v398
      %400 = vmatmul.f32.gmra.mxu0 %v285
      %v401 = vpop.f32.mrf.mxu0
      %v402 = vadd.f32 0.0, %v401
      %403 = vmatmul.f32.gmra.mxu0 %v288
      %v404 = vpop.f32.mrf.mxu0
      %v405 = vadd.f32 0.0, %v404
      %406 = vmatmul.f32.gmra.mxu0 %v291
      %v407 = vpop.f32.mrf.mxu0
      %v408 = vadd.f32 0.0, %v407
      %409 = vmatmul.f32.gmra.mxu0 %v294
      %v410 = vpop.f32.mrf.mxu0
      %v411 = vadd.f32 0.0, %v410
      %412 = vmatmul.f32.gmra.mxu0 %v297
      %v413 = vpop.f32.mrf.mxu0
      %v414 = vadd.f32 0.0, %v413
      %415 = vmatmul.f32.gmra.mxu0 %v300
      %v416 = vpop.f32.mrf.mxu0
      %v417 = vadd.f32 0.0, %v416
      %418 = vmatmul.f32.gmra.mxu0 %v303
      %v419 = vpop.f32.mrf.mxu0
      %v420 = vadd.f32 0.0, %v419
      %421 = vmatmul.f32.gmra.mxu0 %v306
      %v422 = vpop.f32.mrf.mxu0
      %v423 = vadd.f32 0.0, %v422
      %424 = vmatmul.f32.gmra.mxu0 %v309
      %v425 = vpop.f32.mrf.mxu0
      %v426 = vadd.f32 0.0, %v425
      %427 = vmatmul.f32.gmra.mxu0 %v312
      %v428 = vpop.f32.mrf.mxu0
      %v429 = vadd.f32 0.0, %v428
      %430 = vmatmul.f32.gmra.mxu0 %v315
      %v431 = vpop.f32.mrf.mxu0
      %v432 = vadd.f32 0.0, %v431
      %433 = vmatmul.f32.gmra.mxu0 %v318
      %v434 = vpop.f32.mrf.mxu0
      %v435 = vadd.f32 0.0, %v434
      %436 = vmatmul.f32.gmra.mxu0 %v321
      %v437 = vpop.f32.mrf.mxu0
      %v438 = vadd.f32 0.0, %v437
      %439 = vmatmul.f32.gmra.mxu0 %v324
      %v440 = vpop.f32.mrf.mxu0
      %v441 = vadd.f32 0.0, %v440
      %442 = vmatmul.f32.gmra.mxu0 %v327
      %v443 = vpop.f32.mrf.mxu0
      %v444 = vadd.f32 0.0, %v443
      %445 = vmatmul.f32.gmra.mxu0 %v330
      %v446 = vpop.f32.mrf.mxu0
      %v447 = vadd.f32 0.0, %v446
      %448 = vdwg.mxu0
      %v450 = vsel %vm235, %v169, 0
      %v453 = vsel %vm235, %v170, 0
      %v456 = vsel %vm235, %v171, 0
      %v459 = vsel %vm235, %v172, 0
      %v462 = vsel %vm235, %v173, 0
      %v465 = vsel %vm235, %v174, 0
      %v468 = vsel %vm235, %v175, 0
      %v471 = vsel %vm235, %v176, 0
      %v474 = vsel %vm235, %v177, 0
      %v477 = vsel %vm235, %v178, 0
      %v480 = vsel %vm235, %v179, 0
      %v483 = vsel %vm235, %v180, 0
      %v486 = vsel %vm235, %v181, 0
      %v489 = vsel %vm235, %v182, 0
      %v492 = vsel %vm235, %v183, 0
      %v495 = vsel %vm235, %v184, 0
      %v498 = vsel %vm235, %v185, 0
      %v501 = vsel %vm235, %v186, 0
      %v504 = vsel %vm235, %v187, 0
      %v507 = vsel %vm235, %v188, 0
      %v510 = vsel %vm235, %v189, 0
      %v513 = vsel %vm235, %v190, 0
      %v516 = vsel %vm235, %v191, 0
      %v519 = vsel %vm235, %v192, 0
      %v522 = vsel %vm235, %v193, 0
      %v525 = vsel %vm235, %v194, 0
      %v528 = vsel %vm235, %v195, 0
      %v531 = vsel %vm235, %v196, 0
      %v534 = vsel %vm235, %v197, 0
      %v537 = vsel %vm235, %v198, 0
      %v540 = vsel %vm235, %v199, 0
      %v543 = vsel %vm235, %v200, 0
      %v546 = vsel %vm332, %v201, 0
      %548 = vmatpush.msra.mxu0 0.0
      %549 = vmatpush.msra.mxu0 0.0
      %550 = vmatpush.msra.mxu0 0.0
      %551 = vmatpush.msra.mxu0 0.0
      %552 = vmatpush.msra.mxu0 0.0
      %553 = vmatpush.msra.mxu0 0.0
      %554 = vmatpush.msra.mxu0 0.0
      %555 = vmatpush.msra.mxu0 0.0
      %556 = vmatpush.msra.mxu0 0.0
      %557 = vmatpush.msra.mxu0 0.0
      %558 = vmatpush.msra.mxu0 0.0
      %559 = vmatpush.msra.mxu0 0.0
      %560 = vmatpush.msra.mxu0 0.0
      %561 = vmatpush.msra.mxu0 0.0
      %562 = vmatpush.msra.mxu0 0.0
      %563 = vmatpush.msra.mxu0 %v546
      %564 = vmatmul.f32.gmra.mxu0 %v450
      %v565 = vpop.f32.mrf.mxu0
      %v566 = vadd.f32 %v354, %v565
      %567 = vmatmul.f32.gmra.mxu0 %v453
      %v568 = vpop.f32.mrf.mxu0
      %v569 = vadd.f32 %v357, %v568
      %570 = vmatmul.f32.gmra.mxu0 %v456
      %v571 = vpop.f32.mrf.mxu0
      %v572 = vadd.f32 %v360, %v571
      %573 = vmatmul.f32.gmra.mxu0 %v459
      %v574 = vpop.f32.mrf.mxu0
      %v575 = vadd.f32 %v363, %v574
      %576 = vmatmul.f32.gmra.mxu0 %v462
      %v577 = vpop.f32.mrf.mxu0
      %v578 = vadd.f32 %v366, %v577
      %579 = vmatmul.f32.gmra.mxu0 %v465
      %v580 = vpop.f32.mrf.mxu0
      %v581 = vadd.f32 %v369, %v580
      %582 = vmatmul.f32.gmra.mxu0 %v468
      %v583 = vpop.f32.mrf.mxu0
      %v584 = vadd.f32 %v372, %v583
      %585 = vmatmul.f32.gmra.mxu0 %v471
      %v586 = vpop.f32.mrf.mxu0
      %v587 = vadd.f32 %v375, %v586
      %588 = vmatmul.f32.gmra.mxu0 %v474
      %v589 = vpop.f32.mrf.mxu0
      %v590 = vadd.f32 %v378, %v589
      %591 = vmatmul.f32.gmra.mxu0 %v477
      %v592 = vpop.f32.mrf.mxu0
      %v593 = vadd.f32 %v381, %v592
      %594 = vmatmul.f32.gmra.mxu0 %v480
      %v595 = vpop.f32.mrf.mxu0
      %v596 = vadd.f32 %v384, %v595
      %597 = vmatmul.f32.gmra.mxu0 %v483
      %v598 = vpop.f32.mrf.mxu0
      %v599 = vadd.f32 %v387, %v598
      %600 = vmatmul.f32.gmra.mxu0 %v486
      %v601 = vpop.f32.mrf.mxu0
      %v602 = vadd.f32 %v390, %v601
      %603 = vmatmul.f32.gmra.mxu0 %v489
      %v604 = vpop.f32.mrf.mxu0
      %v605 = vadd.f32 %v393, %v604
      %606 = vmatmul.f32.gmra.mxu0 %v492
      %v607 = vpop.f32.mrf.mxu0
      %v608 = vadd.f32 %v396, %v607
      %609 = vmatmul.f32.gmra.mxu0 %v495
      %v610 = vpop.f32.mrf.mxu0
      %v611 = vadd.f32 %v399, %v610
      %612 = vmatmul.f32.gmra.mxu0 %v498
      %v613 = vpop.f32.mrf.mxu0
      %v614 = vadd.f32 %v402, %v613
      %615 = vmatmul.f32.gmra.mxu0 %v501
      %v616 = vpop.f32.mrf.mxu0
      %v617 = vadd.f32 %v405, %v616
      %618 = vmatmul.f32.gmra.mxu0 %v504
      %v619 = vpop.f32.mrf.mxu0
      %v620 = vadd.f32 %v408, %v619
      %621 = vmatmul.f32.gmra.mxu0 %v507
      %v622 = vpop.f32.mrf.mxu0
      %v623 = vadd.f32 %v411, %v622
      %624 = vmatmul.f32.gmra.mxu0 %v510
      %v625 = vpop.f32.mrf.mxu0
      %v626 = vadd.f32 %v414, %v625
      %627 = vmatmul.f32.gmra.mxu0 %v513
      %v628 = vpop.f32.mrf.mxu0
      %v629 = vadd.f32 %v417, %v628
      %630 = vmatmul.f32.gmra.mxu0 %v516
      %v631 = vpop.f32.mrf.mxu0
      %v632 = vadd.f32 %v420, %v631
      %633 = vmatmul.f32.gmra.mxu0 %v519
      %v634 = vpop.f32.mrf.mxu0
      %v635 = vadd.f32 %v423, %v634
      %636 = vmatmul.f32.gmra.mxu0 %v522
      %v637 = vpop.f32.mrf.mxu0
      %v638 = vadd.f32 %v426, %v637
      %639 = vmatmul.f32.gmra.mxu0 %v525
      %v640 = vpop.f32.mrf.mxu0
      %v641 = vadd.f32 %v429, %v640
      %642 = vmatmul.f32.gmra.mxu0 %v528
      %v643 = vpop.f32.mrf.mxu0
      %v644 = vadd.f32 %v432, %v643
      %645 = vmatmul.f32.gmra.mxu0 %v531
      %v646 = vpop.f32.mrf.mxu0
      %v647 = vadd.f32 %v435, %v646
      %648 = vmatmul.f32.gmra.mxu0 %v534
      %v649 = vpop.f32.mrf.mxu0
      %v650 = vadd.f32 %v438, %v649
      %651 = vmatmul.f32.gmra.mxu0 %v537
      %v652 = vpop.f32.mrf.mxu0
      %v653 = vadd.f32 %v441, %v652
      %654 = vmatmul.f32.gmra.mxu0 %v540
      %v655 = vpop.f32.mrf.mxu0
      %v656 = vadd.f32 %v444, %v655
      %657 = vmatmul.f32.gmra.mxu0 %v543
      %v658 = vpop.f32.mrf.mxu0
      %v659 = vadd.f32 %v447, %v658
      %660 = vdwg.mxu0
      %v661 = vld [vmem:[%s163 + $0x2] sm:$0xff]
      %v662 = vld [vmem:[%s163 + $0xa] sm:$0xff]
      %v663 = vld [vmem:[%s163 + $0x1a] sm:$0xff]
      %v664 = vld [vmem:[%s163 + $0x22] sm:$0xff]
      %v665 = vld [vmem:[%s163 + $0x32] sm:$0xff]
      %v666 = vld [vmem:[%s163 + $0x3a] sm:$0xff]
      %v667 = vld [vmem:[%s163 + $0x4a] sm:$0xff]
      %v668 = vld [vmem:[%s163 + $0x52] sm:$0xff]
      %v669 = vld [vmem:[%s163 + $0x62] sm:$0xff]
      %v670 = vld [vmem:[%s163 + $0x6a] sm:$0xff]
      %v671 = vld [vmem:[%s163 + $0x7a] sm:$0xff]
      %v672 = vld [vmem:[%s163 + $0x82] sm:$0xff]
      %v673 = vld [vmem:[%s163 + $0x92] sm:$0xff]
      %v674 = vld [vmem:[%s163 + $0x9a] sm:$0xff]
      %v675 = vld [vmem:[%s163 + $0xaa] sm:$0xff]
      %v676 = vld [vmem:[%s163 + $0xb2] sm:$0xff]
      %v677 = vld [vmem:[%s163 + $0xc2] sm:$0xff]
      %v678 = vld [vmem:[%s163 + $0xca] sm:$0xff]
      %v679 = vld [vmem:[%s163 + $0xda] sm:$0xff]
      %v680 = vld [vmem:[%s163 + $0xe2] sm:$0xff]
      %v681 = vld [vmem:[%s163 + $0xf2] sm:$0xff]
      %v682 = vld [vmem:[%s163 + $0xfa] sm:$0xff]
      %v683 = vld [vmem:[%s163 + $0x10a] sm:$0xff]
      %v684 = vld [vmem:[%s163 + $0x112] sm:$0xff]
      %v685 = vld [vmem:[%s163 + $0x122] sm:$0xff]
      %v686 = vld [vmem:[%s163 + $0x12a] sm:$0xff]
      %v687 = vld [vmem:[%s163 + $0x13a] sm:$0xff]
      %v688 = vld [vmem:[%s163 + $0x142] sm:$0xff]
      %v689 = vld [vmem:[%s163 + $0x152] sm:$0xff]
      %v690 = vld [vmem:[%s163 + $0x15a] sm:$0xff]
      %v691 = vld [vmem:[%s163 + $0x16a] sm:$0xff]
      %v692 = vld [vmem:[%s163 + $0x172] sm:$0xff]
      %v693 = vld [vmem:[%s1 + $0x6] sm:$0x7]
      %v695 = vsel %vm235, %v661, 0
      %v698 = vsel %vm235, %v662, 0
      %v701 = vsel %vm235, %v663, 0
      %v704 = vsel %vm235, %v664, 0
      %v707 = vsel %vm235, %v665, 0
      %v710 = vsel %vm235, %v666, 0
      %v713 = vsel %vm235, %v667, 0
      %v716 = vsel %vm235, %v668, 0
      %v719 = vsel %vm235, %v669, 0
      %v722 = vsel %vm235, %v670, 0
      %v725 = vsel %vm235, %v671, 0
      %v728 = vsel %vm235, %v672, 0
      %v731 = vsel %vm235, %v673, 0
      %v734 = vsel %vm235, %v674, 0
      %v737 = vsel %vm235, %v675, 0
      %v740 = vsel %vm235, %v676, 0
      %v743 = vsel %vm235, %v677, 0
      %v746 = vsel %vm235, %v678, 0
      %v749 = vsel %vm235, %v679, 0
      %v752 = vsel %vm235, %v680, 0
      %v755 = vsel %vm235, %v681, 0
      %v758 = vsel %vm235, %v682, 0
      %v761 = vsel %vm235, %v683, 0
      %v764 = vsel %vm235, %v684, 0
      %v767 = vsel %vm235, %v685, 0
      %v770 = vsel %vm235, %v686, 0
      %v773 = vsel %vm235, %v687, 0
      %v776 = vsel %vm235, %v688, 0
      %v779 = vsel %vm235, %v689, 0
      %v782 = vsel %vm235, %v690, 0
      %v785 = vsel %vm235, %v691, 0
      %v788 = vsel %vm235, %v692, 0
      %v791 = vsel %vm332, %v693, 0
      %793 = vmatpush.msra.mxu0 0.0
      %794 = vmatpush.msra.mxu0 0.0
      %795 = vmatpush.msra.mxu0 0.0
      %796 = vmatpush.msra.mxu0 0.0
      %797 = vmatpush.msra.mxu0 0.0
      %798 = vmatpush.msra.mxu0 0.0
      %799 = vmatpush.msra.mxu0 0.0
      %800 = vmatpush.msra.mxu0 0.0
      %801 = vmatpush.msra.mxu0 0.0
      %802 = vmatpush.msra.mxu0 0.0
      %803 = vmatpush.msra.mxu0 0.0
      %804 = vmatpush.msra.mxu0 0.0
      %805 = vmatpush.msra.mxu0 0.0
      %806 = vmatpush.msra.mxu0 0.0
      %807 = vmatpush.msra.mxu0 0.0
      %808 = vmatpush.msra.mxu0 %v791
      %809 = vmatmul.f32.gmra.mxu0 %v695
      %v810 = vpop.f32.mrf.mxu0
      %v811 = vadd.f32 0.0, %v810
      %812 = vmatmul.f32.gmra.mxu0 %v698
      %v813 = vpop.f32.mrf.mxu0
      %v814 = vadd.f32 0.0, %v813
      %815 = vmatmul.f32.gmra.mxu0 %v701
      %v816 = vpop.f32.mrf.mxu0
      %v817 = vadd.f32 0.0, %v816
      %818 = vmatmul.f32.gmra.mxu0 %v704
      %v819 = vpop.f32.mrf.mxu0
      %v820 = vadd.f32 0.0, %v819
      %821 = vmatmul.f32.gmra.mxu0 %v707
      %v822 = vpop.f32.mrf.mxu0
      %v823 = vadd.f32 0.0, %v822
      %824 = vmatmul.f32.gmra.mxu0 %v710
      %v825 = vpop.f32.mrf.mxu0
      %v826 = vadd.f32 0.0, %v825
      %827 = vmatmul.f32.gmra.mxu0 %v713
      %v828 = vpop.f32.mrf.mxu0
      %v829 = vadd.f32 0.0, %v828
      %830 = vmatmul.f32.gmra.mxu0 %v716
      %v831 = vpop.f32.mrf.mxu0
      %v832 = vadd.f32 0.0, %v831
      %833 = vmatmul.f32.gmra.mxu0 %v719
      %v834 = vpop.f32.mrf.mxu0
      %v835 = vadd.f32 0.0, %v834
      %836 = vmatmul.f32.gmra.mxu0 %v722
      %v837 = vpop.f32.mrf.mxu0
      %v838 = vadd.f32 0.0, %v837
      %839 = vmatmul.f32.gmra.mxu0 %v725
      %v840 = vpop.f32.mrf.mxu0
      %v841 = vadd.f32 0.0, %v840
      %842 = vmatmul.f32.gmra.mxu0 %v728
      %v843 = vpop.f32.mrf.mxu0
      %v844 = vadd.f32 0.0, %v843
      %845 = vmatmul.f32.gmra.mxu0 %v731
      %v846 = vpop.f32.mrf.mxu0
      %v847 = vadd.f32 0.0, %v846
      %848 = vmatmul.f32.gmra.mxu0 %v734
      %v849 = vpop.f32.mrf.mxu0
      %v850 = vadd.f32 0.0, %v849
      %851 = vmatmul.f32.gmra.mxu0 %v737
      %v852 = vpop.f32.mrf.mxu0
      %v853 = vadd.f32 0.0, %v852
      %854 = vmatmul.f32.gmra.mxu0 %v740
      %v855 = vpop.f32.mrf.mxu0
      %v856 = vadd.f32 0.0, %v855
      %857 = vmatmul.f32.gmra.mxu0 %v743
      %v858 = vpop.f32.mrf.mxu0
      %v859 = vadd.f32 0.0, %v858
      %860 = vmatmul.f32.gmra.mxu0 %v746
      %v861 = vpop.f32.mrf.mxu0
      %v862 = vadd.f32 0.0, %v861
      %863 = vmatmul.f32.gmra.mxu0 %v749
      %v864 = vpop.f32.mrf.mxu0
      %v865 = vadd.f32 0.0, %v864
      %866 = vmatmul.f32.gmra.mxu0 %v752
      %v867 = vpop.f32.mrf.mxu0
      %v868 = vadd.f32 0.0, %v867
      %869 = vmatmul.f32.gmra.mxu0 %v755
      %v870 = vpop.f32.mrf.mxu0
      %v871 = vadd.f32 0.0, %v870
      %872 = vmatmul.f32.gmra.mxu0 %v758
      %v873 = vpop.f32.mrf.mxu0
      %v874 = vadd.f32 0.0, %v873
      %875 = vmatmul.f32.gmra.mxu0 %v761
      %v876 = vpop.f32.mrf.mxu0
      %v877 = vadd.f32 0.0, %v876
      %878 = vmatmul.f32.gmra.mxu0 %v764
      %v879 = vpop.f32.mrf.mxu0
      %v880 = vadd.f32 0.0, %v879
      %881 = vmatmul.f32.gmra.mxu0 %v767
      %v882 = vpop.f32.mrf.mxu0
      %v883 = vadd.f32 0.0, %v882
      %884 = vmatmul.f32.gmra.mxu0 %v770
      %v885 = vpop.f32.mrf.mxu0
      %v886 = vadd.f32 0.0, %v885
      %887 = vmatmul.f32.gmra.mxu0 %v773
      %v888 = vpop.f32.mrf.mxu0
      %v889 = vadd.f32 0.0, %v888
      %890 = vmatmul.f32.gmra.mxu0 %v776
      %v891 = vpop.f32.mrf.mxu0
      %v892 = vadd.f32 0.0, %v891
      %893 = vmatmul.f32.gmra.mxu0 %v779
      %v894 = vpop.f32.mrf.mxu0
      %v895 = vadd.f32 0.0, %v894
      %896 = vmatmul.f32.gmra.mxu0 %v782
      %v897 = vpop.f32.mrf.mxu0
      %v898 = vadd.f32 0.0, %v897
      %899 = vmatmul.f32.gmra.mxu0 %v785
      %v900 = vpop.f32.mrf.mxu0
      %v901 = vadd.f32 0.0, %v900
      %902 = vmatmul.f32.gmra.mxu0 %v788
      %v903 = vpop.f32.mrf.mxu0
      %v904 = vadd.f32 0.0, %v903
      %905 = vdwg.mxu0
      %v906 = vadd.f32 %v566, %v811
      %v907 = vadd.f32 %v569, %v814
      %v908 = vadd.f32 %v572, %v817
      %v909 = vadd.f32 %v575, %v820
      %v910 = vadd.f32 %v578, %v823
      %v911 = vadd.f32 %v581, %v826
      %v912 = vadd.f32 %v584, %v829
      %v913 = vadd.f32 %v587, %v832
      %v914 = vadd.f32 %v590, %v835
      %v915 = vadd.f32 %v593, %v838
      %v916 = vadd.f32 %v596, %v841
      %v917 = vadd.f32 %v599, %v844
      %v918 = vadd.f32 %v602, %v847
      %v919 = vadd.f32 %v605, %v850
      %v920 = vadd.f32 %v608, %v853
      %v921 = vadd.f32 %v611, %v856
      %v922 = vadd.f32 %v614, %v859
      %v923 = vadd.f32 %v617, %v862
      %v924 = vadd.f32 %v620, %v865
      %v925 = vadd.f32 %v623, %v868
      %v926 = vadd.f32 %v626, %v871
      %v927 = vadd.f32 %v629, %v874
      %v928 = vadd.f32 %v632, %v877
      %v929 = vadd.f32 %v635, %v880
      %v930 = vadd.f32 %v638, %v883
      %v931 = vadd.f32 %v641, %v886
      %v932 = vadd.f32 %v644, %v889
      %v933 = vadd.f32 %v647, %v892
      %v934 = vadd.f32 %v650, %v895
      %v935 = vadd.f32 %v653, %v898
      %v936 = vadd.f32 %v656, %v901
      %v937 = vadd.f32 %v659, %v904
      %s938 = scalar_lea.vmem %s163, 24
      %v939 = vld [vmem:[%s938] sm:$0xff]
      %v940 = vld [vmem:[%s938 + $0x8] sm:$0xff]
      %v941 = vld [vmem:[%s938 + $0x18] sm:$0xff]
      %v942 = vld [vmem:[%s938 + $0x20] sm:$0xff]
      %v943 = vld [vmem:[%s938 + $0x30] sm:$0xff]
      %v944 = vld [vmem:[%s938 + $0x38] sm:$0xff]
      %v945 = vld [vmem:[%s938 + $0x48] sm:$0xff]
      %v946 = vld [vmem:[%s938 + $0x50] sm:$0xff]
      %v947 = vld [vmem:[%s938 + $0x60] sm:$0xff]
      %v948 = vld [vmem:[%s938 + $0x68] sm:$0xff]
      %v949 = vld [vmem:[%s938 + $0x78] sm:$0xff]
      %v950 = vld [vmem:[%s938 + $0x80] sm:$0xff]
      %v951 = vld [vmem:[%s938 + $0x90] sm:$0xff]
      %v952 = vld [vmem:[%s938 + $0x98] sm:$0xff]
      %v953 = vld [vmem:[%s938 + $0xa8] sm:$0xff]
      %v954 = vld [vmem:[%s938 + $0xb0] sm:$0xff]
      %v955 = vld [vmem:[%s938 + $0xc0] sm:$0xff]
      %v956 = vld [vmem:[%s938 + $0xc8] sm:$0xff]
      %v957 = vld [vmem:[%s938 + $0xd8] sm:$0xff]
      %v958 = vld [vmem:[%s938 + $0xe0] sm:$0xff]
      %v959 = vld [vmem:[%s938 + $0xf0] sm:$0xff]
      %v960 = vld [vmem:[%s938 + $0xf8] sm:$0xff]
      %v961 = vld [vmem:[%s938 + $0x108] sm:$0xff]
      %v962 = vld [vmem:[%s938 + $0x110] sm:$0xff]
      %v963 = vld [vmem:[%s938 + $0x120] sm:$0xff]
      %v964 = vld [vmem:[%s938 + $0x128] sm:$0xff]
      %v965 = vld [vmem:[%s938 + $0x138] sm:$0xff]
      %v966 = vld [vmem:[%s938 + $0x140] sm:$0xff]
      %v967 = vld [vmem:[%s938 + $0x150] sm:$0xff]
      %v968 = vld [vmem:[%s938 + $0x158] sm:$0xff]
      %v969 = vld [vmem:[%s938 + $0x168] sm:$0xff]
      %v970 = vld [vmem:[%s938 + $0x170] sm:$0xff]
      %v971 = vld [vmem:[%s1 + $0x9] sm:$0x7]
      %v973 = vsel %vm235, %v939, 0
      %v976 = vsel %vm235, %v940, 0
      %v979 = vsel %vm235, %v941, 0
      %v982 = vsel %vm235, %v942, 0
      %v985 = vsel %vm235, %v943, 0
      %v988 = vsel %vm235, %v944, 0
      %v991 = vsel %vm235, %v945, 0
      %v994 = vsel %vm235, %v946, 0
      %v997 = vsel %vm235, %v947, 0
      %v1000 = vsel %vm235, %v948, 0
      %v1003 = vsel %vm235, %v949, 0
      %v1006 = vsel %vm235, %v950, 0
      %v1009 = vsel %vm235, %v951, 0
      %v1012 = vsel %vm235, %v952, 0
      %v1015 = vsel %vm235, %v953, 0
      %v1018 = vsel %vm235, %v954, 0
      %v1021 = vsel %vm235, %v955, 0
      %v1024 = vsel %vm235, %v956, 0
      %v1027 = vsel %vm235, %v957, 0
      %v1030 = vsel %vm235, %v958, 0
      %v1033 = vsel %vm235, %v959, 0
      %v1036 = vsel %vm235, %v960, 0
      %v1039 = vsel %vm235, %v961, 0
      %v1042 = vsel %vm235, %v962, 0
      %v1045 = vsel %vm235, %v963, 0
      %v1048 = vsel %vm235, %v964, 0
      %v1051 = vsel %vm235, %v965, 0
      %v1054 = vsel %vm235, %v966, 0
      %v1057 = vsel %vm235, %v967, 0
      %v1060 = vsel %vm235, %v968, 0
      %v1063 = vsel %vm235, %v969, 0
      %v1066 = vsel %vm235, %v970, 0
      %v1069 = vsel %vm332, %v971, 0
      %1071 = vmatpush.msra.mxu0 0.0
      %1072 = vmatpush.msra.mxu0 0.0
      %1073 = vmatpush.msra.mxu0 0.0
      %1074 = vmatpush.msra.mxu0 0.0
      %1075 = vmatpush.msra.mxu0 0.0
      %1076 = vmatpush.msra.mxu0 0.0
      %1077 = vmatpush.msra.mxu0 0.0
      %1078 = vmatpush.msra.mxu0 0.0
      %1079 = vmatpush.msra.mxu0 0.0
      %1080 = vmatpush.msra.mxu0 0.0
      %1081 = vmatpush.msra.mxu0 0.0
      %1082 = vmatpush.msra.mxu0 0.0
      %1083 = vmatpush.msra.mxu0 0.0
      %1084 = vmatpush.msra.mxu0 0.0
      %1085 = vmatpush.msra.mxu0 0.0
      %1086 = vmatpush.msra.mxu0 %v1069
      %1087 = vmatmul.f32.gmra.mxu0 %v973
      %v1088 = vpop.f32.mrf.mxu0
      %v1089 = vadd.f32 0.0, %v1088
      %1090 = vmatmul.f32.gmra.mxu0 %v976
      %v1091 = vpop.f32.mrf.mxu0
      %v1092 = vadd.f32 0.0, %v1091
      %1093 = vmatmul.f32.gmra.mxu0 %v979
      %v1094 = vpop.f32.mrf.mxu0
      %v1095 = vadd.f32 0.0, %v1094
      %1096 = vmatmul.f32.gmra.mxu0 %v982
      %v1097 = vpop.f32.mrf.mxu0
      %v1098 = vadd.f32 0.0, %v1097
      %1099 = vmatmul.f32.gmra.mxu0 %v985
      %v1100 = vpop.f32.mrf.mxu0
      %v1101 = vadd.f32 0.0, %v1100
      %1102 = vmatmul.f32.gmra.mxu0 %v988
      %v1103 = vpop.f32.mrf.mxu0
      %v1104 = vadd.f32 0.0, %v1103
      %1105 = vmatmul.f32.gmra.mxu0 %v991
      %v1106 = vpop.f32.mrf.mxu0
      %v1107 = vadd.f32 0.0, %v1106
      %1108 = vmatmul.f32.gmra.mxu0 %v994
      %v1109 = vpop.f32.mrf.mxu0
      %v1110 = vadd.f32 0.0, %v1109
      %1111 = vmatmul.f32.gmra.mxu0 %v997
      %v1112 = vpop.f32.mrf.mxu0
      %v1113 = vadd.f32 0.0, %v1112
      %1114 = vmatmul.f32.gmra.mxu0 %v1000
      %v1115 = vpop.f32.mrf.mxu0
      %v1116 = vadd.f32 0.0, %v1115
      %1117 = vmatmul.f32.gmra.mxu0 %v1003
      %v1118 = vpop.f32.mrf.mxu0
      %v1119 = vadd.f32 0.0, %v1118
      %1120 = vmatmul.f32.gmra.mxu0 %v1006
      %v1121 = vpop.f32.mrf.mxu0
      %v1122 = vadd.f32 0.0, %v1121
      %1123 = vmatmul.f32.gmra.mxu0 %v1009
      %v1124 = vpop.f32.mrf.mxu0
      %v1125 = vadd.f32 0.0, %v1124
      %1126 = vmatmul.f32.gmra.mxu0 %v1012
      %v1127 = vpop.f32.mrf.mxu0
      %v1128 = vadd.f32 0.0, %v1127
      %1129 = vmatmul.f32.gmra.mxu0 %v1015
      %v1130 = vpop.f32.mrf.mxu0
      %v1131 = vadd.f32 0.0, %v1130
      %1132 = vmatmul.f32.gmra.mxu0 %v1018
      %v1133 = vpop.f32.mrf.mxu0
      %v1134 = vadd.f32 0.0, %v1133
      %1135 = vmatmul.f32.gmra.mxu0 %v1021
      %v1136 = vpop.f32.mrf.mxu0
      %v1137 = vadd.f32 0.0, %v1136
      %1138 = vmatmul.f32.gmra.mxu0 %v1024
      %v1139 = vpop.f32.mrf.mxu0
      %v1140 = vadd.f32 0.0, %v1139
      %1141 = vmatmul.f32.gmra.mxu0 %v1027
      %v1142 = vpop.f32.mrf.mxu0
      %v1143 = vadd.f32 0.0, %v1142
      %1144 = vmatmul.f32.gmra.mxu0 %v1030
      %v1145 = vpop.f32.mrf.mxu0
      %v1146 = vadd.f32 0.0, %v1145
      %1147 = vmatmul.f32.gmra.mxu0 %v1033
      %v1148 = vpop.f32.mrf.mxu0
      %v1149 = vadd.f32 0.0, %v1148
      %1150 = vmatmul.f32.gmra.mxu0 %v1036
      %v1151 = vpop.f32.mrf.mxu0
      %v1152 = vadd.f32 0.0, %v1151
      %1153 = vmatmul.f32.gmra.mxu0 %v1039
      %v1154 = vpop.f32.mrf.mxu0
      %v1155 = vadd.f32 0.0, %v1154
      %1156 = vmatmul.f32.gmra.mxu0 %v1042
      %v1157 = vpop.f32.mrf.mxu0
      %v1158 = vadd.f32 0.0, %v1157
      %1159 = vmatmul.f32.gmra.mxu0 %v1045
      %v1160 = vpop.f32.mrf.mxu0
      %v1161 = vadd.f32 0.0, %v1160
      %1162 = vmatmul.f32.gmra.mxu0 %v1048
      %v1163 = vpop.f32.mrf.mxu0
      %v1164 = vadd.f32 0.0, %v1163
      %1165 = vmatmul.f32.gmra.mxu0 %v1051
      %v1166 = vpop.f32.mrf.mxu0
      %v1167 = vadd.f32 0.0, %v1166
      %1168 = vmatmul.f32.gmra.mxu0 %v1054
      %v1169 = vpop.f32.mrf.mxu0
      %v1170 = vadd.f32 0.0, %v1169
      %1171 = vmatmul.f32.gmra.mxu0 %v1057
      %v1172 = vpop.f32.mrf.mxu0
      %v1173 = vadd.f32 0.0, %v1172
      %1174 = vmatmul.f32.gmra.mxu0 %v1060
      %v1175 = vpop.f32.mrf.mxu0
      %v1176 = vadd.f32 0.0, %v1175
      %1177 = vmatmul.f32.gmra.mxu0 %v1063
      %v1178 = vpop.f32.mrf.mxu0
      %v1179 = vadd.f32 0.0, %v1178
      %1180 = vmatmul.f32.gmra.mxu0 %v1066
      %v1181 = vpop.f32.mrf.mxu0
      %v1182 = vadd.f32 0.0, %v1181
      %1183 = vdwg.mxu0
      %v1184 = vadd.f32 %v906, %v1089
      %v1185 = vadd.f32 %v907, %v1092
      %v1186 = vadd.f32 %v908, %v1095
      %v1187 = vadd.f32 %v909, %v1098
      %v1188 = vadd.f32 %v910, %v1101
      %v1189 = vadd.f32 %v911, %v1104
      %v1190 = vadd.f32 %v912, %v1107
      %v1191 = vadd.f32 %v913, %v1110
      %v1192 = vadd.f32 %v914, %v1113
      %v1193 = vadd.f32 %v915, %v1116
      %v1194 = vadd.f32 %v916, %v1119
      %v1195 = vadd.f32 %v917, %v1122
      %v1196 = vadd.f32 %v918, %v1125
      %v1197 = vadd.f32 %v919, %v1128
      %v1198 = vadd.f32 %v920, %v1131
      %v1199 = vadd.f32 %v921, %v1134
      %v1200 = vadd.f32 %v922, %v1137
      %v1201 = vadd.f32 %v923, %v1140
      %v1202 = vadd.f32 %v924, %v1143
      %v1203 = vadd.f32 %v925, %v1146
      %v1204 = vadd.f32 %v926, %v1149
      %v1205 = vadd.f32 %v927, %v1152
      %v1206 = vadd.f32 %v928, %v1155
      %v1207 = vadd.f32 %v929, %v1158
      %v1208 = vadd.f32 %v930, %v1161
      %v1209 = vadd.f32 %v931, %v1164
      %v1210 = vadd.f32 %v932, %v1167
      %v1211 = vadd.f32 %v933, %v1170
      %v1212 = vadd.f32 %v934, %v1173
      %v1213 = vadd.f32 %v935, %v1176
      %v1214 = vadd.f32 %v936, %v1179
      %v1215 = vadd.f32 %v937, %v1182
      %v1216 = vld [vmem:[%s938 + $0x1] sm:$0xff]
      %v1217 = vld [vmem:[%s938 + $0x9] sm:$0xff]
      %v1218 = vld [vmem:[%s938 + $0x19] sm:$0xff]
      %v1219 = vld [vmem:[%s938 + $0x21] sm:$0xff]
      %v1220 = vld [vmem:[%s938 + $0x31] sm:$0xff]
      %v1221 = vld [vmem:[%s938 + $0x39] sm:$0xff]
      %v1222 = vld [vmem:[%s938 + $0x49] sm:$0xff]
      %v1223 = vld [vmem:[%s938 + $0x51] sm:$0xff]
      %v1224 = vld [vmem:[%s938 + $0x61] sm:$0xff]
      %v1225 = vld [vmem:[%s938 + $0x69] sm:$0xff]
      %v1226 = vld [vmem:[%s938 + $0x79] sm:$0xff]
      %v1227 = vld [vmem:[%s938 + $0x81] sm:$0xff]
      %v1228 = vld [vmem:[%s938 + $0x91] sm:$0xff]
      %v1229 = vld [vmem:[%s938 + $0x99] sm:$0xff]
      %v1230 = vld [vmem:[%s938 + $0xa9] sm:$0xff]
      %v1231 = vld [vmem:[%s938 + $0xb1] sm:$0xff]
      %v1232 = vld [vmem:[%s938 + $0xc1] sm:$0xff]
      %v1233 = vld [vmem:[%s938 + $0xc9] sm:$0xff]
      %v1234 = vld [vmem:[%s938 + $0xd9] sm:$0xff]
      %v1235 = vld [vmem:[%s938 + $0xe1] sm:$0xff]
      %v1236 = vld [vmem:[%s938 + $0xf1] sm:$0xff]
      %v1237 = vld [vmem:[%s938 + $0xf9] sm:$0xff]
      %v1238 = vld [vmem:[%s938 + $0x109] sm:$0xff]
      %v1239 = vld [vmem:[%s938 + $0x111] sm:$0xff]
      %v1240 = vld [vmem:[%s938 + $0x121] sm:$0xff]
      %v1241 = vld [vmem:[%s938 + $0x129] sm:$0xff]
      %v1242 = vld [vmem:[%s938 + $0x139] sm:$0xff]
      %v1243 = vld [vmem:[%s938 + $0x141] sm:$0xff]
      %v1244 = vld [vmem:[%s938 + $0x151] sm:$0xff]
      %v1245 = vld [vmem:[%s938 + $0x159] sm:$0xff]
      %v1246 = vld [vmem:[%s938 + $0x169] sm:$0xff]
      %v1247 = vld [vmem:[%s938 + $0x171] sm:$0xff]
      %v1248 = vld [vmem:[%s1 + $0xc] sm:$0x7]
      %v1250 = vsel %vm235, %v1216, 0
      %v1253 = vsel %vm235, %v1217, 0
      %v1256 = vsel %vm235, %v1218, 0
      %v1259 = vsel %vm235, %v1219, 0
      %v1262 = vsel %vm235, %v1220, 0
      %v1265 = vsel %vm235, %v1221, 0
      %v1268 = vsel %vm235, %v1222, 0
      %v1271 = vsel %vm235, %v1223, 0
      %v1274 = vsel %vm235, %v1224, 0
      %v1277 = vsel %vm235, %v1225, 0
      %v1280 = vsel %vm235, %v1226, 0
      %v1283 = vsel %vm235, %v1227, 0
      %v1286 = vsel %vm235, %v1228, 0
      %v1289 = vsel %vm235, %v1229, 0
      %v1292 = vsel %vm235, %v1230, 0
      %v1295 = vsel %vm235, %v1231, 0
      %v1298 = vsel %vm235, %v1232, 0
      %v1301 = vsel %vm235, %v1233, 0
      %v1304 = vsel %vm235, %v1234, 0
      %v1307 = vsel %vm235, %v1235, 0
      %v1310 = vsel %vm235, %v1236, 0
      %v1313 = vsel %vm235, %v1237, 0
      %v1316 = vsel %vm235, %v1238, 0
      %v1319 = vsel %vm235, %v1239, 0
      %v1322 = vsel %vm235, %v1240, 0
      %v1325 = vsel %vm235, %v1241, 0
      %v1328 = vsel %vm235, %v1242, 0
      %v1331 = vsel %vm235, %v1243, 0
      %v1334 = vsel %vm235, %v1244, 0
      %v1337 = vsel %vm235, %v1245, 0
      %v1340 = vsel %vm235, %v1246, 0
      %v1343 = vsel %vm235, %v1247, 0
      %v1346 = vsel %vm332, %v1248, 0
      %1348 = vmatpush.msra.mxu0 0.0
      %1349 = vmatpush.msra.mxu0 0.0
      %1350 = vmatpush.msra.mxu0 0.0
      %1351 = vmatpush.msra.mxu0 0.0
      %1352 = vmatpush.msra.mxu0 0.0
      %1353 = vmatpush.msra.mxu0 0.0
      %1354 = vmatpush.msra.mxu0 0.0
      %1355 = vmatpush.msra.mxu0 0.0
      %1356 = vmatpush.msra.mxu0 0.0
      %1357 = vmatpush.msra.mxu0 0.0
      %1358 = vmatpush.msra.mxu0 0.0
      %1359 = vmatpush.msra.mxu0 0.0
      %1360 = vmatpush.msra.mxu0 0.0
      %1361 = vmatpush.msra.mxu0 0.0
      %1362 = vmatpush.msra.mxu0 0.0
      %1363 = vmatpush.msra.mxu0 %v1346
      %1364 = vmatmul.f32.gmra.mxu0 %v1250
      %v1365 = vpop.f32.mrf.mxu0
      %v1366 = vadd.f32 0.0, %v1365
      %1367 = vmatmul.f32.gmra.mxu0 %v1253
      %v1368 = vpop.f32.mrf.mxu0
      %v1369 = vadd.f32 0.0, %v1368
      %1370 = vmatmul.f32.gmra.mxu0 %v1256
      %v1371 = vpop.f32.mrf.mxu0
      %v1372 = vadd.f32 0.0, %v1371
      %1373 = vmatmul.f32.gmra.mxu0 %v1259
      %v1374 = vpop.f32.mrf.mxu0
      %v1375 = vadd.f32 0.0, %v1374
      %1376 = vmatmul.f32.gmra.mxu0 %v1262
      %v1377 = vpop.f32.mrf.mxu0
      %v1378 = vadd.f32 0.0, %v1377
      %1379 = vmatmul.f32.gmra.mxu0 %v1265
      %v1380 = vpop.f32.mrf.mxu0
      %v1381 = vadd.f32 0.0, %v1380
      %1382 = vmatmul.f32.gmra.mxu0 %v1268
      %v1383 = vpop.f32.mrf.mxu0
      %v1384 = vadd.f32 0.0, %v1383
      %1385 = vmatmul.f32.gmra.mxu0 %v1271
      %v1386 = vpop.f32.mrf.mxu0
      %v1387 = vadd.f32 0.0, %v1386
      %1388 = vmatmul.f32.gmra.mxu0 %v1274
      %v1389 = vpop.f32.mrf.mxu0
      %v1390 = vadd.f32 0.0, %v1389
      %1391 = vmatmul.f32.gmra.mxu0 %v1277
      %v1392 = vpop.f32.mrf.mxu0
      %v1393 = vadd.f32 0.0, %v1392
      %1394 = vmatmul.f32.gmra.mxu0 %v1280
      %v1395 = vpop.f32.mrf.mxu0
      %v1396 = vadd.f32 0.0, %v1395
      %1397 = vmatmul.f32.gmra.mxu0 %v1283
      %v1398 = vpop.f32.mrf.mxu0
      %v1399 = vadd.f32 0.0, %v1398
      %1400 = vmatmul.f32.gmra.mxu0 %v1286
      %v1401 = vpop.f32.mrf.mxu0
      %v1402 = vadd.f32 0.0, %v1401
      %1403 = vmatmul.f32.gmra.mxu0 %v1289
      %v1404 = vpop.f32.mrf.mxu0
      %v1405 = vadd.f32 0.0, %v1404
      %1406 = vmatmul.f32.gmra.mxu0 %v1292
      %v1407 = vpop.f32.mrf.mxu0
      %v1408 = vadd.f32 0.0, %v1407
      %1409 = vmatmul.f32.gmra.mxu0 %v1295
      %v1410 = vpop.f32.mrf.mxu0
      %v1411 = vadd.f32 0.0, %v1410
      %1412 = vmatmul.f32.gmra.mxu0 %v1298
      %v1413 = vpop.f32.mrf.mxu0
      %v1414 = vadd.f32 0.0, %v1413
      %1415 = vmatmul.f32.gmra.mxu0 %v1301
      %v1416 = vpop.f32.mrf.mxu0
      %v1417 = vadd.f32 0.0, %v1416
      %1418 = vmatmul.f32.gmra.mxu0 %v1304
      %v1419 = vpop.f32.mrf.mxu0
      %v1420 = vadd.f32 0.0, %v1419
      %1421 = vmatmul.f32.gmra.mxu0 %v1307
      %v1422 = vpop.f32.mrf.mxu0
      %v1423 = vadd.f32 0.0, %v1422
      %1424 = vmatmul.f32.gmra.mxu0 %v1310
      %v1425 = vpop.f32.mrf.mxu0
      %v1426 = vadd.f32 0.0, %v1425
      %1427 = vmatmul.f32.gmra.mxu0 %v1313
      %v1428 = vpop.f32.mrf.mxu0
      %v1429 = vadd.f32 0.0, %v1428
      %1430 = vmatmul.f32.gmra.mxu0 %v1316
      %v1431 = vpop.f32.mrf.mxu0
      %v1432 = vadd.f32 0.0, %v1431
      %1433 = vmatmul.f32.gmra.mxu0 %v1319
      %v1434 = vpop.f32.mrf.mxu0
      %v1435 = vadd.f32 0.0, %v1434
      %1436 = vmatmul.f32.gmra.mxu0 %v1322
      %v1437 = vpop.f32.mrf.mxu0
      %v1438 = vadd.f32 0.0, %v1437
      %1439 = vmatmul.f32.gmra.mxu0 %v1325
      %v1440 = vpop.f32.mrf.mxu0
      %v1441 = vadd.f32 0.0, %v1440
      %1442 = vmatmul.f32.gmra.mxu0 %v1328
      %v1443 = vpop.f32.mrf.mxu0
      %v1444 = vadd.f32 0.0, %v1443
      %1445 = vmatmul.f32.gmra.mxu0 %v1331
      %v1446 = vpop.f32.mrf.mxu0
      %v1447 = vadd.f32 0.0, %v1446
      %1448 = vmatmul.f32.gmra.mxu0 %v1334
      %v1449 = vpop.f32.mrf.mxu0
      %v1450 = vadd.f32 0.0, %v1449
      %1451 = vmatmul.f32.gmra.mxu0 %v1337
      %v1452 = vpop.f32.mrf.mxu0
      %v1453 = vadd.f32 0.0, %v1452
      %1454 = vmatmul.f32.gmra.mxu0 %v1340
      %v1455 = vpop.f32.mrf.mxu0
      %v1456 = vadd.f32 0.0, %v1455
      %1457 = vmatmul.f32.gmra.mxu0 %v1343
      %v1458 = vpop.f32.mrf.mxu0
      %v1459 = vadd.f32 0.0, %v1458
      %1460 = vdwg.mxu0
      %v1461 = vadd.f32 %v1184, %v1366
      %v1462 = vadd.f32 %v1185, %v1369
      %v1463 = vadd.f32 %v1186, %v1372
      %v1464 = vadd.f32 %v1187, %v1375
      %v1465 = vadd.f32 %v1188, %v1378
      %v1466 = vadd.f32 %v1189, %v1381
      %v1467 = vadd.f32 %v1190, %v1384
      %v1468 = vadd.f32 %v1191, %v1387
      %v1469 = vadd.f32 %v1192, %v1390
      %v1470 = vadd.f32 %v1193, %v1393
      %v1471 = vadd.f32 %v1194, %v1396
      %v1472 = vadd.f32 %v1195, %v1399
      %v1473 = vadd.f32 %v1196, %v1402
      %v1474 = vadd.f32 %v1197, %v1405
      %v1475 = vadd.f32 %v1198, %v1408
      %v1476 = vadd.f32 %v1199, %v1411
      %v1477 = vadd.f32 %v1200, %v1414
      %v1478 = vadd.f32 %v1201, %v1417
      %v1479 = vadd.f32 %v1202, %v1420
      %v1480 = vadd.f32 %v1203, %v1423
      %v1481 = vadd.f32 %v1204, %v1426
      %v1482 = vadd.f32 %v1205, %v1429
      %v1483 = vadd.f32 %v1206, %v1432
      %v1484 = vadd.f32 %v1207, %v1435
      %v1485 = vadd.f32 %v1208, %v1438
      %v1486 = vadd.f32 %v1209, %v1441
      %v1487 = vadd.f32 %v1210, %v1444
      %v1488 = vadd.f32 %v1211, %v1447
      %v1489 = vadd.f32 %v1212, %v1450
      %v1490 = vadd.f32 %v1213, %v1453
      %v1491 = vadd.f32 %v1214, %v1456
      %v1492 = vadd.f32 %v1215, %v1459
      %v1493 = vld [vmem:[%s938 + $0x2] sm:$0xff]
      %v1494 = vld [vmem:[%s938 + $0xa] sm:$0xff]
      %v1495 = vld [vmem:[%s938 + $0x1a] sm:$0xff]
      %v1496 = vld [vmem:[%s938 + $0x22] sm:$0xff]
      %v1497 = vld [vmem:[%s938 + $0x32] sm:$0xff]
      %v1498 = vld [vmem:[%s938 + $0x3a] sm:$0xff]
      %v1499 = vld [vmem:[%s938 + $0x4a] sm:$0xff]
      %v1500 = vld [vmem:[%s938 + $0x52] sm:$0xff]
      %v1501 = vld [vmem:[%s938 + $0x62] sm:$0xff]
      %v1502 = vld [vmem:[%s938 + $0x6a] sm:$0xff]
      %v1503 = vld [vmem:[%s938 + $0x7a] sm:$0xff]
      %v1504 = vld [vmem:[%s938 + $0x82] sm:$0xff]
      %v1505 = vld [vmem:[%s938 + $0x92] sm:$0xff]
      %v1506 = vld [vmem:[%s938 + $0x9a] sm:$0xff]
      %v1507 = vld [vmem:[%s938 + $0xaa] sm:$0xff]
      %v1508 = vld [vmem:[%s938 + $0xb2] sm:$0xff]
      %v1509 = vld [vmem:[%s938 + $0xc2] sm:$0xff]
      %v1510 = vld [vmem:[%s938 + $0xca] sm:$0xff]
      %v1511 = vld [vmem:[%s938 + $0xda] sm:$0xff]
      %v1512 = vld [vmem:[%s938 + $0xe2] sm:$0xff]
      %v1513 = vld [vmem:[%s938 + $0xf2] sm:$0xff]
      %v1514 = vld [vmem:[%s938 + $0xfa] sm:$0xff]
      %v1515 = vld [vmem:[%s938 + $0x10a] sm:$0xff]
      %v1516 = vld [vmem:[%s938 + $0x112] sm:$0xff]
      %v1517 = vld [vmem:[%s938 + $0x122] sm:$0xff]
      %v1518 = vld [vmem:[%s938 + $0x12a] sm:$0xff]
      %v1519 = vld [vmem:[%s938 + $0x13a] sm:$0xff]
      %v1520 = vld [vmem:[%s938 + $0x142] sm:$0xff]
      %v1521 = vld [vmem:[%s938 + $0x152] sm:$0xff]
      %v1522 = vld [vmem:[%s938 + $0x15a] sm:$0xff]
      %v1523 = vld [vmem:[%s938 + $0x16a] sm:$0xff]
      %v1524 = vld [vmem:[%s938 + $0x172] sm:$0xff]
      %v1525 = vld [vmem:[%s1 + $0xf] sm:$0x7]
      %v1527 = vsel %vm235, %v1493, 0
      %v1530 = vsel %vm235, %v1494, 0
      %v1533 = vsel %vm235, %v1495, 0
      %v1536 = vsel %vm235, %v1496, 0
      %v1539 = vsel %vm235, %v1497, 0
      %v1542 = vsel %vm235, %v1498, 0
      %v1545 = vsel %vm235, %v1499, 0
      %v1548 = vsel %vm235, %v1500, 0
      %v1551 = vsel %vm235, %v1501, 0
      %v1554 = vsel %vm235, %v1502, 0
      %v1557 = vsel %vm235, %v1503, 0
      %v1560 = vsel %vm235, %v1504, 0
      %v1563 = vsel %vm235, %v1505, 0
      %v1566 = vsel %vm235, %v1506, 0
      %v1569 = vsel %vm235, %v1507, 0
      %v1572 = vsel %vm235, %v1508, 0
      %v1575 = vsel %vm235, %v1509, 0
      %v1578 = vsel %vm235, %v1510, 0
      %v1581 = vsel %vm235, %v1511, 0
      %v1584 = vsel %vm235, %v1512, 0
      %v1587 = vsel %vm235, %v1513, 0
      %v1590 = vsel %vm235, %v1514, 0
      %v1593 = vsel %vm235, %v1515, 0
      %v1596 = vsel %vm235, %v1516, 0
      %v1599 = vsel %vm235, %v1517, 0
      %v1602 = vsel %vm235, %v1518, 0
      %v1605 = vsel %vm235, %v1519, 0
      %v1608 = vsel %vm235, %v1520, 0
      %v1611 = vsel %vm235, %v1521, 0
      %v1614 = vsel %vm235, %v1522, 0
      %v1617 = vsel %vm235, %v1523, 0
      %v1620 = vsel %vm235, %v1524, 0
      %v1623 = vsel %vm332, %v1525, 0
      %1625 = vmatpush.msra.mxu0 0.0
      %1626 = vmatpush.msra.mxu0 0.0
      %1627 = vmatpush.msra.mxu0 0.0
      %1628 = vmatpush.msra.mxu0 0.0
      %1629 = vmatpush.msra.mxu0 0.0
      %1630 = vmatpush.msra.mxu0 0.0
      %1631 = vmatpush.msra.mxu0 0.0
      %1632 = vmatpush.msra.mxu0 0.0
      %1633 = vmatpush.msra.mxu0 0.0
      %1634 = vmatpush.msra.mxu0 0.0
      %1635 = vmatpush.msra.mxu0 0.0
      %1636 = vmatpush.msra.mxu0 0.0
      %1637 = vmatpush.msra.mxu0 0.0
      %1638 = vmatpush.msra.mxu0 0.0
      %1639 = vmatpush.msra.mxu0 0.0
      %1640 = vmatpush.msra.mxu0 %v1623
      %1641 = vmatmul.f32.gmra.mxu0 %v1527
      %v1642 = vpop.f32.mrf.mxu0
      %v1643 = vadd.f32 0.0, %v1642
      %1644 = vmatmul.f32.gmra.mxu0 %v1530
      %v1645 = vpop.f32.mrf.mxu0
      %v1646 = vadd.f32 0.0, %v1645
      %1647 = vmatmul.f32.gmra.mxu0 %v1533
      %v1648 = vpop.f32.mrf.mxu0
      %v1649 = vadd.f32 0.0, %v1648
      %1650 = vmatmul.f32.gmra.mxu0 %v1536
      %v1651 = vpop.f32.mrf.mxu0
      %v1652 = vadd.f32 0.0, %v1651
      %1653 = vmatmul.f32.gmra.mxu0 %v1539
      %v1654 = vpop.f32.mrf.mxu0
      %v1655 = vadd.f32 0.0, %v1654
      %1656 = vmatmul.f32.gmra.mxu0 %v1542
      %v1657 = vpop.f32.mrf.mxu0
      %v1658 = vadd.f32 0.0, %v1657
      %1659 = vmatmul.f32.gmra.mxu0 %v1545
      %v1660 = vpop.f32.mrf.mxu0
      %v1661 = vadd.f32 0.0, %v1660
      %1662 = vmatmul.f32.gmra.mxu0 %v1548
      %v1663 = vpop.f32.mrf.mxu0
      %v1664 = vadd.f32 0.0, %v1663
      %1665 = vmatmul.f32.gmra.mxu0 %v1551
      %v1666 = vpop.f32.mrf.mxu0
      %v1667 = vadd.f32 0.0, %v1666
      %1668 = vmatmul.f32.gmra.mxu0 %v1554
      %v1669 = vpop.f32.mrf.mxu0
      %v1670 = vadd.f32 0.0, %v1669
      %1671 = vmatmul.f32.gmra.mxu0 %v1557
      %v1672 = vpop.f32.mrf.mxu0
      %v1673 = vadd.f32 0.0, %v1672
      %1674 = vmatmul.f32.gmra.mxu0 %v1560
      %v1675 = vpop.f32.mrf.mxu0
      %v1676 = vadd.f32 0.0, %v1675
      %1677 = vmatmul.f32.gmra.mxu0 %v1563
      %v1678 = vpop.f32.mrf.mxu0
      %v1679 = vadd.f32 0.0, %v1678
      %1680 = vmatmul.f32.gmra.mxu0 %v1566
      %v1681 = vpop.f32.mrf.mxu0
      %v1682 = vadd.f32 0.0, %v1681
      %1683 = vmatmul.f32.gmra.mxu0 %v1569
      %v1684 = vpop.f32.mrf.mxu0
      %v1685 = vadd.f32 0.0, %v1684
      %1686 = vmatmul.f32.gmra.mxu0 %v1572
      %v1687 = vpop.f32.mrf.mxu0
      %v1688 = vadd.f32 0.0, %v1687
      %1689 = vmatmul.f32.gmra.mxu0 %v1575
      %v1690 = vpop.f32.mrf.mxu0
      %v1691 = vadd.f32 0.0, %v1690
      %1692 = vmatmul.f32.gmra.mxu0 %v1578
      %v1693 = vpop.f32.mrf.mxu0
      %v1694 = vadd.f32 0.0, %v1693
      %1695 = vmatmul.f32.gmra.mxu0 %v1581
      %v1696 = vpop.f32.mrf.mxu0
      %v1697 = vadd.f32 0.0, %v1696
      %1698 = vmatmul.f32.gmra.mxu0 %v1584
      %v1699 = vpop.f32.mrf.mxu0
      %v1700 = vadd.f32 0.0, %v1699
      %1701 = vmatmul.f32.gmra.mxu0 %v1587
      %v1702 = vpop.f32.mrf.mxu0
      %v1703 = vadd.f32 0.0, %v1702
      %1704 = vmatmul.f32.gmra.mxu0 %v1590
      %v1705 = vpop.f32.mrf.mxu0
      %v1706 = vadd.f32 0.0, %v1705
      %1707 = vmatmul.f32.gmra.mxu0 %v1593
      %v1708 = vpop.f32.mrf.mxu0
      %v1709 = vadd.f32 0.0, %v1708
      %1710 = vmatmul.f32.gmra.mxu0 %v1596
      %v1711 = vpop.f32.mrf.mxu0
      %v1712 = vadd.f32 0.0, %v1711
      %1713 = vmatmul.f32.gmra.mxu0 %v1599
      %v1714 = vpop.f32.mrf.mxu0
      %v1715 = vadd.f32 0.0, %v1714
      %1716 = vmatmul.f32.gmra.mxu0 %v1602
      %v1717 = vpop.f32.mrf.mxu0
      %v1718 = vadd.f32 0.0, %v1717
      %1719 = vmatmul.f32.gmra.mxu0 %v1605
      %v1720 = vpop.f32.mrf.mxu0
      %v1721 = vadd.f32 0.0, %v1720
      %1722 = vmatmul.f32.gmra.mxu0 %v1608
      %v1723 = vpop.f32.mrf.mxu0
      %v1724 = vadd.f32 0.0, %v1723
      %1725 = vmatmul.f32.gmra.mxu0 %v1611
      %v1726 = vpop.f32.mrf.mxu0
      %v1727 = vadd.f32 0.0, %v1726
      %1728 = vmatmul.f32.gmra.mxu0 %v1614
      %v1729 = vpop.f32.mrf.mxu0
      %v1730 = vadd.f32 0.0, %v1729
      %1731 = vmatmul.f32.gmra.mxu0 %v1617
      %v1732 = vpop.f32.mrf.mxu0
      %v1733 = vadd.f32 0.0, %v1732
      %1734 = vmatmul.f32.gmra.mxu0 %v1620
      %v1735 = vpop.f32.mrf.mxu0
      %v1736 = vadd.f32 0.0, %v1735
      %1737 = vdwg.mxu0
      %v1738 = vadd.f32 %v1461, %v1643
      %v1739 = vadd.f32 %v1462, %v1646
      %v1740 = vadd.f32 %v1463, %v1649
      %v1741 = vadd.f32 %v1464, %v1652
      %v1742 = vadd.f32 %v1465, %v1655
      %v1743 = vadd.f32 %v1466, %v1658
      %v1744 = vadd.f32 %v1467, %v1661
      %v1745 = vadd.f32 %v1468, %v1664
      %v1746 = vadd.f32 %v1469, %v1667
      %v1747 = vadd.f32 %v1470, %v1670
      %v1748 = vadd.f32 %v1471, %v1673
      %v1749 = vadd.f32 %v1472, %v1676
      %v1750 = vadd.f32 %v1473, %v1679
      %v1751 = vadd.f32 %v1474, %v1682
      %v1752 = vadd.f32 %v1475, %v1685
      %v1753 = vadd.f32 %v1476, %v1688
      %v1754 = vadd.f32 %v1477, %v1691
      %v1755 = vadd.f32 %v1478, %v1694
      %v1756 = vadd.f32 %v1479, %v1697
      %v1757 = vadd.f32 %v1480, %v1700
      %v1758 = vadd.f32 %v1481, %v1703
      %v1759 = vadd.f32 %v1482, %v1706
      %v1760 = vadd.f32 %v1483, %v1709
      %v1761 = vadd.f32 %v1484, %v1712
      %v1762 = vadd.f32 %v1485, %v1715
      %v1763 = vadd.f32 %v1486, %v1718
      %v1764 = vadd.f32 %v1487, %v1721
      %v1765 = vadd.f32 %v1488, %v1724
      %v1766 = vadd.f32 %v1489, %v1727
      %v1767 = vadd.f32 %v1490, %v1730
      %v1768 = vadd.f32 %v1491, %v1733
      %v1769 = vadd.f32 %v1492, %v1736
      %s1770 = scalar_lea.vmem %s163, 48
      %v1771 = vld [vmem:[%s1770] sm:$0xff]
      %v1772 = vld [vmem:[%s1770 + $0x8] sm:$0xff]
      %v1773 = vld [vmem:[%s1770 + $0x18] sm:$0xff]
      %v1774 = vld [vmem:[%s1770 + $0x20] sm:$0xff]
      %v1775 = vld [vmem:[%s1770 + $0x30] sm:$0xff]
      %v1776 = vld [vmem:[%s1770 + $0x38] sm:$0xff]
      %v1777 = vld [vmem:[%s1770 + $0x48] sm:$0xff]
      %v1778 = vld [vmem:[%s1770 + $0x50] sm:$0xff]
      %v1779 = vld [vmem:[%s1770 + $0x60] sm:$0xff]
      %v1780 = vld [vmem:[%s1770 + $0x68] sm:$0xff]
      %v1781 = vld [vmem:[%s1770 + $0x78] sm:$0xff]
      %v1782 = vld [vmem:[%s1770 + $0x80] sm:$0xff]
      %v1783 = vld [vmem:[%s1770 + $0x90] sm:$0xff]
      %v1784 = vld [vmem:[%s1770 + $0x98] sm:$0xff]
      %v1785 = vld [vmem:[%s1770 + $0xa8] sm:$0xff]
      %v1786 = vld [vmem:[%s1770 + $0xb0] sm:$0xff]
      %v1787 = vld [vmem:[%s1770 + $0xc0] sm:$0xff]
      %v1788 = vld [vmem:[%s1770 + $0xc8] sm:$0xff]
      %v1789 = vld [vmem:[%s1770 + $0xd8] sm:$0xff]
      %v1790 = vld [vmem:[%s1770 + $0xe0] sm:$0xff]
      %v1791 = vld [vmem:[%s1770 + $0xf0] sm:$0xff]
      %v1792 = vld [vmem:[%s1770 + $0xf8] sm:$0xff]
      %v1793 = vld [vmem:[%s1770 + $0x108] sm:$0xff]
      %v1794 = vld [vmem:[%s1770 + $0x110] sm:$0xff]
      %v1795 = vld [vmem:[%s1770 + $0x120] sm:$0xff]
      %v1796 = vld [vmem:[%s1770 + $0x128] sm:$0xff]
      %v1797 = vld [vmem:[%s1770 + $0x138] sm:$0xff]
      %v1798 = vld [vmem:[%s1770 + $0x140] sm:$0xff]
      %v1799 = vld [vmem:[%s1770 + $0x150] sm:$0xff]
      %v1800 = vld [vmem:[%s1770 + $0x158] sm:$0xff]
      %v1801 = vld [vmem:[%s1770 + $0x168] sm:$0xff]
      %v1802 = vld [vmem:[%s1770 + $0x170] sm:$0xff]
      %v1803 = vld [vmem:[%s1 + $0x12] sm:$0x7]
      %v1805 = vsel %vm235, %v1771, 0
      %v1808 = vsel %vm235, %v1772, 0
      %v1811 = vsel %vm235, %v1773, 0
      %v1814 = vsel %vm235, %v1774, 0
      %v1817 = vsel %vm235, %v1775, 0
      %v1820 = vsel %vm235, %v1776, 0
      %v1823 = vsel %vm235, %v1777, 0
      %v1826 = vsel %vm235, %v1778, 0
      %v1829 = vsel %vm235, %v1779, 0
      %v1832 = vsel %vm235, %v1780, 0
      %v1835 = vsel %vm235, %v1781, 0
      %v1838 = vsel %vm235, %v1782, 0
      %v1841 = vsel %vm235, %v1783, 0
      %v1844 = vsel %vm235, %v1784, 0
      %v1847 = vsel %vm235, %v1785, 0
      %v1850 = vsel %vm235, %v1786, 0
      %v1853 = vsel %vm235, %v1787, 0
      %v1856 = vsel %vm235, %v1788, 0
      %v1859 = vsel %vm235, %v1789, 0
      %v1862 = vsel %vm235, %v1790, 0
      %v1865 = vsel %vm235, %v1791, 0
      %v1868 = vsel %vm235, %v1792, 0
      %v1871 = vsel %vm235, %v1793, 0
      %v1874 = vsel %vm235, %v1794, 0
      %v1877 = vsel %vm235, %v1795, 0
      %v1880 = vsel %vm235, %v1796, 0
      %v1883 = vsel %vm235, %v1797, 0
      %v1886 = vsel %vm235, %v1798, 0
      %v1889 = vsel %vm235, %v1799, 0
      %v1892 = vsel %vm235, %v1800, 0
      %v1895 = vsel %vm235, %v1801, 0
      %v1898 = vsel %vm235, %v1802, 0
      %v1901 = vsel %vm332, %v1803, 0
      %1903 = vmatpush.msra.mxu0 0.0
      %1904 = vmatpush.msra.mxu0 0.0
      %1905 = vmatpush.msra.mxu0 0.0
      %1906 = vmatpush.msra.mxu0 0.0
      %1907 = vmatpush.msra.mxu0 0.0
      %1908 = vmatpush.msra.mxu0 0.0
      %1909 = vmatpush.msra.mxu0 0.0
      %1910 = vmatpush.msra.mxu0 0.0
      %1911 = vmatpush.msra.mxu0 0.0
      %1912 = vmatpush.msra.mxu0 0.0
      %1913 = vmatpush.msra.mxu0 0.0
      %1914 = vmatpush.msra.mxu0 0.0
      %1915 = vmatpush.msra.mxu0 0.0
      %1916 = vmatpush.msra.mxu0 0.0
      %1917 = vmatpush.msra.mxu0 0.0
      %1918 = vmatpush.msra.mxu0 %v1901
      %1919 = vmatmul.f32.gmra.mxu0 %v1805
      %v1920 = vpop.f32.mrf.mxu0
      %v1921 = vadd.f32 0.0, %v1920
      %1922 = vmatmul.f32.gmra.mxu0 %v1808
      %v1923 = vpop.f32.mrf.mxu0
      %v1924 = vadd.f32 0.0, %v1923
      %1925 = vmatmul.f32.gmra.mxu0 %v1811
      %v1926 = vpop.f32.mrf.mxu0
      %v1927 = vadd.f32 0.0, %v1926
      %1928 = vmatmul.f32.gmra.mxu0 %v1814
      %v1929 = vpop.f32.mrf.mxu0
      %v1930 = vadd.f32 0.0, %v1929
      %1931 = vmatmul.f32.gmra.mxu0 %v1817
      %v1932 = vpop.f32.mrf.mxu0
      %v1933 = vadd.f32 0.0, %v1932
      %1934 = vmatmul.f32.gmra.mxu0 %v1820
      %v1935 = vpop.f32.mrf.mxu0
      %v1936 = vadd.f32 0.0, %v1935
      %1937 = vmatmul.f32.gmra.mxu0 %v1823
      %v1938 = vpop.f32.mrf.mxu0
      %v1939 = vadd.f32 0.0, %v1938
      %1940 = vmatmul.f32.gmra.mxu0 %v1826
      %v1941 = vpop.f32.mrf.mxu0
      %v1942 = vadd.f32 0.0, %v1941
      %1943 = vmatmul.f32.gmra.mxu0 %v1829
      %v1944 = vpop.f32.mrf.mxu0
      %v1945 = vadd.f32 0.0, %v1944
      %1946 = vmatmul.f32.gmra.mxu0 %v1832
      %v1947 = vpop.f32.mrf.mxu0
      %v1948 = vadd.f32 0.0, %v1947
      %1949 = vmatmul.f32.gmra.mxu0 %v1835
      %v1950 = vpop.f32.mrf.mxu0
      %v1951 = vadd.f32 0.0, %v1950
      %1952 = vmatmul.f32.gmra.mxu0 %v1838
      %v1953 = vpop.f32.mrf.mxu0
      %v1954 = vadd.f32 0.0, %v1953
      %1955 = vmatmul.f32.gmra.mxu0 %v1841
      %v1956 = vpop.f32.mrf.mxu0
      %v1957 = vadd.f32 0.0, %v1956
      %1958 = vmatmul.f32.gmra.mxu0 %v1844
      %v1959 = vpop.f32.mrf.mxu0
      %v1960 = vadd.f32 0.0, %v1959
      %1961 = vmatmul.f32.gmra.mxu0 %v1847
      %v1962 = vpop.f32.mrf.mxu0
      %v1963 = vadd.f32 0.0, %v1962
      %1964 = vmatmul.f32.gmra.mxu0 %v1850
      %v1965 = vpop.f32.mrf.mxu0
      %v1966 = vadd.f32 0.0, %v1965
      %1967 = vmatmul.f32.gmra.mxu0 %v1853
      %v1968 = vpop.f32.mrf.mxu0
      %v1969 = vadd.f32 0.0, %v1968
      %1970 = vmatmul.f32.gmra.mxu0 %v1856
      %v1971 = vpop.f32.mrf.mxu0
      %v1972 = vadd.f32 0.0, %v1971
      %1973 = vmatmul.f32.gmra.mxu0 %v1859
      %v1974 = vpop.f32.mrf.mxu0
      %v1975 = vadd.f32 0.0, %v1974
      %1976 = vmatmul.f32.gmra.mxu0 %v1862
      %v1977 = vpop.f32.mrf.mxu0
      %v1978 = vadd.f32 0.0, %v1977
      %1979 = vmatmul.f32.gmra.mxu0 %v1865
      %v1980 = vpop.f32.mrf.mxu0
      %v1981 = vadd.f32 0.0, %v1980
      %1982 = vmatmul.f32.gmra.mxu0 %v1868
      %v1983 = vpop.f32.mrf.mxu0
      %v1984 = vadd.f32 0.0, %v1983
      %1985 = vmatmul.f32.gmra.mxu0 %v1871
      %v1986 = vpop.f32.mrf.mxu0
      %v1987 = vadd.f32 0.0, %v1986
      %1988 = vmatmul.f32.gmra.mxu0 %v1874
      %v1989 = vpop.f32.mrf.mxu0
      %v1990 = vadd.f32 0.0, %v1989
      %1991 = vmatmul.f32.gmra.mxu0 %v1877
      %v1992 = vpop.f32.mrf.mxu0
      %v1993 = vadd.f32 0.0, %v1992
      %1994 = vmatmul.f32.gmra.mxu0 %v1880
      %v1995 = vpop.f32.mrf.mxu0
      %v1996 = vadd.f32 0.0, %v1995
      %1997 = vmatmul.f32.gmra.mxu0 %v1883
      %v1998 = vpop.f32.mrf.mxu0
      %v1999 = vadd.f32 0.0, %v1998
      %2000 = vmatmul.f32.gmra.mxu0 %v1886
      %v2001 = vpop.f32.mrf.mxu0
      %v2002 = vadd.f32 0.0, %v2001
      %2003 = vmatmul.f32.gmra.mxu0 %v1889
      %v2004 = vpop.f32.mrf.mxu0
      %v2005 = vadd.f32 0.0, %v2004
      %2006 = vmatmul.f32.gmra.mxu0 %v1892
      %v2007 = vpop.f32.mrf.mxu0
      %v2008 = vadd.f32 0.0, %v2007
      %2009 = vmatmul.f32.gmra.mxu0 %v1895
      %v2010 = vpop.f32.mrf.mxu0
      %v2011 = vadd.f32 0.0, %v2010
      %2012 = vmatmul.f32.gmra.mxu0 %v1898
      %v2013 = vpop.f32.mrf.mxu0
      %v2014 = vadd.f32 0.0, %v2013
      %2015 = vdwg.mxu0
      %v2016 = vadd.f32 %v1738, %v1921
      %v2017 = vadd.f32 %v1739, %v1924
      %v2018 = vadd.f32 %v1740, %v1927
      %v2019 = vadd.f32 %v1741, %v1930
      %v2020 = vadd.f32 %v1742, %v1933
      %v2021 = vadd.f32 %v1743, %v1936
      %v2022 = vadd.f32 %v1744, %v1939
      %v2023 = vadd.f32 %v1745, %v1942
      %v2024 = vadd.f32 %v1746, %v1945
      %v2025 = vadd.f32 %v1747, %v1948
      %v2026 = vadd.f32 %v1748, %v1951
      %v2027 = vadd.f32 %v1749, %v1954
      %v2028 = vadd.f32 %v1750, %v1957
      %v2029 = vadd.f32 %v1751, %v1960
      %v2030 = vadd.f32 %v1752, %v1963
      %v2031 = vadd.f32 %v1753, %v1966
      %v2032 = vadd.f32 %v1754, %v1969
      %v2033 = vadd.f32 %v1755, %v1972
      %v2034 = vadd.f32 %v1756, %v1975
      %v2035 = vadd.f32 %v1757, %v1978
      %v2036 = vadd.f32 %v1758, %v1981
      %v2037 = vadd.f32 %v1759, %v1984
      %v2038 = vadd.f32 %v1760, %v1987
      %v2039 = vadd.f32 %v1761, %v1990
      %v2040 = vadd.f32 %v1762, %v1993
      %v2041 = vadd.f32 %v1763, %v1996
      %v2042 = vadd.f32 %v1764, %v1999
      %v2043 = vadd.f32 %v1765, %v2002
      %v2044 = vadd.f32 %v1766, %v2005
      %v2045 = vadd.f32 %v1767, %v2008
      %v2046 = vadd.f32 %v1768, %v2011
      %v2047 = vadd.f32 %v1769, %v2014
      %v2048 = vld [vmem:[%s1770 + $0x1] sm:$0xff]
      %v2049 = vld [vmem:[%s1770 + $0x9] sm:$0xff]
      %v2050 = vld [vmem:[%s1770 + $0x19] sm:$0xff]
      %v2051 = vld [vmem:[%s1770 + $0x21] sm:$0xff]
      %v2052 = vld [vmem:[%s1770 + $0x31] sm:$0xff]
      %v2053 = vld [vmem:[%s1770 + $0x39] sm:$0xff]
      %v2054 = vld [vmem:[%s1770 + $0x49] sm:$0xff]
      %v2055 = vld [vmem:[%s1770 + $0x51] sm:$0xff]
      %v2056 = vld [vmem:[%s1770 + $0x61] sm:$0xff]
      %v2057 = vld [vmem:[%s1770 + $0x69] sm:$0xff]
      %v2058 = vld [vmem:[%s1770 + $0x79] sm:$0xff]
      %v2059 = vld [vmem:[%s1770 + $0x81] sm:$0xff]
      %v2060 = vld [vmem:[%s1770 + $0x91] sm:$0xff]
      %v2061 = vld [vmem:[%s1770 + $0x99] sm:$0xff]
      %v2062 = vld [vmem:[%s1770 + $0xa9] sm:$0xff]
      %v2063 = vld [vmem:[%s1770 + $0xb1] sm:$0xff]
      %v2064 = vld [vmem:[%s1770 + $0xc1] sm:$0xff]
      %v2065 = vld [vmem:[%s1770 + $0xc9] sm:$0xff]
      %v2066 = vld [vmem:[%s1770 + $0xd9] sm:$0xff]
      %v2067 = vld [vmem:[%s1770 + $0xe1] sm:$0xff]
      %v2068 = vld [vmem:[%s1770 + $0xf1] sm:$0xff]
      %v2069 = vld [vmem:[%s1770 + $0xf9] sm:$0xff]
      %v2070 = vld [vmem:[%s1770 + $0x109] sm:$0xff]
      %v2071 = vld [vmem:[%s1770 + $0x111] sm:$0xff]
      %v2072 = vld [vmem:[%s1770 + $0x121] sm:$0xff]
      %v2073 = vld [vmem:[%s1770 + $0x129] sm:$0xff]
      %v2074 = vld [vmem:[%s1770 + $0x139] sm:$0xff]
      %v2075 = vld [vmem:[%s1770 + $0x141] sm:$0xff]
      %v2076 = vld [vmem:[%s1770 + $0x151] sm:$0xff]
      %v2077 = vld [vmem:[%s1770 + $0x159] sm:$0xff]
      %v2078 = vld [vmem:[%s1770 + $0x169] sm:$0xff]
      %v2079 = vld [vmem:[%s1770 + $0x171] sm:$0xff]
      %v2080 = vld [vmem:[%s1 + $0x15] sm:$0x7]
      %v2082 = vsel %vm235, %v2048, 0
      %v2085 = vsel %vm235, %v2049, 0
      %v2088 = vsel %vm235, %v2050, 0
      %v2091 = vsel %vm235, %v2051, 0
      %v2094 = vsel %vm235, %v2052, 0
      %v2097 = vsel %vm235, %v2053, 0
      %v2100 = vsel %vm235, %v2054, 0
      %v2103 = vsel %vm235, %v2055, 0
      %v2106 = vsel %vm235, %v2056, 0
      %v2109 = vsel %vm235, %v2057, 0
      %v2112 = vsel %vm235, %v2058, 0
      %v2115 = vsel %vm235, %v2059, 0
      %v2118 = vsel %vm235, %v2060, 0
      %v2121 = vsel %vm235, %v2061, 0
      %v2124 = vsel %vm235, %v2062, 0
      %v2127 = vsel %vm235, %v2063, 0
      %v2130 = vsel %vm235, %v2064, 0
      %v2133 = vsel %vm235, %v2065, 0
      %v2136 = vsel %vm235, %v2066, 0
      %v2139 = vsel %vm235, %v2067, 0
      %v2142 = vsel %vm235, %v2068, 0
      %v2145 = vsel %vm235, %v2069, 0
      %v2148 = vsel %vm235, %v2070, 0
      %v2151 = vsel %vm235, %v2071, 0
      %v2154 = vsel %vm235, %v2072, 0
      %v2157 = vsel %vm235, %v2073, 0
      %v2160 = vsel %vm235, %v2074, 0
      %v2163 = vsel %vm235, %v2075, 0
      %v2166 = vsel %vm235, %v2076, 0
      %v2169 = vsel %vm235, %v2077, 0
      %v2172 = vsel %vm235, %v2078, 0
      %v2175 = vsel %vm235, %v2079, 0
      %v2178 = vsel %vm332, %v2080, 0
      %2180 = vmatpush.msra.mxu0 0.0
      %2181 = vmatpush.msra.mxu0 0.0
      %2182 = vmatpush.msra.mxu0 0.0
      %2183 = vmatpush.msra.mxu0 0.0
      %2184 = vmatpush.msra.mxu0 0.0
      %2185 = vmatpush.msra.mxu0 0.0
      %2186 = vmatpush.msra.mxu0 0.0
      %2187 = vmatpush.msra.mxu0 0.0
      %2188 = vmatpush.msra.mxu0 0.0
      %2189 = vmatpush.msra.mxu0 0.0
      %2190 = vmatpush.msra.mxu0 0.0
      %2191 = vmatpush.msra.mxu0 0.0
      %2192 = vmatpush.msra.mxu0 0.0
      %2193 = vmatpush.msra.mxu0 0.0
      %2194 = vmatpush.msra.mxu0 0.0
      %2195 = vmatpush.msra.mxu0 %v2178
      %2196 = vmatmul.f32.gmra.mxu0 %v2082
      %v2197 = vpop.f32.mrf.mxu0
      %v2198 = vadd.f32 0.0, %v2197
      %2199 = vmatmul.f32.gmra.mxu0 %v2085
      %v2200 = vpop.f32.mrf.mxu0
      %v2201 = vadd.f32 0.0, %v2200
      %2202 = vmatmul.f32.gmra.mxu0 %v2088
      %v2203 = vpop.f32.mrf.mxu0
      %v2204 = vadd.f32 0.0, %v2203
      %2205 = vmatmul.f32.gmra.mxu0 %v2091
      %v2206 = vpop.f32.mrf.mxu0
      %v2207 = vadd.f32 0.0, %v2206
      %2208 = vmatmul.f32.gmra.mxu0 %v2094
      %v2209 = vpop.f32.mrf.mxu0
      %v2210 = vadd.f32 0.0, %v2209
      %2211 = vmatmul.f32.gmra.mxu0 %v2097
      %v2212 = vpop.f32.mrf.mxu0
      %v2213 = vadd.f32 0.0, %v2212
      %2214 = vmatmul.f32.gmra.mxu0 %v2100
      %v2215 = vpop.f32.mrf.mxu0
      %v2216 = vadd.f32 0.0, %v2215
      %2217 = vmatmul.f32.gmra.mxu0 %v2103
      %v2218 = vpop.f32.mrf.mxu0
      %v2219 = vadd.f32 0.0, %v2218
      %2220 = vmatmul.f32.gmra.mxu0 %v2106
      %v2221 = vpop.f32.mrf.mxu0
      %v2222 = vadd.f32 0.0, %v2221
      %2223 = vmatmul.f32.gmra.mxu0 %v2109
      %v2224 = vpop.f32.mrf.mxu0
      %v2225 = vadd.f32 0.0, %v2224
      %2226 = vmatmul.f32.gmra.mxu0 %v2112
      %v2227 = vpop.f32.mrf.mxu0
      %v2228 = vadd.f32 0.0, %v2227
      %2229 = vmatmul.f32.gmra.mxu0 %v2115
      %v2230 = vpop.f32.mrf.mxu0
      %v2231 = vadd.f32 0.0, %v2230
      %2232 = vmatmul.f32.gmra.mxu0 %v2118
      %v2233 = vpop.f32.mrf.mxu0
      %v2234 = vadd.f32 0.0, %v2233
      %2235 = vmatmul.f32.gmra.mxu0 %v2121
      %v2236 = vpop.f32.mrf.mxu0
      %v2237 = vadd.f32 0.0, %v2236
      %2238 = vmatmul.f32.gmra.mxu0 %v2124
      %v2239 = vpop.f32.mrf.mxu0
      %v2240 = vadd.f32 0.0, %v2239
      %2241 = vmatmul.f32.gmra.mxu0 %v2127
      %v2242 = vpop.f32.mrf.mxu0
      %v2243 = vadd.f32 0.0, %v2242
      %2244 = vmatmul.f32.gmra.mxu0 %v2130
      %v2245 = vpop.f32.mrf.mxu0
      %v2246 = vadd.f32 0.0, %v2245
      %2247 = vmatmul.f32.gmra.mxu0 %v2133
      %v2248 = vpop.f32.mrf.mxu0
      %v2249 = vadd.f32 0.0, %v2248
      %2250 = vmatmul.f32.gmra.mxu0 %v2136
      %v2251 = vpop.f32.mrf.mxu0
      %v2252 = vadd.f32 0.0, %v2251
      %2253 = vmatmul.f32.gmra.mxu0 %v2139
      %v2254 = vpop.f32.mrf.mxu0
      %v2255 = vadd.f32 0.0, %v2254
      %2256 = vmatmul.f32.gmra.mxu0 %v2142
      %v2257 = vpop.f32.mrf.mxu0
      %v2258 = vadd.f32 0.0, %v2257
      %2259 = vmatmul.f32.gmra.mxu0 %v2145
      %v2260 = vpop.f32.mrf.mxu0
      %v2261 = vadd.f32 0.0, %v2260
      %2262 = vmatmul.f32.gmra.mxu0 %v2148
      %v2263 = vpop.f32.mrf.mxu0
      %v2264 = vadd.f32 0.0, %v2263
      %2265 = vmatmul.f32.gmra.mxu0 %v2151
      %v2266 = vpop.f32.mrf.mxu0
      %v2267 = vadd.f32 0.0, %v2266
      %2268 = vmatmul.f32.gmra.mxu0 %v2154
      %v2269 = vpop.f32.mrf.mxu0
      %v2270 = vadd.f32 0.0, %v2269
      %2271 = vmatmul.f32.gmra.mxu0 %v2157
      %v2272 = vpop.f32.mrf.mxu0
      %v2273 = vadd.f32 0.0, %v2272
      %2274 = vmatmul.f32.gmra.mxu0 %v2160
      %v2275 = vpop.f32.mrf.mxu0
      %v2276 = vadd.f32 0.0, %v2275
      %2277 = vmatmul.f32.gmra.mxu0 %v2163
      %v2278 = vpop.f32.mrf.mxu0
      %v2279 = vadd.f32 0.0, %v2278
      %2280 = vmatmul.f32.gmra.mxu0 %v2166
      %v2281 = vpop.f32.mrf.mxu0
      %v2282 = vadd.f32 0.0, %v2281
      %2283 = vmatmul.f32.gmra.mxu0 %v2169
      %v2284 = vpop.f32.mrf.mxu0
      %v2285 = vadd.f32 0.0, %v2284
      %2286 = vmatmul.f32.gmra.mxu0 %v2172
      %v2287 = vpop.f32.mrf.mxu0
      %v2288 = vadd.f32 0.0, %v2287
      %2289 = vmatmul.f32.gmra.mxu0 %v2175
      %v2290 = vpop.f32.mrf.mxu0
      %v2291 = vadd.f32 0.0, %v2290
      %2292 = vdwg.mxu0
      %v2293 = vadd.f32 %v2016, %v2198
      %v2294 = vadd.f32 %v2017, %v2201
      %v2295 = vadd.f32 %v2018, %v2204
      %v2296 = vadd.f32 %v2019, %v2207
      %v2297 = vadd.f32 %v2020, %v2210
      %v2298 = vadd.f32 %v2021, %v2213
      %v2299 = vadd.f32 %v2022, %v2216
      %v2300 = vadd.f32 %v2023, %v2219
      %v2301 = vadd.f32 %v2024, %v2222
      %v2302 = vadd.f32 %v2025, %v2225
      %v2303 = vadd.f32 %v2026, %v2228
      %v2304 = vadd.f32 %v2027, %v2231
      %v2305 = vadd.f32 %v2028, %v2234
      %v2306 = vadd.f32 %v2029, %v2237
      %v2307 = vadd.f32 %v2030, %v2240
      %v2308 = vadd.f32 %v2031, %v2243
      %v2309 = vadd.f32 %v2032, %v2246
      %v2310 = vadd.f32 %v2033, %v2249
      %v2311 = vadd.f32 %v2034, %v2252
      %v2312 = vadd.f32 %v2035, %v2255
      %v2313 = vadd.f32 %v2036, %v2258
      %v2314 = vadd.f32 %v2037, %v2261
      %v2315 = vadd.f32 %v2038, %v2264
      %v2316 = vadd.f32 %v2039, %v2267
      %v2317 = vadd.f32 %v2040, %v2270
      %v2318 = vadd.f32 %v2041, %v2273
      %v2319 = vadd.f32 %v2042, %v2276
      %v2320 = vadd.f32 %v2043, %v2279
      %v2321 = vadd.f32 %v2044, %v2282
      %v2322 = vadd.f32 %v2045, %v2285
      %v2323 = vadd.f32 %v2046, %v2288
      %v2324 = vadd.f32 %v2047, %v2291
      %v2325 = vld [vmem:[%s1770 + $0x2] sm:$0xff]
      %v2326 = vld [vmem:[%s1770 + $0xa] sm:$0xff]
      %v2327 = vld [vmem:[%s1770 + $0x1a] sm:$0xff]
      %v2328 = vld [vmem:[%s1770 + $0x22] sm:$0xff]
      %v2329 = vld [vmem:[%s1770 + $0x32] sm:$0xff]
      %v2330 = vld [vmem:[%s1770 + $0x3a] sm:$0xff]
      %v2331 = vld [vmem:[%s1770 + $0x4a] sm:$0xff]
      %v2332 = vld [vmem:[%s1770 + $0x52] sm:$0xff]
      %v2333 = vld [vmem:[%s1770 + $0x62] sm:$0xff]
      %v2334 = vld [vmem:[%s1770 + $0x6a] sm:$0xff]
      %v2335 = vld [vmem:[%s1770 + $0x7a] sm:$0xff]
      %v2336 = vld [vmem:[%s1770 + $0x82] sm:$0xff]
      %v2337 = vld [vmem:[%s1770 + $0x92] sm:$0xff]
      %v2338 = vld [vmem:[%s1770 + $0x9a] sm:$0xff]
      %v2339 = vld [vmem:[%s1770 + $0xaa] sm:$0xff]
      %v2340 = vld [vmem:[%s1770 + $0xb2] sm:$0xff]
      %v2341 = vld [vmem:[%s1770 + $0xc2] sm:$0xff]
      %v2342 = vld [vmem:[%s1770 + $0xca] sm:$0xff]
      %v2343 = vld [vmem:[%s1770 + $0xda] sm:$0xff]
      %v2344 = vld [vmem:[%s1770 + $0xe2] sm:$0xff]
      %v2345 = vld [vmem:[%s1770 + $0xf2] sm:$0xff]
      %v2346 = vld [vmem:[%s1770 + $0xfa] sm:$0xff]
      %v2347 = vld [vmem:[%s1770 + $0x10a] sm:$0xff]
      %v2348 = vld [vmem:[%s1770 + $0x112] sm:$0xff]
      %v2349 = vld [vmem:[%s1770 + $0x122] sm:$0xff]
      %v2350 = vld [vmem:[%s1770 + $0x12a] sm:$0xff]
      %v2351 = vld [vmem:[%s1770 + $0x13a] sm:$0xff]
      %v2352 = vld [vmem:[%s1770 + $0x142] sm:$0xff]
      %v2353 = vld [vmem:[%s1770 + $0x152] sm:$0xff]
      %v2354 = vld [vmem:[%s1770 + $0x15a] sm:$0xff]
      %v2355 = vld [vmem:[%s1770 + $0x16a] sm:$0xff]
      %v2356 = vld [vmem:[%s1770 + $0x172] sm:$0xff]
      %v2357 = vld [vmem:[%s1 + $0x18] sm:$0x7]
      %v2359 = vsel %vm235, %v2325, 0
      %v2362 = vsel %vm235, %v2326, 0
      %v2365 = vsel %vm235, %v2327, 0
      %v2368 = vsel %vm235, %v2328, 0
      %v2371 = vsel %vm235, %v2329, 0
      %v2374 = vsel %vm235, %v2330, 0
      %v2377 = vsel %vm235, %v2331, 0
      %v2380 = vsel %vm235, %v2332, 0
      %v2383 = vsel %vm235, %v2333, 0
      %v2386 = vsel %vm235, %v2334, 0
      %v2389 = vsel %vm235, %v2335, 0
      %v2392 = vsel %vm235, %v2336, 0
      %v2395 = vsel %vm235, %v2337, 0
      %v2398 = vsel %vm235, %v2338, 0
      %v2401 = vsel %vm235, %v2339, 0
      %v2404 = vsel %vm235, %v2340, 0
      %v2407 = vsel %vm235, %v2341, 0
      %v2410 = vsel %vm235, %v2342, 0
      %v2413 = vsel %vm235, %v2343, 0
      %v2416 = vsel %vm235, %v2344, 0
      %v2419 = vsel %vm235, %v2345, 0
      %v2422 = vsel %vm235, %v2346, 0
      %v2425 = vsel %vm235, %v2347, 0
      %v2428 = vsel %vm235, %v2348, 0
      %v2431 = vsel %vm235, %v2349, 0
      %v2434 = vsel %vm235, %v2350, 0
      %v2437 = vsel %vm235, %v2351, 0
      %v2440 = vsel %vm235, %v2352, 0
      %v2443 = vsel %vm235, %v2353, 0
      %v2446 = vsel %vm235, %v2354, 0
      %v2449 = vsel %vm235, %v2355, 0
      %v2452 = vsel %vm235, %v2356, 0
      %v2455 = vsel %vm332, %v2357, 0
      %2457 = vmatpush.msra.mxu0 0.0
      %2458 = vmatpush.msra.mxu0 0.0
      %2459 = vmatpush.msra.mxu0 0.0
      %2460 = vmatpush.msra.mxu0 0.0
      %2461 = vmatpush.msra.mxu0 0.0
      %2462 = vmatpush.msra.mxu0 0.0
      %2463 = vmatpush.msra.mxu0 0.0
      %2464 = vmatpush.msra.mxu0 0.0
      %2465 = vmatpush.msra.mxu0 0.0
      %2466 = vmatpush.msra.mxu0 0.0
      %2467 = vmatpush.msra.mxu0 0.0
      %2468 = vmatpush.msra.mxu0 0.0
      %2469 = vmatpush.msra.mxu0 0.0
      %2470 = vmatpush.msra.mxu0 0.0
      %2471 = vmatpush.msra.mxu0 0.0
      %2472 = vmatpush.msra.mxu0 %v2455
      %2473 = vmatmul.f32.gmra.mxu0 %v2359
      %v2474 = vpop.f32.mrf.mxu0
      %v2475 = vadd.f32 0.0, %v2474
      %2476 = vmatmul.f32.gmra.mxu0 %v2362
      %v2477 = vpop.f32.mrf.mxu0
      %v2478 = vadd.f32 0.0, %v2477
      %2479 = vmatmul.f32.gmra.mxu0 %v2365
      %v2480 = vpop.f32.mrf.mxu0
      %v2481 = vadd.f32 0.0, %v2480
      %2482 = vmatmul.f32.gmra.mxu0 %v2368
      %v2483 = vpop.f32.mrf.mxu0
      %v2484 = vadd.f32 0.0, %v2483
      %2485 = vmatmul.f32.gmra.mxu0 %v2371
      %v2486 = vpop.f32.mrf.mxu0
      %v2487 = vadd.f32 0.0, %v2486
      %2488 = vmatmul.f32.gmra.mxu0 %v2374
      %v2489 = vpop.f32.mrf.mxu0
      %v2490 = vadd.f32 0.0, %v2489
      %2491 = vmatmul.f32.gmra.mxu0 %v2377
      %v2492 = vpop.f32.mrf.mxu0
      %v2493 = vadd.f32 0.0, %v2492
      %2494 = vmatmul.f32.gmra.mxu0 %v2380
      %v2495 = vpop.f32.mrf.mxu0
      %v2496 = vadd.f32 0.0, %v2495
      %2497 = vmatmul.f32.gmra.mxu0 %v2383
      %v2498 = vpop.f32.mrf.mxu0
      %v2499 = vadd.f32 0.0, %v2498
      %2500 = vmatmul.f32.gmra.mxu0 %v2386
      %v2501 = vpop.f32.mrf.mxu0
      %v2502 = vadd.f32 0.0, %v2501
      %2503 = vmatmul.f32.gmra.mxu0 %v2389
      %v2504 = vpop.f32.mrf.mxu0
      %v2505 = vadd.f32 0.0, %v2504
      %2506 = vmatmul.f32.gmra.mxu0 %v2392
      %v2507 = vpop.f32.mrf.mxu0
      %v2508 = vadd.f32 0.0, %v2507
      %2509 = vmatmul.f32.gmra.mxu0 %v2395
      %v2510 = vpop.f32.mrf.mxu0
      %v2511 = vadd.f32 0.0, %v2510
      %2512 = vmatmul.f32.gmra.mxu0 %v2398
      %v2513 = vpop.f32.mrf.mxu0
      %v2514 = vadd.f32 0.0, %v2513
      %2515 = vmatmul.f32.gmra.mxu0 %v2401
      %v2516 = vpop.f32.mrf.mxu0
      %v2517 = vadd.f32 0.0, %v2516
      %2518 = vmatmul.f32.gmra.mxu0 %v2404
      %v2519 = vpop.f32.mrf.mxu0
      %v2520 = vadd.f32 0.0, %v2519
      %2521 = vmatmul.f32.gmra.mxu0 %v2407
      %v2522 = vpop.f32.mrf.mxu0
      %v2523 = vadd.f32 0.0, %v2522
      %2524 = vmatmul.f32.gmra.mxu0 %v2410
      %v2525 = vpop.f32.mrf.mxu0
      %v2526 = vadd.f32 0.0, %v2525
      %2527 = vmatmul.f32.gmra.mxu0 %v2413
      %v2528 = vpop.f32.mrf.mxu0
      %v2529 = vadd.f32 0.0, %v2528
      %2530 = vmatmul.f32.gmra.mxu0 %v2416
      %v2531 = vpop.f32.mrf.mxu0
      %v2532 = vadd.f32 0.0, %v2531
      %2533 = vmatmul.f32.gmra.mxu0 %v2419
      %v2534 = vpop.f32.mrf.mxu0
      %v2535 = vadd.f32 0.0, %v2534
      %2536 = vmatmul.f32.gmra.mxu0 %v2422
      %v2537 = vpop.f32.mrf.mxu0
      %v2538 = vadd.f32 0.0, %v2537
      %2539 = vmatmul.f32.gmra.mxu0 %v2425
      %v2540 = vpop.f32.mrf.mxu0
      %v2541 = vadd.f32 0.0, %v2540
      %2542 = vmatmul.f32.gmra.mxu0 %v2428
      %v2543 = vpop.f32.mrf.mxu0
      %v2544 = vadd.f32 0.0, %v2543
      %2545 = vmatmul.f32.gmra.mxu0 %v2431
      %v2546 = vpop.f32.mrf.mxu0
      %v2547 = vadd.f32 0.0, %v2546
      %2548 = vmatmul.f32.gmra.mxu0 %v2434
      %v2549 = vpop.f32.mrf.mxu0
      %v2550 = vadd.f32 0.0, %v2549
      %2551 = vmatmul.f32.gmra.mxu0 %v2437
      %v2552 = vpop.f32.mrf.mxu0
      %v2553 = vadd.f32 0.0, %v2552
      %2554 = vmatmul.f32.gmra.mxu0 %v2440
      %v2555 = vpop.f32.mrf.mxu0
      %v2556 = vadd.f32 0.0, %v2555
      %2557 = vmatmul.f32.gmra.mxu0 %v2443
      %v2558 = vpop.f32.mrf.mxu0
      %v2559 = vadd.f32 0.0, %v2558
      %2560 = vmatmul.f32.gmra.mxu0 %v2446
      %v2561 = vpop.f32.mrf.mxu0
      %v2562 = vadd.f32 0.0, %v2561
      %2563 = vmatmul.f32.gmra.mxu0 %v2449
      %v2564 = vpop.f32.mrf.mxu0
      %v2565 = vadd.f32 0.0, %v2564
      %2566 = vmatmul.f32.gmra.mxu0 %v2452
      %v2567 = vpop.f32.mrf.mxu0
      %v2568 = vadd.f32 0.0, %v2567
      %2569 = vdwg.mxu0
      %v2570 = vadd.f32 %v2293, %v2475
      %v2571 = vadd.f32 %v2294, %v2478
      %v2572 = vadd.f32 %v2295, %v2481
      %v2573 = vadd.f32 %v2296, %v2484
      %v2574 = vadd.f32 %v2297, %v2487
      %v2575 = vadd.f32 %v2298, %v2490
      %v2576 = vadd.f32 %v2299, %v2493
      %v2577 = vadd.f32 %v2300, %v2496
      %v2578 = vadd.f32 %v2301, %v2499
      %v2579 = vadd.f32 %v2302, %v2502
      %v2580 = vadd.f32 %v2303, %v2505
      %v2581 = vadd.f32 %v2304, %v2508
      %v2582 = vadd.f32 %v2305, %v2511
      %v2583 = vadd.f32 %v2306, %v2514
      %v2584 = vadd.f32 %v2307, %v2517
      %v2585 = vadd.f32 %v2308, %v2520
      %v2586 = vadd.f32 %v2309, %v2523
      %v2587 = vadd.f32 %v2310, %v2526
      %v2588 = vadd.f32 %v2311, %v2529
      %v2589 = vadd.f32 %v2312, %v2532
      %v2590 = vadd.f32 %v2313, %v2535
      %v2591 = vadd.f32 %v2314, %v2538
      %v2592 = vadd.f32 %v2315, %v2541
      %v2593 = vadd.f32 %v2316, %v2544
      %v2594 = vadd.f32 %v2317, %v2547
      %v2595 = vadd.f32 %v2318, %v2550
      %v2596 = vadd.f32 %v2319, %v2553
      %v2597 = vadd.f32 %v2320, %v2556
      %v2598 = vadd.f32 %v2321, %v2559
      %v2599 = vadd.f32 %v2322, %v2562
      %v2600 = vadd.f32 %v2323, %v2565
      %v2601 = vadd.f32 %v2324, %v2568
      %vm2602 = vcmask 261120
      %2603 = vst.msk [vmem:[%s168] sm:$0xff] %vm2602, %v2570
      %2604 = vst.msk [vmem:[%s168 + $0x8] sm:$0xff] %vm2602, %v2571
      %2605 = vst.msk [vmem:[%s168 + $0x10] sm:$0xff] %vm2602, %v2572
      %2606 = vst.msk [vmem:[%s168 + $0x18] sm:$0xff] %vm2602, %v2573
      %2607 = vst.msk [vmem:[%s168 + $0x20] sm:$0xff] %vm2602, %v2574
      %2608 = vst.msk [vmem:[%s168 + $0x28] sm:$0xff] %vm2602, %v2575
      %2609 = vst.msk [vmem:[%s168 + $0x30] sm:$0xff] %vm2602, %v2576
      %2610 = vst.msk [vmem:[%s168 + $0x38] sm:$0xff] %vm2602, %v2577
      %2611 = vst.msk [vmem:[%s168 + $0x40] sm:$0xff] %vm2602, %v2578
      %2612 = vst.msk [vmem:[%s168 + $0x48] sm:$0xff] %vm2602, %v2579
      %2613 = vst.msk [vmem:[%s168 + $0x50] sm:$0xff] %vm2602, %v2580
      %2614 = vst.msk [vmem:[%s168 + $0x58] sm:$0xff] %vm2602, %v2581
      %2615 = vst.msk [vmem:[%s168 + $0x60] sm:$0xff] %vm2602, %v2582
      %2616 = vst.msk [vmem:[%s168 + $0x68] sm:$0xff] %vm2602, %v2583
      %2617 = vst.msk [vmem:[%s168 + $0x70] sm:$0xff] %vm2602, %v2584
      %2618 = vst.msk [vmem:[%s168 + $0x78] sm:$0xff] %vm2602, %v2585
      %2619 = vst.msk [vmem:[%s168 + $0x80] sm:$0xff] %vm2602, %v2586
      %2620 = vst.msk [vmem:[%s168 + $0x88] sm:$0xff] %vm2602, %v2587
      %2621 = vst.msk [vmem:[%s168 + $0x90] sm:$0xff] %vm2602, %v2588
      %2622 = vst.msk [vmem:[%s168 + $0x98] sm:$0xff] %vm2602, %v2589
      %2623 = vst.msk [vmem:[%s168 + $0xa0] sm:$0xff] %vm2602, %v2590
      %2624 = vst.msk [vmem:[%s168 + $0xa8] sm:$0xff] %vm2602, %v2591
      %2625 = vst.msk [vmem:[%s168 + $0xb0] sm:$0xff] %vm2602, %v2592
      %2626 = vst.msk [vmem:[%s168 + $0xb8] sm:$0xff] %vm2602, %v2593
      %2627 = vst.msk [vmem:[%s168 + $0xc0] sm:$0xff] %vm2602, %v2594
      %2628 = vst.msk [vmem:[%s168 + $0xc8] sm:$0xff] %vm2602, %v2595
      %2629 = vst.msk [vmem:[%s168 + $0xd0] sm:$0xff] %vm2602, %v2596
      %2630 = vst.msk [vmem:[%s168 + $0xd8] sm:$0xff] %vm2602, %v2597
      %2631 = vst.msk [vmem:[%s168 + $0xe0] sm:$0xff] %vm2602, %v2598
      %2632 = vst.msk [vmem:[%s168 + $0xe8] sm:$0xff] %vm2602, %v2599
      %2633 = vst.msk [vmem:[%s168 + $0xf0] sm:$0xff] %vm2602, %v2600
      %2634 = vst.msk [vmem:[%s168 + $0xf8] sm:$0xff] %vm2602, %v2601
      %v2635 = vsel %vm2602, %v2570, 0.0
      %v2636 = vsel %vm2602, %v2571, 0.0
      %v2637 = vadd.f32 %v2635, %v2636
      %v2638 = vsel %vm2602, %v2572, 0.0
      %v2639 = vadd.f32 %v2637, %v2638
      %v2640 = vsel %vm2602, %v2573, 0.0
      %v2641 = vadd.f32 %v2639, %v2640
      %v2642 = vsel %vm2602, %v2574, 0.0
      %v2643 = vadd.f32 %v2641, %v2642
      %v2644 = vsel %vm2602, %v2575, 0.0
      %v2645 = vadd.f32 %v2643, %v2644
      %v2646 = vsel %vm2602, %v2576, 0.0
      %v2647 = vadd.f32 %v2645, %v2646
      %v2648 = vsel %vm2602, %v2577, 0.0
      %v2649 = vadd.f32 %v2647, %v2648
      %v2650 = vsel %vm2602, %v2578, 0.0
      %v2651 = vadd.f32 %v2649, %v2650
      %v2652 = vsel %vm2602, %v2579, 0.0
      %v2653 = vadd.f32 %v2651, %v2652
      %v2654 = vsel %vm2602, %v2580, 0.0
      %v2655 = vadd.f32 %v2653, %v2654
      %v2656 = vsel %vm2602, %v2581, 0.0
      %v2657 = vadd.f32 %v2655, %v2656
      %v2658 = vsel %vm2602, %v2582, 0.0
      %v2659 = vadd.f32 %v2657, %v2658
      %v2660 = vsel %vm2602, %v2583, 0.0
      %v2661 = vadd.f32 %v2659, %v2660
      %v2662 = vsel %vm2602, %v2584, 0.0
      %v2663 = vadd.f32 %v2661, %v2662
      %v2664 = vsel %vm2602, %v2585, 0.0
      %v2665 = vadd.f32 %v2663, %v2664
      %v2666 = vsel %vm2602, %v2586, 0.0
      %v2667 = vadd.f32 %v2665, %v2666
      %v2668 = vsel %vm2602, %v2587, 0.0
      %v2669 = vadd.f32 %v2667, %v2668
      %v2670 = vsel %vm2602, %v2588, 0.0
      %v2671 = vadd.f32 %v2669, %v2670
      %v2672 = vsel %vm2602, %v2589, 0.0
      %v2673 = vadd.f32 %v2671, %v2672
      %v2674 = vsel %vm2602, %v2590, 0.0
      %v2675 = vadd.f32 %v2673, %v2674
      %v2676 = vsel %vm2602, %v2591, 0.0
      %v2677 = vadd.f32 %v2675, %v2676
      %v2678 = vsel %vm2602, %v2592, 0.0
      %v2679 = vadd.f32 %v2677, %v2678
      %v2680 = vsel %vm2602, %v2593, 0.0
      %v2681 = vadd.f32 %v2679, %v2680
      %v2682 = vsel %vm2602, %v2594, 0.0
      %v2683 = vadd.f32 %v2681, %v2682
      %v2684 = vsel %vm2602, %v2595, 0.0
      %v2685 = vadd.f32 %v2683, %v2684
      %v2686 = vsel %vm2602, %v2596, 0.0
      %v2687 = vadd.f32 %v2685, %v2686
      %v2688 = vsel %vm2602, %v2597, 0.0
      %v2689 = vadd.f32 %v2687, %v2688
      %v2690 = vsel %vm2602, %v2598, 0.0
      %v2691 = vadd.f32 %v2689, %v2690
      %v2692 = vsel %vm2602, %v2599, 0.0
      %v2693 = vadd.f32 %v2691, %v2692
      %v2694 = vsel %vm2602, %v2600, 0.0
      %v2695 = vadd.f32 %v2693, %v2694
      %v2696 = vsel %vm2602, %v2601, 0.0
      %v2697 = vadd.f32 %v2695, %v2696
      %v2698 = vrot.slane %v2697, 4
      %v2699 = vadd.f32 %v2697, %v2698
      %v2700 = vrot.slane %v2699, 2
      %v2701 = vadd.f32 %v2699, %v2700
      %v2702 = vrot.slane %v2701, 1
      %v2703 = vadd.f32 %v2701, %v2702
      %v2704 = vmul.f32 %v2570, %v2570
      %v2705 = vmul.f32 %v2571, %v2571
      %v2706 = vmul.f32 %v2572, %v2572
      %v2707 = vmul.f32 %v2573, %v2573
      %v2708 = vmul.f32 %v2574, %v2574
      %v2709 = vmul.f32 %v2575, %v2575
      %v2710 = vmul.f32 %v2576, %v2576
      %v2711 = vmul.f32 %v2577, %v2577
      %v2712 = vmul.f32 %v2578, %v2578
      %v2713 = vmul.f32 %v2579, %v2579
      %v2714 = vmul.f32 %v2580, %v2580
      %v2715 = vmul.f32 %v2581, %v2581
      %v2716 = vmul.f32 %v2582, %v2582
      %v2717 = vmul.f32 %v2583, %v2583
      %v2718 = vmul.f32 %v2584, %v2584
      %v2719 = vmul.f32 %v2585, %v2585
      %v2720 = vmul.f32 %v2586, %v2586
      %v2721 = vmul.f32 %v2587, %v2587
      %v2722 = vmul.f32 %v2588, %v2588
      %v2723 = vmul.f32 %v2589, %v2589
      %v2724 = vmul.f32 %v2590, %v2590
      %v2725 = vmul.f32 %v2591, %v2591
      %v2726 = vmul.f32 %v2592, %v2592
      %v2727 = vmul.f32 %v2593, %v2593
      %v2728 = vmul.f32 %v2594, %v2594
      %v2729 = vmul.f32 %v2595, %v2595
      %v2730 = vmul.f32 %v2596, %v2596
      %v2731 = vmul.f32 %v2597, %v2597
      %v2732 = vmul.f32 %v2598, %v2598
      %v2733 = vmul.f32 %v2599, %v2599
      %v2734 = vmul.f32 %v2600, %v2600
      %v2735 = vmul.f32 %v2601, %v2601
      %v2736 = vsel %vm2602, %v2704, 0.0
      %v2737 = vsel %vm2602, %v2705, 0.0
      %v2738 = vadd.f32 %v2736, %v2737
      %v2739 = vsel %vm2602, %v2706, 0.0
      %v2740 = vadd.f32 %v2738, %v2739
      %v2741 = vsel %vm2602, %v2707, 0.0
      %v2742 = vadd.f32 %v2740, %v2741
      %v2743 = vsel %vm2602, %v2708, 0.0
      %v2744 = vadd.f32 %v2742, %v2743
      %v2745 = vsel %vm2602, %v2709, 0.0
      %v2746 = vadd.f32 %v2744, %v2745
      %v2747 = vsel %vm2602, %v2710, 0.0
      %v2748 = vadd.f32 %v2746, %v2747
      %v2749 = vsel %vm2602, %v2711, 0.0
      %v2750 = vadd.f32 %v2748, %v2749
      %v2751 = vsel %vm2602, %v2712, 0.0
      %v2752 = vadd.f32 %v2750, %v2751
      %v2753 = vsel %vm2602, %v2713, 0.0
      %v2754 = vadd.f32 %v2752, %v2753
      %v2755 = vsel %vm2602, %v2714, 0.0
      %v2756 = vadd.f32 %v2754, %v2755
      %v2757 = vsel %vm2602, %v2715, 0.0
      %v2758 = vadd.f32 %v2756, %v2757
      %v2759 = vsel %vm2602, %v2716, 0.0
      %v2760 = vadd.f32 %v2758, %v2759
      %v2761 = vsel %vm2602, %v2717, 0.0
      %v2762 = vadd.f32 %v2760, %v2761
      %v2763 = vsel %vm2602, %v2718, 0.0
      %v2764 = vadd.f32 %v2762, %v2763
      %v2765 = vsel %vm2602, %v2719, 0.0
      %v2766 = vadd.f32 %v2764, %v2765
      %v2767 = vsel %vm2602, %v2720, 0.0
      %v2768 = vadd.f32 %v2766, %v2767
      %v2769 = vsel %vm2602, %v2721, 0.0
      %v2770 = vadd.f32 %v2768, %v2769
      %v2771 = vsel %vm2602, %v2722, 0.0
      %v2772 = vadd.f32 %v2770, %v2771
      %v2773 = vsel %vm2602, %v2723, 0.0
      %v2774 = vadd.f32 %v2772, %v2773
      %v2775 = vsel %vm2602, %v2724, 0.0
      %v2776 = vadd.f32 %v2774, %v2775
      %v2777 = vsel %vm2602, %v2725, 0.0
      %v2778 = vadd.f32 %v2776, %v2777
      %v2779 = vsel %vm2602, %v2726, 0.0
      %v2780 = vadd.f32 %v2778, %v2779
      %v2781 = vsel %vm2602, %v2727, 0.0
      %v2782 = vadd.f32 %v2780, %v2781
      %v2783 = vsel %vm2602, %v2728, 0.0
      %v2784 = vadd.f32 %v2782, %v2783
      %v2785 = vsel %vm2602, %v2729, 0.0
      %v2786 = vadd.f32 %v2784, %v2785
      %v2787 = vsel %vm2602, %v2730, 0.0
      %v2788 = vadd.f32 %v2786, %v2787
      %v2789 = vsel %vm2602, %v2731, 0.0
      %v2790 = vadd.f32 %v2788, %v2789
      %v2791 = vsel %vm2602, %v2732, 0.0
      %v2792 = vadd.f32 %v2790, %v2791
      %v2793 = vsel %vm2602, %v2733, 0.0
      %v2794 = vadd.f32 %v2792, %v2793
      %v2795 = vsel %vm2602, %v2734, 0.0
      %v2796 = vadd.f32 %v2794, %v2795
      %v2797 = vsel %vm2602, %v2735, 0.0
      %v2798 = vadd.f32 %v2796, %v2797
      %v2799 = vrot.slane %v2798, 4
      %v2800 = vadd.f32 %v2798, %v2799
      %v2801 = vrot.slane %v2800, 2
      %v2802 = vadd.f32 %v2800, %v2801
      %v2803 = vrot.slane %v2802, 1
      %v2804 = vadd.f32 %v2802, %v2803
      %p2805 = scmp.eq.s32.totalorder %s15, 0
      // Predicated region
      $region29: #{baseline_train_forward.9} parent=27 // pred_check
        %p2806 = pneg %p2805
      $region30: #{baseline_train_forward.9} parent=27 // pred_check_branch
        %2808 = sbr.rel (%p2806) target = $region32
      $region31: #{baseline_train_forward.9} parent=27 // pred_region
        %vm2809 = vcmask 254976
        %2810 = vst.msk [vmem:[%s3] sm:$0x3] %vm2809, 0.0
      $region32: #{baseline_train_forward.9} parent=27 // pred_fallthru
        _
      %v2811 = vld [vmem:[%s3] sm:$0x3]
      %vm2812 = vcmask 1040384
      %v2813 = vsel %vm2812, %v2703, %v2804
      %v2814 = vadd.f32 %v2811, %v2813
      %vm2815 = vcmask 254976
      %2816 = vst.msk [vmem:[%s3] sm:$0x3] %vm2815, %v2814
      %p2817 = scmp.lt.s32.totalorder %s15, 1
      %s2818 = scalar_select %p2817, %s15, 1
      %s2819 = smul.addr %s2818, 32
      %s2820 = smul.addr %s2819, 8
      %s2821 = scalar_lea.vmem %s2, %s2820
      // Predicated region
      $region33: #{baseline_train_forward.9} parent=27 // pred_check
        %p2822 = pneg %p80
      $region34: #{baseline_train_forward.9} parent=27 // pred_check_branch
        %2824 = sbr.rel (%p2822) target = $region36
      $region35: #{baseline_train_forward.9} parent=27 // pred_region
        _
      $region36: #{baseline_train_forward.9} parent=27 // pred_fallthru
        _
      // Predicated region
      $region37: #{baseline_train_forward.9} parent=27 // pred_check
        %p2825 = pneg %p101
      $region38: #{baseline_train_forward.9} parent=27 // pred_check_branch
        %2827 = sbr.rel (%p2825) target = $region40
      $region39: #{baseline_train_forward.9} parent=27 // pred_region
        _
      $region40: #{baseline_train_forward.9} parent=27 // pred_fallthru
        _
      // Predicated region
      $region41: #{baseline_train_forward.9} parent=27 // pred_check
        %p2828 = pneg %p101
      $region42: #{baseline_train_forward.9} parent=27 // pred_check_branch
        %2830 = sbr.rel (%p2828) target = $region44
      $region43: #{baseline_train_forward.9} parent=27 // pred_region
        _
      $region44: #{baseline_train_forward.9} parent=27 // pred_fallthru
        _
    $region28: #{baseline_train_forward.9} parent=5 // pred_fallthru
      _
    %p2831 = scmp.le.s32.totalorder 2, %s10
    // Predicated region
    $region45: #{baseline_train_forward.9} parent=5 // pred_check
      %p2832 = pneg %p2831
    $region46: #{baseline_train_forward.9} parent=5 // pred_check_branch
      %2834 = sbr.rel (%p2832) target = $region48
    $region47: #{baseline_train_forward.9} parent=5 // pred_region
      %s2835 = ssub.s32 %s10, 2
      // Predicated region
      $region49: #{baseline_train_forward.9} parent=47 // pred_check
        %p2836 = pneg %p86
      $region50: #{baseline_train_forward.9} parent=47 // pred_check_branch
        %2838 = sbr.rel (%p2836) target = $region52
      $region51: #{baseline_train_forward.9} parent=47 // pred_region
        %p2839 = scmp.lt.s32.totalorder %s16, 1
        %s2840 = scalar_select %p2839, %s16, 1
        %s2841 = smul.addr %s2840, 32
        %s2842 = smul.addr %s2841, 8
        %s2843 = scalar_lea.vmem %s2, %s2842
      $region52: #{baseline_train_forward.9} parent=47 // pred_fallthru
        _
    $region48: #{baseline_train_forward.9} parent=5 // pred_fallthru
      _
  $region6: #{baseline_train_forward.9} parent=0 // loop_footer
    %s14 = sadd.s32 1, %s10
  $region7: #{baseline_train_forward.9} parent=0 // loop_footer_branch
    %9 = sbr.rel target = $region3
  $region8: #{baseline_train_forward.9} parent=0 // loop_exit
    _

// kernel: baseline_train_forward.14
$region0: #{baseline_train_forward.14}
  #allocation0 [shape = 'u32[]', space=smem, size = 0x4, offset = 0x4, fixed_abs, tag = 'smem constant byte address 0x4 - core index']
  #allocation1 [shape = 'u32[72,128]{1,0:T(1,128)}', space=vmem, size = 0x9000, scoped, tag = 'internal scratch']
  %s0 = inlined_call_operand.vmem [shape: f32[2,16,32], index: 0, kind: input, shape index: {}]
  %s1 = inlined_call_operand.vmem [shape: f32[2,32], index: 1, kind: input, shape index: {}]
  %s2 = inlined_call_operand.vmem [shape: f32[1,32], index: 2, kind: input, shape index: {}]
  %s3 = inlined_call_operand.vmem [shape: f32[1,32], index: 3, kind: input, shape index: {}]
  %s4 = inlined_call_operand.vmem [shape: f32[2,4,32], index: 4, kind: output, shape index: {}]
  %s5 = sld [smem:[#allocation0]]
  $region49: #{baseline_train_forward.14} parent=0
    _
  %s7 = ssub.s32 1, %s5
  %s8 = scalar_select 0, %s7, %s5
  loop: start=0, step=1, limit=4
  $region2: #{baseline_train_forward.14} parent=0 // loop_pre_header
    _
  $region3: #{baseline_train_forward.14} parent=0 // loop_header
    %s10 = sphi 0, %s14
    %p11 = scmp.ge.s32.totalorder %s10, 4
    %s20 = sphi 0, %s22
    %s23 = sphi 0, %s20
    %s24 = sphi 0, %s23
    %s40 = sphi 0, %s24
    %s44 = sphi 0, %s44
    %s46 = sphi 0, %s44
    %s47 = sphi 0, %s46
    %s61 = sphi 0, %s47
    %s65 = sphi 0, %s65
    %s67 = sphi 0, %s65
    %s68 = sphi 0, %s67
    %s82 = sphi 0, %s68
    %s86 = sphi 0, %s86
    %s88 = sphi 0, %s86
    %s89 = sphi 0, %s88
    %s103 = sphi 0, %s89
    %s109 = sphi 0, %s111
    %s112 = sphi 0, %s109
    %s113 = sphi 0, %s112
    %s129 = sphi 0, %s113
  $region4: #{baseline_train_forward.14} parent=0 // loop_header_branch
    %13 = sbr.rel (%p11) target = $region8
  $region5: #{baseline_train_forward.14} parent=0 // loop_body
    %s15 = ssub.s32 %s10, 1
    %s16 = ssub.s32 %s10, 2
    %s17 = sadd.s32 %s10, 1
    %s18 = ssub.s32 %s10, %s17
    %p19 = scmp.eq.s32.totalorder %s18, 0
    %s21 = sadd.s32 %s20, 1
    %s22 = scalar_select %p19, %s20, %s21
    %p25 = pneg %p19
    %p26 = scmp.eq.s32.totalorder %s10, 1
    %p27 = por %p25, %p26
    %p28 = scmp.ne.s32.totalorder %s20, %s23
    %p29 = scmp.eq.s32.totalorder %s10, 0
    %p30 = por %p28, %p29
    %p31 = scmp.ne.s32.totalorder %s20, %s23
    %p32 = scmp.eq.s32.totalorder %s15, 1
    %p33 = por %p31, %p32
    %p34 = scmp.ne.s32.totalorder %s23, %s24
    %p35 = scmp.eq.s32.totalorder %s15, 0
    %p36 = por %p34, %p35
    %p37 = scmp.ne.s32.totalorder %s23, %s24
    %p38 = scmp.eq.s32.totalorder %s16, 1
    %p39 = por %p37, %p38
    %p41 = scmp.ne.s32.totalorder %s24, %s40
    %p42 = scmp.eq.s32.totalorder %s16, 0
    %p43 = por %p41, %p42
    %s45 = sadd.s32 %s44, 1
    %p48 = scmp.eq.s32.totalorder %s10, 1
    %p49 = scmp.ne.s32.totalorder %s44, %s46
    %p50 = scmp.eq.s32.totalorder %s10, 0
    %p51 = por %p49, %p50
    %p52 = scmp.ne.s32.totalorder %s44, %s46
    %p53 = scmp.eq.s32.totalorder %s15, 1
    %p54 = por %p52, %p53
    %p55 = scmp.ne.s32.totalorder %s46, %s47
    %p56 = scmp.eq.s32.totalorder %s15, 0
    %p57 = por %p55, %p56
    %p58 = scmp.ne.s32.totalorder %s46, %s47
    %p59 = scmp.eq.s32.totalorder %s16, 1
    %p60 = por %p58, %p59
    %p62 = scmp.ne.s32.totalorder %s47, %s61
    %p63 = scmp.eq.s32.totalorder %s16, 0
    %p64 = por %p62, %p63
    %s66 = sadd.s32 %s65, 1
    %p69 = scmp.eq.s32.totalorder %s10, 1
    %p70 = scmp.ne.s32.totalorder %s65, %s67
    %p71 = scmp.eq.s32.totalorder %s10, 0
    %p72 = por %p70, %p71
    %p73 = scmp.ne.s32.totalorder %s65, %s67
    %p74 = scmp.eq.s32.totalorder %s15, 1
    %p75 = por %p73, %p74
    %p76 = scmp.ne.s32.totalorder %s67, %s68
    %p77 = scmp.eq.s32.totalorder %s15, 0
    %p78 = por %p76, %p77
    %p79 = scmp.ne.s32.totalorder %s67, %s68
    %p80 = scmp.eq.s32.totalorder %s16, 1
    %p81 = por %p79, %p80
    %p83 = scmp.ne.s32.totalorder %s68, %s82
    %p84 = scmp.eq.s32.totalorder %s16, 0
    %p85 = por %p83, %p84
    %s87 = sadd.s32 %s86, 1
    %p90 = scmp.eq.s32.totalorder %s10, 1
    %p91 = scmp.ne.s32.totalorder %s86, %s88
    %p92 = scmp.eq.s32.totalorder %s10, 0
    %p93 = por %p91, %p92
    %p94 = scmp.ne.s32.totalorder %s86, %s88
    %p95 = scmp.eq.s32.totalorder %s15, 1
    %p96 = por %p94, %p95
    %p97 = scmp.ne.s32.totalorder %s88, %s89
    %p98 = scmp.eq.s32.totalorder %s15, 0
    %p99 = por %p97, %p98
    %p100 = scmp.ne.s32.totalorder %s88, %s89
    %p101 = scmp.eq.s32.totalorder %s16, 1
    %p102 = por %p100, %p101
    %p104 = scmp.ne.s32.totalorder %s89, %s103
    %p105 = scmp.eq.s32.totalorder %s16, 0
    %p106 = por %p104, %p105
    %s107 = ssub.s32 %s10, %s17
    %p108 = scmp.eq.s32.totalorder %s107, 0
    %s110 = sadd.s32 %s109, 1
    %s111 = scalar_select %p108, %s109, %s110
    %p114 = pneg %p108
    %p115 = scmp.eq.s32.totalorder %s10, 1
    %p116 = por %p114, %p115
    %p117 = scmp.ne.s32.totalorder %s109, %s112
    %p118 = scmp.eq.s32.totalorder %s10, 0
    %p119 = por %p117, %p118
    %p120 = scmp.ne.s32.totalorder %s109, %s112
    %p121 = scmp.eq.s32.totalorder %s15, 1
    %p122 = por %p120, %p121
    %p123 = scmp.ne.s32.totalorder %s112, %s113
    %p124 = scmp.eq.s32.totalorder %s15, 0
    %p125 = por %p123, %p124
    %p126 = scmp.ne.s32.totalorder %s112, %s113
    %p127 = scmp.eq.s32.totalorder %s16, 1
    %p128 = por %p126, %p127
    %p130 = scmp.ne.s32.totalorder %s113, %s129
    %p131 = scmp.eq.s32.totalorder %s16, 0
    %p132 = por %p130, %p131
    %p133 = scmp.le.s32.totalorder 1, %s10
    %p134 = scmp.lt.s32.totalorder %s10, 3
    %p135 = pnand %p133, %p134
    %p136 = pneg %p135
    // Predicated region
    $region9: #{baseline_train_forward.14} parent=5 // pred_check
      _
    $region10: #{baseline_train_forward.14} parent=5 // pred_check_branch
      %138 = sbr.rel (%p135) target = $region12
    $region11: #{baseline_train_forward.14} parent=5 // pred_region
      %s139 = ssub.s32 %s10, 1
      // Predicated region
      $region13: #{baseline_train_forward.14} parent=11 // pred_check
        %p140 = pneg %p57
      $region14: #{baseline_train_forward.14} parent=11 // pred_check_branch
        %142 = sbr.rel (%p140) target = $region16
      $region15: #{baseline_train_forward.14} parent=11 // pred_region
        _
      $region16: #{baseline_train_forward.14} parent=11 // pred_fallthru
        _
      // Predicated region
      $region17: #{baseline_train_forward.14} parent=11 // pred_check
        %p143 = pneg %p78
      $region18: #{baseline_train_forward.14} parent=11 // pred_check_branch
        %145 = sbr.rel (%p143) target = $region20
      $region19: #{baseline_train_forward.14} parent=11 // pred_region
        _
      $region20: #{baseline_train_forward.14} parent=11 // pred_fallthru
        _
      // Predicated region
      $region21: #{baseline_train_forward.14} parent=11 // pred_check
        %p146 = pneg %p99
      $region22: #{baseline_train_forward.14} parent=11 // pred_check_branch
        %148 = sbr.rel (%p146) target = $region24
      $region23: #{baseline_train_forward.14} parent=11 // pred_region
        _
      $region24: #{baseline_train_forward.14} parent=11 // pred_fallthru
        _
    $region12: #{baseline_train_forward.14} parent=5 // pred_fallthru
      _
    %p149 = scmp.lt.s32.totalorder %s10, 2
    // Predicated region
    $region25: #{baseline_train_forward.14} parent=5 // pred_check
      %p150 = pneg %p149
    $region26: #{baseline_train_forward.14} parent=5 // pred_check_branch
      %152 = sbr.rel (%p150) target = $region28
    $region27: #{baseline_train_forward.14} parent=5 // pred_region
      // Predicated region
      $region29: #{baseline_train_forward.14} parent=27 // pred_check
        %p153 = pneg %p30
      $region30: #{baseline_train_forward.14} parent=27 // pred_check_branch
        %155 = sbr.rel (%p153) target = $region32
      $region31: #{baseline_train_forward.14} parent=27 // pred_region
        %p156 = scmp.lt.s32.totalorder %s10, 1
        %s157 = scalar_select %p156, %s10, 1
        %s158 = smul.addr %s157, 2
        %s159 = smul.addr %s158, 8
        %s160 = scalar_lea.vmem %s0, %s159
      $region32: #{baseline_train_forward.14} parent=27 // pred_fallthru
        _
    $region28: #{baseline_train_forward.14} parent=5 // pred_fallthru
      _
    %p161 = scmp.le.s32.totalorder 1, %s10
    %p162 = scmp.lt.s32.totalorder %s10, 3
    %p163 = pnand %p161, %p162
    %p164 = pneg %p163
    // Predicated region
    $region33: #{baseline_train_forward.14} parent=5 // pred_check
      _
    $region34: #{baseline_train_forward.14} parent=5 // pred_check_branch
      %166 = sbr.rel (%p163) target = $region36
    $region35: #{baseline_train_forward.14} parent=5 // pred_region
      %s167 = ssub.s32 %s10, 1
      %p168 = scmp.lt.s32.totalorder %s15, 1
      %s169 = scalar_select %p168, %s15, 1
      %s170 = smul.addr %s169, 2
      %s171 = smul.addr %s170, 8
      %s172 = scalar_lea.vmem %s0, %s171
      %p173 = pneg %p36
      %p174 = pneg %p33
      %p175 = pneg %p57
      %p176 = pneg %p54
      %p177 = pneg %p78
      %p178 = pneg %p75
      %p179 = pneg %p99
      %p180 = pneg %p96
      %p181 = pneg %p125
      %p182 = pneg %p122
      %p183 = scmp.lt.s32.totalorder %s15, 1
      %s184 = scalar_select %p183, %s15, 1
      %s185 = smul.addr %s184, 4
      %s186 = scalar_lea.vmem %s4, %s185
      %p187 = scmp.lt.s32.totalorder %s15, 1
      %s188 = scalar_select %p187, %s15, 1
      %s189 = smul.addr %s188, 2
      %s190 = smul.addr %s189, 8
      %s191 = scalar_lea.vmem %s0, %s190
      %p192 = scmp.lt.s32.totalorder %s15, 1
      %s193 = scalar_select %p192, %s15, 1
      %s194 = smul.addr %s193, 4
      %s195 = scalar_lea.vmem %s4, %s194
      %v196 = vld [vmem:[%s1] sm:$0x1]
      %v197 = vmul.f32 %v196, 0.03125
      %v198 = vld [vmem:[%s1 + $0x1] sm:$0x1]
      %v199 = vmul.f32 %v198, 0.03125
      %v200 = vmul.f32 %v197, %v197
      %v201 = vsub.f32 %v199, %v200
      %v202 = vld [vmem:[%s2] sm:$0x1]
      %v203 = vadd.f32 %v201, 1e-05
      %v204 = vrsqrt.pop %v203
      %v205 = vmul.f32 %v204, %v203
      %v206 = vmul.f32 %v205, %v204
      %v207 = vmul.f32 0.5, %v206
      %v208 = vsub.f32 1.5, %v207
      %v209 = vmul.f32 %v204, %v208
      %vm210 = vweird.f32 %v203
      %vm211 = vweird.f32 %v204
      %vm212 = vmor %vm210, %vm211
      %v213 = vsel %vm212, %v204, %v209
      %v214 = vmul.f32 %v202, %v213
      %v215 = vld [vmem:[%s3] sm:$0x1]
      %v216 = vmul.f32 %v197, %v214
      %v217 = vsub.f32 %v215, %v216
      %v218 = vld [vmem:[%s191] sm:$0xff]
      %v219 = vld [vmem:[%s191 + $0x8] sm:$0xff]
      %v221 = vperm.slane %v214, 0
      %v223 = vmul.f32 %v218, %v221
      %v224 = vmul.f32 %v219, %v221
      %v226 = vperm.slane %v217, 0
      %v228 = vadd.f32 %v223, %v226
      %v229 = vadd.f32 %v224, %v226
      %v230 = vmax.f32 %v228, 0.0
      %v231 = vmax.f32 %v229, 0.0
      %v232 = vlaneseq
      %v233 = vshrl.u32 %v232, 7
      %v234 = vlaneseq
      %v235 = vand.u32 %v234, 127
      %v236 = vshra.s32 %v233, 1
      %v237 = vand.u32 %v233, 1
      %v238 = vmul.u32 %v236, 2
      %v239 = vmul.u32 %v238, 4
      %v240 = vmul.u32 %v237, 2
      %v241 = vadd.s32 %v239, %v240
      %vm242 = vcmp.eq.s32.totalorder %v235, %v241
      %v243 = vsel %vm242, 1, 0
      %v244 = vcvt.s32.f32 %v243
      %vm245 = vcmask 130048
      %v247 = vsel %vm245, %v244, 0
      %249 = vmatpush.msra.mxu0 0.0
      %250 = vmatpush.msra.mxu0 0.0
      %251 = vmatpush.msra.mxu0 0.0
      %252 = vmatpush.msra.mxu0 0.0
      %253 = vmatpush.msra.mxu0 0.0
      %254 = vmatpush.msra.mxu0 0.0
      %255 = vmatpush.msra.mxu0 0.0
      %256 = vmatpush.msra.mxu0 0.0
      %257 = vmatpush.msra.mxu0 0.0
      %258 = vmatpush.msra.mxu0 0.0
      %259 = vmatpush.msra.mxu0 0.0
      %260 = vmatpush.msra.mxu0 0.0
      %261 = vmatpush.msra.mxu0 0.0
      %262 = vmatpush.msra.mxu0 0.0
      %263 = vmatpush.msra.mxu0 %v231
      %264 = vmatpush.msra.mxu0 %v230
      %265 = vmatmul.f32.gmra.mxu0 %v247
      %v266 = vpop.f32.mrf.mxu0
      %v267 = vadd.f32 0.0, %v266
      %268 = vdwg.mxu0
      %v269 = vadd.s32 %v241, 1
      %vm270 = vcmp.eq.s32.totalorder %v235, %v269
      %v271 = vsel %vm270, 1, 0
      %v272 = vcvt.s32.f32 %v271
      %v274 = vsel %vm245, %v272, 0
      %276 = vmatpush.msra.mxu0 0.0
      %277 = vmatpush.msra.mxu0 0.0
      %278 = vmatpush.msra.mxu0 0.0
      %279 = vmatpush.msra.mxu0 0.0
      %280 = vmatpush.msra.mxu0 0.0
      %281 = vmatpush.msra.mxu0 0.0
      %282 = vmatpush.msra.mxu0 0.0
      %283 = vmatpush.msra.mxu0 0.0
      %284 = vmatpush.msra.mxu0 0.0
      %285 = vmatpush.msra.mxu0 0.0
      %286 = vmatpush.msra.mxu0 0.0
      %287 = vmatpush.msra.mxu0 0.0
      %288 = vmatpush.msra.mxu0 0.0
      %289 = vmatpush.msra.mxu0 0.0
      %290 = vmatpush.msra.mxu0 %v231
      %291 = vmatpush.msra.mxu0 %v230
      %292 = vmatmul.f32.gmra.mxu0 %v274
      %v293 = vpop.f32.mrf.mxu0
      %v294 = vadd.f32 0.0, %v293
      %295 = vdwg.mxu0
      %v296 = vmax.f32 %v267, %v294
      %v297 = vadd.s32 %v241, 4
      %vm298 = vcmp.eq.s32.totalorder %v235, %v297
      %v299 = vsel %vm298, 1, 0
      %v300 = vcvt.s32.f32 %v299
      %v302 = vsel %vm245, %v300, 0
      %304 = vmatpush.msra.mxu0 0.0
      %305 = vmatpush.msra.mxu0 0.0
      %306 = vmatpush.msra.mxu0 0.0
      %307 = vmatpush.msra.mxu0 0.0
      %308 = vmatpush.msra.mxu0 0.0
      %309 = vmatpush.msra.mxu0 0.0
      %310 = vmatpush.msra.mxu0 0.0
      %311 = vmatpush.msra.mxu0 0.0
      %312 = vmatpush.msra.mxu0 0.0
      %313 = vmatpush.msra.mxu0 0.0
      %314 = vmatpush.msra.mxu0 0.0
      %315 = vmatpush.msra.mxu0 0.0
      %316 = vmatpush.msra.mxu0 0.0
      %317 = vmatpush.msra.mxu0 0.0
      %318 = vmatpush.msra.mxu0 %v231
      %319 = vmatpush.msra.mxu0 %v230
      %320 = vmatmul.f32.gmra.mxu0 %v302
      %v321 = vpop.f32.mrf.mxu0
      %v322 = vadd.f32 0.0, %v321
      %323 = vdwg.mxu0
      %v324 = vmax.f32 %v296, %v322
      %v325 = vadd.s32 %v297, 1
      %vm326 = vcmp.eq.s32.totalorder %v235, %v325
      %v327 = vsel %vm326, 1, 0
      %v328 = vcvt.s32.f32 %v327
      %v330 = vsel %vm245, %v328, 0
      %332 = vmatpush.msra.mxu0 0.0
      %333 = vmatpush.msra.mxu0 0.0
      %334 = vmatpush.msra.mxu0 0.0
      %335 = vmatpush.msra.mxu0 0.0
      %336 = vmatpush.msra.mxu0 0.0
      %337 = vmatpush.msra.mxu0 0.0
      %338 = vmatpush.msra.mxu0 0.0
      %339 = vmatpush.msra.mxu0 0.0
      %340 = vmatpush.msra.mxu0 0.0
      %341 = vmatpush.msra.mxu0 0.0
      %342 = vmatpush.msra.mxu0 0.0
      %343 = vmatpush.msra.mxu0 0.0
      %344 = vmatpush.msra.mxu0 0.0
      %345 = vmatpush.msra.mxu0 0.0
      %346 = vmatpush.msra.mxu0 %v231
      %347 = vmatpush.msra.mxu0 %v230
      %348 = vmatmul.f32.gmra.mxu0 %v330
      %v349 = vpop.f32.mrf.mxu0
      %v350 = vadd.f32 0.0, %v349
      %351 = vdwg.mxu0
      %v352 = vmax.f32 %v324, %v350
      %vm353 = vcmask 257024
      %354 = vst.msk [vmem:[%s195] sm:$0xf] %vm353, %v352
      %p355 = scmp.lt.s32.totalorder %s15, 1
      %s356 = scalar_select %p355, %s15, 1
      %s357 = smul.addr %s356, 4
      %s358 = scalar_lea.vmem %s4, %s357
      // Predicated region
      $region37: #{baseline_train_forward.14} parent=35 // pred_check
        %p359 = pneg %p122
      $region38: #{baseline_train_forward.14} parent=35 // pred_check_branch
        %361 = sbr.rel (%p359) target = $region40
      $region39: #{baseline_train_forward.14} parent=35 // pred_region
        _
      $region40: #{baseline_train_forward.14} parent=35 // pred_fallthru
        _
    $region36: #{baseline_train_forward.14} parent=5 // pred_fallthru
      _
    %p362 = scmp.le.s32.totalorder 2, %s10
    // Predicated region
    $region41: #{baseline_train_forward.14} parent=5 // pred_check
      %p363 = pneg %p362
    $region42: #{baseline_train_forward.14} parent=5 // pred_check_branch
      %365 = sbr.rel (%p363) target = $region44
    $region43: #{baseline_train_forward.14} parent=5 // pred_region
      %s366 = ssub.s32 %s10, 2
      // Predicated region
      $region45: #{baseline_train_forward.14} parent=43 // pred_check
        %p367 = pneg %p128
      $region46: #{baseline_train_forward.14} parent=43 // pred_check_branch
        %369 = sbr.rel (%p367) target = $region48
      $region47: #{baseline_train_forward.14} parent=43 // pred_region
        %p370 = scmp.lt.s32.totalorder %s16, 1
        %s371 = scalar_select %p370, %s16, 1
        %s372 = smul.addr %s371, 4
        %s373 = scalar_lea.vmem %s4, %s372
      $region48: #{baseline_train_forward.14} parent=43 // pred_fallthru
        _
    $region44: #{baseline_train_forward.14} parent=5 // pred_fallthru
      _
  $region6: #{baseline_train_forward.14} parent=0 // loop_footer
    %s14 = sadd.s32 1, %s10
  $region7: #{baseline_train_forward.14} parent=0 // loop_footer_branch
    %9 = sbr.rel target = $region3
  $region8: #{baseline_train_forward.14} parent=0 // loop_exit
    _

// kernel: baseline_train_forward.13
$region0: #{baseline_train_forward.13}
  #allocation0 [shape = 'u32[]', space=smem, size = 0x4, offset = 0x4, fixed_abs, tag = 'smem constant byte address 0x4 - core index']
  #allocation1 [shape = 'u32[72,128]{1,0:T(1,128)}', space=vmem, size = 0x9000, scoped, tag = 'internal scratch']
  %s0 = inlined_call_operand.vmem [shape: f32[2,6,6,32], index: 0, kind: input, shape index: {}]
  %s1 = inlined_call_operand.vmem [shape: f32[288,32], index: 1, kind: input, shape index: {}]
  %s2 = inlined_call_operand.vmem [shape: f32[2,16,32], index: 2, kind: output, shape index: {0}]
  %s3 = inlined_call_operand.vmem [shape: f32[2,32], index: 3, kind: output, shape index: {1}]
  %4 = xla_tuple %s2, %s3
  %s5 = sld [smem:[#allocation0]]
  $region53: #{baseline_train_forward.13} parent=0
    _
  %s7 = ssub.s32 1, %s5
  %s8 = scalar_select 0, %s7, %s5
  loop: start=0, step=1, limit=4
  $region2: #{baseline_train_forward.13} parent=0 // loop_pre_header
    _
  $region3: #{baseline_train_forward.13} parent=0 // loop_header
    %s10 = sphi 0, %s14
    %p11 = scmp.ge.s32.totalorder %s10, 4
    %s20 = sphi 0, %s22
    %s23 = sphi 0, %s20
    %s24 = sphi 0, %s23
    %s40 = sphi 0, %s24
    %s44 = sphi 0, %s44
    %s46 = sphi 0, %s44
    %s47 = sphi 0, %s46
    %s61 = sphi 0, %s47
    %s67 = sphi 0, %s69
    %s70 = sphi 0, %s67
    %s71 = sphi 0, %s70
    %s87 = sphi 0, %s71
    %s91 = sphi 0, %s91
    %s93 = sphi 0, %s91
    %s94 = sphi 0, %s93
    %s108 = sphi 0, %s94
  $region4: #{baseline_train_forward.13} parent=0 // loop_header_branch
    %13 = sbr.rel (%p11) target = $region8
  $region5: #{baseline_train_forward.13} parent=0 // loop_body
    %s15 = ssub.s32 %s10, 1
    %s16 = ssub.s32 %s10, 2
    %s17 = sadd.s32 %s10, 1
    %s18 = ssub.s32 %s10, %s17
    %p19 = scmp.eq.s32.totalorder %s18, 0
    %s21 = sadd.s32 %s20, 1
    %s22 = scalar_select %p19, %s20, %s21
    %p25 = pneg %p19
    %p26 = scmp.eq.s32.totalorder %s10, 1
    %p27 = por %p25, %p26
    %p28 = scmp.ne.s32.totalorder %s20, %s23
    %p29 = scmp.eq.s32.totalorder %s10, 0
    %p30 = por %p28, %p29
    %p31 = scmp.ne.s32.totalorder %s20, %s23
    %p32 = scmp.eq.s32.totalorder %s15, 1
    %p33 = por %p31, %p32
    %p34 = scmp.ne.s32.totalorder %s23, %s24
    %p35 = scmp.eq.s32.totalorder %s15, 0
    %p36 = por %p34, %p35
    %p37 = scmp.ne.s32.totalorder %s23, %s24
    %p38 = scmp.eq.s32.totalorder %s16, 1
    %p39 = por %p37, %p38
    %p41 = scmp.ne.s32.totalorder %s24, %s40
    %p42 = scmp.eq.s32.totalorder %s16, 0
    %p43 = por %p41, %p42
    %s45 = sadd.s32 %s44, 1
    %p48 = scmp.eq.s32.totalorder %s10, 1
    %p49 = scmp.ne.s32.totalorder %s44, %s46
    %p50 = scmp.eq.s32.totalorder %s10, 0
    %p51 = por %p49, %p50
    %p52 = scmp.ne.s32.totalorder %s44, %s46
    %p53 = scmp.eq.s32.totalorder %s15, 1
    %p54 = por %p52, %p53
    %p55 = scmp.ne.s32.totalorder %s46, %s47
    %p56 = scmp.eq.s32.totalorder %s15, 0
    %p57 = por %p55, %p56
    %p58 = scmp.ne.s32.totalorder %s46, %s47
    %p59 = scmp.eq.s32.totalorder %s16, 1
    %p60 = por %p58, %p59
    %p62 = scmp.ne.s32.totalorder %s47, %s61
    %p63 = scmp.eq.s32.totalorder %s16, 0
    %p64 = por %p62, %p63
    %s65 = ssub.s32 %s10, %s17
    %p66 = scmp.eq.s32.totalorder %s65, 0
    %s68 = sadd.s32 %s67, 1
    %s69 = scalar_select %p66, %s67, %s68
    %p72 = pneg %p66
    %p73 = scmp.eq.s32.totalorder %s10, 1
    %p74 = por %p72, %p73
    %p75 = scmp.ne.s32.totalorder %s67, %s70
    %p76 = scmp.eq.s32.totalorder %s10, 0
    %p77 = por %p75, %p76
    %p78 = scmp.ne.s32.totalorder %s67, %s70
    %p79 = scmp.eq.s32.totalorder %s15, 1
    %p80 = por %p78, %p79
    %p81 = scmp.ne.s32.totalorder %s70, %s71
    %p82 = scmp.eq.s32.totalorder %s15, 0
    %p83 = por %p81, %p82
    %p84 = scmp.ne.s32.totalorder %s70, %s71
    %p85 = scmp.eq.s32.totalorder %s16, 1
    %p86 = por %p84, %p85
    %p88 = scmp.ne.s32.totalorder %s71, %s87
    %p89 = scmp.eq.s32.totalorder %s16, 0
    %p90 = por %p88, %p89
    %s92 = sadd.s32 %s91, 1
    %p95 = scmp.eq.s32.totalorder %s10, 1
    %p96 = scmp.ne.s32.totalorder %s91, %s93
    %p97 = scmp.eq.s32.totalorder %s10, 0
    %p98 = por %p96, %p97
    %p99 = scmp.ne.s32.totalorder %s91, %s93
    %p100 = scmp.eq.s32.totalorder %s15, 1
    %p101 = por %p99, %p100
    %p102 = scmp.ne.s32.totalorder %s93, %s94
    %p103 = scmp.eq.s32.totalorder %s15, 0
    %p104 = por %p102, %p103
    %p105 = scmp.ne.s32.totalorder %s93, %s94
    %p106 = scmp.eq.s32.totalorder %s16, 1
    %p107 = por %p105, %p106
    %p109 = scmp.ne.s32.totalorder %s94, %s108
    %p110 = scmp.eq.s32.totalorder %s16, 0
    %p111 = por %p109, %p110
    %p112 = scmp.le.s32.totalorder 1, %s10
    %p113 = scmp.lt.s32.totalorder %s10, 3
    %p114 = pnand %p112, %p113
    %p115 = pneg %p114
    // Predicated region
    $region9: #{baseline_train_forward.13} parent=5 // pred_check
      _
    $region10: #{baseline_train_forward.13} parent=5 // pred_check_branch
      %117 = sbr.rel (%p114) target = $region12
    $region11: #{baseline_train_forward.13} parent=5 // pred_region
      %s118 = ssub.s32 %s10, 1
      // Predicated region
      $region13: #{baseline_train_forward.13} parent=11 // pred_check
        %p119 = pneg %p57
      $region14: #{baseline_train_forward.13} parent=11 // pred_check_branch
        %121 = sbr.rel (%p119) target = $region16
      $region15: #{baseline_train_forward.13} parent=11 // pred_region
        _
      $region16: #{baseline_train_forward.13} parent=11 // pred_fallthru
        _
    $region12: #{baseline_train_forward.13} parent=5 // pred_fallthru
      _
    %p122 = scmp.lt.s32.totalorder %s10, 2
    // Predicated region
    $region17: #{baseline_train_forward.13} parent=5 // pred_check
      %p123 = pneg %p122
    $region18: #{baseline_train_forward.13} parent=5 // pred_check_branch
      %125 = sbr.rel (%p123) target = $region20
    $region19: #{baseline_train_forward.13} parent=5 // pred_region
      // Predicated region
      $region21: #{baseline_train_forward.13} parent=19 // pred_check
        %p126 = pneg %p30
      $region22: #{baseline_train_forward.13} parent=19 // pred_check_branch
        %128 = sbr.rel (%p126) target = $region24
      $region23: #{baseline_train_forward.13} parent=19 // pred_region
        %p129 = scmp.lt.s32.totalorder %s10, 1
        %s130 = scalar_select %p129, %s10, 1
        %s131 = smul.addr %s130, 6
        %s132 = smul.addr %s131, 8
        %s133 = scalar_lea.vmem %s0, %s132
      $region24: #{baseline_train_forward.13} parent=19 // pred_fallthru
        _
    $region20: #{baseline_train_forward.13} parent=5 // pred_fallthru
      _
    %p134 = scmp.le.s32.totalorder 1, %s10
    %p135 = scmp.lt.s32.totalorder %s10, 3
    %p136 = pnand %p134, %p135
    %p137 = pneg %p136
    // Predicated region
    $region25: #{baseline_train_forward.13} parent=5 // pred_check
      _
    $region26: #{baseline_train_forward.13} parent=5 // pred_check_branch
      %139 = sbr.rel (%p136) target = $region28
    $region27: #{baseline_train_forward.13} parent=5 // pred_region
      %s140 = ssub.s32 %s10, 1
      %p141 = scmp.lt.s32.totalorder %s15, 1
      %s142 = scalar_select %p141, %s15, 1
      %s143 = smul.addr %s142, 6
      %s144 = smul.addr %s143, 8
      %s145 = scalar_lea.vmem %s0, %s144
      %p146 = pneg %p36
      %p147 = pneg %p33
      %p148 = pneg %p57
      %p149 = pneg %p54
      %p150 = pneg %p83
      %p151 = pneg %p80
      %p152 = scmp.lt.s32.totalorder %s15, 1
      %s153 = scalar_select %p152, %s15, 1
      %s154 = smul.addr %s153, 2
      %s155 = smul.addr %s154, 8
      %s156 = scalar_lea.vmem %s2, %s155
      %p157 = pneg %p104
      %p158 = pneg %p101
      %p159 = scmp.lt.s32.totalorder %s15, 1
      %s160 = scalar_select %p159, %s15, 1
      %s161 = smul.addr %s160, 6
      %s162 = smul.addr %s161, 8
      %s163 = scalar_lea.vmem %s0, %s162
      %p164 = scmp.lt.s32.totalorder %s15, 1
      %s165 = scalar_select %p164, %s15, 1
      %s166 = smul.addr %s165, 2
      %s167 = smul.addr %s166, 8
      %s168 = scalar_lea.vmem %s2, %s167
      %v169 = vld [vmem:[%s163] sm:$0xf]
      %v170 = vld [vmem:[%s163 + $0x8] sm:$0xf]
      %v171 = vld [vmem:[%s163 + $0x10] sm:$0xf]
      %v172 = vld [vmem:[%s163 + $0x18] sm:$0xf]
      %v173 = vld [vmem:[%s1] sm:$0xff]
      %v174 = vld [vmem:[%s1 + $0x8] sm:$0xff]
      %v175 = vld [vmem:[%s1 + $0x10] sm:$0xff]
      %v176 = vld [vmem:[%s1 + $0x18] sm:$0xff]
      %v177 = vld [vmem:[%s163 + $0x1] sm:$0xf]
      %v178 = vld [vmem:[%s163 + $0x9] sm:$0xf]
      %v179 = vld [vmem:[%s163 + $0x11] sm:$0xf]
      %v180 = vld [vmem:[%s163 + $0x19] sm:$0xf]
      %v181 = vld [vmem:[%s1 + $0x20] sm:$0xff]
      %v182 = vld [vmem:[%s1 + $0x28] sm:$0xff]
      %v183 = vld [vmem:[%s1 + $0x30] sm:$0xff]
      %v184 = vld [vmem:[%s1 + $0x38] sm:$0xff]
      %189 = vst [vmem:[#allocation1] ss:$2 sm:$0xff] %v177
      %s190 = scalar_lea.vmem [#allocation1], 1
      %191 = vst [vmem:[%s190] ss:$2 sm:$0xff] %v178
      %s192 = scalar_lea.vmem [#allocation1], 16
      %193 = vst [vmem:[%s192] ss:$2 sm:$0xff] %v179
      %s194 = scalar_lea.vmem [#allocation1], 17
      %195 = vst [vmem:[%s194] ss:$2 sm:$0xff] %v180
      %v196 = vld.sshfl [vmem:[#allocation1] sm:$0xff pattern:$0x75316420]
      %v197 = vld.sshfl [vmem:[#allocation1 + $0x10] sm:$0xff pattern:$0x75316420]
      %vm198 = vcmask 261120
      %v199 = vsel %vm198, %v196, 0
      %v201 = vsel %vm198, %v197, 0
      %203 = vmatpush.msra.mxu0 0.0
      %204 = vmatpush.msra.mxu0 0.0
      %205 = vmatpush.msra.mxu0 0.0
      %206 = vmatpush.msra.mxu0 0.0
      %207 = vmatpush.msra.mxu0 0.0
      %208 = vmatpush.msra.mxu0 0.0
      %209 = vmatpush.msra.mxu0 0.0
      %210 = vmatpush.msra.mxu0 0.0
      %211 = vmatpush.msra.mxu0 0.0
      %212 = vmatpush.msra.mxu0 0.0
      %213 = vmatpush.msra.mxu0 0.0
      %214 = vmatpush.msra.mxu0 0.0
      %215 = vmatpush.msra.mxu0 %v184
      %216 = vmatpush.msra.mxu0 %v183
      %217 = vmatpush.msra.mxu0 %v182
      %218 = vmatpush.msra.mxu0 %v181
      %219 = vmatmul.f32.gmra.mxu0 %v199
      %v220 = vpop.f32.mrf.mxu0
      %v221 = vadd.f32 0.0, %v220
      %222 = vmatmul.f32.gmra.mxu0 %v201
      %v223 = vpop.f32.mrf.mxu0
      %v224 = vadd.f32 0.0, %v223
      %225 = vdwg.mxu0
      %230 = vst [vmem:[#allocation1] ss:$2 sm:$0xff] %v169
      %s231 = scalar_lea.vmem [#allocation1], 1
      %232 = vst [vmem:[%s231] ss:$2 sm:$0xff] %v170
      %s233 = scalar_lea.vmem [#allocation1], 16
      %234 = vst [vmem:[%s233] ss:$2 sm:$0xff] %v171
      %s235 = scalar_lea.vmem [#allocation1], 17
      %236 = vst [vmem:[%s235] ss:$2 sm:$0xff] %v172
      %v237 = vld.sshfl [vmem:[#allocation1] sm:$0xff pattern:$0x75316420]
      %v238 = vld.sshfl [vmem:[#allocation1 + $0x10] sm:$0xff pattern:$0x75316420]
      %v239 = vsel %vm198, %v237, 0
      %v241 = vsel %vm198, %v238, 0
      %243 = vmatpush.msra.mxu0 0.0
      %244 = vmatpush.msra.mxu0 0.0
      %245 = vmatpush.msra.mxu0 0.0
      %246 = vmatpush.msra.mxu0 0.0
      %247 = vmatpush.msra.mxu0 0.0
      %248 = vmatpush.msra.mxu0 0.0
      %249 = vmatpush.msra.mxu0 0.0
      %250 = vmatpush.msra.mxu0 0.0
      %251 = vmatpush.msra.mxu0 0.0
      %252 = vmatpush.msra.mxu0 0.0
      %253 = vmatpush.msra.mxu0 0.0
      %254 = vmatpush.msra.mxu0 0.0
      %255 = vmatpush.msra.mxu0 %v176
      %256 = vmatpush.msra.mxu0 %v175
      %257 = vmatpush.msra.mxu0 %v174
      %258 = vmatpush.msra.mxu0 %v173
      %259 = vmatmul.f32.gmra.mxu0 %v239
      %v260 = vpop.f32.mrf.mxu0
      %v261 = vadd.f32 %v221, %v260
      %262 = vmatmul.f32.gmra.mxu0 %v241
      %v263 = vpop.f32.mrf.mxu0
      %v264 = vadd.f32 %v224, %v263
      %265 = vdwg.mxu0
      %v266 = vld [vmem:[%s163 + $0x2] sm:$0xf]
      %v267 = vld [vmem:[%s163 + $0xa] sm:$0xf]
      %v268 = vld [vmem:[%s163 + $0x12] sm:$0xf]
      %v269 = vld [vmem:[%s163 + $0x1a] sm:$0xf]
      %v270 = vld [vmem:[%s1 + $0x40] sm:$0xff]
      %v271 = vld [vmem:[%s1 + $0x48] sm:$0xff]
      %v272 = vld [vmem:[%s1 + $0x50] sm:$0xff]
      %v273 = vld [vmem:[%s1 + $0x58] sm:$0xff]
      %278 = vst [vmem:[#allocation1] ss:$2 sm:$0xff] %v266
      %s279 = scalar_lea.vmem [#allocation1], 1
      %280 = vst [vmem:[%s279] ss:$2 sm:$0xff] %v267
      %s281 = scalar_lea.vmem [#allocation1], 16
      %282 = vst [vmem:[%s281] ss:$2 sm:$0xff] %v268
      %s283 = scalar_lea.vmem [#allocation1], 17
      %284 = vst [vmem:[%s283] ss:$2 sm:$0xff] %v269
      %v285 = vld.sshfl [vmem:[#allocation1] sm:$0xff pattern:$0x75316420]
      %v286 = vld.sshfl [vmem:[#allocation1 + $0x10] sm:$0xff pattern:$0x75316420]
      %v287 = vsel %vm198, %v285, 0
      %v289 = vsel %vm198, %v286, 0
      %291 = vmatpush.msra.mxu0 0.0
      %292 = vmatpush.msra.mxu0 0.0
      %293 = vmatpush.msra.mxu0 0.0
      %294 = vmatpush.msra.mxu0 0.0
      %295 = vmatpush.msra.mxu0 0.0
      %296 = vmatpush.msra.mxu0 0.0
      %297 = vmatpush.msra.mxu0 0.0
      %298 = vmatpush.msra.mxu0 0.0
      %299 = vmatpush.msra.mxu0 0.0
      %300 = vmatpush.msra.mxu0 0.0
      %301 = vmatpush.msra.mxu0 0.0
      %302 = vmatpush.msra.mxu0 0.0
      %303 = vmatpush.msra.mxu0 %v273
      %304 = vmatpush.msra.mxu0 %v272
      %305 = vmatpush.msra.mxu0 %v271
      %306 = vmatpush.msra.mxu0 %v270
      %307 = vmatmul.f32.gmra.mxu0 %v287
      %v308 = vpop.f32.mrf.mxu0
      %v309 = vadd.f32 0.0, %v308
      %310 = vmatmul.f32.gmra.mxu0 %v289
      %v311 = vpop.f32.mrf.mxu0
      %v312 = vadd.f32 0.0, %v311
      %313 = vdwg.mxu0
      %v314 = vadd.f32 %v261, %v309
      %v315 = vadd.f32 %v264, %v312
      %s316 = scalar_lea.vmem %s163, 8
      %v317 = vld [vmem:[%s316] sm:$0xf]
      %v318 = vld [vmem:[%s316 + $0x8] sm:$0xf]
      %v319 = vld [vmem:[%s316 + $0x10] sm:$0xf]
      %v320 = vld [vmem:[%s316 + $0x18] sm:$0xf]
      %v321 = vld [vmem:[%s1 + $0x60] sm:$0xff]
      %v322 = vld [vmem:[%s1 + $0x68] sm:$0xff]
      %v323 = vld [vmem:[%s1 + $0x70] sm:$0xff]
      %v324 = vld [vmem:[%s1 + $0x78] sm:$0xff]
      %329 = vst [vmem:[#allocation1] ss:$2 sm:$0xff] %v317
      %s330 = scalar_lea.vmem [#allocation1], 1
      %331 = vst [vmem:[%s330] ss:$2 sm:$0xff] %v318
      %s332 = scalar_lea.vmem [#allocation1], 16
      %333 = vst [vmem:[%s332] ss:$2 sm:$0xff] %v319
      %s334 = scalar_lea.vmem [#allocation1], 17
      %335 = vst [vmem:[%s334] ss:$2 sm:$0xff] %v320
      %v336 = vld.sshfl [vmem:[#allocation1] sm:$0xff pattern:$0x75316420]
      %v337 = vld.sshfl [vmem:[#allocation1 + $0x10] sm:$0xff pattern:$0x75316420]
      %v338 = vsel %vm198, %v336, 0
      %v340 = vsel %vm198, %v337, 0
      %342 = vmatpush.msra.mxu0 0.0
      %343 = vmatpush.msra.mxu0 0.0
      %344 = vmatpush.msra.mxu0 0.0
      %345 = vmatpush.msra.mxu0 0.0
      %346 = vmatpush.msra.mxu0 0.0
      %347 = vmatpush.msra.mxu0 0.0
      %348 = vmatpush.msra.mxu0 0.0
      %349 = vmatpush.msra.mxu0 0.0
      %350 = vmatpush.msra.mxu0 0.0
      %351 = vmatpush.msra.mxu0 0.0
      %352 = vmatpush.msra.mxu0 0.0
      %353 = vmatpush.msra.mxu0 0.0
      %354 = vmatpush.msra.mxu0 %v324
      %355 = vmatpush.msra.mxu0 %v323
      %356 = vmatpush.msra.mxu0 %v322
      %357 = vmatpush.msra.mxu0 %v321
      %358 = vmatmul.f32.gmra.mxu0 %v338
      %v359 = vpop.f32.mrf.mxu0
      %v360 = vadd.f32 0.0, %v359
      %361 = vmatmul.f32.gmra.mxu0 %v340
      %v362 = vpop.f32.mrf.mxu0
      %v363 = vadd.f32 0.0, %v362
      %364 = vdwg.mxu0
      %v365 = vadd.f32 %v314, %v360
      %v366 = vadd.f32 %v315, %v363
      %v367 = vld [vmem:[%s316 + $0x1] sm:$0xf]
      %v368 = vld [vmem:[%s316 + $0x9] sm:$0xf]
      %v369 = vld [vmem:[%s316 + $0x11] sm:$0xf]
      %v370 = vld [vmem:[%s316 + $0x19] sm:$0xf]
      %v371 = vld [vmem:[%s1 + $0x80] sm:$0xff]
      %v372 = vld [vmem:[%s1 + $0x88] sm:$0xff]
      %v373 = vld [vmem:[%s1 + $0x90] sm:$0xff]
      %v374 = vld [vmem:[%s1 + $0x98] sm:$0xff]
      %379 = vst [vmem:[#allocation1] ss:$2 sm:$0xff] %v367
      %s380 = scalar_lea.vmem [#allocation1], 1
      %381 = vst [vmem:[%s380] ss:$2 sm:$0xff] %v368
      %s382 = scalar_lea.vmem [#allocation1], 16
      %383 = vst [vmem:[%s382] ss:$2 sm:$0xff] %v369
      %s384 = scalar_lea.vmem [#allocation1], 17
      %385 = vst [vmem:[%s384] ss:$2 sm:$0xff] %v370
      %v386 = vld.sshfl [vmem:[#allocation1] sm:$0xff pattern:$0x75316420]
      %v387 = vld.sshfl [vmem:[#allocation1 + $0x10] sm:$0xff pattern:$0x75316420]
      %v388 = vsel %vm198, %v386, 0
      %v390 = vsel %vm198, %v387, 0
      %392 = vmatpush.msra.mxu0 0.0
      %393 = vmatpush.msra.mxu0 0.0
      %394 = vmatpush.msra.mxu0 0.0
      %395 = vmatpush.msra.mxu0 0.0
      %396 = vmatpush.msra.mxu0 0.0
      %397 = vmatpush.msra.mxu0 0.0
      %398 = vmatpush.msra.mxu0 0.0
      %399 = vmatpush.msra.mxu0 0.0
      %400 = vmatpush.msra.mxu0 0.0
      %401 = vmatpush.msra.mxu0 0.0
      %402 = vmatpush.msra.mxu0 0.0
      %403 = vmatpush.msra.mxu0 0.0
      %404 = vmatpush.msra.mxu0 %v374
      %405 = vmatpush.msra.mxu0 %v373
      %406 = vmatpush.msra.mxu0 %v372
      %407 = vmatpush.msra.mxu0 %v371
      %408 = vmatmul.f32.gmra.mxu0 %v388
      %v409 = vpop.f32.mrf.mxu0
      %v410 = vadd.f32 0.0, %v409
      %411 = vmatmul.f32.gmra.mxu0 %v390
      %v412 = vpop.f32.mrf.mxu0
      %v413 = vadd.f32 0.0, %v412
      %414 = vdwg.mxu0
      %v415 = vadd.f32 %v365, %v410
      %v416 = vadd.f32 %v366, %v413
      %v417 = vld [vmem:[%s316 + $0x2] sm:$0xf]
      %v418 = vld [vmem:[%s316 + $0xa] sm:$0xf]
      %v419 = vld [vmem:[%s316 + $0x12] sm:$0xf]
      %v420 = vld [vmem:[%s316 + $0x1a] sm:$0xf]
      %v421 = vld [vmem:[%s1 + $0xa0] sm:$0xff]
      %v422 = vld [vmem:[%s1 + $0xa8] sm:$0xff]
      %v423 = vld [vmem:[%s1 + $0xb0] sm:$0xff]
      %v424 = vld [vmem:[%s1 + $0xb8] sm:$0xff]
      %429 = vst [vmem:[#allocation1] ss:$2 sm:$0xff] %v417
      %s430 = scalar_lea.vmem [#allocation1], 1
      %431 = vst [vmem:[%s430] ss:$2 sm:$0xff] %v418
      %s432 = scalar_lea.vmem [#allocation1], 16
      %433 = vst [vmem:[%s432] ss:$2 sm:$0xff] %v419
      %s434 = scalar_lea.vmem [#allocation1], 17
      %435 = vst [vmem:[%s434] ss:$2 sm:$0xff] %v420
      %v436 = vld.sshfl [vmem:[#allocation1] sm:$0xff pattern:$0x75316420]
      %v437 = vld.sshfl [vmem:[#allocation1 + $0x10] sm:$0xff pattern:$0x75316420]
      %v438 = vsel %vm198, %v436, 0
      %v440 = vsel %vm198, %v437, 0
      %442 = vmatpush.msra.mxu0 0.0
      %443 = vmatpush.msra.mxu0 0.0
      %444 = vmatpush.msra.mxu0 0.0
      %445 = vmatpush.msra.mxu0 0.0
      %446 = vmatpush.msra.mxu0 0.0
      %447 = vmatpush.msra.mxu0 0.0
      %448 = vmatpush.msra.mxu0 0.0
      %449 = vmatpush.msra.mxu0 0.0
      %450 = vmatpush.msra.mxu0 0.0
      %451 = vmatpush.msra.mxu0 0.0
      %452 = vmatpush.msra.mxu0 0.0
      %453 = vmatpush.msra.mxu0 0.0
      %454 = vmatpush.msra.mxu0 %v424
      %455 = vmatpush.msra.mxu0 %v423
      %456 = vmatpush.msra.mxu0 %v422
      %457 = vmatpush.msra.mxu0 %v421
      %458 = vmatmul.f32.gmra.mxu0 %v438
      %v459 = vpop.f32.mrf.mxu0
      %v460 = vadd.f32 0.0, %v459
      %461 = vmatmul.f32.gmra.mxu0 %v440
      %v462 = vpop.f32.mrf.mxu0
      %v463 = vadd.f32 0.0, %v462
      %464 = vdwg.mxu0
      %v465 = vadd.f32 %v415, %v460
      %v466 = vadd.f32 %v416, %v463
      %s467 = scalar_lea.vmem %s163, 16
      %v468 = vld [vmem:[%s467] sm:$0xf]
      %v469 = vld [vmem:[%s467 + $0x8] sm:$0xf]
      %v470 = vld [vmem:[%s467 + $0x10] sm:$0xf]
      %v471 = vld [vmem:[%s467 + $0x18] sm:$0xf]
      %v472 = vld [vmem:[%s1 + $0xc0] sm:$0xff]
      %v473 = vld [vmem:[%s1 + $0xc8] sm:$0xff]
      %v474 = vld [vmem:[%s1 + $0xd0] sm:$0xff]
      %v475 = vld [vmem:[%s1 + $0xd8] sm:$0xff]
      %480 = vst [vmem:[#allocation1] ss:$2 sm:$0xff] %v468
      %s481 = scalar_lea.vmem [#allocation1], 1
      %482 = vst [vmem:[%s481] ss:$2 sm:$0xff] %v469
      %s483 = scalar_lea.vmem [#allocation1], 16
      %484 = vst [vmem:[%s483] ss:$2 sm:$0xff] %v470
      %s485 = scalar_lea.vmem [#allocation1], 17
      %486 = vst [vmem:[%s485] ss:$2 sm:$0xff] %v471
      %v487 = vld.sshfl [vmem:[#allocation1] sm:$0xff pattern:$0x75316420]
      %v488 = vld.sshfl [vmem:[#allocation1 + $0x10] sm:$0xff pattern:$0x75316420]
      %v489 = vsel %vm198, %v487, 0
      %v491 = vsel %vm198, %v488, 0
      %493 = vmatpush.msra.mxu0 0.0
      %494 = vmatpush.msra.mxu0 0.0
      %495 = vmatpush.msra.mxu0 0.0
      %496 = vmatpush.msra.mxu0 0.0
      %497 = vmatpush.msra.mxu0 0.0
      %498 = vmatpush.msra.mxu0 0.0
      %499 = vmatpush.msra.mxu0 0.0
      %500 = vmatpush.msra.mxu0 0.0
      %501 = vmatpush.msra.mxu0 0.0
      %502 = vmatpush.msra.mxu0 0.0
      %503 = vmatpush.msra.mxu0 0.0
      %504 = vmatpush.msra.mxu0 0.0
      %505 = vmatpush.msra.mxu0 %v475
      %506 = vmatpush.msra.mxu0 %v474
      %507 = vmatpush.msra.mxu0 %v473
      %508 = vmatpush.msra.mxu0 %v472
      %509 = vmatmul.f32.gmra.mxu0 %v489
      %v510 = vpop.f32.mrf.mxu0
      %v511 = vadd.f32 0.0, %v510
      %512 = vmatmul.f32.gmra.mxu0 %v491
      %v513 = vpop.f32.mrf.mxu0
      %v514 = vadd.f32 0.0, %v513
      %515 = vdwg.mxu0
      %v516 = vadd.f32 %v465, %v511
      %v517 = vadd.f32 %v466, %v514
      %v518 = vld [vmem:[%s467 + $0x1] sm:$0xf]
      %v519 = vld [vmem:[%s467 + $0x9] sm:$0xf]
      %v520 = vld [vmem:[%s467 + $0x11] sm:$0xf]
      %v521 = vld [vmem:[%s467 + $0x19] sm:$0xf]
      %v522 = vld [vmem:[%s1 + $0xe0] sm:$0xff]
      %v523 = vld [vmem:[%s1 + $0xe8] sm:$0xff]
      %v524 = vld [vmem:[%s1 + $0xf0] sm:$0xff]
      %v525 = vld [vmem:[%s1 + $0xf8] sm:$0xff]
      %530 = vst [vmem:[#allocation1] ss:$2 sm:$0xff] %v518
      %s531 = scalar_lea.vmem [#allocation1], 1
      %532 = vst [vmem:[%s531] ss:$2 sm:$0xff] %v519
      %s533 = scalar_lea.vmem [#allocation1], 16
      %534 = vst [vmem:[%s533] ss:$2 sm:$0xff] %v520
      %s535 = scalar_lea.vmem [#allocation1], 17
      %536 = vst [vmem:[%s535] ss:$2 sm:$0xff] %v521
      %v537 = vld.sshfl [vmem:[#allocation1] sm:$0xff pattern:$0x75316420]
      %v538 = vld.sshfl [vmem:[#allocation1 + $0x10] sm:$0xff pattern:$0x75316420]
      %v539 = vsel %vm198, %v537, 0
      %v541 = vsel %vm198, %v538, 0
      %543 = vmatpush.msra.mxu0 0.0
      %544 = vmatpush.msra.mxu0 0.0
      %545 = vmatpush.msra.mxu0 0.0
      %546 = vmatpush.msra.mxu0 0.0
      %547 = vmatpush.msra.mxu0 0.0
      %548 = vmatpush.msra.mxu0 0.0
      %549 = vmatpush.msra.mxu0 0.0
      %550 = vmatpush.msra.mxu0 0.0
      %551 = vmatpush.msra.mxu0 0.0
      %552 = vmatpush.msra.mxu0 0.0
      %553 = vmatpush.msra.mxu0 0.0
      %554 = vmatpush.msra.mxu0 0.0
      %555 = vmatpush.msra.mxu0 %v525
      %556 = vmatpush.msra.mxu0 %v524
      %557 = vmatpush.msra.mxu0 %v523
      %558 = vmatpush.msra.mxu0 %v522
      %559 = vmatmul.f32.gmra.mxu0 %v539
      %v560 = vpop.f32.mrf.mxu0
      %v561 = vadd.f32 0.0, %v560
      %562 = vmatmul.f32.gmra.mxu0 %v541
      %v563 = vpop.f32.mrf.mxu0
      %v564 = vadd.f32 0.0, %v563
      %565 = vdwg.mxu0
      %v566 = vadd.f32 %v516, %v561
      %v567 = vadd.f32 %v517, %v564
      %v568 = vld [vmem:[%s467 + $0x2] sm:$0xf]
      %v569 = vld [vmem:[%s467 + $0xa] sm:$0xf]
      %v570 = vld [vmem:[%s467 + $0x12] sm:$0xf]
      %v571 = vld [vmem:[%s467 + $0x1a] sm:$0xf]
      %v572 = vld [vmem:[%s1 + $0x100] sm:$0xff]
      %v573 = vld [vmem:[%s1 + $0x108] sm:$0xff]
      %v574 = vld [vmem:[%s1 + $0x110] sm:$0xff]
      %v575 = vld [vmem:[%s1 + $0x118] sm:$0xff]
      %580 = vst [vmem:[#allocation1] ss:$2 sm:$0xff] %v568
      %s581 = scalar_lea.vmem [#allocation1], 1
      %582 = vst [vmem:[%s581] ss:$2 sm:$0xff] %v569
      %s583 = scalar_lea.vmem [#allocation1], 16
      %584 = vst [vmem:[%s583] ss:$2 sm:$0xff] %v570
      %s585 = scalar_lea.vmem [#allocation1], 17
      %586 = vst [vmem:[%s585] ss:$2 sm:$0xff] %v571
      %v587 = vld.sshfl [vmem:[#allocation1] sm:$0xff pattern:$0x75316420]
      %v588 = vld.sshfl [vmem:[#allocation1 + $0x10] sm:$0xff pattern:$0x75316420]
      %v589 = vsel %vm198, %v587, 0
      %v591 = vsel %vm198, %v588, 0
      %593 = vmatpush.msra.mxu0 0.0
      %594 = vmatpush.msra.mxu0 0.0
      %595 = vmatpush.msra.mxu0 0.0
      %596 = vmatpush.msra.mxu0 0.0
      %597 = vmatpush.msra.mxu0 0.0
      %598 = vmatpush.msra.mxu0 0.0
      %599 = vmatpush.msra.mxu0 0.0
      %600 = vmatpush.msra.mxu0 0.0
      %601 = vmatpush.msra.mxu0 0.0
      %602 = vmatpush.msra.mxu0 0.0
      %603 = vmatpush.msra.mxu0 0.0
      %604 = vmatpush.msra.mxu0 0.0
      %605 = vmatpush.msra.mxu0 %v575
      %606 = vmatpush.msra.mxu0 %v574
      %607 = vmatpush.msra.mxu0 %v573
      %608 = vmatpush.msra.mxu0 %v572
      %609 = vmatmul.f32.gmra.mxu0 %v589
      %v610 = vpop.f32.mrf.mxu0
      %v611 = vadd.f32 0.0, %v610
      %612 = vmatmul.f32.gmra.mxu0 %v591
      %v613 = vpop.f32.mrf.mxu0
      %v614 = vadd.f32 0.0, %v613
      %615 = vdwg.mxu0
      %v616 = vadd.f32 %v566, %v611
      %v617 = vadd.f32 %v567, %v614
      %618 = vst.msk [vmem:[%s168] sm:$0xff] %vm198, %v616
      %619 = vst.msk [vmem:[%s168 + $0x8] sm:$0xff] %vm198, %v617
      %v620 = vsel %vm198, %v616, 0.0
      %v621 = vsel %vm198, %v617, 0.0
      %v622 = vadd.f32 %v620, %v621
      %v623 = vrot.slane %v622, 4
      %v624 = vadd.f32 %v622, %v623
      %v625 = vrot.slane %v624, 2
      %v626 = vadd.f32 %v624, %v625
      %v627 = vrot.slane %v626, 1
      %v628 = vadd.f32 %v626, %v627
      %v629 = vmul.f32 %v616, %v616
      %v630 = vmul.f32 %v617, %v617
      %v631 = vsel %vm198, %v629, 0.0
      %v632 = vsel %vm198, %v630, 0.0
      %v633 = vadd.f32 %v631, %v632
      %v634 = vrot.slane %v633, 4
      %v635 = vadd.f32 %v633, %v634
      %v636 = vrot.slane %v635, 2
      %v637 = vadd.f32 %v635, %v636
      %v638 = vrot.slane %v637, 1
      %v639 = vadd.f32 %v637, %v638
      %p640 = scmp.eq.s32.totalorder %s15, 0
      // Predicated region
      $region29: #{baseline_train_forward.13} parent=27 // pred_check
        %p641 = pneg %p640
      $region30: #{baseline_train_forward.13} parent=27 // pred_check_branch
        %643 = sbr.rel (%p641) target = $region32
      $region31: #{baseline_train_forward.13} parent=27 // pred_region
        %vm644 = vcmask 254976
        %645 = vst.msk [vmem:[%s3] sm:$0x3] %vm644, 0.0
      $region32: #{baseline_train_forward.13} parent=27 // pred_fallthru
        _
      %v646 = vld [vmem:[%s3] sm:$0x3]
      %vm647 = vcmask 1040384
      %v648 = vsel %vm647, %v628, %v639
      %v649 = vadd.f32 %v646, %v648
      %vm650 = vcmask 254976
      %651 = vst.msk [vmem:[%s3] sm:$0x3] %vm650, %v649
      %p652 = scmp.lt.s32.totalorder %s15, 1
      %s653 = scalar_select %p652, %s15, 1
      %s654 = smul.addr %s653, 2
      %s655 = smul.addr %s654, 8
      %s656 = scalar_lea.vmem %s2, %s655
      // Predicated region
      $region33: #{baseline_train_forward.13} parent=27 // pred_check
        %p657 = pneg %p80
      $region34: #{baseline_train_forward.13} parent=27 // pred_check_branch
        %659 = sbr.rel (%p657) target = $region36
      $region35: #{baseline_train_forward.13} parent=27 // pred_region
        _
      $region36: #{baseline_train_forward.13} parent=27 // pred_fallthru
        _
      // Predicated region
      $region37: #{baseline_train_forward.13} parent=27 // pred_check
        %p660 = pneg %p101
      $region38: #{baseline_train_forward.13} parent=27 // pred_check_branch
        %662 = sbr.rel (%p660) target = $region40
      $region39: #{baseline_train_forward.13} parent=27 // pred_region
        _
      $region40: #{baseline_train_forward.13} parent=27 // pred_fallthru
        _
      // Predicated region
      $region41: #{baseline_train_forward.13} parent=27 // pred_check
        %p663 = pneg %p101
      $region42: #{baseline_train_forward.13} parent=27 // pred_check_branch
        %665 = sbr.rel (%p663) target = $region44
      $region43: #{baseline_train_forward.13} parent=27 // pred_region
        _
      $region44: #{baseline_train_forward.13} parent=27 // pred_fallthru
        _
    $region28: #{baseline_train_forward.13} parent=5 // pred_fallthru
      _
    %p666 = scmp.le.s32.totalorder 2, %s10
    // Predicated region
    $region45: #{baseline_train_forward.13} parent=5 // pred_check
      %p667 = pneg %p666
    $region46: #{baseline_train_forward.13} parent=5 // pred_check_branch
      %669 = sbr.rel (%p667) target = $region48
    $region47: #{baseline_train_forward.13} parent=5 // pred_region
      %s670 = ssub.s32 %s10, 2
      // Predicated region
      $region49: #{baseline_train_forward.13} parent=47 // pred_check
        %p671 = pneg %p86
      $region50: #{baseline_train_forward.13} parent=47 // pred_check_branch
        %673 = sbr.rel (%p671) target = $region52
      $region51: #{baseline_train_forward.13} parent=47 // pred_region
        %p674 = scmp.lt.s32.totalorder %s16, 1
        %s675 = scalar_select %p674, %s16, 1
        %s676 = smul.addr %s675, 2
        %s677 = smul.addr %s676, 8
        %s678 = scalar_lea.vmem %s2, %s677
      $region52: #{baseline_train_forward.13} parent=47 // pred_fallthru
        _
    $region48: #{baseline_train_forward.13} parent=5 // pred_fallthru
      _
  $region6: #{baseline_train_forward.13} parent=0 // loop_footer
    %s14 = sadd.s32 1, %s10
  $region7: #{baseline_train_forward.13} parent=0 // loop_footer_branch
    %9 = sbr.rel target = $region3
  $region8: #{baseline_train_forward.13} parent=0 // loop_exit
    _

// kernel: baseline_train_forward.15
$region0: #{baseline_train_forward.15}
  #allocation0 [shape = 'u32[]', space=smem, size = 0x4, offset = 0x4, fixed_abs, tag = 'smem constant byte address 0x4 - core index']
  #allocation1 [shape = 'u32[72,128]{1,0:T(1,128)}', space=vmem, size = 0x9000, scoped, tag = 'internal scratch']
  %s0 = inlined_call_operand.vmem [shape: f32[2,4,4,32], index: 0, kind: input, shape index: {}]
  %s1 = inlined_call_operand.vmem [shape: f32[288,32], index: 1, kind: input, shape index: {}]
  %s2 = inlined_call_operand.vmem [shape: f32[2,4,32], index: 2, kind: output, shape index: {0}]
  %s3 = inlined_call_operand.vmem [shape: f32[2,32], index: 3, kind: output, shape index: {1}]
  %4 = xla_tuple %s2, %s3
  %s5 = sld [smem:[#allocation0]]
  $region53: #{baseline_train_forward.15} parent=0
    _
  %s7 = ssub.s32 1, %s5
  %s8 = scalar_select 0, %s7, %s5
  loop: start=0, step=1, limit=4
  $region2: #{baseline_train_forward.15} parent=0 // loop_pre_header
    _
  $region3: #{baseline_train_forward.15} parent=0 // loop_header
    %s10 = sphi 0, %s14
    %p11 = scmp.ge.s32.totalorder %s10, 4
    %s20 = sphi 0, %s22
    %s23 = sphi 0, %s20
    %s24 = sphi 0, %s23
    %s40 = sphi 0, %s24
    %s44 = sphi 0, %s44
    %s46 = sphi 0, %s44
    %s47 = sphi 0, %s46
    %s61 = sphi 0, %s47
    %s67 = sphi 0, %s69
    %s70 = sphi 0, %s67
    %s71 = sphi 0, %s70
    %s87 = sphi 0, %s71
    %s91 = sphi 0, %s91
    %s93 = sphi 0, %s91
    %s94 = sphi 0, %s93
    %s108 = sphi 0, %s94
  $region4: #{baseline_train_forward.15} parent=0 // loop_header_branch
    %13 = sbr.rel (%p11) target = $region8
  $region5: #{baseline_train_forward.15} parent=0 // loop_body
    %s15 = ssub.s32 %s10, 1
    %s16 = ssub.s32 %s10, 2
    %s17 = sadd.s32 %s10, 1
    %s18 = ssub.s32 %s10, %s17
    %p19 = scmp.eq.s32.totalorder %s18, 0
    %s21 = sadd.s32 %s20, 1
    %s22 = scalar_select %p19, %s20, %s21
    %p25 = pneg %p19
    %p26 = scmp.eq.s32.totalorder %s10, 1
    %p27 = por %p25, %p26
    %p28 = scmp.ne.s32.totalorder %s20, %s23
    %p29 = scmp.eq.s32.totalorder %s10, 0
    %p30 = por %p28, %p29
    %p31 = scmp.ne.s32.totalorder %s20, %s23
    %p32 = scmp.eq.s32.totalorder %s15, 1
    %p33 = por %p31, %p32
    %p34 = scmp.ne.s32.totalorder %s23, %s24
    %p35 = scmp.eq.s32.totalorder %s15, 0
    %p36 = por %p34, %p35
    %p37 = scmp.ne.s32.totalorder %s23, %s24
    %p38 = scmp.eq.s32.totalorder %s16, 1
    %p39 = por %p37, %p38
    %p41 = scmp.ne.s32.totalorder %s24, %s40
    %p42 = scmp.eq.s32.totalorder %s16, 0
    %p43 = por %p41, %p42
    %s45 = sadd.s32 %s44, 1
    %p48 = scmp.eq.s32.totalorder %s10, 1
    %p49 = scmp.ne.s32.totalorder %s44, %s46
    %p50 = scmp.eq.s32.totalorder %s10, 0
    %p51 = por %p49, %p50
    %p52 = scmp.ne.s32.totalorder %s44, %s46
    %p53 = scmp.eq.s32.totalorder %s15, 1
    %p54 = por %p52, %p53
    %p55 = scmp.ne.s32.totalorder %s46, %s47
    %p56 = scmp.eq.s32.totalorder %s15, 0
    %p57 = por %p55, %p56
    %p58 = scmp.ne.s32.totalorder %s46, %s47
    %p59 = scmp.eq.s32.totalorder %s16, 1
    %p60 = por %p58, %p59
    %p62 = scmp.ne.s32.totalorder %s47, %s61
    %p63 = scmp.eq.s32.totalorder %s16, 0
    %p64 = por %p62, %p63
    %s65 = ssub.s32 %s10, %s17
    %p66 = scmp.eq.s32.totalorder %s65, 0
    %s68 = sadd.s32 %s67, 1
    %s69 = scalar_select %p66, %s67, %s68
    %p72 = pneg %p66
    %p73 = scmp.eq.s32.totalorder %s10, 1
    %p74 = por %p72, %p73
    %p75 = scmp.ne.s32.totalorder %s67, %s70
    %p76 = scmp.eq.s32.totalorder %s10, 0
    %p77 = por %p75, %p76
    %p78 = scmp.ne.s32.totalorder %s67, %s70
    %p79 = scmp.eq.s32.totalorder %s15, 1
    %p80 = por %p78, %p79
    %p81 = scmp.ne.s32.totalorder %s70, %s71
    %p82 = scmp.eq.s32.totalorder %s15, 0
    %p83 = por %p81, %p82
    %p84 = scmp.ne.s32.totalorder %s70, %s71
    %p85 = scmp.eq.s32.totalorder %s16, 1
    %p86 = por %p84, %p85
    %p88 = scmp.ne.s32.totalorder %s71, %s87
    %p89 = scmp.eq.s32.totalorder %s16, 0
    %p90 = por %p88, %p89
    %s92 = sadd.s32 %s91, 1
    %p95 = scmp.eq.s32.totalorder %s10, 1
    %p96 = scmp.ne.s32.totalorder %s91, %s93
    %p97 = scmp.eq.s32.totalorder %s10, 0
    %p98 = por %p96, %p97
    %p99 = scmp.ne.s32.totalorder %s91, %s93
    %p100 = scmp.eq.s32.totalorder %s15, 1
    %p101 = por %p99, %p100
    %p102 = scmp.ne.s32.totalorder %s93, %s94
    %p103 = scmp.eq.s32.totalorder %s15, 0
    %p104 = por %p102, %p103
    %p105 = scmp.ne.s32.totalorder %s93, %s94
    %p106 = scmp.eq.s32.totalorder %s16, 1
    %p107 = por %p105, %p106
    %p109 = scmp.ne.s32.totalorder %s94, %s108
    %p110 = scmp.eq.s32.totalorder %s16, 0
    %p111 = por %p109, %p110
    %p112 = scmp.le.s32.totalorder 1, %s10
    %p113 = scmp.lt.s32.totalorder %s10, 3
    %p114 = pnand %p112, %p113
    %p115 = pneg %p114
    // Predicated region
    $region9: #{baseline_train_forward.15} parent=5 // pred_check
      _
    $region10: #{baseline_train_forward.15} parent=5 // pred_check_branch
      %117 = sbr.rel (%p114) target = $region12
    $region11: #{baseline_train_forward.15} parent=5 // pred_region
      %s118 = ssub.s32 %s10, 1
      // Predicated region
      $region13: #{baseline_train_forward.15} parent=11 // pred_check
        %p119 = pneg %p57
      $region14: #{baseline_train_forward.15} parent=11 // pred_check_branch
        %121 = sbr.rel (%p119) target = $region16
      $region15: #{baseline_train_forward.15} parent=11 // pred_region
        _
      $region16: #{baseline_train_forward.15} parent=11 // pred_fallthru
        _
    $region12: #{baseline_train_forward.15} parent=5 // pred_fallthru
      _
    %p122 = scmp.lt.s32.totalorder %s10, 2
    // Predicated region
    $region17: #{baseline_train_forward.15} parent=5 // pred_check
      %p123 = pneg %p122
    $region18: #{baseline_train_forward.15} parent=5 // pred_check_branch
      %125 = sbr.rel (%p123) target = $region20
    $region19: #{baseline_train_forward.15} parent=5 // pred_region
      // Predicated region
      $region21: #{baseline_train_forward.15} parent=19 // pred_check
        %p126 = pneg %p30
      $region22: #{baseline_train_forward.15} parent=19 // pred_check_branch
        %128 = sbr.rel (%p126) target = $region24
      $region23: #{baseline_train_forward.15} parent=19 // pred_region
        %p129 = scmp.lt.s32.totalorder %s10, 1
        %s130 = scalar_select %p129, %s10, 1
        %s131 = smul.addr %s130, 4
        %s132 = smul.addr %s131, 4
        %s133 = scalar_lea.vmem %s0, %s132
      $region24: #{baseline_train_forward.15} parent=19 // pred_fallthru
        _
    $region20: #{baseline_train_forward.15} parent=5 // pred_fallthru
      _
    %p134 = scmp.le.s32.totalorder 1, %s10
    %p135 = scmp.lt.s32.totalorder %s10, 3
    %p136 = pnand %p134, %p135
    %p137 = pneg %p136
    // Predicated region
    $region25: #{baseline_train_forward.15} parent=5 // pred_check
      _
    $region26: #{baseline_train_forward.15} parent=5 // pred_check_branch
      %139 = sbr.rel (%p136) target = $region28
    $region27: #{baseline_train_forward.15} parent=5 // pred_region
      %s140 = ssub.s32 %s10, 1
      %p141 = scmp.lt.s32.totalorder %s15, 1
      %s142 = scalar_select %p141, %s15, 1
      %s143 = smul.addr %s142, 4
      %s144 = smul.addr %s143, 4
      %s145 = scalar_lea.vmem %s0, %s144
      %p146 = pneg %p36
      %p147 = pneg %p33
      %p148 = pneg %p57
      %p149 = pneg %p54
      %p150 = pneg %p83
      %p151 = pneg %p80
      %p152 = scmp.lt.s32.totalorder %s15, 1
      %s153 = scalar_select %p152, %s15, 1
      %s154 = smul.addr %s153, 4
      %s155 = scalar_lea.vmem %s2, %s154
      %p156 = pneg %p104
      %p157 = pneg %p101
      %p158 = scmp.lt.s32.totalorder %s15, 1
      %s159 = scalar_select %p158, %s15, 1
      %s160 = smul.addr %s159, 4
      %s161 = smul.addr %s160, 4
      %s162 = scalar_lea.vmem %s0, %s161
      %p163 = scmp.lt.s32.totalorder %s15, 1
      %s164 = scalar_select %p163, %s15, 1
      %s165 = smul.addr %s164, 4
      %s166 = scalar_lea.vmem %s2, %s165
      %v167 = vld [vmem:[%s162] sm:$0x3]
      %v168 = vld [vmem:[%s162 + $0x4] sm:$0x3]
      %v169 = vld [vmem:[%s1] sm:$0xff]
      %v170 = vld [vmem:[%s1 + $0x8] sm:$0xff]
      %v171 = vld [vmem:[%s1 + $0x10] sm:$0xff]
      %v172 = vld [vmem:[%s1 + $0x18] sm:$0xff]
      %v173 = vld [vmem:[%s162 + $0x1] sm:$0x3]
      %v174 = vld [vmem:[%s162 + $0x5] sm:$0x3]
      %v175 = vld [vmem:[%s1 + $0x20] sm:$0xff]
      %v176 = vld [vmem:[%s1 + $0x28] sm:$0xff]
      %v177 = vld [vmem:[%s1 + $0x30] sm:$0xff]
      %v178 = vld [vmem:[%s1 + $0x38] sm:$0xff]
      %181 = vst [vmem:[#allocation1] ss:$4 sm:$0xff] %v173
      %s182 = scalar_lea.vmem [#allocation1], 1
      %183 = vst [vmem:[%s182] ss:$4 sm:$0xff] %v174
      %v184 = vld.sshfl [vmem:[#allocation1] sm:$0xff pattern:$0x73625140]
      %vm185 = vcmask 261120
      %v186 = vsel %vm185, %v184, 0
      %188 = vmatpush.msra.mxu0 0.0
      %189 = vmatpush.msra.mxu0 0.0
      %190 = vmatpush.msra.mxu0 0.0
      %191 = vmatpush.msra.mxu0 0.0
      %192 = vmatpush.msra.mxu0 0.0
      %193 = vmatpush.msra.mxu0 0.0
      %194 = vmatpush.msra.mxu0 0.0
      %195 = vmatpush.msra.mxu0 0.0
      %196 = vmatpush.msra.mxu0 0.0
      %197 = vmatpush.msra.mxu0 0.0
      %198 = vmatpush.msra.mxu0 0.0
      %199 = vmatpush.msra.mxu0 0.0
      %200 = vmatpush.msra.mxu0 %v178
      %201 = vmatpush.msra.mxu0 %v177
      %202 = vmatpush.msra.mxu0 %v176
      %203 = vmatpush.msra.mxu0 %v175
      %204 = vmatmul.f32.gmra.mxu0 %v186
      %v205 = vpop.f32.mrf.mxu0
      %v206 = vadd.f32 0.0, %v205
      %207 = vdwg.mxu0
      %210 = vst [vmem:[#allocation1] ss:$4 sm:$0xff] %v167
      %s211 = scalar_lea.vmem [#allocation1], 1
      %212 = vst [vmem:[%s211] ss:$4 sm:$0xff] %v168
      %v213 = vld.sshfl [vmem:[#allocation1] sm:$0xff pattern:$0x73625140]
      %v214 = vsel %vm185, %v213, 0
      %216 = vmatpush.msra.mxu0 0.0
      %217 = vmatpush.msra.mxu0 0.0
      %218 = vmatpush.msra.mxu0 0.0
      %219 = vmatpush.msra.mxu0 0.0
      %220 = vmatpush.msra.mxu0 0.0
      %221 = vmatpush.msra.mxu0 0.0
      %222 = vmatpush.msra.mxu0 0.0
      %223 = vmatpush.msra.mxu0 0.0
      %224 = vmatpush.msra.mxu0 0.0
      %225 = vmatpush.msra.mxu0 0.0
      %226 = vmatpush.msra.mxu0 0.0
      %227 = vmatpush.msra.mxu0 0.0
      %228 = vmatpush.msra.mxu0 %v172
      %229 = vmatpush.msra.mxu0 %v171
      %230 = vmatpush.msra.mxu0 %v170
      %231 = vmatpush.msra.mxu0 %v169
      %232 = vmatmul.f32.gmra.mxu0 %v214
      %v233 = vpop.f32.mrf.mxu0
      %v234 = vadd.f32 %v206, %v233
      %235 = vdwg.mxu0
      %v236 = vld [vmem:[%s162 + $0x2] sm:$0x3]
      %v237 = vld [vmem:[%s162 + $0x6] sm:$0x3]
      %v238 = vld [vmem:[%s1 + $0x40] sm:$0xff]
      %v239 = vld [vmem:[%s1 + $0x48] sm:$0xff]
      %v240 = vld [vmem:[%s1 + $0x50] sm:$0xff]
      %v241 = vld [vmem:[%s1 + $0x58] sm:$0xff]
      %244 = vst [vmem:[#allocation1] ss:$4 sm:$0xff] %v236
      %s245 = scalar_lea.vmem [#allocation1], 1
      %246 = vst [vmem:[%s245] ss:$4 sm:$0xff] %v237
      %v247 = vld.sshfl [vmem:[#allocation1] sm:$0xff pattern:$0x73625140]
      %v248 = vsel %vm185, %v247, 0
      %250 = vmatpush.msra.mxu0 0.0
      %251 = vmatpush.msra.mxu0 0.0
      %252 = vmatpush.msra.mxu0 0.0
      %253 = vmatpush.msra.mxu0 0.0
      %254 = vmatpush.msra.mxu0 0.0
      %255 = vmatpush.msra.mxu0 0.0
      %256 = vmatpush.msra.mxu0 0.0
      %257 = vmatpush.msra.mxu0 0.0
      %258 = vmatpush.msra.mxu0 0.0
      %259 = vmatpush.msra.mxu0 0.0
      %260 = vmatpush.msra.mxu0 0.0
      %261 = vmatpush.msra.mxu0 0.0
      %262 = vmatpush.msra.mxu0 %v241
      %263 = vmatpush.msra.mxu0 %v240
      %264 = vmatpush.msra.mxu0 %v239
      %265 = vmatpush.msra.mxu0 %v238
      %266 = vmatmul.f32.gmra.mxu0 %v248
      %v267 = vpop.f32.mrf.mxu0
      %v268 = vadd.f32 0.0, %v267
      %269 = vdwg.mxu0
      %v270 = vadd.f32 %v234, %v268
      %s271 = scalar_lea.vmem %s162, 4
      %v272 = vld [vmem:[%s271] sm:$0x3]
      %v273 = vld [vmem:[%s271 + $0x4] sm:$0x3]
      %v274 = vld [vmem:[%s1 + $0x60] sm:$0xff]
      %v275 = vld [vmem:[%s1 + $0x68] sm:$0xff]
      %v276 = vld [vmem:[%s1 + $0x70] sm:$0xff]
      %v277 = vld [vmem:[%s1 + $0x78] sm:$0xff]
      %280 = vst [vmem:[#allocation1] ss:$4 sm:$0xff] %v272
      %s281 = scalar_lea.vmem [#allocation1], 1
      %282 = vst [vmem:[%s281] ss:$4 sm:$0xff] %v273
      %v283 = vld.sshfl [vmem:[#allocation1] sm:$0xff pattern:$0x73625140]
      %v284 = vsel %vm185, %v283, 0
      %286 = vmatpush.msra.mxu0 0.0
      %287 = vmatpush.msra.mxu0 0.0
      %288 = vmatpush.msra.mxu0 0.0
      %289 = vmatpush.msra.mxu0 0.0
      %290 = vmatpush.msra.mxu0 0.0
      %291 = vmatpush.msra.mxu0 0.0
      %292 = vmatpush.msra.mxu0 0.0
      %293 = vmatpush.msra.mxu0 0.0
      %294 = vmatpush.msra.mxu0 0.0
      %295 = vmatpush.msra.mxu0 0.0
      %296 = vmatpush.msra.mxu0 0.0
      %297 = vmatpush.msra.mxu0 0.0
      %298 = vmatpush.msra.mxu0 %v277
      %299 = vmatpush.msra.mxu0 %v276
      %300 = vmatpush.msra.mxu0 %v275
      %301 = vmatpush.msra.mxu0 %v274
      %302 = vmatmul.f32.gmra.mxu0 %v284
      %v303 = vpop.f32.mrf.mxu0
      %v304 = vadd.f32 0.0, %v303
      %305 = vdwg.mxu0
      %v306 = vadd.f32 %v270, %v304
      %v307 = vld [vmem:[%s271 + $0x1] sm:$0x3]
      %v308 = vld [vmem:[%s271 + $0x5] sm:$0x3]
      %v309 = vld [vmem:[%s1 + $0x80] sm:$0xff]
      %v310 = vld [vmem:[%s1 + $0x88] sm:$0xff]
      %v311 = vld [vmem:[%s1 + $0x90] sm:$0xff]
      %v312 = vld [vmem:[%s1 + $0x98] sm:$0xff]
      %315 = vst [vmem:[#allocation1] ss:$4 sm:$0xff] %v307
      %s316 = scalar_lea.vmem [#allocation1], 1
      %317 = vst [vmem:[%s316] ss:$4 sm:$0xff] %v308
      %v318 = vld.sshfl [vmem:[#allocation1] sm:$0xff pattern:$0x73625140]
      %v319 = vsel %vm185, %v318, 0
      %321 = vmatpush.msra.mxu0 0.0
      %322 = vmatpush.msra.mxu0 0.0
      %323 = vmatpush.msra.mxu0 0.0
      %324 = vmatpush.msra.mxu0 0.0
      %325 = vmatpush.msra.mxu0 0.0
      %326 = vmatpush.msra.mxu0 0.0
      %327 = vmatpush.msra.mxu0 0.0
      %328 = vmatpush.msra.mxu0 0.0
      %329 = vmatpush.msra.mxu0 0.0
      %330 = vmatpush.msra.mxu0 0.0
      %331 = vmatpush.msra.mxu0 0.0
      %332 = vmatpush.msra.mxu0 0.0
      %333 = vmatpush.msra.mxu0 %v312
      %334 = vmatpush.msra.mxu0 %v311
      %335 = vmatpush.msra.mxu0 %v310
      %336 = vmatpush.msra.mxu0 %v309
      %337 = vmatmul.f32.gmra.mxu0 %v319
      %v338 = vpop.f32.mrf.mxu0
      %v339 = vadd.f32 0.0, %v338
      %340 = vdwg.mxu0
      %v341 = vadd.f32 %v306, %v339
      %v342 = vld [vmem:[%s271 + $0x2] sm:$0x3]
      %v343 = vld [vmem:[%s271 + $0x6] sm:$0x3]
      %v344 = vld [vmem:[%s1 + $0xa0] sm:$0xff]
      %v345 = vld [vmem:[%s1 + $0xa8] sm:$0xff]
      %v346 = vld [vmem:[%s1 + $0xb0] sm:$0xff]
      %v347 = vld [vmem:[%s1 + $0xb8] sm:$0xff]
      %350 = vst [vmem:[#allocation1] ss:$4 sm:$0xff] %v342
      %s351 = scalar_lea.vmem [#allocation1], 1
      %352 = vst [vmem:[%s351] ss:$4 sm:$0xff] %v343
      %v353 = vld.sshfl [vmem:[#allocation1] sm:$0xff pattern:$0x73625140]
      %v354 = vsel %vm185, %v353, 0
      %356 = vmatpush.msra.mxu0 0.0
      %357 = vmatpush.msra.mxu0 0.0
      %358 = vmatpush.msra.mxu0 0.0
      %359 = vmatpush.msra.mxu0 0.0
      %360 = vmatpush.msra.mxu0 0.0
      %361 = vmatpush.msra.mxu0 0.0
      %362 = vmatpush.msra.mxu0 0.0
      %363 = vmatpush.msra.mxu0 0.0
      %364 = vmatpush.msra.mxu0 0.0
      %365 = vmatpush.msra.mxu0 0.0
      %366 = vmatpush.msra.mxu0 0.0
      %367 = vmatpush.msra.mxu0 0.0
      %368 = vmatpush.msra.mxu0 %v347
      %369 = vmatpush.msra.mxu0 %v346
      %370 = vmatpush.msra.mxu0 %v345
      %371 = vmatpush.msra.mxu0 %v344
      %372 = vmatmul.f32.gmra.mxu0 %v354
      %v373 = vpop.f32.mrf.mxu0
      %v374 = vadd.f32 0.0, %v373
      %375 = vdwg.mxu0
      %v376 = vadd.f32 %v341, %v374
      %s377 = scalar_lea.vmem %s162, 8
      %v378 = vld [vmem:[%s377] sm:$0x3]
      %v379 = vld [vmem:[%s377 + $0x4] sm:$0x3]
      %v380 = vld [vmem:[%s1 + $0xc0] sm:$0xff]
      %v381 = vld [vmem:[%s1 + $0xc8] sm:$0xff]
      %v382 = vld [vmem:[%s1 + $0xd0] sm:$0xff]
      %v383 = vld [vmem:[%s1 + $0xd8] sm:$0xff]
      %386 = vst [vmem:[#allocation1] ss:$4 sm:$0xff] %v378
      %s387 = scalar_lea.vmem [#allocation1], 1
      %388 = vst [vmem:[%s387] ss:$4 sm:$0xff] %v379
      %v389 = vld.sshfl [vmem:[#allocation1] sm:$0xff pattern:$0x73625140]
      %v390 = vsel %vm185, %v389, 0
      %392 = vmatpush.msra.mxu0 0.0
      %393 = vmatpush.msra.mxu0 0.0
      %394 = vmatpush.msra.mxu0 0.0
      %395 = vmatpush.msra.mxu0 0.0
      %396 = vmatpush.msra.mxu0 0.0
      %397 = vmatpush.msra.mxu0 0.0
      %398 = vmatpush.msra.mxu0 0.0
      %399 = vmatpush.msra.mxu0 0.0
      %400 = vmatpush.msra.mxu0 0.0
      %401 = vmatpush.msra.mxu0 0.0
      %402 = vmatpush.msra.mxu0 0.0
      %403 = vmatpush.msra.mxu0 0.0
      %404 = vmatpush.msra.mxu0 %v383
      %405 = vmatpush.msra.mxu0 %v382
      %406 = vmatpush.msra.mxu0 %v381
      %407 = vmatpush.msra.mxu0 %v380
      %408 = vmatmul.f32.gmra.mxu0 %v390
      %v409 = vpop.f32.mrf.mxu0
      %v410 = vadd.f32 0.0, %v409
      %411 = vdwg.mxu0
      %v412 = vadd.f32 %v376, %v410
      %v413 = vld [vmem:[%s377 + $0x1] sm:$0x3]
      %v414 = vld [vmem:[%s377 + $0x5] sm:$0x3]
      %v415 = vld [vmem:[%s1 + $0xe0] sm:$0xff]
      %v416 = vld [vmem:[%s1 + $0xe8] sm:$0xff]
      %v417 = vld [vmem:[%s1 + $0xf0] sm:$0xff]
      %v418 = vld [vmem:[%s1 + $0xf8] sm:$0xff]
      %421 = vst [vmem:[#allocation1] ss:$4 sm:$0xff] %v413
      %s422 = scalar_lea.vmem [#allocation1], 1
      %423 = vst [vmem:[%s422] ss:$4 sm:$0xff] %v414
      %v424 = vld.sshfl [vmem:[#allocation1] sm:$0xff pattern:$0x73625140]
      %v425 = vsel %vm185, %v424, 0
      %427 = vmatpush.msra.mxu0 0.0
      %428 = vmatpush.msra.mxu0 0.0
      %429 = vmatpush.msra.mxu0 0.0
      %430 = vmatpush.msra.mxu0 0.0
      %431 = vmatpush.msra.mxu0 0.0
      %432 = vmatpush.msra.mxu0 0.0
      %433 = vmatpush.msra.mxu0 0.0
      %434 = vmatpush.msra.mxu0 0.0
      %435 = vmatpush.msra.mxu0 0.0
      %436 = vmatpush.msra.mxu0 0.0
      %437 = vmatpush.msra.mxu0 0.0
      %438 = vmatpush.msra.mxu0 0.0
      %439 = vmatpush.msra.mxu0 %v418
      %440 = vmatpush.msra.mxu0 %v417
      %441 = vmatpush.msra.mxu0 %v416
      %442 = vmatpush.msra.mxu0 %v415
      %443 = vmatmul.f32.gmra.mxu0 %v425
      %v444 = vpop.f32.mrf.mxu0
      %v445 = vadd.f32 0.0, %v444
      %446 = vdwg.mxu0
      %v447 = vadd.f32 %v412, %v445
      %v448 = vld [vmem:[%s377 + $0x2] sm:$0x3]
      %v449 = vld [vmem:[%s377 + $0x6] sm:$0x3]
      %v450 = vld [vmem:[%s1 + $0x100] sm:$0xff]
      %v451 = vld [vmem:[%s1 + $0x108] sm:$0xff]
      %v452 = vld [vmem:[%s1 + $0x110] sm:$0xff]
      %v453 = vld [vmem:[%s1 + $0x118] sm:$0xff]
      %456 = vst [vmem:[#allocation1] ss:$4 sm:$0xff] %v448
      %s457 = scalar_lea.vmem [#allocation1], 1
      %458 = vst [vmem:[%s457] ss:$4 sm:$0xff] %v449
      %v459 = vld.sshfl [vmem:[#allocation1] sm:$0xff pattern:$0x73625140]
      %v460 = vsel %vm185, %v459, 0
      %462 = vmatpush.msra.mxu0 0.0
      %463 = vmatpush.msra.mxu0 0.0
      %464 = vmatpush.msra.mxu0 0.0
      %465 = vmatpush.msra.mxu0 0.0
      %466 = vmatpush.msra.mxu0 0.0
      %467 = vmatpush.msra.mxu0 0.0
      %468 = vmatpush.msra.mxu0 0.0
      %469 = vmatpush.msra.mxu0 0.0
      %470 = vmatpush.msra.mxu0 0.0
      %471 = vmatpush.msra.mxu0 0.0
      %472 = vmatpush.msra.mxu0 0.0
      %473 = vmatpush.msra.mxu0 0.0
      %474 = vmatpush.msra.mxu0 %v453
      %475 = vmatpush.msra.mxu0 %v452
      %476 = vmatpush.msra.mxu0 %v451
      %477 = vmatpush.msra.mxu0 %v450
      %478 = vmatmul.f32.gmra.mxu0 %v460
      %v479 = vpop.f32.mrf.mxu0
      %v480 = vadd.f32 0.0, %v479
      %481 = vdwg.mxu0
      %v482 = vadd.f32 %v447, %v480
      %vm483 = vcmask 257024
      %484 = vst.msk [vmem:[%s166] sm:$0xf] %vm483, %v482
      %v485 = vsel %vm483, %v482, 0.0
      %v486 = vrot.slane %v485, 4
      %v487 = vadd.f32 %v485, %v486
      %v488 = vrot.slane %v487, 2
      %v489 = vadd.f32 %v487, %v488
      %v490 = vrot.slane %v489, 1
      %v491 = vadd.f32 %v489, %v490
      %v492 = vmul.f32 %v482, %v482
      %v493 = vsel %vm483, %v492, 0.0
      %v494 = vrot.slane %v493, 4
      %v495 = vadd.f32 %v493, %v494
      %v496 = vrot.slane %v495, 2
      %v497 = vadd.f32 %v495, %v496
      %v498 = vrot.slane %v497, 1
      %v499 = vadd.f32 %v497, %v498
      %p500 = scmp.eq.s32.totalorder %s15, 0
      // Predicated region
      $region29: #{baseline_train_forward.15} parent=27 // pred_check
        %p501 = pneg %p500
      $region30: #{baseline_train_forward.15} parent=27 // pred_check_branch
        %503 = sbr.rel (%p501) target = $region32
      $region31: #{baseline_train_forward.15} parent=27 // pred_region
        %vm504 = vcmask 254976
        %505 = vst.msk [vmem:[%s3] sm:$0x3] %vm504, 0.0
      $region32: #{baseline_train_forward.15} parent=27 // pred_fallthru
        _
      %v506 = vld [vmem:[%s3] sm:$0x3]
      %vm507 = vcmask 1040384
      %v508 = vsel %vm507, %v491, %v499
      %v509 = vadd.f32 %v506, %v508
      %vm510 = vcmask 254976
      %511 = vst.msk [vmem:[%s3] sm:$0x3] %vm510, %v509
      %p512 = scmp.lt.s32.totalorder %s15, 1
      %s513 = scalar_select %p512, %s15, 1
      %s514 = smul.addr %s513, 4
      %s515 = scalar_lea.vmem %s2, %s514
      // Predicated region
      $region33: #{baseline_train_forward.15} parent=27 // pred_check
        %p516 = pneg %p80
      $region34: #{baseline_train_forward.15} parent=27 // pred_check_branch
        %518 = sbr.rel (%p516) target = $region36
      $region35: #{baseline_train_forward.15} parent=27 // pred_region
        _
      $region36: #{baseline_train_forward.15} parent=27 // pred_fallthru
        _
      // Predicated region
      $region37: #{baseline_train_forward.15} parent=27 // pred_check
        %p519 = pneg %p101
      $region38: #{baseline_train_forward.15} parent=27 // pred_check_branch
        %521 = sbr.rel (%p519) target = $region40
      $region39: #{baseline_train_forward.15} parent=27 // pred_region
        _
      $region40: #{baseline_train_forward.15} parent=27 // pred_fallthru
        _
      // Predicated region
      $region41: #{baseline_train_forward.15} parent=27 // pred_check
        %p522 = pneg %p101
      $region42: #{baseline_train_forward.15} parent=27 // pred_check_branch
        %524 = sbr.rel (%p522) target = $region44
      $region43: #{baseline_train_forward.15} parent=27 // pred_region
        _
      $region44: #{baseline_train_forward.15} parent=27 // pred_fallthru
        _
    $region28: #{baseline_train_forward.15} parent=5 // pred_fallthru
      _
    %p525 = scmp.le.s32.totalorder 2, %s10
    // Predicated region
    $region45: #{baseline_train_forward.15} parent=5 // pred_check
      %p526 = pneg %p525
    $region46: #{baseline_train_forward.15} parent=5 // pred_check_branch
      %528 = sbr.rel (%p526) target = $region48
    $region47: #{baseline_train_forward.15} parent=5 // pred_region
      %s529 = ssub.s32 %s10, 2
      // Predicated region
      $region49: #{baseline_train_forward.15} parent=47 // pred_check
        %p530 = pneg %p86
      $region50: #{baseline_train_forward.15} parent=47 // pred_check_branch
        %532 = sbr.rel (%p530) target = $region52
      $region51: #{baseline_train_forward.15} parent=47 // pred_region
        %p533 = scmp.lt.s32.totalorder %s16, 1
        %s534 = scalar_select %p533, %s16, 1
        %s535 = smul.addr %s534, 4
        %s536 = scalar_lea.vmem %s2, %s535
      $region52: #{baseline_train_forward.15} parent=47 // pred_fallthru
        _
    $region48: #{baseline_train_forward.15} parent=5 // pred_fallthru
      _
  $region6: #{baseline_train_forward.15} parent=0 // loop_footer
    %s14 = sadd.s32 1, %s10
  $region7: #{baseline_train_forward.15} parent=0 // loop_footer_branch
    %9 = sbr.rel target = $region3
  $region8: #{baseline_train_forward.15} parent=0 // loop_exit
    _

// kernel: baseline_train_forward.16
$region0: #{baseline_train_forward.16}
  #allocation0 [shape = 'u32[]', space=smem, size = 0x4, offset = 0x4, fixed_abs, tag = 'smem constant byte address 0x4 - core index']
  #allocation1 [shape = 'u32[72,128]{1,0:T(1,128)}', space=vmem, size = 0x9000, scoped, tag = 'internal scratch']
  %s0 = inlined_call_operand.vmem [shape: f32[2,4,32], index: 0, kind: input, shape index: {}]
  %s1 = inlined_call_operand.vmem [shape: f32[2,32], index: 1, kind: input, shape index: {}]
  %s2 = inlined_call_operand.vmem [shape: f32[1,32], index: 2, kind: input, shape index: {}]
  %s3 = inlined_call_operand.vmem [shape: f32[1,32], index: 3, kind: input, shape index: {}]
  %s4 = inlined_call_operand.vmem [shape: f32[2,1,32], index: 4, kind: output, shape index: {}]
  %s5 = sld [smem:[#allocation0]]
  $region49: #{baseline_train_forward.16} parent=0
    _
  %s7 = ssub.s32 1, %s5
  %s8 = scalar_select 0, %s7, %s5
  loop: start=0, step=1, limit=4
  $region2: #{baseline_train_forward.16} parent=0 // loop_pre_header
    _
  $region3: #{baseline_train_forward.16} parent=0 // loop_header
    %s10 = sphi 0, %s14
    %p11 = scmp.ge.s32.totalorder %s10, 4
    %s20 = sphi 0, %s22
    %s23 = sphi 0, %s20
    %s24 = sphi 0, %s23
    %s40 = sphi 0, %s24
    %s44 = sphi 0, %s44
    %s46 = sphi 0, %s44
    %s47 = sphi 0, %s46
    %s61 = sphi 0, %s47
    %s65 = sphi 0, %s65
    %s67 = sphi 0, %s65
    %s68 = sphi 0, %s67
    %s82 = sphi 0, %s68
    %s86 = sphi 0, %s86
    %s88 = sphi 0, %s86
    %s89 = sphi 0, %s88
    %s103 = sphi 0, %s89
    %s109 = sphi 0, %s111
    %s112 = sphi 0, %s109
    %s113 = sphi 0, %s112
    %s129 = sphi 0, %s113
  $region4: #{baseline_train_forward.16} parent=0 // loop_header_branch
    %13 = sbr.rel (%p11) target = $region8
  $region5: #{baseline_train_forward.16} parent=0 // loop_body
    %s15 = ssub.s32 %s10, 1
    %s16 = ssub.s32 %s10, 2
    %s17 = sadd.s32 %s10, 1
    %s18 = ssub.s32 %s10, %s17
    %p19 = scmp.eq.s32.totalorder %s18, 0
    %s21 = sadd.s32 %s20, 1
    %s22 = scalar_select %p19, %s20, %s21
    %p25 = pneg %p19
    %p26 = scmp.eq.s32.totalorder %s10, 1
    %p27 = por %p25, %p26
    %p28 = scmp.ne.s32.totalorder %s20, %s23
    %p29 = scmp.eq.s32.totalorder %s10, 0
    %p30 = por %p28, %p29
    %p31 = scmp.ne.s32.totalorder %s20, %s23
    %p32 = scmp.eq.s32.totalorder %s15, 1
    %p33 = por %p31, %p32
    %p34 = scmp.ne.s32.totalorder %s23, %s24
    %p35 = scmp.eq.s32.totalorder %s15, 0
    %p36 = por %p34, %p35
    %p37 = scmp.ne.s32.totalorder %s23, %s24
    %p38 = scmp.eq.s32.totalorder %s16, 1
    %p39 = por %p37, %p38
    %p41 = scmp.ne.s32.totalorder %s24, %s40
    %p42 = scmp.eq.s32.totalorder %s16, 0
    %p43 = por %p41, %p42
    %s45 = sadd.s32 %s44, 1
    %p48 = scmp.eq.s32.totalorder %s10, 1
    %p49 = scmp.ne.s32.totalorder %s44, %s46
    %p50 = scmp.eq.s32.totalorder %s10, 0
    %p51 = por %p49, %p50
    %p52 = scmp.ne.s32.totalorder %s44, %s46
    %p53 = scmp.eq.s32.totalorder %s15, 1
    %p54 = por %p52, %p53
    %p55 = scmp.ne.s32.totalorder %s46, %s47
    %p56 = scmp.eq.s32.totalorder %s15, 0
    %p57 = por %p55, %p56
    %p58 = scmp.ne.s32.totalorder %s46, %s47
    %p59 = scmp.eq.s32.totalorder %s16, 1
    %p60 = por %p58, %p59
    %p62 = scmp.ne.s32.totalorder %s47, %s61
    %p63 = scmp.eq.s32.totalorder %s16, 0
    %p64 = por %p62, %p63
    %s66 = sadd.s32 %s65, 1
    %p69 = scmp.eq.s32.totalorder %s10, 1
    %p70 = scmp.ne.s32.totalorder %s65, %s67
    %p71 = scmp.eq.s32.totalorder %s10, 0
    %p72 = por %p70, %p71
    %p73 = scmp.ne.s32.totalorder %s65, %s67
    %p74 = scmp.eq.s32.totalorder %s15, 1
    %p75 = por %p73, %p74
    %p76 = scmp.ne.s32.totalorder %s67, %s68
    %p77 = scmp.eq.s32.totalorder %s15, 0
    %p78 = por %p76, %p77
    %p79 = scmp.ne.s32.totalorder %s67, %s68
    %p80 = scmp.eq.s32.totalorder %s16, 1
    %p81 = por %p79, %p80
    %p83 = scmp.ne.s32.totalorder %s68, %s82
    %p84 = scmp.eq.s32.totalorder %s16, 0
    %p85 = por %p83, %p84
    %s87 = sadd.s32 %s86, 1
    %p90 = scmp.eq.s32.totalorder %s10, 1
    %p91 = scmp.ne.s32.totalorder %s86, %s88
    %p92 = scmp.eq.s32.totalorder %s10, 0
    %p93 = por %p91, %p92
    %p94 = scmp.ne.s32.totalorder %s86, %s88
    %p95 = scmp.eq.s32.totalorder %s15, 1
    %p96 = por %p94, %p95
    %p97 = scmp.ne.s32.totalorder %s88, %s89
    %p98 = scmp.eq.s32.totalorder %s15, 0
    %p99 = por %p97, %p98
    %p100 = scmp.ne.s32.totalorder %s88, %s89
    %p101 = scmp.eq.s32.totalorder %s16, 1
    %p102 = por %p100, %p101
    %p104 = scmp.ne.s32.totalorder %s89, %s103
    %p105 = scmp.eq.s32.totalorder %s16, 0
    %p106 = por %p104, %p105
    %s107 = ssub.s32 %s10, %s17
    %p108 = scmp.eq.s32.totalorder %s107, 0
    %s110 = sadd.s32 %s109, 1
    %s111 = scalar_select %p108, %s109, %s110
    %p114 = pneg %p108
    %p115 = scmp.eq.s32.totalorder %s10, 1
    %p116 = por %p114, %p115
    %p117 = scmp.ne.s32.totalorder %s109, %s112
    %p118 = scmp.eq.s32.totalorder %s10, 0
    %p119 = por %p117, %p118
    %p120 = scmp.ne.s32.totalorder %s109, %s112
    %p121 = scmp.eq.s32.totalorder %s15, 1
    %p122 = por %p120, %p121
    %p123 = scmp.ne.s32.totalorder %s112, %s113
    %p124 = scmp.eq.s32.totalorder %s15, 0
    %p125 = por %p123, %p124
    %p126 = scmp.ne.s32.totalorder %s112, %s113
    %p127 = scmp.eq.s32.totalorder %s16, 1
    %p128 = por %p126, %p127
    %p130 = scmp.ne.s32.totalorder %s113, %s129
    %p131 = scmp.eq.s32.totalorder %s16, 0
    %p132 = por %p130, %p131
    %p133 = scmp.le.s32.totalorder 1, %s10
    %p134 = scmp.lt.s32.totalorder %s10, 3
    %p135 = pnand %p133, %p134
    %p136 = pneg %p135
    // Predicated region
    $region9: #{baseline_train_forward.16} parent=5 // pred_check
      _
    $region10: #{baseline_train_forward.16} parent=5 // pred_check_branch
      %138 = sbr.rel (%p135) target = $region12
    $region11: #{baseline_train_forward.16} parent=5 // pred_region
      %s139 = ssub.s32 %s10, 1
      // Predicated region
      $region13: #{baseline_train_forward.16} parent=11 // pred_check
        %p140 = pneg %p57
      $region14: #{baseline_train_forward.16} parent=11 // pred_check_branch
        %142 = sbr.rel (%p140) target = $region16
      $region15: #{baseline_train_forward.16} parent=11 // pred_region
        _
      $region16: #{baseline_train_forward.16} parent=11 // pred_fallthru
        _
      // Predicated region
      $region17: #{baseline_train_forward.16} parent=11 // pred_check
        %p143 = pneg %p78
      $region18: #{baseline_train_forward.16} parent=11 // pred_check_branch
        %145 = sbr.rel (%p143) target = $region20
      $region19: #{baseline_train_forward.16} parent=11 // pred_region
        _
      $region20: #{baseline_train_forward.16} parent=11 // pred_fallthru
        _
      // Predicated region
      $region21: #{baseline_train_forward.16} parent=11 // pred_check
        %p146 = pneg %p99
      $region22: #{baseline_train_forward.16} parent=11 // pred_check_branch
        %148 = sbr.rel (%p146) target = $region24
      $region23: #{baseline_train_forward.16} parent=11 // pred_region
        _
      $region24: #{baseline_train_forward.16} parent=11 // pred_fallthru
        _
    $region12: #{baseline_train_forward.16} parent=5 // pred_fallthru
      _
    %p149 = scmp.lt.s32.totalorder %s10, 2
    // Predicated region
    $region25: #{baseline_train_forward.16} parent=5 // pred_check
      %p150 = pneg %p149
    $region26: #{baseline_train_forward.16} parent=5 // pred_check_branch
      %152 = sbr.rel (%p150) target = $region28
    $region27: #{baseline_train_forward.16} parent=5 // pred_region
      // Predicated region
      $region29: #{baseline_train_forward.16} parent=27 // pred_check
        %p153 = pneg %p30
      $region30: #{baseline_train_forward.16} parent=27 // pred_check_branch
        %155 = sbr.rel (%p153) target = $region32
      $region31: #{baseline_train_forward.16} parent=27 // pred_region
        %p156 = scmp.lt.s32.totalorder %s10, 1
        %s157 = scalar_select %p156, %s10, 1
        %s158 = smul.addr %s157, 4
        %s159 = scalar_lea.vmem %s0, %s158
      $region32: #{baseline_train_forward.16} parent=27 // pred_fallthru
        _
    $region28: #{baseline_train_forward.16} parent=5 // pred_fallthru
      _
    %p160 = scmp.le.s32.totalorder 1, %s10
    %p161 = scmp.lt.s32.totalorder %s10, 3
    %p162 = pnand %p160, %p161
    %p163 = pneg %p162
    // Predicated region
    $region33: #{baseline_train_forward.16} parent=5 // pred_check
      _
    $region34: #{baseline_train_forward.16} parent=5 // pred_check_branch
      %165 = sbr.rel (%p162) target = $region36
    $region35: #{baseline_train_forward.16} parent=5 // pred_region
      %s166 = ssub.s32 %s10, 1
      %p167 = scmp.lt.s32.totalorder %s15, 1
      %s168 = scalar_select %p167, %s15, 1
      %s169 = smul.addr %s168, 4
      %s170 = scalar_lea.vmem %s0, %s169
      %p171 = pneg %p36
      %p172 = pneg %p33
      %p173 = pneg %p57
      %p174 = pneg %p54
      %p175 = pneg %p78
      %p176 = pneg %p75
      %p177 = pneg %p99
      %p178 = pneg %p96
      %p179 = pneg %p125
      %p180 = pneg %p122
      %p181 = scmp.lt.s32.totalorder %s15, 1
      %s182 = scalar_select %p181, %s15, 1
      %s183 = scalar_lea.vmem %s4, %s182
      %p184 = scmp.lt.s32.totalorder %s15, 1
      %s185 = scalar_select %p184, %s15, 1
      %s186 = smul.addr %s185, 4
      %s187 = scalar_lea.vmem %s0, %s186
      %p188 = scmp.lt.s32.totalorder %s15, 1
      %s189 = scalar_select %p188, %s15, 1
      %s190 = scalar_lea.vmem %s4, %s189
      %v191 = vld [vmem:[%s1] sm:$0x1]
      %v192 = vmul.f32 %v191, 0.125
      %v193 = vld [vmem:[%s1 + $0x1] sm:$0x1]
      %v194 = vmul.f32 %v193, 0.125
      %v195 = vmul.f32 %v192, %v192
      %v196 = vsub.f32 %v194, %v195
      %v197 = vld [vmem:[%s2] sm:$0x1]
      %v198 = vadd.f32 %v196, 1e-05
      %v199 = vrsqrt.pop %v198
      %v200 = vmul.f32 %v199, %v198
      %v201 = vmul.f32 %v200, %v199
      %v202 = vmul.f32 0.5, %v201
      %v203 = vsub.f32 1.5, %v202
      %v204 = vmul.f32 %v199, %v203
      %vm205 = vweird.f32 %v198
      %vm206 = vweird.f32 %v199
      %vm207 = vmor %vm205, %vm206
      %v208 = vsel %vm207, %v199, %v204
      %v209 = vmul.f32 %v197, %v208
      %v210 = vld [vmem:[%s3] sm:$0x1]
      %v211 = vmul.f32 %v192, %v209
      %v212 = vsub.f32 %v210, %v211
      %v213 = vld [vmem:[%s187] sm:$0xf]
      %v215 = vperm.slane %v209, 0
      %v217 = vmul.f32 %v213, %v215
      %v219 = vperm.slane %v212, 0
      %v221 = vadd.f32 %v217, %v219
      %v222 = vmax.f32 %v221, 0.0
      %v223 = vlaneseq
      %v224 = vshrl.u32 %v223, 7
      %v225 = vlaneseq
      %v226 = vand.u32 %v225, 127
      %v227 = vmul.u32 %v224, 2
      %v228 = vmul.u32 %v227, 2
      %vm229 = vcmp.eq.s32.totalorder %v226, %v228
      %v230 = vsel %vm229, 1, 0
      %v231 = vcvt.s32.f32 %v230
      %vm232 = vcmask 31744
      %v234 = vsel %vm232, %v231, 0
      %vm236 = vcmask 1043456
      %v238 = vsel %vm236, %v222, 0
      %240 = vmatpush.msra.mxu0 0.0
      %241 = vmatpush.msra.mxu0 0.0
      %242 = vmatpush.msra.mxu0 0.0
      %243 = vmatpush.msra.mxu0 0.0
      %244 = vmatpush.msra.mxu0 0.0
      %245 = vmatpush.msra.mxu0 0.0
      %246 = vmatpush.msra.mxu0 0.0
      %247 = vmatpush.msra.mxu0 0.0
      %248 = vmatpush.msra.mxu0 0.0
      %249 = vmatpush.msra.mxu0 0.0
      %250 = vmatpush.msra.mxu0 0.0
      %251 = vmatpush.msra.mxu0 0.0
      %252 = vmatpush.msra.mxu0 0.0
      %253 = vmatpush.msra.mxu0 0.0
      %254 = vmatpush.msra.mxu0 0.0
      %255 = vmatpush.msra.mxu0 %v238
      %256 = vmatmul.f32.gmra.mxu0 %v234
      %v257 = vpop.f32.mrf.mxu0
      %v258 = vadd.f32 0.0, %v257
      %259 = vdwg.mxu0
      %v260 = vadd.s32 %v228, 1
      %vm261 = vcmp.eq.s32.totalorder %v226, %v260
      %v262 = vsel %vm261, 1, 0
      %v263 = vcvt.s32.f32 %v262
      %v265 = vsel %vm232, %v263, 0
      %267 = vmatpush.msra.mxu0 0.0
      %268 = vmatpush.msra.mxu0 0.0
      %269 = vmatpush.msra.mxu0 0.0
      %270 = vmatpush.msra.mxu0 0.0
      %271 = vmatpush.msra.mxu0 0.0
      %272 = vmatpush.msra.mxu0 0.0
      %273 = vmatpush.msra.mxu0 0.0
      %274 = vmatpush.msra.mxu0 0.0
      %275 = vmatpush.msra.mxu0 0.0
      %276 = vmatpush.msra.mxu0 0.0
      %277 = vmatpush.msra.mxu0 0.0
      %278 = vmatpush.msra.mxu0 0.0
      %279 = vmatpush.msra.mxu0 0.0
      %280 = vmatpush.msra.mxu0 0.0
      %281 = vmatpush.msra.mxu0 0.0
      %282 = vmatpush.msra.mxu0 %v238
      %283 = vmatmul.f32.gmra.mxu0 %v265
      %v284 = vpop.f32.mrf.mxu0
      %v285 = vadd.f32 0.0, %v284
      %286 = vdwg.mxu0
      %v287 = vmax.f32 %v258, %v285
      %v288 = vadd.s32 %v228, 2
      %vm289 = vcmp.eq.s32.totalorder %v226, %v288
      %v290 = vsel %vm289, 1, 0
      %v291 = vcvt.s32.f32 %v290
      %v293 = vsel %vm232, %v291, 0
      %295 = vmatpush.msra.mxu0 0.0
      %296 = vmatpush.msra.mxu0 0.0
      %297 = vmatpush.msra.mxu0 0.0
      %298 = vmatpush.msra.mxu0 0.0
      %299 = vmatpush.msra.mxu0 0.0
      %300 = vmatpush.msra.mxu0 0.0
      %301 = vmatpush.msra.mxu0 0.0
      %302 = vmatpush.msra.mxu0 0.0
      %303 = vmatpush.msra.mxu0 0.0
      %304 = vmatpush.msra.mxu0 0.0
      %305 = vmatpush.msra.mxu0 0.0
      %306 = vmatpush.msra.mxu0 0.0
      %307 = vmatpush.msra.mxu0 0.0
      %308 = vmatpush.msra.mxu0 0.0
      %309 = vmatpush.msra.mxu0 0.0
      %310 = vmatpush.msra.mxu0 %v238
      %311 = vmatmul.f32.gmra.mxu0 %v293
      %v312 = vpop.f32.mrf.mxu0
      %v313 = vadd.f32 0.0, %v312
      %314 = vdwg.mxu0
      %v315 = vmax.f32 %v287, %v313
      %v316 = vadd.s32 %v288, 1
      %vm317 = vcmp.eq.s32.totalorder %v226, %v316
      %v318 = vsel %vm317, 1, 0
      %v319 = vcvt.s32.f32 %v318
      %v321 = vsel %vm232, %v319, 0
      %323 = vmatpush.msra.mxu0 0.0
      %324 = vmatpush.msra.mxu0 0.0
      %325 = vmatpush.msra.mxu0 0.0
      %326 = vmatpush.msra.mxu0 0.0
      %327 = vmatpush.msra.mxu0 0.0
      %328 = vmatpush.msra.mxu0 0.0
      %329 = vmatpush.msra.mxu0 0.0
      %330 = vmatpush.msra.mxu0 0.0
      %331 = vmatpush.msra.mxu0 0.0
      %332 = vmatpush.msra.mxu0 0.0
      %333 = vmatpush.msra.mxu0 0.0
      %334 = vmatpush.msra.mxu0 0.0
      %335 = vmatpush.msra.mxu0 0.0
      %336 = vmatpush.msra.mxu0 0.0
      %337 = vmatpush.msra.mxu0 0.0
      %338 = vmatpush.msra.mxu0 %v238
      %339 = vmatmul.f32.gmra.mxu0 %v321
      %v340 = vpop.f32.mrf.mxu0
      %v341 = vadd.f32 0.0, %v340
      %342 = vdwg.mxu0
      %v343 = vmax.f32 %v315, %v341
      %vm344 = vcmask 253952
      %345 = vst.msk [vmem:[%s190] sm:$0x1] %vm344, %v343
      %p346 = scmp.lt.s32.totalorder %s15, 1
      %s347 = scalar_select %p346, %s15, 1
      %s348 = scalar_lea.vmem %s4, %s347
      // Predicated region
      $region37: #{baseline_train_forward.16} parent=35 // pred_check
        %p349 = pneg %p122
      $region38: #{baseline_train_forward.16} parent=35 // pred_check_branch
        %351 = sbr.rel (%p349) target = $region40
      $region39: #{baseline_train_forward.16} parent=35 // pred_region
        _
      $region40: #{baseline_train_forward.16} parent=35 // pred_fallthru
        _
    $region36: #{baseline_train_forward.16} parent=5 // pred_fallthru
      _
    %p352 = scmp.le.s32.totalorder 2, %s10
    // Predicated region
    $region41: #{baseline_train_forward.16} parent=5 // pred_check
      %p353 = pneg %p352
    $region42: #{baseline_train_forward.16} parent=5 // pred_check_branch
      %355 = sbr.rel (%p353) target = $region44
    $region43: #{baseline_train_forward.16} parent=5 // pred_region
      %s356 = ssub.s32 %s10, 2
      // Predicated region
      $region45: #{baseline_train_forward.16} parent=43 // pred_check
        %p357 = pneg %p128
      $region46: #{baseline_train_forward.16} parent=43 // pred_check_branch
        %359 = sbr.rel (%p357) target = $region48
      $region47: #{baseline_train_forward.16} parent=43 // pred_region
        %p360 = scmp.lt.s32.totalorder %s16, 1
        %s361 = scalar_select %p360, %s16, 1
        %s362 = scalar_lea.vmem %s4, %s361
      $region48: #{baseline_train_forward.16} parent=43 // pred_fallthru
        _
    $region44: #{baseline_train_forward.16} parent=5 // pred_fallthru
      _
  $region6: #{baseline_train_forward.16} parent=0 // loop_footer
    %s14 = sadd.s32 1, %s10
  $region7: #{baseline_train_forward.16} parent=0 // loop_footer_branch
    %9 = sbr.rel target = $region3
  $region8: #{baseline_train_forward.16} parent=0 // loop_exit
    _

// kernel: baseline_train_forward.17
$region0: #{baseline_train_forward.17}
  #allocation0 [shape = 'u32[]', space=smem, size = 0x4, offset = 0x4, fixed_abs, tag = 'smem constant byte address 0x4 - core index']
  #allocation1 [shape = 'u32[72,128]{1,0:T(1,128)}', space=vmem, size = 0x9000, scoped, tag = 'internal scratch']
  #allocation2 [shape = 'f32[1,1]{1,0:T(1,128)S(1)}', space=vmem, size = 0x200, scoped, tag = 'scoped memory for baseline_train_forward.17']
  %s0 = inlined_call_operand.vmem [shape: f32[2,32], index: 0, kind: input, shape index: {}]
  %s1 = inlined_call_operand.vmem [shape: f32[10,32], index: 1, kind: input, shape index: {}]
  %s2 = inlined_call_operand.vmem [shape: f32[10,1], index: 2, kind: input, shape index: {}]
  %s3 = inlined_call_operand.<no memory space> [shape: f32[1,1], index: 3, kind: input, shape index: {}]
  %s4 = inlined_call_operand.hbm [shape: f32[2,10], index: 4, kind: output, shape index: {}]
  %s5 = sld [smem:[#allocation0]]
  $region26: #{baseline_train_forward.17} parent=0
    _
  %s7 = ssub.s32 1, %s5
  %s8 = scalar_select 0, %s7, %s5
  %v9 = vstv %s3
  %10 = vst [vmem:[#allocation2] sm:$0x1] %v9
  $region1: #{baseline_train_forward.17} parent=0
    #allocation3 [shape = 'u8[1024]{0}', space=vmem, size = 0x400, scoped, tag = 'output window, operand 0, single buffered']
    #allocation4 [shape = 's32[1]{0}', space=sflag, size = 0x4, scoped, tag = 'scoped memory for baseline_train_forward.17']
    %11 = vsyncpa [#allocation4], 0
    // Predicated region
    $region2: #{baseline_train_forward.17} parent=1 // pred_check
      _
    $region3: #{baseline_train_forward.17} parent=1 // pred_check_branch
      %13 = sbr.rel (0) target = $region5
    $region4: #{baseline_train_forward.17} parent=1 // pred_region
      _
    $region5: #{baseline_train_forward.17} parent=1 // pred_fallthru
      _
    // Predicated region
    $region6: #{baseline_train_forward.17} parent=1 // pred_check
      _
    $region7: #{baseline_train_forward.17} parent=1 // pred_check_branch
      %15 = sbr.rel (0) target = $region9
    $region8: #{baseline_train_forward.17} parent=1 // pred_region
      _
    $region9: #{baseline_train_forward.17} parent=1 // pred_fallthru
      _
    // Predicated region
    $region10: #{baseline_train_forward.17} parent=1 // pred_check
      _
    $region11: #{baseline_train_forward.17} parent=1 // pred_check_branch
      %17 = sbr.rel (0) target = $region13
    $region12: #{baseline_train_forward.17} parent=1 // pred_region
      _
    $region13: #{baseline_train_forward.17} parent=1 // pred_fallthru
      _
    // Predicated region
    $region14: #{baseline_train_forward.17} parent=1 // pred_check
      _
    $region15: #{baseline_train_forward.17} parent=1 // pred_check_branch
      %19 = sbr.rel (0) target = $region17
    $region16: #{baseline_train_forward.17} parent=1 // pred_region
      _
    $region17: #{baseline_train_forward.17} parent=1 // pred_fallthru
      _
    %v20 = vld [vmem:[%s0] sm:$0x3]
    %v21 = vmul.f32 %v20, %v20
    %vm22 = vcmask 254976
    %v23 = vsel %vm22, %v21, 0.0
    %24 = vadd.xlane.f32.xlu0 %v23
    %v25 = vpop.xlane.xlu0 %24
    %v26 = vrsqrt.pop %v25
    %v27 = vmul.f32 %v26, %v25
    %v28 = vmul.f32 %v27, %v26
    %v29 = vmul.f32 0.5, %v28
    %v30 = vsub.f32 1.5, %v29
    %v31 = vmul.f32 %v26, %v30
    %v32 = vmul.f32 %v25, %v31
    %vm33 = vcmp.eq.f32.partialorder %v25, inf
    %v34 = vsel %vm33, %v25, %v32
    %vm35 = vcmp.eq.f32.partialorder %v25, 0.0
    %v36 = vand.u32 %v25, 2147483648
    %v37 = vsel %vm35, %v36, %v34
    %v38 = vadd.f32 %v37, 1e-05
    %v39 = vrcp.pop %v38
    %v40 = vmul.f32 %v38, %v39
    %v41 = vsub.f32 1.0, %v40
    %v42 = vmul.f32 %v39, %v41
    %v43 = vadd.f32 %v39, %v42
    %vm44 = vweird.f32 %v38
    %vm45 = vweird.f32 %v39
    %vm46 = vmor %vm44, %vm45
    %v47 = vsel %vm46, %v39, %v43
    %v48 = vand.u32 2147483647, %v38
    %vm49 = vcmp.eq.f32.partialorder %v48, 8.507059e+37
    %v50 = vand.u32 %v38, 2147483648
    %v51 = vor.u32 1.1754944e-38, %v50
    %v52 = vsel %vm49, %v51, %v47
    %v53 = vmul.f32 %v20, %v52
    %v54 = vld [vmem:[%s1] sm:$0xff]
    %v55 = vld [vmem:[%s1 + $0x8] sm:$0x3]
    %v56 = vld [vmem:[%s2] sm:$0xff]
    %v57 = vld [vmem:[%s2 + $0x8] sm:$0x3]
    %v58 = vmul.f32 %v54, %v54
    %v59 = vmul.f32 %v55, %v55
    %vm60 = vcmask 261120
    %v61 = vsel %vm60, %v58, 0.0
    %62 = vadd.xlane.f32.xlu0 %v61
    %v63 = vpop.xlane.xlu0 %62
    %v64 = vsel %vm22, %v59, 0.0
    %65 = vadd.xlane.f32.xlu0 %v64
    %v66 = vpop.xlane.xlu0 %65
    %v67 = vrsqrt.pop %v63
    %v68 = vmul.f32 %v67, %v63
    %v69 = vmul.f32 %v68, %v67
    %v70 = vmul.f32 0.5, %v69
    %v71 = vsub.f32 1.5, %v70
    %v72 = vmul.f32 %v67, %v71
    %v73 = vmul.f32 %v63, %v72
    %vm74 = vcmp.eq.f32.partialorder %v63, inf
    %v75 = vsel %vm74, %v63, %v73
    %vm76 = vcmp.eq.f32.partialorder %v63, 0.0
    %v77 = vand.u32 %v63, 2147483648
    %v78 = vsel %vm76, %v77, %v75
    %v79 = vrsqrt.pop %v66
    %v80 = vmul.f32 %v79, %v66
    %v81 = vmul.f32 %v80, %v79
    %v82 = vmul.f32 0.5, %v81
    %v83 = vsub.f32 1.5, %v82
    %v84 = vmul.f32 %v79, %v83
    %v85 = vmul.f32 %v66, %v84
    %vm86 = vcmp.eq.f32.partialorder %v66, inf
    %v87 = vsel %vm86, %v66, %v85
    %vm88 = vcmp.eq.f32.partialorder %v66, 0.0
    %v89 = vand.u32 %v66, 2147483648
    %v90 = vsel %vm88, %v89, %v87
    %v91 = vrcp.pop %v78
    %v92 = vmul.f32 %v78, %v91
    %v93 = vsub.f32 1.0, %v92
    %v94 = vmul.f32 %v91, %v93
    %v95 = vadd.f32 %v91, %v94
    %vm96 = vweird.f32 %v78
    %vm97 = vweird.f32 %v91
    %vm98 = vmor %vm96, %vm97
    %v99 = vsel %vm98, %v91, %v95
    %v100 = vand.u32 2147483647, %v78
    %vm101 = vcmp.eq.f32.partialorder %v100, 8.507059e+37
    %v102 = vand.u32 %v78, 2147483648
    %v103 = vor.u32 1.1754944e-38, %v102
    %v104 = vsel %vm101, %v103, %v99
    %v105 = vmul.f32 %v56, %v104
    %v106 = vrcp.pop %v90
    %v107 = vmul.f32 %v90, %v106
    %v108 = vsub.f32 1.0, %v107
    %v109 = vmul.f32 %v106, %v108
    %v110 = vadd.f32 %v106, %v109
    %vm111 = vweird.f32 %v90
    %vm112 = vweird.f32 %v106
    %vm113 = vmor %vm111, %vm112
    %v114 = vsel %vm113, %v106, %v110
    %v115 = vand.u32 2147483647, %v90
    %vm116 = vcmp.eq.f32.partialorder %v115, 8.507059e+37
    %v117 = vand.u32 %v90, 2147483648
    %v118 = vor.u32 1.1754944e-38, %v117
    %v119 = vsel %vm116, %v118, %v114
    %v120 = vmul.f32 %v57, %v119
    %122 = vset.pattern.permute.xlu0 0
    %123 = vperm.xlu0 %122, %v105
    %v124 = vpop.permute.xlu0 %123
    %127 = vset.pattern.permute.xlu0 0
    %128 = vperm.xlu0 %127, %v120
    %v129 = vpop.permute.xlu0 %128
    %v131 = vmul.f32 %v54, %v124
    %v132 = vmul.f32 %v55, %v129
    %v134 = vsel %vm60, %v53, 0
    %v137 = vsel %vm60, %v131, 0
    %v140 = vsel %vm60, %v132, 0
    %142 = vmatpush.xpose.msra.mxu0 0.0
    %143 = vmatpush.xpose.msra.mxu0 0.0
    %144 = vmatpush.xpose.msra.mxu0 0.0
    %145 = vmatpush.xpose.msra.mxu0 0.0
    %146 = vmatpush.xpose.msra.mxu0 0.0
    %147 = vmatpush.xpose.msra.mxu0 0.0
    %148 = vmatpush.xpose.msra.mxu0 0.0
    %149 = vmatpush.xpose.msra.mxu0 0.0
    %150 = vmatpush.xpose.msra.mxu0 0.0
    %151 = vmatpush.xpose.msra.mxu0 0.0
    %152 = vmatpush.xpose.msra.mxu0 0.0
    %153 = vmatpush.xpose.msra.mxu0 0.0
    %154 = vmatpush.xpose.msra.mxu0 0.0
    %155 = vmatpush.xpose.msra.mxu0 0.0
    %156 = vmatpush.xpose.msra.mxu0 %v140
    %157 = vmatpush.xpose.msra.mxu0 %v137
    %158 = vmatmul.f32.gmra.mxu0 %v134
    %v159 = vpop.f32.mrf.mxu0
    %v160 = vadd.f32 0.0, %v159
    %161 = vdwg.mxu0
    %v162 = vld [vmem:[#allocation2] sm:$0x1]
    %v164 = vperm.slane %v162, 0
    %165 = vset.pattern.permute.xlu0 0
    %166 = vperm.xlu0 %165, %v164
    %v167 = vpop.permute.xlu0 %166
    %v169 = vmul.f32 %v160, %v167
    %vm170 = vcmask 74752
    %171 = vst.msk [vmem:[#allocation3] sm:$0x3] %vm170, %v169
    // Predicated region
    $region18: #{baseline_train_forward.17} parent=1 // pred_check
      _
    $region19: #{baseline_train_forward.17} parent=1 // pred_check_branch
      %173 = sbr.rel (0) target = $region21
    $region20: #{baseline_train_forward.17} parent=1 // pred_region
      %175 = vsyncadd [#allocation4], 0
      %s177 = sshll.u32 [#allocation3], 4
      %s178 = int_to_ptr.vmem [resolvable:$true] %s177
      %s179 = sshll.u32 %s4, 4
      %s180 = int_to_ptr.hbm [resolvable:$true] %s179
      %182 = dma.vmem_to_hbm [thread:$0]  %s178, 32, %s180, [#allocation4]
    $region21: #{baseline_train_forward.17} parent=1 // pred_fallthru
      _
    // Predicated region
    $region22: #{baseline_train_forward.17} parent=1 // pred_check
      _
    $region23: #{baseline_train_forward.17} parent=1 // pred_check_branch
      %184 = sbr.rel (0) target = $region25
    $region24: #{baseline_train_forward.17} parent=1 // pred_region
      %186 = dma.done [#allocation4], 32
    $region25: #{baseline_train_forward.17} parent=1 // pred_fallthru
      _
    %187 = vsyncpa [#allocation4], 1

</llo_original>
